<compile_context>
chip_gen: v7x
topology: tpu7x:2x2x1
jax: 0.10.0
libtpu: 0.0.40
codegen_flags: <defaults>
</compile_context>

<pallas_src>
import jax
import jax.numpy as jnp
from jax.experimental import pallas as pl
from jax.experimental.pallas import tpu as pltpu

INPUT_SIZE = 63
NUM_CLASSES = 28
C1 = 64                   # conv1 out channels
C2 = 32                   # conv2 out channels
KSZ = 3                   # conv kernel size
L1 = INPUT_SIZE           # 63 positions
LK = 64                   # conv1 contraction padded to 64
P1 = L1 // 2              # 31 positions after MaxPool1d(2)
P2 = P1 // 2              # 15 positions after second MaxPool1d(2)
HID = 128                 # fc1 hidden
NOUT = 128                # fc2 output padded to a full lane tile

NBH = 1 + P1 + 2          # 34 blocks per conv1 half: [zero pad | 31 positions | 2 zero pads]
HA = NBH * C1             # 2176 lanes per half
N1 = 2 * HA               # 4352 conv1 output lanes: [even-position half | odd-position half]

NG = 4                    # conv2 output-position groups
GPOS = 8                  # output positions per group (last group: 7 real + 1 zeroed)
GK = (GPOS + 2) * C1      # 640  K per group (10 input-position blocks x 64 ch)
GN = GPOS * C2            # 256  N per group (8 positions x 32 ch, ordered [4 even | 4 odd])
N2P = NG * (GPOS // 2) * C2   # 512 pooled conv2 lanes (16 blocks; block 15 dead, fc1 rows zero)

BT = 256                  # batch tile (samples per grid step); 128 also fine on v5e


def cnn1d_kernel(x_ref, w1_ref, b1_ref, w2g_ref, b2_ref,
                 fc1w_ref, fc1b_ref, fc2w_ref, fc2b_ref, out_ref):
    x = x_ref[...].astype(jnp.bfloat16)                                   # (BT, 64)

    # conv1 (1->64, k=3, pad=1): one banded bf16 MXU matmul, f32 accumulation.
    y1 = jnp.dot(x, w1_ref[...], preferred_element_type=jnp.float32)     # (BT, 4352)

    # maxpool1(2) + bias + relu fused (per-channel bias & relu commute with max).
    # Result layout == conv2 input with zero-pad blocks built in: block t = pooled position t-1.
    p1 = jnp.maximum(jnp.maximum(y1[:, :HA], y1[:, HA:]) + b1_ref[...], 0.0)   # (BT, 2176)
    p1b = p1.astype(jnp.bfloat16)

    # conv2 (64->32, k=3, pad=1) + maxpool2(2): 4 dense banded group matmuls over
    # 128-lane-aligned windows; each group's 256 output lanes are [4 even pos | 4 odd pos],
    # so the pool is one aligned jnp.maximum per group.
    pools = []
    for g in range(NG):
        yg = jnp.dot(p1b[:, g * GPOS * C1: g * GPOS * C1 + GK], w2g_ref[g],
                     preferred_element_type=jnp.float32)                  # (BT, 256)
        pools.append(jnp.maximum(yg[:, :GN // 2], yg[:, GN // 2:]))       # (BT, 128)
    p2 = jnp.maximum(jnp.concatenate(pools, axis=1) + b2_ref[...], 0.0)   # (BT, 512)

    # fc1 + relu (rows for the dead 16th block are zero, so no slicing needed).
    h = jnp.maximum(
        jnp.dot(p2.astype(jnp.bfloat16), fc1w_ref[...],
                preferred_element_type=jnp.float32) + fc1b_ref[...], 0.0)  # (BT, 128)

    # dropout(p=0.4) is identity in eval mode; fc2 lane-padded to 128 output columns.
    out_ref[...] = jnp.dot(h.astype(jnp.bfloat16), fc2w_ref[...],
                           preferred_element_type=jnp.float32) + fc2b_ref[...]


def _prepare_params(params):
    """Fold convs into banded/grouped bf16 matrices and pre-permute FC weights (wrapper glue)."""
    w1, b1, w2, b2, fw1, fb1, fw2, fb2 = params
    f32, bf16 = jnp.float32, jnp.bfloat16

    # ---- conv1 -> banded matrix (64, 4352) ----
    # Columns: two halves of 34 64-channel blocks; block 0 and blocks 32,33 are zero pads,
    # blocks 1..31 are conv1 positions (even half: 0,2,...,60 ; odd half: 1,3,...,61).
    pad = jnp.array([-1], jnp.int32)
    posA = jnp.concatenate([pad, jnp.arange(0, 62, 2), pad, pad])         # (34,)
    posB = jnp.concatenate([pad, jnp.arange(1, 63, 2), pad, pad])         # (34,)
    pos = jnp.concatenate([posA, posB])                                   # (68,)
    m = jnp.arange(LK)[:, None]                                           # (64, 1) input index
    t1 = m - pos[None, :] + 1                                             # tap index
    valid1 = (pos[None, :] >= 0) & (t1 >= 0) & (t1 < KSZ) & (m < L1)
    w1_kc = w1[:, 0, :].T.astype(f32)                                     # (3, 64) [k, c]
    w1b = jnp.where(valid1[:, :, None], w1_kc[jnp.clip(t1, 0, KSZ - 1)], 0.0)
    w1b = w1b.reshape(LK, N1).astype(bf16)                                # (64, 4352)

    # conv1 bias, added after pooling (zero for pad blocks).
    posP = jnp.concatenate([pad, jnp.arange(P1), pad, pad])               # (34,)
    b1p = jnp.where((posP >= 0)[:, None], b1.astype(f32)[None, :], 0.0).reshape(1, HA)

    # ---- conv2 -> 4 grouped band matrices (4, 640, 256) ----
    # Group g covers output positions 8g..8g+7 (group 3: position-31 columns zeroed); its K
    # window is p1p blocks 8g..8g+9 (input positions 8g-1..8g+8, pad blocks already zero).
    # Within a group the 8 output positions are ordered [0,2,4,6 | 1,3,5,7] so maxpool2 is a
    # single aligned maximum of the two 128-lane halves.
    bi = jnp.arange(GPOS + 2)[:, None]                                    # (10, 1) window block
    jo = jnp.arange(GPOS)[None, :]                                        # (1, 8)  output offset
    k2 = bi - jo                                                          # tap index
    w2_kco = jnp.transpose(w2, (2, 1, 0)).astype(f32)                     # (3, 64, 32) [k, c, o]
    vals2 = w2_kco[jnp.clip(k2, 0, KSZ - 1)]                              # (10, 8, 64, 32)
    perm = jnp.array([0, 2, 4, 6, 1, 3, 5, 7])
    groups = []
    for g in range(NG):
        j = g * GPOS + jo                                                 # absolute output position
        valid2 = (k2 >= 0) & (k2 < KSZ) & (j < P1)                        # (10, 8)
        wg = jnp.where(valid2[:, :, None, None], vals2, 0.0)              # (10, 8, 64, 32)
        wg = wg[:, perm]                                                  # even/odd column order
        groups.append(jnp.transpose(wg, (0, 2, 1, 3)).reshape(GK, GN))    # (640, 256)
    w2g = jnp.stack(groups, axis=0).astype(bf16)                          # (4, 640, 256)

    # conv2 bias, added after pooling (zero for the dead 16th block).
    q = jnp.arange(N2P // C2)                                             # 16 pooled-pos blocks
    b2p = jnp.where((q < P2)[:, None], b2.astype(f32)[None, :], 0.0).reshape(1, N2P)

    # ---- fc1: rows ordered (pooled pos jj, channel o) to match p2; PyTorch flatten is o*15+jj ----
    fc1w_core = jnp.transpose(fw1.reshape(HID, C2, P2), (2, 1, 0)).reshape(P2 * C2, HID)
    fc1w = jnp.zeros((N2P, HID), f32).at[:P2 * C2].set(fc1w_core).astype(bf16)
    fc1b = fb1.astype(f32).reshape(1, HID)

    # ---- fc2: transpose + zero-pad 28 classes to 128 lanes for a dense output store ----
    fc2w = jnp.zeros((HID, NOUT), f32).at[:, :NUM_CLASSES].set(fw2.T.astype(f32)).astype(bf16)
    fc2b = jnp.zeros((1, NOUT), f32).at[:, :NUM_CLASSES].set(fb2.astype(f32)[None, :])

    return w1b, b1p, w2g, b2p, fc1w, fc1b, fc2w, fc2b


def cnn1d_forward(x_ncl, params, *, block_b=BT):
    """x_ncl: (B, 1, 63) float32, params in PyTorch shapes."""
    w1b, b1p, w2g, b2p, fc1w, fc1b, fc2w, fc2b = _prepare_params(params)

    B = x_ncl.shape[0]
    x2 = x_ncl[:, 0, :].astype(jnp.float32)                               # (B, 63)
    bp_ = ((B + block_b - 1) // block_b) * block_b
    # TODO(synk): for tiny batches bp_//block_b may be 1, leaving one v7x TensorCore idle.
    x2 = jnp.pad(x2, ((0, bp_ - B), (0, LK - L1)))                        # pad batch + K to 64

    def const_spec(shape):
        nd = len(shape)
        return pl.BlockSpec(shape, lambda *_: (0,) * nd, pipeline_mode=pl.Buffered(1))

    nsteps = bp_ // block_b
    flops_per_step = 2 * block_b * (LK * N1 + NG * GK * GN + N2P * HID + HID * NOUT)
    weight_bytes = sum(int(w.size) * w.dtype.itemsize
                       for w in (w1b, b1p, w2g, b2p, fc1w, fc1b, fc2w, fc2b))
    cost = pl.CostEstimate(
        flops=nsteps * flops_per_step,
        transcendentals=0,
        bytes_accessed=int(x2.size) * 4 + bp_ * NOUT * 4 + weight_bytes)

    out = pl.pallas_call(
        cnn1d_kernel,
        out_shape=jax.ShapeDtypeStruct((bp_, NOUT), jnp.float32),
        grid_spec=pltpu.PrefetchScalarGridSpec(
            num_scalar_prefetch=0,
            grid=(nsteps,),
            in_specs=[
                pl.BlockSpec((block_b, LK), lambda b: (b, 0)),            # x batch tile
                const_spec((LK, N1)),                                     # conv1 banded weight (bf16)
                const_spec((1, HA)),                                      # conv1 bias (post-pool, f32)
                const_spec((NG, GK, GN)),                                 # conv2 grouped band weights
                const_spec((1, N2P)),                                     # conv2 bias (post-pool, f32)
                const_spec((N2P, HID)),                                   # fc1 weight (permuted, bf16)
                const_spec((1, HID)),                                     # fc1 bias
                const_spec((HID, NOUT)),                                  # fc2 weight^T (lane-padded)
                const_spec((1, NOUT)),                                    # fc2 bias (lane-padded)
            ],
            out_specs=pl.BlockSpec((block_b, NOUT), lambda b: (b, 0)),
        ),
        compiler_params=pltpu.CompilerParams(
            dimension_semantics=("parallel",),
            vmem_limit_bytes=40 * 1024 * 1024,
        ),
        cost_estimate=cost,
    )(x2, w1b, b1p, w2g, b2p, fc1w, fc1b, fc2w, fc2b)

    return out[:B, :NUM_CLASSES]


def init_params(key):
    """Deterministic, PyTorch-shaped parameters (uniform +-1/sqrt(fan_in))."""
    ks = jax.random.split(key, 8)

    def u(k, shape, fan_in):
        bound = float(fan_in) ** -0.5
        return jax.random.uniform(k, shape, jnp.float32, -bound, bound)

    w1 = u(ks[0], (C1, 1, KSZ), 1 * KSZ)
    b1 = u(ks[1], (C1,), 1 * KSZ)
    w2 = u(ks[2], (C2, C1, KSZ), C1 * KSZ)
    b2 = u(ks[3], (C2,), C1 * KSZ)
    fw1 = u(ks[4], (HID, C2 * P2), C2 * P2)
    fb1 = u(ks[5], (HID,), C2 * P2)
    fw2 = u(ks[6], (NUM_CLASSES, HID), HID)
    fb2 = u(ks[7], (NUM_CLASSES,), HID)
    return (w1, b1, w2, b2, fw1, fb1, fw2, fb2)


def reference_forward(x_ncl, params):
    """Pure-JAX reference reproducing the PyTorch forward (eval mode)."""
    w1, b1, w2, b2, fw1, fb1, fw2, fb2 = params
    y = jax.lax.conv_general_dilated(
        x_ncl, w1, window_strides=(1,), padding=((1, 1),),
        dimension_numbers=('NCH', 'OIH', 'NCH'))
    y = jax.nn.relu(y + b1[None, :, None])
    y = jax.lax.reduce_window(y, -jnp.inf, jax.lax.max, (1, 1, 2), (1, 1, 2), 'VALID')
    y = jax.lax.conv_general_dilated(
        y, w2, window_strides=(1,), padding=((1, 1),),
        dimension_numbers=('NCH', 'OIH', 'NCH'))
    y = jax.nn.relu(y + b2[None, :, None])
    y = jax.lax.reduce_window(y, -jnp.inf, jax.lax.max, (1, 1, 2), (1, 1, 2), 'VALID')
    flat = y.reshape(y.shape[0], -1)                 # channel-major flatten, like torch
    h = jax.nn.relu(flat @ fw1.T + fb1)
    # dropout is identity in eval mode
    return h @ fw2.T + fb2


if __name__ == "__main__":
    x = jax.random.normal(jax.random.PRNGKey(0), (2, 1, INPUT_SIZE), dtype=jnp.float32)
    params = init_params(jax.random.PRNGKey(1))

    out = cnn1d_forward(x, params)
    out = jax.block_until_ready(out)

    ref = reference_forward(x, params)
    assert out.shape == (2, NUM_CLASSES), out.shape
    if not jnp.allclose(out, ref, atol=2e-2, rtol=2e-2):
        raise AssertionError(
            f"kernel/reference mismatch, max abs diff = {float(jnp.max(jnp.abs(out - ref)))}")
    print("KERNEL_OK")
</pallas_src>

<mosaic_0001>
module attributes {stable_mosaic.version = 11 : i64} {
  func.func @cnn1d_kernel(%arg0: i32, %arg1: memref<256x64xf32, #tpu.memory_space<vmem>>, %arg2: memref<64x4352xbf16, #tpu.memory_space<vmem>>, %arg3: memref<1x2176xf32, #tpu.memory_space<vmem>>, %arg4: memref<4x640x256xbf16, #tpu.memory_space<vmem>>, %arg5: memref<1x512xf32, #tpu.memory_space<vmem>>, %arg6: memref<512x128xbf16, #tpu.memory_space<vmem>>, %arg7: memref<1x128xf32, #tpu.memory_space<vmem>>, %arg8: memref<128x128xbf16, #tpu.memory_space<vmem>>, %arg9: memref<1x128xf32, #tpu.memory_space<vmem>>, %arg10: memref<256x128xf32, #tpu.memory_space<vmem>>) attributes {dimension_semantics = [#tpu.dimension_semantics<parallel>], iteration_bounds = array<i64: 1>, scalar_prefetch = 0 : i64, scratch_operands = 0 : i64, tpu.core_type = #tpu.core_type<tc>, window_params = [{transform_indices = @transform_0, window_bounds = array<i64: 256, 64>}, {pipeline_mode = #tpu.pipeline_mode<synchronous>, transform_indices = @transform_1, window_bounds = array<i64: 64, 4352>}, {pipeline_mode = #tpu.pipeline_mode<synchronous>, transform_indices = @transform_2, window_bounds = array<i64: 1, 2176>}, {pipeline_mode = #tpu.pipeline_mode<synchronous>, transform_indices = @transform_3, window_bounds = array<i64: 4, 640, 256>}, {pipeline_mode = #tpu.pipeline_mode<synchronous>, transform_indices = @transform_4, window_bounds = array<i64: 1, 512>}, {pipeline_mode = #tpu.pipeline_mode<synchronous>, transform_indices = @transform_5, window_bounds = array<i64: 512, 128>}, {pipeline_mode = #tpu.pipeline_mode<synchronous>, transform_indices = @transform_6, window_bounds = array<i64: 1, 128>}, {pipeline_mode = #tpu.pipeline_mode<synchronous>, transform_indices = @transform_7, window_bounds = array<i64: 128, 128>}, {pipeline_mode = #tpu.pipeline_mode<synchronous>, transform_indices = @transform_8, window_bounds = array<i64: 1, 128>}, {transform_indices = @transform_9, window_bounds = array<i64: 256, 128>}]} {
    %c0 = arith.constant 0 : index
    %c0_0 = arith.constant 0 : index
    %0 = vector.load %arg1[%c0, %c0_0] : memref<256x64xf32, #tpu.memory_space<vmem>>, vector<256x64xf32>
    %1 = arith.truncf %0 : vector<256x64xf32> to vector<256x64xbf16>
    %c0_1 = arith.constant 0 : index
    %c0_2 = arith.constant 0 : index
    %2 = vector.load %arg2[%c0_1, %c0_2] : memref<64x4352xbf16, #tpu.memory_space<vmem>>, vector<64x4352xbf16>
    %cst = arith.constant dense<0.000000e+00> : vector<256x4352xf32>
    %3 = tpu.matmul %1, %2, %cst {dimension_numbers = #tpu.dot_dimension_numbers<[1], [0], [0], [1], [0, 0, 1, 1], [], []>} : vector<256x64xbf16>, vector<64x4352xbf16>, vector<256x4352xf32> -> vector<256x4352xf32>
    %4 = vector.extract_strided_slice %3 {offsets = [0, 0], sizes = [256, 2176], strides = [1, 1]} : vector<256x4352xf32> to vector<256x2176xf32>
    %5 = vector.extract_strided_slice %3 {offsets = [0, 2176], sizes = [256, 2176], strides = [1, 1]} : vector<256x4352xf32> to vector<256x2176xf32>
    %6 = arith.maximumf %4, %5 : vector<256x2176xf32>
    %c0_3 = arith.constant 0 : index
    %c0_4 = arith.constant 0 : index
    %7 = vector.load %arg3[%c0_3, %c0_4] : memref<1x2176xf32, #tpu.memory_space<vmem>>, vector<1x2176xf32>
    %8 = vector.broadcast %7 : vector<1x2176xf32> to vector<256x2176xf32>
    %9 = arith.addf %6, %8 : vector<256x2176xf32>
    %cst_5 = arith.constant 0.000000e+00 : f32
    %10 = vector.broadcast %cst_5 : f32 to vector<256x2176xf32>
    %11 = arith.maximumf %9, %10 : vector<256x2176xf32>
    %12 = arith.truncf %11 : vector<256x2176xf32> to vector<256x2176xbf16>
    %13 = vector.extract_strided_slice %12 {offsets = [0, 0], sizes = [256, 640], strides = [1, 1]} : vector<256x2176xbf16> to vector<256x640xbf16>
    %c0_6 = arith.constant 0 : index
    %c0_7 = arith.constant 0 : index
    %c0_8 = arith.constant 0 : index
    %14 = vector.load %arg4[%c0_6, %c0_7, %c0_8] : memref<4x640x256xbf16, #tpu.memory_space<vmem>>, vector<1x640x256xbf16>
    %15 = vector.shape_cast %14 : vector<1x640x256xbf16> to vector<640x256xbf16>
    %cst_9 = arith.constant dense<0.000000e+00> : vector<256x256xf32>
    %16 = tpu.matmul %13, %15, %cst_9 {dimension_numbers = #tpu.dot_dimension_numbers<[1], [0], [0], [1], [0, 0, 1, 1], [], []>} : vector<256x640xbf16>, vector<640x256xbf16>, vector<256x256xf32> -> vector<256x256xf32>
    %17 = vector.extract_strided_slice %16 {offsets = [0, 0], sizes = [256, 128], strides = [1, 1]} : vector<256x256xf32> to vector<256x128xf32>
    %18 = vector.extract_strided_slice %16 {offsets = [0, 128], sizes = [256, 128], strides = [1, 1]} : vector<256x256xf32> to vector<256x128xf32>
    %19 = arith.maximumf %17, %18 : vector<256x128xf32>
    %20 = vector.extract_strided_slice %12 {offsets = [0, 512], sizes = [256, 640], strides = [1, 1]} : vector<256x2176xbf16> to vector<256x640xbf16>
    %c1 = arith.constant 1 : index
    %c0_10 = arith.constant 0 : index
    %c0_11 = arith.constant 0 : index
    %21 = vector.load %arg4[%c1, %c0_10, %c0_11] : memref<4x640x256xbf16, #tpu.memory_space<vmem>>, vector<1x640x256xbf16>
    %22 = vector.shape_cast %21 : vector<1x640x256xbf16> to vector<640x256xbf16>
    %cst_12 = arith.constant dense<0.000000e+00> : vector<256x256xf32>
    %23 = tpu.matmul %20, %22, %cst_12 {dimension_numbers = #tpu.dot_dimension_numbers<[1], [0], [0], [1], [0, 0, 1, 1], [], []>} : vector<256x640xbf16>, vector<640x256xbf16>, vector<256x256xf32> -> vector<256x256xf32>
    %24 = vector.extract_strided_slice %23 {offsets = [0, 0], sizes = [256, 128], strides = [1, 1]} : vector<256x256xf32> to vector<256x128xf32>
    %25 = vector.extract_strided_slice %23 {offsets = [0, 128], sizes = [256, 128], strides = [1, 1]} : vector<256x256xf32> to vector<256x128xf32>
    %26 = arith.maximumf %24, %25 : vector<256x128xf32>
    %27 = vector.extract_strided_slice %12 {offsets = [0, 1024], sizes = [256, 640], strides = [1, 1]} : vector<256x2176xbf16> to vector<256x640xbf16>
    %c2 = arith.constant 2 : index
    %c0_13 = arith.constant 0 : index
    %c0_14 = arith.constant 0 : index
    %28 = vector.load %arg4[%c2, %c0_13, %c0_14] : memref<4x640x256xbf16, #tpu.memory_space<vmem>>, vector<1x640x256xbf16>
    %29 = vector.shape_cast %28 : vector<1x640x256xbf16> to vector<640x256xbf16>
    %cst_15 = arith.constant dense<0.000000e+00> : vector<256x256xf32>
    %30 = tpu.matmul %27, %29, %cst_15 {dimension_numbers = #tpu.dot_dimension_numbers<[1], [0], [0], [1], [0, 0, 1, 1], [], []>} : vector<256x640xbf16>, vector<640x256xbf16>, vector<256x256xf32> -> vector<256x256xf32>
    %31 = vector.extract_strided_slice %30 {offsets = [0, 0], sizes = [256, 128], strides = [1, 1]} : vector<256x256xf32> to vector<256x128xf32>
    %32 = vector.extract_strided_slice %30 {offsets = [0, 128], sizes = [256, 128], strides = [1, 1]} : vector<256x256xf32> to vector<256x128xf32>
    %33 = arith.maximumf %31, %32 : vector<256x128xf32>
    %34 = vector.extract_strided_slice %12 {offsets = [0, 1536], sizes = [256, 640], strides = [1, 1]} : vector<256x2176xbf16> to vector<256x640xbf16>
    %c3 = arith.constant 3 : index
    %c0_16 = arith.constant 0 : index
    %c0_17 = arith.constant 0 : index
    %35 = vector.load %arg4[%c3, %c0_16, %c0_17] : memref<4x640x256xbf16, #tpu.memory_space<vmem>>, vector<1x640x256xbf16>
    %36 = vector.shape_cast %35 : vector<1x640x256xbf16> to vector<640x256xbf16>
    %cst_18 = arith.constant dense<0.000000e+00> : vector<256x256xf32>
    %37 = tpu.matmul %34, %36, %cst_18 {dimension_numbers = #tpu.dot_dimension_numbers<[1], [0], [0], [1], [0, 0, 1, 1], [], []>} : vector<256x640xbf16>, vector<640x256xbf16>, vector<256x256xf32> -> vector<256x256xf32>
    %38 = vector.extract_strided_slice %37 {offsets = [0, 0], sizes = [256, 128], strides = [1, 1]} : vector<256x256xf32> to vector<256x128xf32>
    %39 = vector.extract_strided_slice %37 {offsets = [0, 128], sizes = [256, 128], strides = [1, 1]} : vector<256x256xf32> to vector<256x128xf32>
    %40 = arith.maximumf %38, %39 : vector<256x128xf32>
    %41 = tpu.concatenate %19, %26, %33, %40 in 1 : vector<256x128xf32>, vector<256x128xf32>, vector<256x128xf32>, vector<256x128xf32> -> vector<256x512xf32>
    %c0_19 = arith.constant 0 : index
    %c0_20 = arith.constant 0 : index
    %42 = vector.load %arg5[%c0_19, %c0_20] : memref<1x512xf32, #tpu.memory_space<vmem>>, vector<1x512xf32>
    %43 = vector.broadcast %42 : vector<1x512xf32> to vector<256x512xf32>
    %44 = arith.addf %41, %43 : vector<256x512xf32>
    %cst_21 = arith.constant 0.000000e+00 : f32
    %45 = vector.broadcast %cst_21 : f32 to vector<256x512xf32>
    %46 = arith.maximumf %44, %45 : vector<256x512xf32>
    %47 = arith.truncf %46 : vector<256x512xf32> to vector<256x512xbf16>
    %c0_22 = arith.constant 0 : index
    %c0_23 = arith.constant 0 : index
    %48 = vector.load %arg6[%c0_22, %c0_23] : memref<512x128xbf16, #tpu.memory_space<vmem>>, vector<512x128xbf16>
    %cst_24 = arith.constant dense<0.000000e+00> : vector<256x128xf32>
    %49 = tpu.matmul %47, %48, %cst_24 {dimension_numbers = #tpu.dot_dimension_numbers<[1], [0], [0], [1], [0, 0, 1, 1], [], []>} : vector<256x512xbf16>, vector<512x128xbf16>, vector<256x128xf32> -> vector<256x128xf32>
    %c0_25 = arith.constant 0 : index
    %c0_26 = arith.constant 0 : index
    %50 = vector.load %arg7[%c0_25, %c0_26] : memref<1x128xf32, #tpu.memory_space<vmem>>, vector<1x128xf32>
    %51 = vector.broadcast %50 : vector<1x128xf32> to vector<256x128xf32>
    %52 = arith.addf %49, %51 : vector<256x128xf32>
    %cst_27 = arith.constant 0.000000e+00 : f32
    %53 = vector.broadcast %cst_27 : f32 to vector<256x128xf32>
    %54 = arith.maximumf %52, %53 : vector<256x128xf32>
    %55 = arith.truncf %54 : vector<256x128xf32> to vector<256x128xbf16>
    %c0_28 = arith.constant 0 : index
    %c0_29 = arith.constant 0 : index
    %56 = vector.load %arg8[%c0_28, %c0_29] : memref<128x128xbf16, #tpu.memory_space<vmem>>, vector<128x128xbf16>
    %cst_30 = arith.constant dense<0.000000e+00> : vector<256x128xf32>
    %57 = tpu.matmul %55, %56, %cst_30 {dimension_numbers = #tpu.dot_dimension_numbers<[1], [0], [0], [1], [0, 0, 1, 1], [], []>} : vector<256x128xbf16>, vector<128x128xbf16>, vector<256x128xf32> -> vector<256x128xf32>
    %c0_31 = arith.constant 0 : index
    %c0_32 = arith.constant 0 : index
    %58 = vector.load %arg9[%c0_31, %c0_32] : memref<1x128xf32, #tpu.memory_space<vmem>>, vector<1x128xf32>
    %59 = vector.broadcast %58 : vector<1x128xf32> to vector<256x128xf32>
    %60 = arith.addf %57, %59 : vector<256x128xf32>
    %c0_33 = arith.constant 0 : index
    %c0_34 = arith.constant 0 : index
    %61 = vector.load %arg10[%c0_33, %c0_34] : memref<256x128xf32, #tpu.memory_space<vmem>>, vector<256x128xf32>
    tpu.vector_store %arg10[%c0_33, %c0_34], %60 {strides = array<i32>} : memref<256x128xf32, #tpu.memory_space<vmem>>, vector<256x128xf32>,
    return
  }
  func.func @transform_0(%arg0: i32) -> (i32, i32) {
    %c0_i32 = arith.constant 0 : i32
    %c0_i32_0 = arith.constant 0 : i32
    return %arg0, %c0_i32 : i32, i32
  }
  func.func @transform_1(%arg0: i32) -> (i32, i32) {
    %c0_i32 = arith.constant 0 : i32
    %c0_i32_0 = arith.constant 0 : i32
    %c0_i32_1 = arith.constant 0 : i32
    return %c0_i32, %c0_i32_0 : i32, i32
  }
  func.func @transform_2(%arg0: i32) -> (i32, i32) {
    %c0_i32 = arith.constant 0 : i32
    %c0_i32_0 = arith.constant 0 : i32
    %c0_i32_1 = arith.constant 0 : i32
    return %c0_i32, %c0_i32_0 : i32, i32
  }
  func.func @transform_3(%arg0: i32) -> (i32, i32, i32) {
    %c0_i32 = arith.constant 0 : i32
    %c0_i32_0 = arith.constant 0 : i32
    %c0_i32_1 = arith.constant 0 : i32
    %c0_i32_2 = arith.constant 0 : i32
    return %c0_i32, %c0_i32_0, %c0_i32_1 : i32, i32, i32
  }
  func.func @transform_4(%arg0: i32) -> (i32, i32) {
    %c0_i32 = arith.constant 0 : i32
    %c0_i32_0 = arith.constant 0 : i32
    %c0_i32_1 = arith.constant 0 : i32
    return %c0_i32, %c0_i32_0 : i32, i32
  }
  func.func @transform_5(%arg0: i32) -> (i32, i32) {
    %c0_i32 = arith.constant 0 : i32
    %c0_i32_0 = arith.constant 0 : i32
    %c0_i32_1 = arith.constant 0 : i32
    return %c0_i32, %c0_i32_0 : i32, i32
  }
  func.func @transform_6(%arg0: i32) -> (i32, i32) {
    %c0_i32 = arith.constant 0 : i32
    %c0_i32_0 = arith.constant 0 : i32
    %c0_i32_1 = arith.constant 0 : i32
    return %c0_i32, %c0_i32_0 : i32, i32
  }
  func.func @transform_7(%arg0: i32) -> (i32, i32) {
    %c0_i32 = arith.constant 0 : i32
    %c0_i32_0 = arith.constant 0 : i32
    %c0_i32_1 = arith.constant 0 : i32
    return %c0_i32, %c0_i32_0 : i32, i32
  }
  func.func @transform_8(%arg0: i32) -> (i32, i32) {
    %c0_i32 = arith.constant 0 : i32
    %c0_i32_0 = arith.constant 0 : i32
    %c0_i32_1 = arith.constant 0 : i32
    return %c0_i32, %c0_i32_0 : i32, i32
  }
  func.func @transform_9(%arg0: i32) -> (i32, i32) {
    %c0_i32 = arith.constant 0 : i32
    %c0_i32_0 = arith.constant 0 : i32
    return %arg0, %c0_i32 : i32, i32
  }
}

</mosaic_0001>

<llo_original>
// kernel: tpu_custom_call.1
$region0: #{tpu_custom_call.1}
  #allocation0 [shape = 'u32[]', space=smem, size = 0x4, offset = 0x4, fixed_abs, tag = 'smem constant byte address 0x4 - core index']
  #allocation1 [shape = 'u32[144,128]{1,0:T(1,128)}', space=vmem, size = 0x12000, scoped, tag = 'internal scratch']
  %s0 = inlined_call_operand.vmem [shape: f32[256,64], index: 0, kind: input, shape index: {}]
  %s1 = inlined_call_operand.hbm [shape: bf16[64,4352], index: 1, kind: input, shape index: {}]
  %s2 = inlined_call_operand.hbm [shape: f32[1,2176], index: 2, kind: input, shape index: {}]
  %s3 = inlined_call_operand.hbm [shape: bf16[4,640,256], index: 3, kind: input, shape index: {}]
  %s4 = inlined_call_operand.hbm [shape: f32[1,512], index: 4, kind: input, shape index: {}]
  %s5 = inlined_call_operand.hbm [shape: bf16[512,128], index: 5, kind: input, shape index: {}]
  %s6 = inlined_call_operand.hbm [shape: f32[1,128], index: 6, kind: input, shape index: {}]
  %s7 = inlined_call_operand.hbm [shape: bf16[128,128], index: 7, kind: input, shape index: {}]
  %s8 = inlined_call_operand.hbm [shape: f32[1,128], index: 8, kind: input, shape index: {}]
  %s9 = inlined_call_operand.hbm [shape: f32[256,128], index: 9, kind: output, shape index: {}]
  %s10 = sld [smem:[#allocation0]]
  $region78: #{tpu_custom_call.1} parent=0
    _
  %s12 = ssub.s32 1, %s10
  %s13 = scalar_select 0, %s12, %s10
  $region1: #{tpu_custom_call.1} parent=0
    #allocation2 [shape = 'u8[557056]{0}', space=vmem, size = 0x88000, scoped, tag = 'input window, operand 1, single buffered']
    #allocation3 [shape = 's32[1]{0}', space=sflag, size = 0x4, scoped, tag = 'scoped memory for tpu_custom_call.1']
    #allocation4 [shape = 's32[1]{0}', space=sflag, size = 0x4, scoped, tag = 'scoped memory for tpu_custom_call.1']
    #allocation5 [shape = 'u8[8704]{0}', space=vmem, size = 0x2400, scoped, tag = 'input window, operand 2, single buffered']
    #allocation6 [shape = 's32[1]{0}', space=sflag, size = 0x4, scoped, tag = 'scoped memory for tpu_custom_call.1']
    #allocation7 [shape = 'u8[1310720]{0}', space=vmem, size = 0x140000, scoped, tag = 'input window, operand 3, single buffered']
    #allocation8 [shape = 'u8[2048]{0}', space=vmem, size = 0x800, scoped, tag = 'input window, operand 4, single buffered']
    #allocation9 [shape = 's32[1]{0}', space=sflag, size = 0x4, scoped, tag = 'scoped memory for tpu_custom_call.1']
    #allocation10 [shape = 'u8[131072]{0}', space=vmem, size = 0x20000, scoped, tag = 'input window, operand 5, single buffered']
    #allocation11 [shape = 'u8[512]{0}', space=vmem, size = 0x400, scoped, tag = 'input window, operand 6, single buffered']
    #allocation12 [shape = 's32[1]{0}', space=sflag, size = 0x4, scoped, tag = 'scoped memory for tpu_custom_call.1']
    #allocation13 [shape = 'u8[32768]{0}', space=vmem, size = 0x8000, scoped, tag = 'input window, operand 7, single buffered']
    #allocation14 [shape = 'u8[512]{0}', space=vmem, size = 0x400, scoped, tag = 'input window, operand 8, single buffered']
    #allocation15 [shape = 's32[1]{0}', space=sflag, size = 0x4, scoped, tag = 'scoped memory for tpu_custom_call.1']
    #allocation16 [shape = 'u8[131072]{0}', space=vmem, size = 0x20000, scoped, tag = 'output window, operand 0, single buffered']
    %14 = vsyncpa [#allocation3], 0
    %15 = vsyncpa [#allocation6], 0
    %16 = vsyncpa [#allocation9], 0
    %17 = vsyncpa [#allocation12], 0
    %18 = vsyncpa [#allocation15], 0
    %19 = vsyncpa [#allocation4], 0
    // Predicated region
    $region2: #{tpu_custom_call.1} parent=1 // pred_check
      _
    $region3: #{tpu_custom_call.1} parent=1 // pred_check_branch
      %21 = sbr.rel (0) target = $region5
    $region4: #{tpu_custom_call.1} parent=1 // pred_region
      _
    $region5: #{tpu_custom_call.1} parent=1 // pred_fallthru
      _
    // Predicated region
    $region6: #{tpu_custom_call.1} parent=1 // pred_check
      _
    $region7: #{tpu_custom_call.1} parent=1 // pred_check_branch
      %23 = sbr.rel (0) target = $region9
    $region8: #{tpu_custom_call.1} parent=1 // pred_region
      %s25 = ssub.s32 17408, 17408
      %26 = vsyncadd [#allocation3], %s25
      %s27 = sshll.u32 [#allocation2], 4
      %s28 = int_to_ptr.vmem [resolvable:$true] %s27
      %33 = dma.hbm_to_vmem [thread:$0]  %s1, 17408, %s28, [#allocation3], 2176, 2176, 136
    $region9: #{tpu_custom_call.1} parent=1 // pred_fallthru
      _
    // Predicated region
    $region10: #{tpu_custom_call.1} parent=1 // pred_check
      _
    $region11: #{tpu_custom_call.1} parent=1 // pred_check_branch
      %35 = sbr.rel (0) target = $region13
    $region12: #{tpu_custom_call.1} parent=1 // pred_region
      %s37 = ssub.s32 272, 272
      %38 = vsyncadd [#allocation6], %s37
      %s40 = sshll.u32 [#allocation5], 4
      %s41 = int_to_ptr.vmem [resolvable:$true] %s40
      %43 = dma.hbm_to_vmem [thread:$0]  %s2, 272, %s41, [#allocation6]
    $region13: #{tpu_custom_call.1} parent=1 // pred_fallthru
      _
    // Predicated region
    $region14: #{tpu_custom_call.1} parent=1 // pred_check
      _
    $region15: #{tpu_custom_call.1} parent=1 // pred_check_branch
      %45 = sbr.rel (0) target = $region17
    $region16: #{tpu_custom_call.1} parent=1 // pred_region
      %s47 = ssub.s32 40960, 40960
      %48 = vsyncadd [#allocation6], %s47
      %s49 = sshll.u32 [#allocation7], 4
      %s50 = int_to_ptr.vmem [resolvable:$true] %s49
      %55 = dma.hbm_to_vmem [thread:$0]  %s3, 40960, %s50, [#allocation6], 128, 128, 8
    $region17: #{tpu_custom_call.1} parent=1 // pred_fallthru
      _
    // Predicated region
    $region18: #{tpu_custom_call.1} parent=1 // pred_check
      _
    $region19: #{tpu_custom_call.1} parent=1 // pred_check_branch
      %57 = sbr.rel (0) target = $region21
    $region20: #{tpu_custom_call.1} parent=1 // pred_region
      %s59 = ssub.s32 64, 64
      %60 = vsyncadd [#allocation9], %s59
      %s62 = sshll.u32 [#allocation8], 4
      %s63 = int_to_ptr.vmem [resolvable:$true] %s62
      %65 = dma.hbm_to_vmem [thread:$0]  %s4, 64, %s63, [#allocation9]
    $region21: #{tpu_custom_call.1} parent=1 // pred_fallthru
      _
    // Predicated region
    $region22: #{tpu_custom_call.1} parent=1 // pred_check
      _
    $region23: #{tpu_custom_call.1} parent=1 // pred_check_branch
      %67 = sbr.rel (0) target = $region25
    $region24: #{tpu_custom_call.1} parent=1 // pred_region
      %s69 = ssub.s32 4096, 4096
      %70 = vsyncadd [#allocation9], %s69
      %s71 = sshll.u32 [#allocation10], 4
      %s72 = int_to_ptr.vmem [resolvable:$true] %s71
      %77 = dma.hbm_to_vmem [thread:$0]  %s5, 4096, %s72, [#allocation9], 64, 64, 4
    $region25: #{tpu_custom_call.1} parent=1 // pred_fallthru
      _
    // Predicated region
    $region26: #{tpu_custom_call.1} parent=1 // pred_check
      _
    $region27: #{tpu_custom_call.1} parent=1 // pred_check_branch
      %79 = sbr.rel (0) target = $region29
    $region28: #{tpu_custom_call.1} parent=1 // pred_region
      %s81 = ssub.s32 16, 16
      %82 = vsyncadd [#allocation12], %s81
      %s84 = sshll.u32 [#allocation11], 4
      %s85 = int_to_ptr.vmem [resolvable:$true] %s84
      %87 = dma.hbm_to_vmem [thread:$0]  %s6, 16, %s85, [#allocation12]
    $region29: #{tpu_custom_call.1} parent=1 // pred_fallthru
      _
    // Predicated region
    $region30: #{tpu_custom_call.1} parent=1 // pred_check
      _
    $region31: #{tpu_custom_call.1} parent=1 // pred_check_branch
      %89 = sbr.rel (0) target = $region33
    $region32: #{tpu_custom_call.1} parent=1 // pred_region
      %s91 = ssub.s32 1024, 1024
      %92 = vsyncadd [#allocation12], %s91
      %s93 = sshll.u32 [#allocation13], 4
      %s94 = int_to_ptr.vmem [resolvable:$true] %s93
      %99 = dma.hbm_to_vmem [thread:$0]  %s7, 1024, %s94, [#allocation12], 64, 64, 4
    $region33: #{tpu_custom_call.1} parent=1 // pred_fallthru
      _
    // Predicated region
    $region34: #{tpu_custom_call.1} parent=1 // pred_check
      _
    $region35: #{tpu_custom_call.1} parent=1 // pred_check_branch
      %101 = sbr.rel (0) target = $region37
    $region36: #{tpu_custom_call.1} parent=1 // pred_region
      %s103 = ssub.s32 16, 16
      %104 = vsyncadd [#allocation15], %s103
      %s106 = sshll.u32 [#allocation14], 4
      %s107 = int_to_ptr.vmem [resolvable:$true] %s106
      %109 = dma.hbm_to_vmem [thread:$0]  %s8, 16, %s107, [#allocation15]
    $region37: #{tpu_custom_call.1} parent=1 // pred_fallthru
      _
    // Predicated region
    $region38: #{tpu_custom_call.1} parent=1 // pred_check
      _
    $region39: #{tpu_custom_call.1} parent=1 // pred_check_branch
      %111 = sbr.rel (0) target = $region41
    $region40: #{tpu_custom_call.1} parent=1 // pred_region
      %112 = dma.done [#allocation3], 17408
    $region41: #{tpu_custom_call.1} parent=1 // pred_fallthru
      _
    // Predicated region
    $region42: #{tpu_custom_call.1} parent=1 // pred_check
      _
    $region43: #{tpu_custom_call.1} parent=1 // pred_check_branch
      %114 = sbr.rel (0) target = $region45
    $region44: #{tpu_custom_call.1} parent=1 // pred_region
      %115 = dma.done [#allocation6], 272
    $region45: #{tpu_custom_call.1} parent=1 // pred_fallthru
      _
    // Predicated region
    $region46: #{tpu_custom_call.1} parent=1 // pred_check
      _
    $region47: #{tpu_custom_call.1} parent=1 // pred_check_branch
      %117 = sbr.rel (0) target = $region49
    $region48: #{tpu_custom_call.1} parent=1 // pred_region
      %118 = dma.done [#allocation6], 40960
    $region49: #{tpu_custom_call.1} parent=1 // pred_fallthru
      _
    // Predicated region
    $region50: #{tpu_custom_call.1} parent=1 // pred_check
      _
    $region51: #{tpu_custom_call.1} parent=1 // pred_check_branch
      %120 = sbr.rel (0) target = $region53
    $region52: #{tpu_custom_call.1} parent=1 // pred_region
      %121 = dma.done [#allocation9], 64
    $region53: #{tpu_custom_call.1} parent=1 // pred_fallthru
      _
    // Predicated region
    $region54: #{tpu_custom_call.1} parent=1 // pred_check
      _
    $region55: #{tpu_custom_call.1} parent=1 // pred_check_branch
      %123 = sbr.rel (0) target = $region57
    $region56: #{tpu_custom_call.1} parent=1 // pred_region
      %124 = dma.done [#allocation9], 4096
    $region57: #{tpu_custom_call.1} parent=1 // pred_fallthru
      _
    // Predicated region
    $region58: #{tpu_custom_call.1} parent=1 // pred_check
      _
    $region59: #{tpu_custom_call.1} parent=1 // pred_check_branch
      %126 = sbr.rel (0) target = $region61
    $region60: #{tpu_custom_call.1} parent=1 // pred_region
      %127 = dma.done [#allocation12], 16
    $region61: #{tpu_custom_call.1} parent=1 // pred_fallthru
      _
    // Predicated region
    $region62: #{tpu_custom_call.1} parent=1 // pred_check
      _
    $region63: #{tpu_custom_call.1} parent=1 // pred_check_branch
      %129 = sbr.rel (0) target = $region65
    $region64: #{tpu_custom_call.1} parent=1 // pred_region
      %130 = dma.done [#allocation12], 1024
    $region65: #{tpu_custom_call.1} parent=1 // pred_fallthru
      _
    // Predicated region
    $region66: #{tpu_custom_call.1} parent=1 // pred_check
      _
    $region67: #{tpu_custom_call.1} parent=1 // pred_check_branch
      %132 = sbr.rel (0) target = $region69
    $region68: #{tpu_custom_call.1} parent=1 // pred_region
      %133 = dma.done [#allocation15], 16
    $region69: #{tpu_custom_call.1} parent=1 // pred_fallthru
      _
    %v135 = vld [vmem:[%s0] sm:$0xff]
    %v136 = vld [vmem:[%s0 + $0x8] sm:$0xff]
    %v137 = vld [vmem:[%s0 + $0x10] sm:$0xff]
    %v138 = vld [vmem:[%s0 + $0x18] sm:$0xff]
    %v139 = vld [vmem:[%s0 + $0x20] sm:$0xff]
    %v140 = vld [vmem:[%s0 + $0x28] sm:$0xff]
    %v141 = vld [vmem:[%s0 + $0x30] sm:$0xff]
    %v142 = vld [vmem:[%s0 + $0x38] sm:$0xff]
    %v143 = vld [vmem:[%s0 + $0x40] sm:$0xff]
    %v144 = vld [vmem:[%s0 + $0x48] sm:$0xff]
    %v145 = vld [vmem:[%s0 + $0x50] sm:$0xff]
    %v146 = vld [vmem:[%s0 + $0x58] sm:$0xff]
    %v147 = vld [vmem:[%s0 + $0x60] sm:$0xff]
    %v148 = vld [vmem:[%s0 + $0x68] sm:$0xff]
    %v149 = vld [vmem:[%s0 + $0x70] sm:$0xff]
    %v150 = vld [vmem:[%s0 + $0x78] sm:$0xff]
    %v151 = vld [vmem:[%s0 + $0x80] sm:$0xff]
    %v152 = vld [vmem:[%s0 + $0x88] sm:$0xff]
    %v153 = vld [vmem:[%s0 + $0x90] sm:$0xff]
    %v154 = vld [vmem:[%s0 + $0x98] sm:$0xff]
    %v155 = vld [vmem:[%s0 + $0xa0] sm:$0xff]
    %v156 = vld [vmem:[%s0 + $0xa8] sm:$0xff]
    %v157 = vld [vmem:[%s0 + $0xb0] sm:$0xff]
    %v158 = vld [vmem:[%s0 + $0xb8] sm:$0xff]
    %v159 = vld [vmem:[%s0 + $0xc0] sm:$0xff]
    %v160 = vld [vmem:[%s0 + $0xc8] sm:$0xff]
    %v161 = vld [vmem:[%s0 + $0xd0] sm:$0xff]
    %v162 = vld [vmem:[%s0 + $0xd8] sm:$0xff]
    %v163 = vld [vmem:[%s0 + $0xe0] sm:$0xff]
    %v164 = vld [vmem:[%s0 + $0xe8] sm:$0xff]
    %v165 = vld [vmem:[%s0 + $0xf0] sm:$0xff]
    %v166 = vld [vmem:[%s0 + $0xf8] sm:$0xff]
    %v167 = vpack.c.bf16 %v136, %v135
    %v168 = vpack.c.bf16 %v138, %v137
    %v169 = vpack.c.bf16 %v140, %v139
    %v170 = vpack.c.bf16 %v142, %v141
    %v171 = vpack.c.bf16 %v144, %v143
    %v172 = vpack.c.bf16 %v146, %v145
    %v173 = vpack.c.bf16 %v148, %v147
    %v174 = vpack.c.bf16 %v150, %v149
    %v175 = vpack.c.bf16 %v152, %v151
    %v176 = vpack.c.bf16 %v154, %v153
    %v177 = vpack.c.bf16 %v156, %v155
    %v178 = vpack.c.bf16 %v158, %v157
    %v179 = vpack.c.bf16 %v160, %v159
    %v180 = vpack.c.bf16 %v162, %v161
    %v181 = vpack.c.bf16 %v164, %v163
    %v182 = vpack.c.bf16 %v166, %v165
    %v183 = vld [vmem:[#allocation2] sm:$0xff]
    %v184 = vld [vmem:[#allocation2 + $0x8] sm:$0xff]
    %v185 = vld [vmem:[#allocation2 + $0x10] sm:$0xff]
    %v186 = vld [vmem:[#allocation2 + $0x18] sm:$0xff]
    %v187 = vld [vmem:[#allocation2 + $0x20] sm:$0xff]
    %v188 = vld [vmem:[#allocation2 + $0x28] sm:$0xff]
    %v189 = vld [vmem:[#allocation2 + $0x30] sm:$0xff]
    %v190 = vld [vmem:[#allocation2 + $0x38] sm:$0xff]
    %v191 = vld [vmem:[#allocation2 + $0x40] sm:$0xff]
    %v192 = vld [vmem:[#allocation2 + $0x48] sm:$0xff]
    %v193 = vld [vmem:[#allocation2 + $0x50] sm:$0xff]
    %v194 = vld [vmem:[#allocation2 + $0x58] sm:$0xff]
    %v195 = vld [vmem:[#allocation2 + $0x60] sm:$0xff]
    %v196 = vld [vmem:[#allocation2 + $0x68] sm:$0xff]
    %v197 = vld [vmem:[#allocation2 + $0x70] sm:$0xff]
    %v198 = vld [vmem:[#allocation2 + $0x78] sm:$0xff]
    %v199 = vld [vmem:[#allocation2 + $0x80] sm:$0xff]
    %v200 = vld [vmem:[#allocation2 + $0x88] sm:$0xff]
    %v201 = vld [vmem:[#allocation2 + $0x90] sm:$0xff]
    %v202 = vld [vmem:[#allocation2 + $0x98] sm:$0xff]
    %v203 = vld [vmem:[#allocation2 + $0xa0] sm:$0xff]
    %v204 = vld [vmem:[#allocation2 + $0xa8] sm:$0xff]
    %v205 = vld [vmem:[#allocation2 + $0xb0] sm:$0xff]
    %v206 = vld [vmem:[#allocation2 + $0xb8] sm:$0xff]
    %v207 = vld [vmem:[#allocation2 + $0xc0] sm:$0xff]
    %v208 = vld [vmem:[#allocation2 + $0xc8] sm:$0xff]
    %v209 = vld [vmem:[#allocation2 + $0xd0] sm:$0xff]
    %v210 = vld [vmem:[#allocation2 + $0xd8] sm:$0xff]
    %v211 = vld [vmem:[#allocation2 + $0xe0] sm:$0xff]
    %v212 = vld [vmem:[#allocation2 + $0xe8] sm:$0xff]
    %v213 = vld [vmem:[#allocation2 + $0xf0] sm:$0xff]
    %v214 = vld [vmem:[#allocation2 + $0xf8] sm:$0xff]
    %v215 = vld [vmem:[#allocation2 + $0x100] sm:$0xff]
    %v216 = vld [vmem:[#allocation2 + $0x108] sm:$0xff]
    %v217 = vld [vmem:[#allocation2 + $0x110] sm:$0xff]
    %v218 = vld [vmem:[#allocation2 + $0x118] sm:$0xff]
    %v219 = vld [vmem:[#allocation2 + $0x120] sm:$0xff]
    %v220 = vld [vmem:[#allocation2 + $0x128] sm:$0xff]
    %v221 = vld [vmem:[#allocation2 + $0x130] sm:$0xff]
    %v222 = vld [vmem:[#allocation2 + $0x138] sm:$0xff]
    %v223 = vld [vmem:[#allocation2 + $0x140] sm:$0xff]
    %v224 = vld [vmem:[#allocation2 + $0x148] sm:$0xff]
    %v225 = vld [vmem:[#allocation2 + $0x150] sm:$0xff]
    %v226 = vld [vmem:[#allocation2 + $0x158] sm:$0xff]
    %v227 = vld [vmem:[#allocation2 + $0x160] sm:$0xff]
    %v228 = vld [vmem:[#allocation2 + $0x168] sm:$0xff]
    %v229 = vld [vmem:[#allocation2 + $0x170] sm:$0xff]
    %v230 = vld [vmem:[#allocation2 + $0x178] sm:$0xff]
    %v231 = vld [vmem:[#allocation2 + $0x180] sm:$0xff]
    %v232 = vld [vmem:[#allocation2 + $0x188] sm:$0xff]
    %v233 = vld [vmem:[#allocation2 + $0x190] sm:$0xff]
    %v234 = vld [vmem:[#allocation2 + $0x198] sm:$0xff]
    %v235 = vld [vmem:[#allocation2 + $0x1a0] sm:$0xff]
    %v236 = vld [vmem:[#allocation2 + $0x1a8] sm:$0xff]
    %v237 = vld [vmem:[#allocation2 + $0x1b0] sm:$0xff]
    %v238 = vld [vmem:[#allocation2 + $0x1b8] sm:$0xff]
    %v239 = vld [vmem:[#allocation2 + $0x1c0] sm:$0xff]
    %v240 = vld [vmem:[#allocation2 + $0x1c8] sm:$0xff]
    %v241 = vld [vmem:[#allocation2 + $0x1d0] sm:$0xff]
    %v242 = vld [vmem:[#allocation2 + $0x1d8] sm:$0xff]
    %v243 = vld [vmem:[#allocation2 + $0x1e0] sm:$0xff]
    %v244 = vld [vmem:[#allocation2 + $0x1e8] sm:$0xff]
    %v245 = vld [vmem:[#allocation2 + $0x1f0] sm:$0xff]
    %v246 = vld [vmem:[#allocation2 + $0x1f8] sm:$0xff]
    %v247 = vld [vmem:[#allocation2 + $0x200] sm:$0xff]
    %v248 = vld [vmem:[#allocation2 + $0x208] sm:$0xff]
    %v249 = vld [vmem:[#allocation2 + $0x210] sm:$0xff]
    %v250 = vld [vmem:[#allocation2 + $0x218] sm:$0xff]
    %v251 = vld [vmem:[#allocation2 + $0x220] sm:$0xff]
    %v252 = vld [vmem:[#allocation2 + $0x228] sm:$0xff]
    %v253 = vld [vmem:[#allocation2 + $0x230] sm:$0xff]
    %v254 = vld [vmem:[#allocation2 + $0x238] sm:$0xff]
    %v255 = vld [vmem:[#allocation2 + $0x240] sm:$0xff]
    %v256 = vld [vmem:[#allocation2 + $0x248] sm:$0xff]
    %v257 = vld [vmem:[#allocation2 + $0x250] sm:$0xff]
    %v258 = vld [vmem:[#allocation2 + $0x258] sm:$0xff]
    %v259 = vld [vmem:[#allocation2 + $0x260] sm:$0xff]
    %v260 = vld [vmem:[#allocation2 + $0x268] sm:$0xff]
    %v261 = vld [vmem:[#allocation2 + $0x270] sm:$0xff]
    %v262 = vld [vmem:[#allocation2 + $0x278] sm:$0xff]
    %v263 = vld [vmem:[#allocation2 + $0x280] sm:$0xff]
    %v264 = vld [vmem:[#allocation2 + $0x288] sm:$0xff]
    %v265 = vld [vmem:[#allocation2 + $0x290] sm:$0xff]
    %v266 = vld [vmem:[#allocation2 + $0x298] sm:$0xff]
    %v267 = vld [vmem:[#allocation2 + $0x2a0] sm:$0xff]
    %v268 = vld [vmem:[#allocation2 + $0x2a8] sm:$0xff]
    %v269 = vld [vmem:[#allocation2 + $0x2b0] sm:$0xff]
    %v270 = vld [vmem:[#allocation2 + $0x2b8] sm:$0xff]
    %v271 = vld [vmem:[#allocation2 + $0x2c0] sm:$0xff]
    %v272 = vld [vmem:[#allocation2 + $0x2c8] sm:$0xff]
    %v273 = vld [vmem:[#allocation2 + $0x2d0] sm:$0xff]
    %v274 = vld [vmem:[#allocation2 + $0x2d8] sm:$0xff]
    %v275 = vld [vmem:[#allocation2 + $0x2e0] sm:$0xff]
    %v276 = vld [vmem:[#allocation2 + $0x2e8] sm:$0xff]
    %v277 = vld [vmem:[#allocation2 + $0x2f0] sm:$0xff]
    %v278 = vld [vmem:[#allocation2 + $0x2f8] sm:$0xff]
    %v279 = vld [vmem:[#allocation2 + $0x300] sm:$0xff]
    %v280 = vld [vmem:[#allocation2 + $0x308] sm:$0xff]
    %v281 = vld [vmem:[#allocation2 + $0x310] sm:$0xff]
    %v282 = vld [vmem:[#allocation2 + $0x318] sm:$0xff]
    %v283 = vld [vmem:[#allocation2 + $0x320] sm:$0xff]
    %v284 = vld [vmem:[#allocation2 + $0x328] sm:$0xff]
    %v285 = vld [vmem:[#allocation2 + $0x330] sm:$0xff]
    %v286 = vld [vmem:[#allocation2 + $0x338] sm:$0xff]
    %v287 = vld [vmem:[#allocation2 + $0x340] sm:$0xff]
    %v288 = vld [vmem:[#allocation2 + $0x348] sm:$0xff]
    %v289 = vld [vmem:[#allocation2 + $0x350] sm:$0xff]
    %v290 = vld [vmem:[#allocation2 + $0x358] sm:$0xff]
    %v291 = vld [vmem:[#allocation2 + $0x360] sm:$0xff]
    %v292 = vld [vmem:[#allocation2 + $0x368] sm:$0xff]
    %v293 = vld [vmem:[#allocation2 + $0x370] sm:$0xff]
    %v294 = vld [vmem:[#allocation2 + $0x378] sm:$0xff]
    %v295 = vld [vmem:[#allocation2 + $0x380] sm:$0xff]
    %v296 = vld [vmem:[#allocation2 + $0x388] sm:$0xff]
    %v297 = vld [vmem:[#allocation2 + $0x390] sm:$0xff]
    %v298 = vld [vmem:[#allocation2 + $0x398] sm:$0xff]
    %v299 = vld [vmem:[#allocation2 + $0x3a0] sm:$0xff]
    %v300 = vld [vmem:[#allocation2 + $0x3a8] sm:$0xff]
    %v301 = vld [vmem:[#allocation2 + $0x3b0] sm:$0xff]
    %v302 = vld [vmem:[#allocation2 + $0x3b8] sm:$0xff]
    %v303 = vld [vmem:[#allocation2 + $0x3c0] sm:$0xff]
    %v304 = vld [vmem:[#allocation2 + $0x3c8] sm:$0xff]
    %v305 = vld [vmem:[#allocation2 + $0x3d0] sm:$0xff]
    %v306 = vld [vmem:[#allocation2 + $0x3d8] sm:$0xff]
    %v307 = vld [vmem:[#allocation2 + $0x3e0] sm:$0xff]
    %v308 = vld [vmem:[#allocation2 + $0x3e8] sm:$0xff]
    %v309 = vld [vmem:[#allocation2 + $0x3f0] sm:$0xff]
    %v310 = vld [vmem:[#allocation2 + $0x3f8] sm:$0xff]
    %v311 = vld [vmem:[#allocation2 + $0x400] sm:$0xff]
    %v312 = vld [vmem:[#allocation2 + $0x408] sm:$0xff]
    %v313 = vld [vmem:[#allocation2 + $0x410] sm:$0xff]
    %v314 = vld [vmem:[#allocation2 + $0x418] sm:$0xff]
    %v315 = vld [vmem:[#allocation2 + $0x420] sm:$0xff]
    %v316 = vld [vmem:[#allocation2 + $0x428] sm:$0xff]
    %v317 = vld [vmem:[#allocation2 + $0x430] sm:$0xff]
    %v318 = vld [vmem:[#allocation2 + $0x438] sm:$0xff]
    %v455 = vunpack.c.l.b16 %v183
    %v456 = vunpack.c.h.b16 %v183
    %v457 = vunpack.c.l.b16 %v184
    %v458 = vunpack.c.h.b16 %v184
    %v459 = vunpack.c.l.b16 %v185
    %v460 = vunpack.c.h.b16 %v185
    %v461 = vunpack.c.l.b16 %v186
    %v462 = vunpack.c.h.b16 %v186
    %v463 = vunpack.c.l.b16 %v187
    %v464 = vunpack.c.h.b16 %v187
    %v465 = vunpack.c.l.b16 %v188
    %v466 = vunpack.c.h.b16 %v188
    %v467 = vunpack.c.l.b16 %v189
    %v468 = vunpack.c.h.b16 %v189
    %v469 = vunpack.c.l.b16 %v190
    %v470 = vunpack.c.h.b16 %v190
    %v471 = vunpack.c.l.b16 %v191
    %v472 = vunpack.c.h.b16 %v191
    %v473 = vunpack.c.l.b16 %v192
    %v474 = vunpack.c.h.b16 %v192
    %v475 = vunpack.c.l.b16 %v193
    %v476 = vunpack.c.h.b16 %v193
    %v477 = vunpack.c.l.b16 %v194
    %v478 = vunpack.c.h.b16 %v194
    %v479 = vunpack.c.l.b16 %v195
    %v480 = vunpack.c.h.b16 %v195
    %v481 = vunpack.c.l.b16 %v196
    %v482 = vunpack.c.h.b16 %v196
    %v483 = vunpack.c.l.b16 %v197
    %v484 = vunpack.c.h.b16 %v197
    %v485 = vunpack.c.l.b16 %v198
    %v486 = vunpack.c.h.b16 %v198
    %v487 = vunpack.c.l.b16 %v199
    %v488 = vunpack.c.h.b16 %v199
    %v489 = vunpack.c.l.b16 %v200
    %v490 = vunpack.c.h.b16 %v200
    %v491 = vunpack.c.l.b16 %v201
    %v492 = vunpack.c.h.b16 %v201
    %v493 = vunpack.c.l.b16 %v202
    %v494 = vunpack.c.h.b16 %v202
    %v495 = vunpack.c.l.b16 %v203
    %v496 = vunpack.c.h.b16 %v203
    %v497 = vunpack.c.l.b16 %v204
    %v498 = vunpack.c.h.b16 %v204
    %v499 = vunpack.c.l.b16 %v205
    %v500 = vunpack.c.h.b16 %v205
    %v501 = vunpack.c.l.b16 %v206
    %v502 = vunpack.c.h.b16 %v206
    %v503 = vunpack.c.l.b16 %v207
    %v504 = vunpack.c.h.b16 %v207
    %v505 = vunpack.c.l.b16 %v208
    %v506 = vunpack.c.h.b16 %v208
    %v507 = vunpack.c.l.b16 %v209
    %v508 = vunpack.c.h.b16 %v209
    %v509 = vunpack.c.l.b16 %v210
    %v510 = vunpack.c.h.b16 %v210
    %v511 = vunpack.c.l.b16 %v211
    %v512 = vunpack.c.h.b16 %v211
    %v513 = vunpack.c.l.b16 %v212
    %v514 = vunpack.c.h.b16 %v212
    %v515 = vunpack.c.l.b16 %v213
    %v516 = vunpack.c.h.b16 %v213
    %v517 = vunpack.c.l.b16 %v214
    %v518 = vunpack.c.h.b16 %v214
    %v519 = vunpack.c.l.b16 %v215
    %v520 = vunpack.c.h.b16 %v215
    %v521 = vunpack.c.l.b16 %v216
    %v522 = vunpack.c.h.b16 %v216
    %v523 = vunpack.c.l.b16 %v217
    %v524 = vunpack.c.h.b16 %v217
    %v525 = vunpack.c.l.b16 %v218
    %v526 = vunpack.c.h.b16 %v218
    %v527 = vunpack.c.l.b16 %v219
    %v528 = vunpack.c.h.b16 %v219
    %v529 = vunpack.c.l.b16 %v220
    %v530 = vunpack.c.h.b16 %v220
    %v531 = vunpack.c.l.b16 %v221
    %v532 = vunpack.c.h.b16 %v221
    %v533 = vunpack.c.l.b16 %v222
    %v534 = vunpack.c.h.b16 %v222
    %v535 = vunpack.c.l.b16 %v223
    %v536 = vunpack.c.h.b16 %v223
    %v537 = vunpack.c.l.b16 %v224
    %v538 = vunpack.c.h.b16 %v224
    %v539 = vunpack.c.l.b16 %v225
    %v540 = vunpack.c.h.b16 %v225
    %v541 = vunpack.c.l.b16 %v226
    %v542 = vunpack.c.h.b16 %v226
    %v543 = vunpack.c.l.b16 %v227
    %v544 = vunpack.c.h.b16 %v227
    %v545 = vunpack.c.l.b16 %v228
    %v546 = vunpack.c.h.b16 %v228
    %v547 = vunpack.c.l.b16 %v229
    %v548 = vunpack.c.h.b16 %v229
    %v549 = vunpack.c.l.b16 %v230
    %v550 = vunpack.c.h.b16 %v230
    %v551 = vunpack.c.l.b16 %v231
    %v552 = vunpack.c.h.b16 %v231
    %v553 = vunpack.c.l.b16 %v232
    %v554 = vunpack.c.h.b16 %v232
    %v555 = vunpack.c.l.b16 %v233
    %v556 = vunpack.c.h.b16 %v233
    %v557 = vunpack.c.l.b16 %v234
    %v558 = vunpack.c.h.b16 %v234
    %v559 = vunpack.c.l.b16 %v235
    %v560 = vunpack.c.h.b16 %v235
    %v561 = vunpack.c.l.b16 %v236
    %v562 = vunpack.c.h.b16 %v236
    %v563 = vunpack.c.l.b16 %v237
    %v564 = vunpack.c.h.b16 %v237
    %v565 = vunpack.c.l.b16 %v238
    %v566 = vunpack.c.h.b16 %v238
    %v567 = vunpack.c.l.b16 %v239
    %v568 = vunpack.c.h.b16 %v239
    %v569 = vunpack.c.l.b16 %v240
    %v570 = vunpack.c.h.b16 %v240
    %v571 = vunpack.c.l.b16 %v241
    %v572 = vunpack.c.h.b16 %v241
    %v573 = vunpack.c.l.b16 %v242
    %v574 = vunpack.c.h.b16 %v242
    %v575 = vunpack.c.l.b16 %v243
    %v576 = vunpack.c.h.b16 %v243
    %v577 = vunpack.c.l.b16 %v244
    %v578 = vunpack.c.h.b16 %v244
    %v579 = vunpack.c.l.b16 %v245
    %v580 = vunpack.c.h.b16 %v245
    %v581 = vunpack.c.l.b16 %v246
    %v582 = vunpack.c.h.b16 %v246
    %v583 = vunpack.c.l.b16 %v247
    %v584 = vunpack.c.h.b16 %v247
    %v585 = vunpack.c.l.b16 %v248
    %v586 = vunpack.c.h.b16 %v248
    %v587 = vunpack.c.l.b16 %v249
    %v588 = vunpack.c.h.b16 %v249
    %v589 = vunpack.c.l.b16 %v250
    %v590 = vunpack.c.h.b16 %v250
    %v591 = vunpack.c.l.b16 %v251
    %v592 = vunpack.c.h.b16 %v251
    %v593 = vunpack.c.l.b16 %v252
    %v594 = vunpack.c.h.b16 %v252
    %v595 = vunpack.c.l.b16 %v253
    %v596 = vunpack.c.h.b16 %v253
    %v597 = vunpack.c.l.b16 %v254
    %v598 = vunpack.c.h.b16 %v254
    %v599 = vunpack.c.l.b16 %v255
    %v600 = vunpack.c.h.b16 %v255
    %v601 = vunpack.c.l.b16 %v256
    %v602 = vunpack.c.h.b16 %v256
    %v603 = vunpack.c.l.b16 %v257
    %v604 = vunpack.c.h.b16 %v257
    %v605 = vunpack.c.l.b16 %v258
    %v606 = vunpack.c.h.b16 %v258
    %v607 = vunpack.c.l.b16 %v259
    %v608 = vunpack.c.h.b16 %v259
    %v609 = vunpack.c.l.b16 %v260
    %v610 = vunpack.c.h.b16 %v260
    %v611 = vunpack.c.l.b16 %v261
    %v612 = vunpack.c.h.b16 %v261
    %v613 = vunpack.c.l.b16 %v262
    %v614 = vunpack.c.h.b16 %v262
    %v615 = vunpack.c.l.b16 %v263
    %v616 = vunpack.c.h.b16 %v263
    %v617 = vunpack.c.l.b16 %v264
    %v618 = vunpack.c.h.b16 %v264
    %v619 = vunpack.c.l.b16 %v265
    %v620 = vunpack.c.h.b16 %v265
    %v621 = vunpack.c.l.b16 %v266
    %v622 = vunpack.c.h.b16 %v266
    %v623 = vunpack.c.l.b16 %v267
    %v624 = vunpack.c.h.b16 %v267
    %v625 = vunpack.c.l.b16 %v268
    %v626 = vunpack.c.h.b16 %v268
    %v627 = vunpack.c.l.b16 %v269
    %v628 = vunpack.c.h.b16 %v269
    %v629 = vunpack.c.l.b16 %v270
    %v630 = vunpack.c.h.b16 %v270
    %v631 = vunpack.c.l.b16 %v271
    %v632 = vunpack.c.h.b16 %v271
    %v633 = vunpack.c.l.b16 %v272
    %v634 = vunpack.c.h.b16 %v272
    %v635 = vunpack.c.l.b16 %v273
    %v636 = vunpack.c.h.b16 %v273
    %v637 = vunpack.c.l.b16 %v274
    %v638 = vunpack.c.h.b16 %v274
    %v639 = vunpack.c.l.b16 %v275
    %v640 = vunpack.c.h.b16 %v275
    %v641 = vunpack.c.l.b16 %v276
    %v642 = vunpack.c.h.b16 %v276
    %v643 = vunpack.c.l.b16 %v277
    %v644 = vunpack.c.h.b16 %v277
    %v645 = vunpack.c.l.b16 %v278
    %v646 = vunpack.c.h.b16 %v278
    %v647 = vunpack.c.l.b16 %v279
    %v648 = vunpack.c.h.b16 %v279
    %v649 = vunpack.c.l.b16 %v280
    %v650 = vunpack.c.h.b16 %v280
    %v651 = vunpack.c.l.b16 %v281
    %v652 = vunpack.c.h.b16 %v281
    %v653 = vunpack.c.l.b16 %v282
    %v654 = vunpack.c.h.b16 %v282
    %v655 = vunpack.c.l.b16 %v283
    %v656 = vunpack.c.h.b16 %v283
    %v657 = vunpack.c.l.b16 %v284
    %v658 = vunpack.c.h.b16 %v284
    %v659 = vunpack.c.l.b16 %v285
    %v660 = vunpack.c.h.b16 %v285
    %v661 = vunpack.c.l.b16 %v286
    %v662 = vunpack.c.h.b16 %v286
    %v663 = vunpack.c.l.b16 %v287
    %v664 = vunpack.c.h.b16 %v287
    %v665 = vunpack.c.l.b16 %v288
    %v666 = vunpack.c.h.b16 %v288
    %v667 = vunpack.c.l.b16 %v289
    %v668 = vunpack.c.h.b16 %v289
    %v669 = vunpack.c.l.b16 %v290
    %v670 = vunpack.c.h.b16 %v290
    %v671 = vunpack.c.l.b16 %v291
    %v672 = vunpack.c.h.b16 %v291
    %v673 = vunpack.c.l.b16 %v292
    %v674 = vunpack.c.h.b16 %v292
    %v675 = vunpack.c.l.b16 %v293
    %v676 = vunpack.c.h.b16 %v293
    %v677 = vunpack.c.l.b16 %v294
    %v678 = vunpack.c.h.b16 %v294
    %v679 = vunpack.c.l.b16 %v295
    %v680 = vunpack.c.h.b16 %v295
    %v681 = vunpack.c.l.b16 %v296
    %v682 = vunpack.c.h.b16 %v296
    %v683 = vunpack.c.l.b16 %v297
    %v684 = vunpack.c.h.b16 %v297
    %v685 = vunpack.c.l.b16 %v298
    %v686 = vunpack.c.h.b16 %v298
    %v687 = vunpack.c.l.b16 %v299
    %v688 = vunpack.c.h.b16 %v299
    %v689 = vunpack.c.l.b16 %v300
    %v690 = vunpack.c.h.b16 %v300
    %v691 = vunpack.c.l.b16 %v301
    %v692 = vunpack.c.h.b16 %v301
    %v693 = vunpack.c.l.b16 %v302
    %v694 = vunpack.c.h.b16 %v302
    %v695 = vunpack.c.l.b16 %v303
    %v696 = vunpack.c.h.b16 %v303
    %v697 = vunpack.c.l.b16 %v304
    %v698 = vunpack.c.h.b16 %v304
    %v699 = vunpack.c.l.b16 %v305
    %v700 = vunpack.c.h.b16 %v305
    %v701 = vunpack.c.l.b16 %v306
    %v702 = vunpack.c.h.b16 %v306
    %v703 = vunpack.c.l.b16 %v307
    %v704 = vunpack.c.h.b16 %v307
    %v705 = vunpack.c.l.b16 %v308
    %v706 = vunpack.c.h.b16 %v308
    %v707 = vunpack.c.l.b16 %v309
    %v708 = vunpack.c.h.b16 %v309
    %v709 = vunpack.c.l.b16 %v310
    %v710 = vunpack.c.h.b16 %v310
    %v711 = vunpack.c.l.b16 %v311
    %v712 = vunpack.c.h.b16 %v311
    %v713 = vunpack.c.l.b16 %v312
    %v714 = vunpack.c.h.b16 %v312
    %v715 = vunpack.c.l.b16 %v313
    %v716 = vunpack.c.h.b16 %v313
    %v717 = vunpack.c.l.b16 %v314
    %v718 = vunpack.c.h.b16 %v314
    %v719 = vunpack.c.l.b16 %v315
    %v720 = vunpack.c.h.b16 %v315
    %v721 = vunpack.c.l.b16 %v316
    %v722 = vunpack.c.h.b16 %v316
    %v723 = vunpack.c.l.b16 %v317
    %v724 = vunpack.c.h.b16 %v317
    %v725 = vunpack.c.l.b16 %v318
    %v726 = vunpack.c.h.b16 %v318
    %v727 = vpack.c.b16 %v489, %v455
    %v728 = vpack.c.b16 %v490, %v456
    %v729 = vpack.c.b16 %v491, %v457
    %v730 = vpack.c.b16 %v492, %v458
    %v731 = vpack.c.b16 %v493, %v459
    %v732 = vpack.c.b16 %v494, %v460
    %v733 = vpack.c.b16 %v495, %v461
    %v734 = vpack.c.b16 %v496, %v462
    %v735 = vpack.c.b16 %v497, %v463
    %v736 = vpack.c.b16 %v498, %v464
    %v737 = vpack.c.b16 %v499, %v465
    %v738 = vpack.c.b16 %v500, %v466
    %v739 = vpack.c.b16 %v501, %v467
    %v740 = vpack.c.b16 %v502, %v468
    %v741 = vpack.c.b16 %v503, %v469
    %v742 = vpack.c.b16 %v504, %v470
    %v743 = vpack.c.b16 %v505, %v471
    %v744 = vpack.c.b16 %v506, %v472
    %v745 = vpack.c.b16 %v507, %v473
    %v746 = vpack.c.b16 %v508, %v474
    %v747 = vpack.c.b16 %v509, %v475
    %v748 = vpack.c.b16 %v510, %v476
    %v749 = vpack.c.b16 %v511, %v477
    %v750 = vpack.c.b16 %v512, %v478
    %v751 = vpack.c.b16 %v513, %v479
    %v752 = vpack.c.b16 %v514, %v480
    %v753 = vpack.c.b16 %v515, %v481
    %v754 = vpack.c.b16 %v516, %v482
    %v755 = vpack.c.b16 %v517, %v483
    %v756 = vpack.c.b16 %v518, %v484
    %v757 = vpack.c.b16 %v519, %v485
    %v758 = vpack.c.b16 %v520, %v486
    %v759 = vpack.c.b16 %v521, %v487
    %v760 = vpack.c.b16 %v522, %v488
    %v761 = vpack.c.b16 %v557, %v523
    %v762 = vpack.c.b16 %v558, %v524
    %v763 = vpack.c.b16 %v559, %v525
    %v764 = vpack.c.b16 %v560, %v526
    %v765 = vpack.c.b16 %v561, %v527
    %v766 = vpack.c.b16 %v562, %v528
    %v767 = vpack.c.b16 %v563, %v529
    %v768 = vpack.c.b16 %v564, %v530
    %v769 = vpack.c.b16 %v565, %v531
    %v770 = vpack.c.b16 %v566, %v532
    %v771 = vpack.c.b16 %v567, %v533
    %v772 = vpack.c.b16 %v568, %v534
    %v773 = vpack.c.b16 %v569, %v535
    %v774 = vpack.c.b16 %v570, %v536
    %v775 = vpack.c.b16 %v571, %v537
    %v776 = vpack.c.b16 %v572, %v538
    %v777 = vpack.c.b16 %v573, %v539
    %v778 = vpack.c.b16 %v574, %v540
    %v779 = vpack.c.b16 %v575, %v541
    %v780 = vpack.c.b16 %v576, %v542
    %v781 = vpack.c.b16 %v577, %v543
    %v782 = vpack.c.b16 %v578, %v544
    %v783 = vpack.c.b16 %v579, %v545
    %v784 = vpack.c.b16 %v580, %v546
    %v785 = vpack.c.b16 %v581, %v547
    %v786 = vpack.c.b16 %v582, %v548
    %v787 = vpack.c.b16 %v583, %v549
    %v788 = vpack.c.b16 %v584, %v550
    %v789 = vpack.c.b16 %v585, %v551
    %v790 = vpack.c.b16 %v586, %v552
    %v791 = vpack.c.b16 %v587, %v553
    %v792 = vpack.c.b16 %v588, %v554
    %v793 = vpack.c.b16 %v589, %v555
    %v794 = vpack.c.b16 %v590, %v556
    %v795 = vpack.c.b16 %v625, %v591
    %v796 = vpack.c.b16 %v626, %v592
    %v797 = vpack.c.b16 %v627, %v593
    %v798 = vpack.c.b16 %v628, %v594
    %v799 = vpack.c.b16 %v629, %v595
    %v800 = vpack.c.b16 %v630, %v596
    %v801 = vpack.c.b16 %v631, %v597
    %v802 = vpack.c.b16 %v632, %v598
    %v803 = vpack.c.b16 %v633, %v599
    %v804 = vpack.c.b16 %v634, %v600
    %v805 = vpack.c.b16 %v635, %v601
    %v806 = vpack.c.b16 %v636, %v602
    %v807 = vpack.c.b16 %v637, %v603
    %v808 = vpack.c.b16 %v638, %v604
    %v809 = vpack.c.b16 %v639, %v605
    %v810 = vpack.c.b16 %v640, %v606
    %v811 = vpack.c.b16 %v641, %v607
    %v812 = vpack.c.b16 %v642, %v608
    %v813 = vpack.c.b16 %v643, %v609
    %v814 = vpack.c.b16 %v644, %v610
    %v815 = vpack.c.b16 %v645, %v611
    %v816 = vpack.c.b16 %v646, %v612
    %v817 = vpack.c.b16 %v647, %v613
    %v818 = vpack.c.b16 %v648, %v614
    %v819 = vpack.c.b16 %v649, %v615
    %v820 = vpack.c.b16 %v650, %v616
    %v821 = vpack.c.b16 %v651, %v617
    %v822 = vpack.c.b16 %v652, %v618
    %v823 = vpack.c.b16 %v653, %v619
    %v824 = vpack.c.b16 %v654, %v620
    %v825 = vpack.c.b16 %v655, %v621
    %v826 = vpack.c.b16 %v656, %v622
    %v827 = vpack.c.b16 %v657, %v623
    %v828 = vpack.c.b16 %v658, %v624
    %v829 = vpack.c.b16 %v693, %v659
    %v830 = vpack.c.b16 %v694, %v660
    %v831 = vpack.c.b16 %v695, %v661
    %v832 = vpack.c.b16 %v696, %v662
    %v833 = vpack.c.b16 %v697, %v663
    %v834 = vpack.c.b16 %v698, %v664
    %v835 = vpack.c.b16 %v699, %v665
    %v836 = vpack.c.b16 %v700, %v666
    %v837 = vpack.c.b16 %v701, %v667
    %v838 = vpack.c.b16 %v702, %v668
    %v839 = vpack.c.b16 %v703, %v669
    %v840 = vpack.c.b16 %v704, %v670
    %v841 = vpack.c.b16 %v705, %v671
    %v842 = vpack.c.b16 %v706, %v672
    %v843 = vpack.c.b16 %v707, %v673
    %v844 = vpack.c.b16 %v708, %v674
    %v845 = vpack.c.b16 %v709, %v675
    %v846 = vpack.c.b16 %v710, %v676
    %v847 = vpack.c.b16 %v711, %v677
    %v848 = vpack.c.b16 %v712, %v678
    %v849 = vpack.c.b16 %v713, %v679
    %v850 = vpack.c.b16 %v714, %v680
    %v851 = vpack.c.b16 %v715, %v681
    %v852 = vpack.c.b16 %v716, %v682
    %v853 = vpack.c.b16 %v717, %v683
    %v854 = vpack.c.b16 %v718, %v684
    %v855 = vpack.c.b16 %v719, %v685
    %v856 = vpack.c.b16 %v720, %v686
    %v857 = vpack.c.b16 %v721, %v687
    %v858 = vpack.c.b16 %v722, %v688
    %v859 = vpack.c.b16 %v723, %v689
    %v860 = vpack.c.b16 %v724, %v690
    %v861 = vpack.c.b16 %v725, %v691
    %v862 = vpack.c.b16 %v726, %v692
    %vm999 = vcmask 523264
    %v1001 = vsel %vm999, %v167, 0
    %v1004 = vsel %vm999, %v168, 0
    %v1007 = vsel %vm999, %v169, 0
    %v1010 = vsel %vm999, %v170, 0
    %v1013 = vsel %vm999, %v171, 0
    %v1016 = vsel %vm999, %v172, 0
    %v1019 = vsel %vm999, %v173, 0
    %v1022 = vsel %vm999, %v174, 0
    %v1025 = vsel %vm999, %v175, 0
    %v1028 = vsel %vm999, %v176, 0
    %v1031 = vsel %vm999, %v177, 0
    %v1034 = vsel %vm999, %v178, 0
    %v1037 = vsel %vm999, %v179, 0
    %v1040 = vsel %vm999, %v180, 0
    %v1043 = vsel %vm999, %v181, 0
    %v1046 = vsel %vm999, %v182, 0
    %1048 = vmatprep.subr.bf16.mxu0 %v728
    %1049 = vmatpush1.bf16.msra.mxu0 %v727
    %1050 = vmatprep.subr.bf16.mxu0 %v762
    %1051 = vmatpush1.bf16.msra.mxu0 %v761
    %1052 = vmatprep.subr.bf16.mxu0 %v796
    %1053 = vmatpush1.bf16.msra.mxu0 %v795
    %1054 = vmatprep.subr.bf16.mxu0 %v830
    %1055 = vmatpush1.bf16.msra.mxu0 %v829
    %1056 = vmatprep.subr.bf16.mxu0 0
    %1057 = vmatpush1.bf16.msra.mxu0 0
    %1058 = vmatprep.subr.bf16.mxu0 0
    %1059 = vmatpush1.bf16.msra.mxu0 0
    %1060 = vmatprep.subr.bf16.mxu0 0
    %1061 = vmatpush1.bf16.msra.mxu0 0
    %1062 = vmatprep.subr.bf16.mxu0 0
    %1063 = vmatpush1.bf16.msra.mxu0 0
    %1064 = vmatprep.subr.bf16.mxu0 0
    %1065 = vmatpush1.bf16.msra.mxu0 0
    %1066 = vmatprep.subr.bf16.mxu0 0
    %1067 = vmatpush1.bf16.msra.mxu0 0
    %1068 = vmatprep.subr.bf16.mxu0 0
    %1069 = vmatpush1.bf16.msra.mxu0 0
    %1070 = vmatprep.subr.bf16.mxu0 0
    %1071 = vmatpush1.bf16.msra.mxu0 0
    %1072 = vmatprep.subr.bf16.mxu0 0
    %1073 = vmatpush1.bf16.msra.mxu0 0
    %1074 = vmatprep.subr.bf16.mxu0 0
    %1075 = vmatpush1.bf16.msra.mxu0 0
    %1076 = vmatprep.subr.bf16.mxu0 0
    %1077 = vmatpush1.bf16.msra.mxu0 0
    %1078 = vmatprep.subr.bf16.mxu0 0
    %1079 = vmatpush1.bf16.msra.mxu0 0
    %1080 = vmatprep.mubr.bf16.mxu0 0
    %1081 = vmatmul.mubr.bf16.gmra.mrb[0].mxu0 %v1001
    %v1082 = vpop.f32.mrb[0].mxu0
    %v1083 = vadd.f32 0.0, %v1082
    %v1084 = vpop.f32.mrb[0].mxu0
    %v1085 = vadd.f32 0.0, %v1084
    %v1086 = vpop.f32.mrb[0].mxu0
    %v1087 = vadd.f32 0.0, %v1086
    %v1088 = vpop.f32.mrb[0].mxu0
    %v1089 = vadd.f32 0.0, %v1088
    %1090 = vmatprep.mubr.bf16.mxu0 0
    %1091 = vmatmul.mubr.bf16.gmra.mrb[0].mxu0 %v1004
    %v1092 = vpop.f32.mrb[0].mxu0
    %v1093 = vadd.f32 0.0, %v1092
    %v1094 = vpop.f32.mrb[0].mxu0
    %v1095 = vadd.f32 0.0, %v1094
    %v1096 = vpop.f32.mrb[0].mxu0
    %v1097 = vadd.f32 0.0, %v1096
    %v1098 = vpop.f32.mrb[0].mxu0
    %v1099 = vadd.f32 0.0, %v1098
    %1100 = vmatprep.mubr.bf16.mxu0 0
    %1101 = vmatmul.mubr.bf16.gmra.mrb[0].mxu0 %v1007
    %v1102 = vpop.f32.mrb[0].mxu0
    %v1103 = vadd.f32 0.0, %v1102
    %v1104 = vpop.f32.mrb[0].mxu0
    %v1105 = vadd.f32 0.0, %v1104
    %v1106 = vpop.f32.mrb[0].mxu0
    %v1107 = vadd.f32 0.0, %v1106
    %v1108 = vpop.f32.mrb[0].mxu0
    %v1109 = vadd.f32 0.0, %v1108
    %1110 = vmatprep.mubr.bf16.mxu0 0
    %1111 = vmatmul.mubr.bf16.gmra.mrb[0].mxu0 %v1010
    %v1112 = vpop.f32.mrb[0].mxu0
    %v1113 = vadd.f32 0.0, %v1112
    %v1114 = vpop.f32.mrb[0].mxu0
    %v1115 = vadd.f32 0.0, %v1114
    %v1116 = vpop.f32.mrb[0].mxu0
    %v1117 = vadd.f32 0.0, %v1116
    %v1118 = vpop.f32.mrb[0].mxu0
    %v1119 = vadd.f32 0.0, %v1118
    %1120 = vmatprep.mubr.bf16.mxu0 0
    %1121 = vmatmul.mubr.bf16.gmra.mrb[0].mxu0 %v1013
    %v1122 = vpop.f32.mrb[0].mxu0
    %v1123 = vadd.f32 0.0, %v1122
    %v1124 = vpop.f32.mrb[0].mxu0
    %v1125 = vadd.f32 0.0, %v1124
    %v1126 = vpop.f32.mrb[0].mxu0
    %v1127 = vadd.f32 0.0, %v1126
    %v1128 = vpop.f32.mrb[0].mxu0
    %v1129 = vadd.f32 0.0, %v1128
    %1130 = vmatprep.mubr.bf16.mxu0 0
    %1131 = vmatmul.mubr.bf16.gmra.mrb[0].mxu0 %v1016
    %v1132 = vpop.f32.mrb[0].mxu0
    %v1133 = vadd.f32 0.0, %v1132
    %v1134 = vpop.f32.mrb[0].mxu0
    %v1135 = vadd.f32 0.0, %v1134
    %v1136 = vpop.f32.mrb[0].mxu0
    %v1137 = vadd.f32 0.0, %v1136
    %v1138 = vpop.f32.mrb[0].mxu0
    %v1139 = vadd.f32 0.0, %v1138
    %1140 = vmatprep.mubr.bf16.mxu0 0
    %1141 = vmatmul.mubr.bf16.gmra.mrb[0].mxu0 %v1019
    %v1142 = vpop.f32.mrb[0].mxu0
    %v1143 = vadd.f32 0.0, %v1142
    %v1144 = vpop.f32.mrb[0].mxu0
    %v1145 = vadd.f32 0.0, %v1144
    %v1146 = vpop.f32.mrb[0].mxu0
    %v1147 = vadd.f32 0.0, %v1146
    %v1148 = vpop.f32.mrb[0].mxu0
    %v1149 = vadd.f32 0.0, %v1148
    %1150 = vmatprep.mubr.bf16.mxu0 0
    %1151 = vmatmul.mubr.bf16.gmra.mrb[0].mxu0 %v1022
    %v1152 = vpop.f32.mrb[0].mxu0
    %v1153 = vadd.f32 0.0, %v1152
    %v1154 = vpop.f32.mrb[0].mxu0
    %v1155 = vadd.f32 0.0, %v1154
    %v1156 = vpop.f32.mrb[0].mxu0
    %v1157 = vadd.f32 0.0, %v1156
    %v1158 = vpop.f32.mrb[0].mxu0
    %v1159 = vadd.f32 0.0, %v1158
    %1160 = vmatprep.mubr.bf16.mxu0 0
    %1161 = vmatmul.mubr.bf16.gmra.mrb[0].mxu0 %v1025
    %v1162 = vpop.f32.mrb[0].mxu0
    %v1163 = vadd.f32 0.0, %v1162
    %v1164 = vpop.f32.mrb[0].mxu0
    %v1165 = vadd.f32 0.0, %v1164
    %v1166 = vpop.f32.mrb[0].mxu0
    %v1167 = vadd.f32 0.0, %v1166
    %v1168 = vpop.f32.mrb[0].mxu0
    %v1169 = vadd.f32 0.0, %v1168
    %1170 = vmatprep.mubr.bf16.mxu0 0
    %1171 = vmatmul.mubr.bf16.gmra.mrb[0].mxu0 %v1028
    %v1172 = vpop.f32.mrb[0].mxu0
    %v1173 = vadd.f32 0.0, %v1172
    %v1174 = vpop.f32.mrb[0].mxu0
    %v1175 = vadd.f32 0.0, %v1174
    %v1176 = vpop.f32.mrb[0].mxu0
    %v1177 = vadd.f32 0.0, %v1176
    %v1178 = vpop.f32.mrb[0].mxu0
    %v1179 = vadd.f32 0.0, %v1178
    %1180 = vmatprep.mubr.bf16.mxu0 0
    %1181 = vmatmul.mubr.bf16.gmra.mrb[0].mxu0 %v1031
    %v1182 = vpop.f32.mrb[0].mxu0
    %v1183 = vadd.f32 0.0, %v1182
    %v1184 = vpop.f32.mrb[0].mxu0
    %v1185 = vadd.f32 0.0, %v1184
    %v1186 = vpop.f32.mrb[0].mxu0
    %v1187 = vadd.f32 0.0, %v1186
    %v1188 = vpop.f32.mrb[0].mxu0
    %v1189 = vadd.f32 0.0, %v1188
    %1190 = vmatprep.mubr.bf16.mxu0 0
    %1191 = vmatmul.mubr.bf16.gmra.mrb[0].mxu0 %v1034
    %v1192 = vpop.f32.mrb[0].mxu0
    %v1193 = vadd.f32 0.0, %v1192
    %v1194 = vpop.f32.mrb[0].mxu0
    %v1195 = vadd.f32 0.0, %v1194
    %v1196 = vpop.f32.mrb[0].mxu0
    %v1197 = vadd.f32 0.0, %v1196
    %v1198 = vpop.f32.mrb[0].mxu0
    %v1199 = vadd.f32 0.0, %v1198
    %1200 = vmatprep.mubr.bf16.mxu0 0
    %1201 = vmatmul.mubr.bf16.gmra.mrb[0].mxu0 %v1037
    %v1202 = vpop.f32.mrb[0].mxu0
    %v1203 = vadd.f32 0.0, %v1202
    %v1204 = vpop.f32.mrb[0].mxu0
    %v1205 = vadd.f32 0.0, %v1204
    %v1206 = vpop.f32.mrb[0].mxu0
    %v1207 = vadd.f32 0.0, %v1206
    %v1208 = vpop.f32.mrb[0].mxu0
    %v1209 = vadd.f32 0.0, %v1208
    %1210 = vmatprep.mubr.bf16.mxu0 0
    %1211 = vmatmul.mubr.bf16.gmra.mrb[0].mxu0 %v1040
    %v1212 = vpop.f32.mrb[0].mxu0
    %v1213 = vadd.f32 0.0, %v1212
    %v1214 = vpop.f32.mrb[0].mxu0
    %v1215 = vadd.f32 0.0, %v1214
    %v1216 = vpop.f32.mrb[0].mxu0
    %v1217 = vadd.f32 0.0, %v1216
    %v1218 = vpop.f32.mrb[0].mxu0
    %v1219 = vadd.f32 0.0, %v1218
    %1220 = vmatprep.mubr.bf16.mxu0 0
    %1221 = vmatmul.mubr.bf16.gmra.mrb[0].mxu0 %v1043
    %v1222 = vpop.f32.mrb[0].mxu0
    %v1223 = vadd.f32 0.0, %v1222
    %v1224 = vpop.f32.mrb[0].mxu0
    %v1225 = vadd.f32 0.0, %v1224
    %v1226 = vpop.f32.mrb[0].mxu0
    %v1227 = vadd.f32 0.0, %v1226
    %v1228 = vpop.f32.mrb[0].mxu0
    %v1229 = vadd.f32 0.0, %v1228
    %1230 = vmatprep.mubr.bf16.mxu0 0
    %1231 = vmatmul.mubr.bf16.gmra.mrb[0].mxu0 %v1046
    %v1232 = vpop.f32.mrb[0].mxu0
    %v1233 = vadd.f32 0.0, %v1232
    %v1234 = vpop.f32.mrb[0].mxu0
    %v1235 = vadd.f32 0.0, %v1234
    %v1236 = vpop.f32.mrb[0].mxu0
    %v1237 = vadd.f32 0.0, %v1236
    %v1238 = vpop.f32.mrb[0].mxu0
    %v1239 = vadd.f32 0.0, %v1238
    %1240 = vdwg.mxu0
    %1241 = vmatprep.subr.bf16.mxu0 %v730
    %1242 = vmatpush1.bf16.msra.mxu0 %v729
    %1243 = vmatprep.subr.bf16.mxu0 %v764
    %1244 = vmatpush1.bf16.msra.mxu0 %v763
    %1245 = vmatprep.subr.bf16.mxu0 %v798
    %1246 = vmatpush1.bf16.msra.mxu0 %v797
    %1247 = vmatprep.subr.bf16.mxu0 %v832
    %1248 = vmatpush1.bf16.msra.mxu0 %v831
    %1249 = vmatprep.subr.bf16.mxu0 0
    %1250 = vmatpush1.bf16.msra.mxu0 0
    %1251 = vmatprep.subr.bf16.mxu0 0
    %1252 = vmatpush1.bf16.msra.mxu0 0
    %1253 = vmatprep.subr.bf16.mxu0 0
    %1254 = vmatpush1.bf16.msra.mxu0 0
    %1255 = vmatprep.subr.bf16.mxu0 0
    %1256 = vmatpush1.bf16.msra.mxu0 0
    %1257 = vmatprep.subr.bf16.mxu0 0
    %1258 = vmatpush1.bf16.msra.mxu0 0
    %1259 = vmatprep.subr.bf16.mxu0 0
    %1260 = vmatpush1.bf16.msra.mxu0 0
    %1261 = vmatprep.subr.bf16.mxu0 0
    %1262 = vmatpush1.bf16.msra.mxu0 0
    %1263 = vmatprep.subr.bf16.mxu0 0
    %1264 = vmatpush1.bf16.msra.mxu0 0
    %1265 = vmatprep.subr.bf16.mxu0 0
    %1266 = vmatpush1.bf16.msra.mxu0 0
    %1267 = vmatprep.subr.bf16.mxu0 0
    %1268 = vmatpush1.bf16.msra.mxu0 0
    %1269 = vmatprep.subr.bf16.mxu0 0
    %1270 = vmatpush1.bf16.msra.mxu0 0
    %1271 = vmatprep.subr.bf16.mxu0 0
    %1272 = vmatpush1.bf16.msra.mxu0 0
    %1273 = vmatprep.mubr.bf16.mxu0 0
    %1274 = vmatmul.mubr.bf16.gmra.mrb[0].mxu0 %v1001
    %v1275 = vpop.f32.mrb[0].mxu0
    %v1276 = vadd.f32 0.0, %v1275
    %v1277 = vpop.f32.mrb[0].mxu0
    %v1278 = vadd.f32 0.0, %v1277
    %v1279 = vpop.f32.mrb[0].mxu0
    %v1280 = vadd.f32 0.0, %v1279
    %v1281 = vpop.f32.mrb[0].mxu0
    %v1282 = vadd.f32 0.0, %v1281
    %1283 = vmatprep.mubr.bf16.mxu0 0
    %1284 = vmatmul.mubr.bf16.gmra.mrb[0].mxu0 %v1004
    %v1285 = vpop.f32.mrb[0].mxu0
    %v1286 = vadd.f32 0.0, %v1285
    %v1287 = vpop.f32.mrb[0].mxu0
    %v1288 = vadd.f32 0.0, %v1287
    %v1289 = vpop.f32.mrb[0].mxu0
    %v1290 = vadd.f32 0.0, %v1289
    %v1291 = vpop.f32.mrb[0].mxu0
    %v1292 = vadd.f32 0.0, %v1291
    %1293 = vmatprep.mubr.bf16.mxu0 0
    %1294 = vmatmul.mubr.bf16.gmra.mrb[0].mxu0 %v1007
    %v1295 = vpop.f32.mrb[0].mxu0
    %v1296 = vadd.f32 0.0, %v1295
    %v1297 = vpop.f32.mrb[0].mxu0
    %v1298 = vadd.f32 0.0, %v1297
    %v1299 = vpop.f32.mrb[0].mxu0
    %v1300 = vadd.f32 0.0, %v1299
    %v1301 = vpop.f32.mrb[0].mxu0
    %v1302 = vadd.f32 0.0, %v1301
    %1303 = vmatprep.mubr.bf16.mxu0 0
    %1304 = vmatmul.mubr.bf16.gmra.mrb[0].mxu0 %v1010
    %v1305 = vpop.f32.mrb[0].mxu0
    %v1306 = vadd.f32 0.0, %v1305
    %v1307 = vpop.f32.mrb[0].mxu0
    %v1308 = vadd.f32 0.0, %v1307
    %v1309 = vpop.f32.mrb[0].mxu0
    %v1310 = vadd.f32 0.0, %v1309
    %v1311 = vpop.f32.mrb[0].mxu0
    %v1312 = vadd.f32 0.0, %v1311
    %1313 = vmatprep.mubr.bf16.mxu0 0
    %1314 = vmatmul.mubr.bf16.gmra.mrb[0].mxu0 %v1013
    %v1315 = vpop.f32.mrb[0].mxu0
    %v1316 = vadd.f32 0.0, %v1315
    %v1317 = vpop.f32.mrb[0].mxu0
    %v1318 = vadd.f32 0.0, %v1317
    %v1319 = vpop.f32.mrb[0].mxu0
    %v1320 = vadd.f32 0.0, %v1319
    %v1321 = vpop.f32.mrb[0].mxu0
    %v1322 = vadd.f32 0.0, %v1321
    %1323 = vmatprep.mubr.bf16.mxu0 0
    %1324 = vmatmul.mubr.bf16.gmra.mrb[0].mxu0 %v1016
    %v1325 = vpop.f32.mrb[0].mxu0
    %v1326 = vadd.f32 0.0, %v1325
    %v1327 = vpop.f32.mrb[0].mxu0
    %v1328 = vadd.f32 0.0, %v1327
    %v1329 = vpop.f32.mrb[0].mxu0
    %v1330 = vadd.f32 0.0, %v1329
    %v1331 = vpop.f32.mrb[0].mxu0
    %v1332 = vadd.f32 0.0, %v1331
    %1333 = vmatprep.mubr.bf16.mxu0 0
    %1334 = vmatmul.mubr.bf16.gmra.mrb[0].mxu0 %v1019
    %v1335 = vpop.f32.mrb[0].mxu0
    %v1336 = vadd.f32 0.0, %v1335
    %v1337 = vpop.f32.mrb[0].mxu0
    %v1338 = vadd.f32 0.0, %v1337
    %v1339 = vpop.f32.mrb[0].mxu0
    %v1340 = vadd.f32 0.0, %v1339
    %v1341 = vpop.f32.mrb[0].mxu0
    %v1342 = vadd.f32 0.0, %v1341
    %1343 = vmatprep.mubr.bf16.mxu0 0
    %1344 = vmatmul.mubr.bf16.gmra.mrb[0].mxu0 %v1022
    %v1345 = vpop.f32.mrb[0].mxu0
    %v1346 = vadd.f32 0.0, %v1345
    %v1347 = vpop.f32.mrb[0].mxu0
    %v1348 = vadd.f32 0.0, %v1347
    %v1349 = vpop.f32.mrb[0].mxu0
    %v1350 = vadd.f32 0.0, %v1349
    %v1351 = vpop.f32.mrb[0].mxu0
    %v1352 = vadd.f32 0.0, %v1351
    %1353 = vmatprep.mubr.bf16.mxu0 0
    %1354 = vmatmul.mubr.bf16.gmra.mrb[0].mxu0 %v1025
    %v1355 = vpop.f32.mrb[0].mxu0
    %v1356 = vadd.f32 0.0, %v1355
    %v1357 = vpop.f32.mrb[0].mxu0
    %v1358 = vadd.f32 0.0, %v1357
    %v1359 = vpop.f32.mrb[0].mxu0
    %v1360 = vadd.f32 0.0, %v1359
    %v1361 = vpop.f32.mrb[0].mxu0
    %v1362 = vadd.f32 0.0, %v1361
    %1363 = vmatprep.mubr.bf16.mxu0 0
    %1364 = vmatmul.mubr.bf16.gmra.mrb[0].mxu0 %v1028
    %v1365 = vpop.f32.mrb[0].mxu0
    %v1366 = vadd.f32 0.0, %v1365
    %v1367 = vpop.f32.mrb[0].mxu0
    %v1368 = vadd.f32 0.0, %v1367
    %v1369 = vpop.f32.mrb[0].mxu0
    %v1370 = vadd.f32 0.0, %v1369
    %v1371 = vpop.f32.mrb[0].mxu0
    %v1372 = vadd.f32 0.0, %v1371
    %1373 = vmatprep.mubr.bf16.mxu0 0
    %1374 = vmatmul.mubr.bf16.gmra.mrb[0].mxu0 %v1031
    %v1375 = vpop.f32.mrb[0].mxu0
    %v1376 = vadd.f32 0.0, %v1375
    %v1377 = vpop.f32.mrb[0].mxu0
    %v1378 = vadd.f32 0.0, %v1377
    %v1379 = vpop.f32.mrb[0].mxu0
    %v1380 = vadd.f32 0.0, %v1379
    %v1381 = vpop.f32.mrb[0].mxu0
    %v1382 = vadd.f32 0.0, %v1381
    %1383 = vmatprep.mubr.bf16.mxu0 0
    %1384 = vmatmul.mubr.bf16.gmra.mrb[0].mxu0 %v1034
    %v1385 = vpop.f32.mrb[0].mxu0
    %v1386 = vadd.f32 0.0, %v1385
    %v1387 = vpop.f32.mrb[0].mxu0
    %v1388 = vadd.f32 0.0, %v1387
    %v1389 = vpop.f32.mrb[0].mxu0
    %v1390 = vadd.f32 0.0, %v1389
    %v1391 = vpop.f32.mrb[0].mxu0
    %v1392 = vadd.f32 0.0, %v1391
    %1393 = vmatprep.mubr.bf16.mxu0 0
    %1394 = vmatmul.mubr.bf16.gmra.mrb[0].mxu0 %v1037
    %v1395 = vpop.f32.mrb[0].mxu0
    %v1396 = vadd.f32 0.0, %v1395
    %v1397 = vpop.f32.mrb[0].mxu0
    %v1398 = vadd.f32 0.0, %v1397
    %v1399 = vpop.f32.mrb[0].mxu0
    %v1400 = vadd.f32 0.0, %v1399
    %v1401 = vpop.f32.mrb[0].mxu0
    %v1402 = vadd.f32 0.0, %v1401
    %1403 = vmatprep.mubr.bf16.mxu0 0
    %1404 = vmatmul.mubr.bf16.gmra.mrb[0].mxu0 %v1040
    %v1405 = vpop.f32.mrb[0].mxu0
    %v1406 = vadd.f32 0.0, %v1405
    %v1407 = vpop.f32.mrb[0].mxu0
    %v1408 = vadd.f32 0.0, %v1407
    %v1409 = vpop.f32.mrb[0].mxu0
    %v1410 = vadd.f32 0.0, %v1409
    %v1411 = vpop.f32.mrb[0].mxu0
    %v1412 = vadd.f32 0.0, %v1411
    %1413 = vmatprep.mubr.bf16.mxu0 0
    %1414 = vmatmul.mubr.bf16.gmra.mrb[0].mxu0 %v1043
    %v1415 = vpop.f32.mrb[0].mxu0
    %v1416 = vadd.f32 0.0, %v1415
    %v1417 = vpop.f32.mrb[0].mxu0
    %v1418 = vadd.f32 0.0, %v1417
    %v1419 = vpop.f32.mrb[0].mxu0
    %v1420 = vadd.f32 0.0, %v1419
    %v1421 = vpop.f32.mrb[0].mxu0
    %v1422 = vadd.f32 0.0, %v1421
    %1423 = vmatprep.mubr.bf16.mxu0 0
    %1424 = vmatmul.mubr.bf16.gmra.mrb[0].mxu0 %v1046
    %v1425 = vpop.f32.mrb[0].mxu0
    %v1426 = vadd.f32 0.0, %v1425
    %v1427 = vpop.f32.mrb[0].mxu0
    %v1428 = vadd.f32 0.0, %v1427
    %v1429 = vpop.f32.mrb[0].mxu0
    %v1430 = vadd.f32 0.0, %v1429
    %v1431 = vpop.f32.mrb[0].mxu0
    %v1432 = vadd.f32 0.0, %v1431
    %1433 = vdwg.mxu0
    %1434 = vmatprep.subr.bf16.mxu0 %v732
    %1435 = vmatpush1.bf16.msra.mxu0 %v731
    %1436 = vmatprep.subr.bf16.mxu0 %v766
    %1437 = vmatpush1.bf16.msra.mxu0 %v765
    %1438 = vmatprep.subr.bf16.mxu0 %v800
    %1439 = vmatpush1.bf16.msra.mxu0 %v799
    %1440 = vmatprep.subr.bf16.mxu0 %v834
    %1441 = vmatpush1.bf16.msra.mxu0 %v833
    %1442 = vmatprep.subr.bf16.mxu0 0
    %1443 = vmatpush1.bf16.msra.mxu0 0
    %1444 = vmatprep.subr.bf16.mxu0 0
    %1445 = vmatpush1.bf16.msra.mxu0 0
    %1446 = vmatprep.subr.bf16.mxu0 0
    %1447 = vmatpush1.bf16.msra.mxu0 0
    %1448 = vmatprep.subr.bf16.mxu0 0
    %1449 = vmatpush1.bf16.msra.mxu0 0
    %1450 = vmatprep.subr.bf16.mxu0 0
    %1451 = vmatpush1.bf16.msra.mxu0 0
    %1452 = vmatprep.subr.bf16.mxu0 0
    %1453 = vmatpush1.bf16.msra.mxu0 0
    %1454 = vmatprep.subr.bf16.mxu0 0
    %1455 = vmatpush1.bf16.msra.mxu0 0
    %1456 = vmatprep.subr.bf16.mxu0 0
    %1457 = vmatpush1.bf16.msra.mxu0 0
    %1458 = vmatprep.subr.bf16.mxu0 0
    %1459 = vmatpush1.bf16.msra.mxu0 0
    %1460 = vmatprep.subr.bf16.mxu0 0
    %1461 = vmatpush1.bf16.msra.mxu0 0
    %1462 = vmatprep.subr.bf16.mxu0 0
    %1463 = vmatpush1.bf16.msra.mxu0 0
    %1464 = vmatprep.subr.bf16.mxu0 0
    %1465 = vmatpush1.bf16.msra.mxu0 0
    %1466 = vmatprep.mubr.bf16.mxu0 0
    %1467 = vmatmul.mubr.bf16.gmra.mrb[0].mxu0 %v1001
    %v1468 = vpop.f32.mrb[0].mxu0
    %v1469 = vadd.f32 0.0, %v1468
    %v1470 = vpop.f32.mrb[0].mxu0
    %v1471 = vadd.f32 0.0, %v1470
    %v1472 = vpop.f32.mrb[0].mxu0
    %v1473 = vadd.f32 0.0, %v1472
    %v1474 = vpop.f32.mrb[0].mxu0
    %v1475 = vadd.f32 0.0, %v1474
    %1476 = vmatprep.mubr.bf16.mxu0 0
    %1477 = vmatmul.mubr.bf16.gmra.mrb[0].mxu0 %v1004
    %v1478 = vpop.f32.mrb[0].mxu0
    %v1479 = vadd.f32 0.0, %v1478
    %v1480 = vpop.f32.mrb[0].mxu0
    %v1481 = vadd.f32 0.0, %v1480
    %v1482 = vpop.f32.mrb[0].mxu0
    %v1483 = vadd.f32 0.0, %v1482
    %v1484 = vpop.f32.mrb[0].mxu0
    %v1485 = vadd.f32 0.0, %v1484
    %1486 = vmatprep.mubr.bf16.mxu0 0
    %1487 = vmatmul.mubr.bf16.gmra.mrb[0].mxu0 %v1007
    %v1488 = vpop.f32.mrb[0].mxu0
    %v1489 = vadd.f32 0.0, %v1488
    %v1490 = vpop.f32.mrb[0].mxu0
    %v1491 = vadd.f32 0.0, %v1490
    %v1492 = vpop.f32.mrb[0].mxu0
    %v1493 = vadd.f32 0.0, %v1492
    %v1494 = vpop.f32.mrb[0].mxu0
    %v1495 = vadd.f32 0.0, %v1494
    %1496 = vmatprep.mubr.bf16.mxu0 0
    %1497 = vmatmul.mubr.bf16.gmra.mrb[0].mxu0 %v1010
    %v1498 = vpop.f32.mrb[0].mxu0
    %v1499 = vadd.f32 0.0, %v1498
    %v1500 = vpop.f32.mrb[0].mxu0
    %v1501 = vadd.f32 0.0, %v1500
    %v1502 = vpop.f32.mrb[0].mxu0
    %v1503 = vadd.f32 0.0, %v1502
    %v1504 = vpop.f32.mrb[0].mxu0
    %v1505 = vadd.f32 0.0, %v1504
    %1506 = vmatprep.mubr.bf16.mxu0 0
    %1507 = vmatmul.mubr.bf16.gmra.mrb[0].mxu0 %v1013
    %v1508 = vpop.f32.mrb[0].mxu0
    %v1509 = vadd.f32 0.0, %v1508
    %v1510 = vpop.f32.mrb[0].mxu0
    %v1511 = vadd.f32 0.0, %v1510
    %v1512 = vpop.f32.mrb[0].mxu0
    %v1513 = vadd.f32 0.0, %v1512
    %v1514 = vpop.f32.mrb[0].mxu0
    %v1515 = vadd.f32 0.0, %v1514
    %1516 = vmatprep.mubr.bf16.mxu0 0
    %1517 = vmatmul.mubr.bf16.gmra.mrb[0].mxu0 %v1016
    %v1518 = vpop.f32.mrb[0].mxu0
    %v1519 = vadd.f32 0.0, %v1518
    %v1520 = vpop.f32.mrb[0].mxu0
    %v1521 = vadd.f32 0.0, %v1520
    %v1522 = vpop.f32.mrb[0].mxu0
    %v1523 = vadd.f32 0.0, %v1522
    %v1524 = vpop.f32.mrb[0].mxu0
    %v1525 = vadd.f32 0.0, %v1524
    %1526 = vmatprep.mubr.bf16.mxu0 0
    %1527 = vmatmul.mubr.bf16.gmra.mrb[0].mxu0 %v1019
    %v1528 = vpop.f32.mrb[0].mxu0
    %v1529 = vadd.f32 0.0, %v1528
    %v1530 = vpop.f32.mrb[0].mxu0
    %v1531 = vadd.f32 0.0, %v1530
    %v1532 = vpop.f32.mrb[0].mxu0
    %v1533 = vadd.f32 0.0, %v1532
    %v1534 = vpop.f32.mrb[0].mxu0
    %v1535 = vadd.f32 0.0, %v1534
    %1536 = vmatprep.mubr.bf16.mxu0 0
    %1537 = vmatmul.mubr.bf16.gmra.mrb[0].mxu0 %v1022
    %v1538 = vpop.f32.mrb[0].mxu0
    %v1539 = vadd.f32 0.0, %v1538
    %v1540 = vpop.f32.mrb[0].mxu0
    %v1541 = vadd.f32 0.0, %v1540
    %v1542 = vpop.f32.mrb[0].mxu0
    %v1543 = vadd.f32 0.0, %v1542
    %v1544 = vpop.f32.mrb[0].mxu0
    %v1545 = vadd.f32 0.0, %v1544
    %1546 = vmatprep.mubr.bf16.mxu0 0
    %1547 = vmatmul.mubr.bf16.gmra.mrb[0].mxu0 %v1025
    %v1548 = vpop.f32.mrb[0].mxu0
    %v1549 = vadd.f32 0.0, %v1548
    %v1550 = vpop.f32.mrb[0].mxu0
    %v1551 = vadd.f32 0.0, %v1550
    %v1552 = vpop.f32.mrb[0].mxu0
    %v1553 = vadd.f32 0.0, %v1552
    %v1554 = vpop.f32.mrb[0].mxu0
    %v1555 = vadd.f32 0.0, %v1554
    %1556 = vmatprep.mubr.bf16.mxu0 0
    %1557 = vmatmul.mubr.bf16.gmra.mrb[0].mxu0 %v1028
    %v1558 = vpop.f32.mrb[0].mxu0
    %v1559 = vadd.f32 0.0, %v1558
    %v1560 = vpop.f32.mrb[0].mxu0
    %v1561 = vadd.f32 0.0, %v1560
    %v1562 = vpop.f32.mrb[0].mxu0
    %v1563 = vadd.f32 0.0, %v1562
    %v1564 = vpop.f32.mrb[0].mxu0
    %v1565 = vadd.f32 0.0, %v1564
    %1566 = vmatprep.mubr.bf16.mxu0 0
    %1567 = vmatmul.mubr.bf16.gmra.mrb[0].mxu0 %v1031
    %v1568 = vpop.f32.mrb[0].mxu0
    %v1569 = vadd.f32 0.0, %v1568
    %v1570 = vpop.f32.mrb[0].mxu0
    %v1571 = vadd.f32 0.0, %v1570
    %v1572 = vpop.f32.mrb[0].mxu0
    %v1573 = vadd.f32 0.0, %v1572
    %v1574 = vpop.f32.mrb[0].mxu0
    %v1575 = vadd.f32 0.0, %v1574
    %1576 = vmatprep.mubr.bf16.mxu0 0
    %1577 = vmatmul.mubr.bf16.gmra.mrb[0].mxu0 %v1034
    %v1578 = vpop.f32.mrb[0].mxu0
    %v1579 = vadd.f32 0.0, %v1578
    %v1580 = vpop.f32.mrb[0].mxu0
    %v1581 = vadd.f32 0.0, %v1580
    %v1582 = vpop.f32.mrb[0].mxu0
    %v1583 = vadd.f32 0.0, %v1582
    %v1584 = vpop.f32.mrb[0].mxu0
    %v1585 = vadd.f32 0.0, %v1584
    %1586 = vmatprep.mubr.bf16.mxu0 0
    %1587 = vmatmul.mubr.bf16.gmra.mrb[0].mxu0 %v1037
    %v1588 = vpop.f32.mrb[0].mxu0
    %v1589 = vadd.f32 0.0, %v1588
    %v1590 = vpop.f32.mrb[0].mxu0
    %v1591 = vadd.f32 0.0, %v1590
    %v1592 = vpop.f32.mrb[0].mxu0
    %v1593 = vadd.f32 0.0, %v1592
    %v1594 = vpop.f32.mrb[0].mxu0
    %v1595 = vadd.f32 0.0, %v1594
    %1596 = vmatprep.mubr.bf16.mxu0 0
    %1597 = vmatmul.mubr.bf16.gmra.mrb[0].mxu0 %v1040
    %v1598 = vpop.f32.mrb[0].mxu0
    %v1599 = vadd.f32 0.0, %v1598
    %v1600 = vpop.f32.mrb[0].mxu0
    %v1601 = vadd.f32 0.0, %v1600
    %v1602 = vpop.f32.mrb[0].mxu0
    %v1603 = vadd.f32 0.0, %v1602
    %v1604 = vpop.f32.mrb[0].mxu0
    %v1605 = vadd.f32 0.0, %v1604
    %1606 = vmatprep.mubr.bf16.mxu0 0
    %1607 = vmatmul.mubr.bf16.gmra.mrb[0].mxu0 %v1043
    %v1608 = vpop.f32.mrb[0].mxu0
    %v1609 = vadd.f32 0.0, %v1608
    %v1610 = vpop.f32.mrb[0].mxu0
    %v1611 = vadd.f32 0.0, %v1610
    %v1612 = vpop.f32.mrb[0].mxu0
    %v1613 = vadd.f32 0.0, %v1612
    %v1614 = vpop.f32.mrb[0].mxu0
    %v1615 = vadd.f32 0.0, %v1614
    %1616 = vmatprep.mubr.bf16.mxu0 0
    %1617 = vmatmul.mubr.bf16.gmra.mrb[0].mxu0 %v1046
    %v1618 = vpop.f32.mrb[0].mxu0
    %v1619 = vadd.f32 0.0, %v1618
    %v1620 = vpop.f32.mrb[0].mxu0
    %v1621 = vadd.f32 0.0, %v1620
    %v1622 = vpop.f32.mrb[0].mxu0
    %v1623 = vadd.f32 0.0, %v1622
    %v1624 = vpop.f32.mrb[0].mxu0
    %v1625 = vadd.f32 0.0, %v1624
    %1626 = vdwg.mxu0
    %1627 = vmatprep.subr.bf16.mxu0 %v734
    %1628 = vmatpush1.bf16.msra.mxu0 %v733
    %1629 = vmatprep.subr.bf16.mxu0 %v768
    %1630 = vmatpush1.bf16.msra.mxu0 %v767
    %1631 = vmatprep.subr.bf16.mxu0 %v802
    %1632 = vmatpush1.bf16.msra.mxu0 %v801
    %1633 = vmatprep.subr.bf16.mxu0 %v836
    %1634 = vmatpush1.bf16.msra.mxu0 %v835
    %1635 = vmatprep.subr.bf16.mxu0 0
    %1636 = vmatpush1.bf16.msra.mxu0 0
    %1637 = vmatprep.subr.bf16.mxu0 0
    %1638 = vmatpush1.bf16.msra.mxu0 0
    %1639 = vmatprep.subr.bf16.mxu0 0
    %1640 = vmatpush1.bf16.msra.mxu0 0
    %1641 = vmatprep.subr.bf16.mxu0 0
    %1642 = vmatpush1.bf16.msra.mxu0 0
    %1643 = vmatprep.subr.bf16.mxu0 0
    %1644 = vmatpush1.bf16.msra.mxu0 0
    %1645 = vmatprep.subr.bf16.mxu0 0
    %1646 = vmatpush1.bf16.msra.mxu0 0
    %1647 = vmatprep.subr.bf16.mxu0 0
    %1648 = vmatpush1.bf16.msra.mxu0 0
    %1649 = vmatprep.subr.bf16.mxu0 0
    %1650 = vmatpush1.bf16.msra.mxu0 0
    %1651 = vmatprep.subr.bf16.mxu0 0
    %1652 = vmatpush1.bf16.msra.mxu0 0
    %1653 = vmatprep.subr.bf16.mxu0 0
    %1654 = vmatpush1.bf16.msra.mxu0 0
    %1655 = vmatprep.subr.bf16.mxu0 0
    %1656 = vmatpush1.bf16.msra.mxu0 0
    %1657 = vmatprep.subr.bf16.mxu0 0
    %1658 = vmatpush1.bf16.msra.mxu0 0
    %1659 = vmatprep.mubr.bf16.mxu0 0
    %1660 = vmatmul.mubr.bf16.gmra.mrb[0].mxu0 %v1001
    %v1661 = vpop.f32.mrb[0].mxu0
    %v1662 = vadd.f32 0.0, %v1661
    %v1663 = vpop.f32.mrb[0].mxu0
    %v1664 = vadd.f32 0.0, %v1663
    %v1665 = vpop.f32.mrb[0].mxu0
    %v1666 = vadd.f32 0.0, %v1665
    %v1667 = vpop.f32.mrb[0].mxu0
    %v1668 = vadd.f32 0.0, %v1667
    %1669 = vmatprep.mubr.bf16.mxu0 0
    %1670 = vmatmul.mubr.bf16.gmra.mrb[0].mxu0 %v1004
    %v1671 = vpop.f32.mrb[0].mxu0
    %v1672 = vadd.f32 0.0, %v1671
    %v1673 = vpop.f32.mrb[0].mxu0
    %v1674 = vadd.f32 0.0, %v1673
    %v1675 = vpop.f32.mrb[0].mxu0
    %v1676 = vadd.f32 0.0, %v1675
    %v1677 = vpop.f32.mrb[0].mxu0
    %v1678 = vadd.f32 0.0, %v1677
    %1679 = vmatprep.mubr.bf16.mxu0 0
    %1680 = vmatmul.mubr.bf16.gmra.mrb[0].mxu0 %v1007
    %v1681 = vpop.f32.mrb[0].mxu0
    %v1682 = vadd.f32 0.0, %v1681
    %v1683 = vpop.f32.mrb[0].mxu0
    %v1684 = vadd.f32 0.0, %v1683
    %v1685 = vpop.f32.mrb[0].mxu0
    %v1686 = vadd.f32 0.0, %v1685
    %v1687 = vpop.f32.mrb[0].mxu0
    %v1688 = vadd.f32 0.0, %v1687
    %1689 = vmatprep.mubr.bf16.mxu0 0
    %1690 = vmatmul.mubr.bf16.gmra.mrb[0].mxu0 %v1010
    %v1691 = vpop.f32.mrb[0].mxu0
    %v1692 = vadd.f32 0.0, %v1691
    %v1693 = vpop.f32.mrb[0].mxu0
    %v1694 = vadd.f32 0.0, %v1693
    %v1695 = vpop.f32.mrb[0].mxu0
    %v1696 = vadd.f32 0.0, %v1695
    %v1697 = vpop.f32.mrb[0].mxu0
    %v1698 = vadd.f32 0.0, %v1697
    %1699 = vmatprep.mubr.bf16.mxu0 0
    %1700 = vmatmul.mubr.bf16.gmra.mrb[0].mxu0 %v1013
    %v1701 = vpop.f32.mrb[0].mxu0
    %v1702 = vadd.f32 0.0, %v1701
    %v1703 = vpop.f32.mrb[0].mxu0
    %v1704 = vadd.f32 0.0, %v1703
    %v1705 = vpop.f32.mrb[0].mxu0
    %v1706 = vadd.f32 0.0, %v1705
    %v1707 = vpop.f32.mrb[0].mxu0
    %v1708 = vadd.f32 0.0, %v1707
    %1709 = vmatprep.mubr.bf16.mxu0 0
    %1710 = vmatmul.mubr.bf16.gmra.mrb[0].mxu0 %v1016
    %v1711 = vpop.f32.mrb[0].mxu0
    %v1712 = vadd.f32 0.0, %v1711
    %v1713 = vpop.f32.mrb[0].mxu0
    %v1714 = vadd.f32 0.0, %v1713
    %v1715 = vpop.f32.mrb[0].mxu0
    %v1716 = vadd.f32 0.0, %v1715
    %v1717 = vpop.f32.mrb[0].mxu0
    %v1718 = vadd.f32 0.0, %v1717
    %1719 = vmatprep.mubr.bf16.mxu0 0
    %1720 = vmatmul.mubr.bf16.gmra.mrb[0].mxu0 %v1019
    %v1721 = vpop.f32.mrb[0].mxu0
    %v1722 = vadd.f32 0.0, %v1721
    %v1723 = vpop.f32.mrb[0].mxu0
    %v1724 = vadd.f32 0.0, %v1723
    %v1725 = vpop.f32.mrb[0].mxu0
    %v1726 = vadd.f32 0.0, %v1725
    %v1727 = vpop.f32.mrb[0].mxu0
    %v1728 = vadd.f32 0.0, %v1727
    %1729 = vmatprep.mubr.bf16.mxu0 0
    %1730 = vmatmul.mubr.bf16.gmra.mrb[0].mxu0 %v1022
    %v1731 = vpop.f32.mrb[0].mxu0
    %v1732 = vadd.f32 0.0, %v1731
    %v1733 = vpop.f32.mrb[0].mxu0
    %v1734 = vadd.f32 0.0, %v1733
    %v1735 = vpop.f32.mrb[0].mxu0
    %v1736 = vadd.f32 0.0, %v1735
    %v1737 = vpop.f32.mrb[0].mxu0
    %v1738 = vadd.f32 0.0, %v1737
    %1739 = vmatprep.mubr.bf16.mxu0 0
    %1740 = vmatmul.mubr.bf16.gmra.mrb[0].mxu0 %v1025
    %v1741 = vpop.f32.mrb[0].mxu0
    %v1742 = vadd.f32 0.0, %v1741
    %v1743 = vpop.f32.mrb[0].mxu0
    %v1744 = vadd.f32 0.0, %v1743
    %v1745 = vpop.f32.mrb[0].mxu0
    %v1746 = vadd.f32 0.0, %v1745
    %v1747 = vpop.f32.mrb[0].mxu0
    %v1748 = vadd.f32 0.0, %v1747
    %1749 = vmatprep.mubr.bf16.mxu0 0
    %1750 = vmatmul.mubr.bf16.gmra.mrb[0].mxu0 %v1028
    %v1751 = vpop.f32.mrb[0].mxu0
    %v1752 = vadd.f32 0.0, %v1751
    %v1753 = vpop.f32.mrb[0].mxu0
    %v1754 = vadd.f32 0.0, %v1753
    %v1755 = vpop.f32.mrb[0].mxu0
    %v1756 = vadd.f32 0.0, %v1755
    %v1757 = vpop.f32.mrb[0].mxu0
    %v1758 = vadd.f32 0.0, %v1757
    %1759 = vmatprep.mubr.bf16.mxu0 0
    %1760 = vmatmul.mubr.bf16.gmra.mrb[0].mxu0 %v1031
    %v1761 = vpop.f32.mrb[0].mxu0
    %v1762 = vadd.f32 0.0, %v1761
    %v1763 = vpop.f32.mrb[0].mxu0
    %v1764 = vadd.f32 0.0, %v1763
    %v1765 = vpop.f32.mrb[0].mxu0
    %v1766 = vadd.f32 0.0, %v1765
    %v1767 = vpop.f32.mrb[0].mxu0
    %v1768 = vadd.f32 0.0, %v1767
    %1769 = vmatprep.mubr.bf16.mxu0 0
    %1770 = vmatmul.mubr.bf16.gmra.mrb[0].mxu0 %v1034
    %v1771 = vpop.f32.mrb[0].mxu0
    %v1772 = vadd.f32 0.0, %v1771
    %v1773 = vpop.f32.mrb[0].mxu0
    %v1774 = vadd.f32 0.0, %v1773
    %v1775 = vpop.f32.mrb[0].mxu0
    %v1776 = vadd.f32 0.0, %v1775
    %v1777 = vpop.f32.mrb[0].mxu0
    %v1778 = vadd.f32 0.0, %v1777
    %1779 = vmatprep.mubr.bf16.mxu0 0
    %1780 = vmatmul.mubr.bf16.gmra.mrb[0].mxu0 %v1037
    %v1781 = vpop.f32.mrb[0].mxu0
    %v1782 = vadd.f32 0.0, %v1781
    %v1783 = vpop.f32.mrb[0].mxu0
    %v1784 = vadd.f32 0.0, %v1783
    %v1785 = vpop.f32.mrb[0].mxu0
    %v1786 = vadd.f32 0.0, %v1785
    %v1787 = vpop.f32.mrb[0].mxu0
    %v1788 = vadd.f32 0.0, %v1787
    %1789 = vmatprep.mubr.bf16.mxu0 0
    %1790 = vmatmul.mubr.bf16.gmra.mrb[0].mxu0 %v1040
    %v1791 = vpop.f32.mrb[0].mxu0
    %v1792 = vadd.f32 0.0, %v1791
    %v1793 = vpop.f32.mrb[0].mxu0
    %v1794 = vadd.f32 0.0, %v1793
    %v1795 = vpop.f32.mrb[0].mxu0
    %v1796 = vadd.f32 0.0, %v1795
    %v1797 = vpop.f32.mrb[0].mxu0
    %v1798 = vadd.f32 0.0, %v1797
    %1799 = vmatprep.mubr.bf16.mxu0 0
    %1800 = vmatmul.mubr.bf16.gmra.mrb[0].mxu0 %v1043
    %v1801 = vpop.f32.mrb[0].mxu0
    %v1802 = vadd.f32 0.0, %v1801
    %v1803 = vpop.f32.mrb[0].mxu0
    %v1804 = vadd.f32 0.0, %v1803
    %v1805 = vpop.f32.mrb[0].mxu0
    %v1806 = vadd.f32 0.0, %v1805
    %v1807 = vpop.f32.mrb[0].mxu0
    %v1808 = vadd.f32 0.0, %v1807
    %1809 = vmatprep.mubr.bf16.mxu0 0
    %1810 = vmatmul.mubr.bf16.gmra.mrb[0].mxu0 %v1046
    %v1811 = vpop.f32.mrb[0].mxu0
    %v1812 = vadd.f32 0.0, %v1811
    %v1813 = vpop.f32.mrb[0].mxu0
    %v1814 = vadd.f32 0.0, %v1813
    %v1815 = vpop.f32.mrb[0].mxu0
    %v1816 = vadd.f32 0.0, %v1815
    %v1817 = vpop.f32.mrb[0].mxu0
    %v1818 = vadd.f32 0.0, %v1817
    %1819 = vdwg.mxu0
    %1820 = vmatprep.subr.bf16.mxu0 %v736
    %1821 = vmatpush1.bf16.msra.mxu0 %v735
    %1822 = vmatprep.subr.bf16.mxu0 %v770
    %1823 = vmatpush1.bf16.msra.mxu0 %v769
    %1824 = vmatprep.subr.bf16.mxu0 %v804
    %1825 = vmatpush1.bf16.msra.mxu0 %v803
    %1826 = vmatprep.subr.bf16.mxu0 %v838
    %1827 = vmatpush1.bf16.msra.mxu0 %v837
    %1828 = vmatprep.subr.bf16.mxu0 0
    %1829 = vmatpush1.bf16.msra.mxu0 0
    %1830 = vmatprep.subr.bf16.mxu0 0
    %1831 = vmatpush1.bf16.msra.mxu0 0
    %1832 = vmatprep.subr.bf16.mxu0 0
    %1833 = vmatpush1.bf16.msra.mxu0 0
    %1834 = vmatprep.subr.bf16.mxu0 0
    %1835 = vmatpush1.bf16.msra.mxu0 0
    %1836 = vmatprep.subr.bf16.mxu0 0
    %1837 = vmatpush1.bf16.msra.mxu0 0
    %1838 = vmatprep.subr.bf16.mxu0 0
    %1839 = vmatpush1.bf16.msra.mxu0 0
    %1840 = vmatprep.subr.bf16.mxu0 0
    %1841 = vmatpush1.bf16.msra.mxu0 0
    %1842 = vmatprep.subr.bf16.mxu0 0
    %1843 = vmatpush1.bf16.msra.mxu0 0
    %1844 = vmatprep.subr.bf16.mxu0 0
    %1845 = vmatpush1.bf16.msra.mxu0 0
    %1846 = vmatprep.subr.bf16.mxu0 0
    %1847 = vmatpush1.bf16.msra.mxu0 0
    %1848 = vmatprep.subr.bf16.mxu0 0
    %1849 = vmatpush1.bf16.msra.mxu0 0
    %1850 = vmatprep.subr.bf16.mxu0 0
    %1851 = vmatpush1.bf16.msra.mxu0 0
    %1852 = vmatprep.mubr.bf16.mxu0 0
    %1853 = vmatmul.mubr.bf16.gmra.mrb[0].mxu0 %v1001
    %v1854 = vpop.f32.mrb[0].mxu0
    %v1855 = vadd.f32 0.0, %v1854
    %v1856 = vpop.f32.mrb[0].mxu0
    %v1857 = vadd.f32 0.0, %v1856
    %v1858 = vpop.f32.mrb[0].mxu0
    %v1859 = vadd.f32 0.0, %v1858
    %v1860 = vpop.f32.mrb[0].mxu0
    %v1861 = vadd.f32 0.0, %v1860
    %1862 = vmatprep.mubr.bf16.mxu0 0
    %1863 = vmatmul.mubr.bf16.gmra.mrb[0].mxu0 %v1004
    %v1864 = vpop.f32.mrb[0].mxu0
    %v1865 = vadd.f32 0.0, %v1864
    %v1866 = vpop.f32.mrb[0].mxu0
    %v1867 = vadd.f32 0.0, %v1866
    %v1868 = vpop.f32.mrb[0].mxu0
    %v1869 = vadd.f32 0.0, %v1868
    %v1870 = vpop.f32.mrb[0].mxu0
    %v1871 = vadd.f32 0.0, %v1870
    %1872 = vmatprep.mubr.bf16.mxu0 0
    %1873 = vmatmul.mubr.bf16.gmra.mrb[0].mxu0 %v1007
    %v1874 = vpop.f32.mrb[0].mxu0
    %v1875 = vadd.f32 0.0, %v1874
    %v1876 = vpop.f32.mrb[0].mxu0
    %v1877 = vadd.f32 0.0, %v1876
    %v1878 = vpop.f32.mrb[0].mxu0
    %v1879 = vadd.f32 0.0, %v1878
    %v1880 = vpop.f32.mrb[0].mxu0
    %v1881 = vadd.f32 0.0, %v1880
    %1882 = vmatprep.mubr.bf16.mxu0 0
    %1883 = vmatmul.mubr.bf16.gmra.mrb[0].mxu0 %v1010
    %v1884 = vpop.f32.mrb[0].mxu0
    %v1885 = vadd.f32 0.0, %v1884
    %v1886 = vpop.f32.mrb[0].mxu0
    %v1887 = vadd.f32 0.0, %v1886
    %v1888 = vpop.f32.mrb[0].mxu0
    %v1889 = vadd.f32 0.0, %v1888
    %v1890 = vpop.f32.mrb[0].mxu0
    %v1891 = vadd.f32 0.0, %v1890
    %1892 = vmatprep.mubr.bf16.mxu0 0
    %1893 = vmatmul.mubr.bf16.gmra.mrb[0].mxu0 %v1013
    %v1894 = vpop.f32.mrb[0].mxu0
    %v1895 = vadd.f32 0.0, %v1894
    %v1896 = vpop.f32.mrb[0].mxu0
    %v1897 = vadd.f32 0.0, %v1896
    %v1898 = vpop.f32.mrb[0].mxu0
    %v1899 = vadd.f32 0.0, %v1898
    %v1900 = vpop.f32.mrb[0].mxu0
    %v1901 = vadd.f32 0.0, %v1900
    %1902 = vmatprep.mubr.bf16.mxu0 0
    %1903 = vmatmul.mubr.bf16.gmra.mrb[0].mxu0 %v1016
    %v1904 = vpop.f32.mrb[0].mxu0
    %v1905 = vadd.f32 0.0, %v1904
    %v1906 = vpop.f32.mrb[0].mxu0
    %v1907 = vadd.f32 0.0, %v1906
    %v1908 = vpop.f32.mrb[0].mxu0
    %v1909 = vadd.f32 0.0, %v1908
    %v1910 = vpop.f32.mrb[0].mxu0
    %v1911 = vadd.f32 0.0, %v1910
    %1912 = vmatprep.mubr.bf16.mxu0 0
    %1913 = vmatmul.mubr.bf16.gmra.mrb[0].mxu0 %v1019
    %v1914 = vpop.f32.mrb[0].mxu0
    %v1915 = vadd.f32 0.0, %v1914
    %v1916 = vpop.f32.mrb[0].mxu0
    %v1917 = vadd.f32 0.0, %v1916
    %v1918 = vpop.f32.mrb[0].mxu0
    %v1919 = vadd.f32 0.0, %v1918
    %v1920 = vpop.f32.mrb[0].mxu0
    %v1921 = vadd.f32 0.0, %v1920
    %1922 = vmatprep.mubr.bf16.mxu0 0
    %1923 = vmatmul.mubr.bf16.gmra.mrb[0].mxu0 %v1022
    %v1924 = vpop.f32.mrb[0].mxu0
    %v1925 = vadd.f32 0.0, %v1924
    %v1926 = vpop.f32.mrb[0].mxu0
    %v1927 = vadd.f32 0.0, %v1926
    %v1928 = vpop.f32.mrb[0].mxu0
    %v1929 = vadd.f32 0.0, %v1928
    %v1930 = vpop.f32.mrb[0].mxu0
    %v1931 = vadd.f32 0.0, %v1930
    %1932 = vmatprep.mubr.bf16.mxu0 0
    %1933 = vmatmul.mubr.bf16.gmra.mrb[0].mxu0 %v1025
    %v1934 = vpop.f32.mrb[0].mxu0
    %v1935 = vadd.f32 0.0, %v1934
    %v1936 = vpop.f32.mrb[0].mxu0
    %v1937 = vadd.f32 0.0, %v1936
    %v1938 = vpop.f32.mrb[0].mxu0
    %v1939 = vadd.f32 0.0, %v1938
    %v1940 = vpop.f32.mrb[0].mxu0
    %v1941 = vadd.f32 0.0, %v1940
    %1942 = vmatprep.mubr.bf16.mxu0 0
    %1943 = vmatmul.mubr.bf16.gmra.mrb[0].mxu0 %v1028
    %v1944 = vpop.f32.mrb[0].mxu0
    %v1945 = vadd.f32 0.0, %v1944
    %v1946 = vpop.f32.mrb[0].mxu0
    %v1947 = vadd.f32 0.0, %v1946
    %v1948 = vpop.f32.mrb[0].mxu0
    %v1949 = vadd.f32 0.0, %v1948
    %v1950 = vpop.f32.mrb[0].mxu0
    %v1951 = vadd.f32 0.0, %v1950
    %1952 = vmatprep.mubr.bf16.mxu0 0
    %1953 = vmatmul.mubr.bf16.gmra.mrb[0].mxu0 %v1031
    %v1954 = vpop.f32.mrb[0].mxu0
    %v1955 = vadd.f32 0.0, %v1954
    %v1956 = vpop.f32.mrb[0].mxu0
    %v1957 = vadd.f32 0.0, %v1956
    %v1958 = vpop.f32.mrb[0].mxu0
    %v1959 = vadd.f32 0.0, %v1958
    %v1960 = vpop.f32.mrb[0].mxu0
    %v1961 = vadd.f32 0.0, %v1960
    %1962 = vmatprep.mubr.bf16.mxu0 0
    %1963 = vmatmul.mubr.bf16.gmra.mrb[0].mxu0 %v1034
    %v1964 = vpop.f32.mrb[0].mxu0
    %v1965 = vadd.f32 0.0, %v1964
    %v1966 = vpop.f32.mrb[0].mxu0
    %v1967 = vadd.f32 0.0, %v1966
    %v1968 = vpop.f32.mrb[0].mxu0
    %v1969 = vadd.f32 0.0, %v1968
    %v1970 = vpop.f32.mrb[0].mxu0
    %v1971 = vadd.f32 0.0, %v1970
    %1972 = vmatprep.mubr.bf16.mxu0 0
    %1973 = vmatmul.mubr.bf16.gmra.mrb[0].mxu0 %v1037
    %v1974 = vpop.f32.mrb[0].mxu0
    %v1975 = vadd.f32 0.0, %v1974
    %v1976 = vpop.f32.mrb[0].mxu0
    %v1977 = vadd.f32 0.0, %v1976
    %v1978 = vpop.f32.mrb[0].mxu0
    %v1979 = vadd.f32 0.0, %v1978
    %v1980 = vpop.f32.mrb[0].mxu0
    %v1981 = vadd.f32 0.0, %v1980
    %1982 = vmatprep.mubr.bf16.mxu0 0
    %1983 = vmatmul.mubr.bf16.gmra.mrb[0].mxu0 %v1040
    %v1984 = vpop.f32.mrb[0].mxu0
    %v1985 = vadd.f32 0.0, %v1984
    %v1986 = vpop.f32.mrb[0].mxu0
    %v1987 = vadd.f32 0.0, %v1986
    %v1988 = vpop.f32.mrb[0].mxu0
    %v1989 = vadd.f32 0.0, %v1988
    %v1990 = vpop.f32.mrb[0].mxu0
    %v1991 = vadd.f32 0.0, %v1990
    %1992 = vmatprep.mubr.bf16.mxu0 0
    %1993 = vmatmul.mubr.bf16.gmra.mrb[0].mxu0 %v1043
    %v1994 = vpop.f32.mrb[0].mxu0
    %v1995 = vadd.f32 0.0, %v1994
    %v1996 = vpop.f32.mrb[0].mxu0
    %v1997 = vadd.f32 0.0, %v1996
    %v1998 = vpop.f32.mrb[0].mxu0
    %v1999 = vadd.f32 0.0, %v1998
    %v2000 = vpop.f32.mrb[0].mxu0
    %v2001 = vadd.f32 0.0, %v2000
    %2002 = vmatprep.mubr.bf16.mxu0 0
    %2003 = vmatmul.mubr.bf16.gmra.mrb[0].mxu0 %v1046
    %v2004 = vpop.f32.mrb[0].mxu0
    %v2005 = vadd.f32 0.0, %v2004
    %v2006 = vpop.f32.mrb[0].mxu0
    %v2007 = vadd.f32 0.0, %v2006
    %v2008 = vpop.f32.mrb[0].mxu0
    %v2009 = vadd.f32 0.0, %v2008
    %v2010 = vpop.f32.mrb[0].mxu0
    %v2011 = vadd.f32 0.0, %v2010
    %2012 = vdwg.mxu0
    %2013 = vmatprep.subr.bf16.mxu0 %v738
    %2014 = vmatpush1.bf16.msra.mxu0 %v737
    %2015 = vmatprep.subr.bf16.mxu0 %v772
    %2016 = vmatpush1.bf16.msra.mxu0 %v771
    %2017 = vmatprep.subr.bf16.mxu0 %v806
    %2018 = vmatpush1.bf16.msra.mxu0 %v805
    %2019 = vmatprep.subr.bf16.mxu0 %v840
    %2020 = vmatpush1.bf16.msra.mxu0 %v839
    %2021 = vmatprep.subr.bf16.mxu0 0
    %2022 = vmatpush1.bf16.msra.mxu0 0
    %2023 = vmatprep.subr.bf16.mxu0 0
    %2024 = vmatpush1.bf16.msra.mxu0 0
    %2025 = vmatprep.subr.bf16.mxu0 0
    %2026 = vmatpush1.bf16.msra.mxu0 0
    %2027 = vmatprep.subr.bf16.mxu0 0
    %2028 = vmatpush1.bf16.msra.mxu0 0
    %2029 = vmatprep.subr.bf16.mxu0 0
    %2030 = vmatpush1.bf16.msra.mxu0 0
    %2031 = vmatprep.subr.bf16.mxu0 0
    %2032 = vmatpush1.bf16.msra.mxu0 0
    %2033 = vmatprep.subr.bf16.mxu0 0
    %2034 = vmatpush1.bf16.msra.mxu0 0
    %2035 = vmatprep.subr.bf16.mxu0 0
    %2036 = vmatpush1.bf16.msra.mxu0 0
    %2037 = vmatprep.subr.bf16.mxu0 0
    %2038 = vmatpush1.bf16.msra.mxu0 0
    %2039 = vmatprep.subr.bf16.mxu0 0
    %2040 = vmatpush1.bf16.msra.mxu0 0
    %2041 = vmatprep.subr.bf16.mxu0 0
    %2042 = vmatpush1.bf16.msra.mxu0 0
    %2043 = vmatprep.subr.bf16.mxu0 0
    %2044 = vmatpush1.bf16.msra.mxu0 0
    %2045 = vmatprep.mubr.bf16.mxu0 0
    %2046 = vmatmul.mubr.bf16.gmra.mrb[0].mxu0 %v1001
    %v2047 = vpop.f32.mrb[0].mxu0
    %v2048 = vadd.f32 0.0, %v2047
    %v2049 = vpop.f32.mrb[0].mxu0
    %v2050 = vadd.f32 0.0, %v2049
    %v2051 = vpop.f32.mrb[0].mxu0
    %v2052 = vadd.f32 0.0, %v2051
    %v2053 = vpop.f32.mrb[0].mxu0
    %v2054 = vadd.f32 0.0, %v2053
    %2055 = vmatprep.mubr.bf16.mxu0 0
    %2056 = vmatmul.mubr.bf16.gmra.mrb[0].mxu0 %v1004
    %v2057 = vpop.f32.mrb[0].mxu0
    %v2058 = vadd.f32 0.0, %v2057
    %v2059 = vpop.f32.mrb[0].mxu0
    %v2060 = vadd.f32 0.0, %v2059
    %v2061 = vpop.f32.mrb[0].mxu0
    %v2062 = vadd.f32 0.0, %v2061
    %v2063 = vpop.f32.mrb[0].mxu0
    %v2064 = vadd.f32 0.0, %v2063
    %2065 = vmatprep.mubr.bf16.mxu0 0
    %2066 = vmatmul.mubr.bf16.gmra.mrb[0].mxu0 %v1007
    %v2067 = vpop.f32.mrb[0].mxu0
    %v2068 = vadd.f32 0.0, %v2067
    %v2069 = vpop.f32.mrb[0].mxu0
    %v2070 = vadd.f32 0.0, %v2069
    %v2071 = vpop.f32.mrb[0].mxu0
    %v2072 = vadd.f32 0.0, %v2071
    %v2073 = vpop.f32.mrb[0].mxu0
    %v2074 = vadd.f32 0.0, %v2073
    %2075 = vmatprep.mubr.bf16.mxu0 0
    %2076 = vmatmul.mubr.bf16.gmra.mrb[0].mxu0 %v1010
    %v2077 = vpop.f32.mrb[0].mxu0
    %v2078 = vadd.f32 0.0, %v2077
    %v2079 = vpop.f32.mrb[0].mxu0
    %v2080 = vadd.f32 0.0, %v2079
    %v2081 = vpop.f32.mrb[0].mxu0
    %v2082 = vadd.f32 0.0, %v2081
    %v2083 = vpop.f32.mrb[0].mxu0
    %v2084 = vadd.f32 0.0, %v2083
    %2085 = vmatprep.mubr.bf16.mxu0 0
    %2086 = vmatmul.mubr.bf16.gmra.mrb[0].mxu0 %v1013
    %v2087 = vpop.f32.mrb[0].mxu0
    %v2088 = vadd.f32 0.0, %v2087
    %v2089 = vpop.f32.mrb[0].mxu0
    %v2090 = vadd.f32 0.0, %v2089
    %v2091 = vpop.f32.mrb[0].mxu0
    %v2092 = vadd.f32 0.0, %v2091
    %v2093 = vpop.f32.mrb[0].mxu0
    %v2094 = vadd.f32 0.0, %v2093
    %2095 = vmatprep.mubr.bf16.mxu0 0
    %2096 = vmatmul.mubr.bf16.gmra.mrb[0].mxu0 %v1016
    %v2097 = vpop.f32.mrb[0].mxu0
    %v2098 = vadd.f32 0.0, %v2097
    %v2099 = vpop.f32.mrb[0].mxu0
    %v2100 = vadd.f32 0.0, %v2099
    %v2101 = vpop.f32.mrb[0].mxu0
    %v2102 = vadd.f32 0.0, %v2101
    %v2103 = vpop.f32.mrb[0].mxu0
    %v2104 = vadd.f32 0.0, %v2103
    %2105 = vmatprep.mubr.bf16.mxu0 0
    %2106 = vmatmul.mubr.bf16.gmra.mrb[0].mxu0 %v1019
    %v2107 = vpop.f32.mrb[0].mxu0
    %v2108 = vadd.f32 0.0, %v2107
    %v2109 = vpop.f32.mrb[0].mxu0
    %v2110 = vadd.f32 0.0, %v2109
    %v2111 = vpop.f32.mrb[0].mxu0
    %v2112 = vadd.f32 0.0, %v2111
    %v2113 = vpop.f32.mrb[0].mxu0
    %v2114 = vadd.f32 0.0, %v2113
    %2115 = vmatprep.mubr.bf16.mxu0 0
    %2116 = vmatmul.mubr.bf16.gmra.mrb[0].mxu0 %v1022
    %v2117 = vpop.f32.mrb[0].mxu0
    %v2118 = vadd.f32 0.0, %v2117
    %v2119 = vpop.f32.mrb[0].mxu0
    %v2120 = vadd.f32 0.0, %v2119
    %v2121 = vpop.f32.mrb[0].mxu0
    %v2122 = vadd.f32 0.0, %v2121
    %v2123 = vpop.f32.mrb[0].mxu0
    %v2124 = vadd.f32 0.0, %v2123
    %2125 = vmatprep.mubr.bf16.mxu0 0
    %2126 = vmatmul.mubr.bf16.gmra.mrb[0].mxu0 %v1025
    %v2127 = vpop.f32.mrb[0].mxu0
    %v2128 = vadd.f32 0.0, %v2127
    %v2129 = vpop.f32.mrb[0].mxu0
    %v2130 = vadd.f32 0.0, %v2129
    %v2131 = vpop.f32.mrb[0].mxu0
    %v2132 = vadd.f32 0.0, %v2131
    %v2133 = vpop.f32.mrb[0].mxu0
    %v2134 = vadd.f32 0.0, %v2133
    %2135 = vmatprep.mubr.bf16.mxu0 0
    %2136 = vmatmul.mubr.bf16.gmra.mrb[0].mxu0 %v1028
    %v2137 = vpop.f32.mrb[0].mxu0
    %v2138 = vadd.f32 0.0, %v2137
    %v2139 = vpop.f32.mrb[0].mxu0
    %v2140 = vadd.f32 0.0, %v2139
    %v2141 = vpop.f32.mrb[0].mxu0
    %v2142 = vadd.f32 0.0, %v2141
    %v2143 = vpop.f32.mrb[0].mxu0
    %v2144 = vadd.f32 0.0, %v2143
    %2145 = vmatprep.mubr.bf16.mxu0 0
    %2146 = vmatmul.mubr.bf16.gmra.mrb[0].mxu0 %v1031
    %v2147 = vpop.f32.mrb[0].mxu0
    %v2148 = vadd.f32 0.0, %v2147
    %v2149 = vpop.f32.mrb[0].mxu0
    %v2150 = vadd.f32 0.0, %v2149
    %v2151 = vpop.f32.mrb[0].mxu0
    %v2152 = vadd.f32 0.0, %v2151
    %v2153 = vpop.f32.mrb[0].mxu0
    %v2154 = vadd.f32 0.0, %v2153
    %2155 = vmatprep.mubr.bf16.mxu0 0
    %2156 = vmatmul.mubr.bf16.gmra.mrb[0].mxu0 %v1034
    %v2157 = vpop.f32.mrb[0].mxu0
    %v2158 = vadd.f32 0.0, %v2157
    %v2159 = vpop.f32.mrb[0].mxu0
    %v2160 = vadd.f32 0.0, %v2159
    %v2161 = vpop.f32.mrb[0].mxu0
    %v2162 = vadd.f32 0.0, %v2161
    %v2163 = vpop.f32.mrb[0].mxu0
    %v2164 = vadd.f32 0.0, %v2163
    %2165 = vmatprep.mubr.bf16.mxu0 0
    %2166 = vmatmul.mubr.bf16.gmra.mrb[0].mxu0 %v1037
    %v2167 = vpop.f32.mrb[0].mxu0
    %v2168 = vadd.f32 0.0, %v2167
    %v2169 = vpop.f32.mrb[0].mxu0
    %v2170 = vadd.f32 0.0, %v2169
    %v2171 = vpop.f32.mrb[0].mxu0
    %v2172 = vadd.f32 0.0, %v2171
    %v2173 = vpop.f32.mrb[0].mxu0
    %v2174 = vadd.f32 0.0, %v2173
    %2175 = vmatprep.mubr.bf16.mxu0 0
    %2176 = vmatmul.mubr.bf16.gmra.mrb[0].mxu0 %v1040
    %v2177 = vpop.f32.mrb[0].mxu0
    %v2178 = vadd.f32 0.0, %v2177
    %v2179 = vpop.f32.mrb[0].mxu0
    %v2180 = vadd.f32 0.0, %v2179
    %v2181 = vpop.f32.mrb[0].mxu0
    %v2182 = vadd.f32 0.0, %v2181
    %v2183 = vpop.f32.mrb[0].mxu0
    %v2184 = vadd.f32 0.0, %v2183
    %2185 = vmatprep.mubr.bf16.mxu0 0
    %2186 = vmatmul.mubr.bf16.gmra.mrb[0].mxu0 %v1043
    %v2187 = vpop.f32.mrb[0].mxu0
    %v2188 = vadd.f32 0.0, %v2187
    %v2189 = vpop.f32.mrb[0].mxu0
    %v2190 = vadd.f32 0.0, %v2189
    %v2191 = vpop.f32.mrb[0].mxu0
    %v2192 = vadd.f32 0.0, %v2191
    %v2193 = vpop.f32.mrb[0].mxu0
    %v2194 = vadd.f32 0.0, %v2193
    %2195 = vmatprep.mubr.bf16.mxu0 0
    %2196 = vmatmul.mubr.bf16.gmra.mrb[0].mxu0 %v1046
    %v2197 = vpop.f32.mrb[0].mxu0
    %v2198 = vadd.f32 0.0, %v2197
    %v2199 = vpop.f32.mrb[0].mxu0
    %v2200 = vadd.f32 0.0, %v2199
    %v2201 = vpop.f32.mrb[0].mxu0
    %v2202 = vadd.f32 0.0, %v2201
    %v2203 = vpop.f32.mrb[0].mxu0
    %v2204 = vadd.f32 0.0, %v2203
    %2205 = vdwg.mxu0
    %2206 = vmatprep.subr.bf16.mxu0 %v740
    %2207 = vmatpush1.bf16.msra.mxu0 %v739
    %2208 = vmatprep.subr.bf16.mxu0 %v774
    %2209 = vmatpush1.bf16.msra.mxu0 %v773
    %2210 = vmatprep.subr.bf16.mxu0 %v808
    %2211 = vmatpush1.bf16.msra.mxu0 %v807
    %2212 = vmatprep.subr.bf16.mxu0 %v842
    %2213 = vmatpush1.bf16.msra.mxu0 %v841
    %2214 = vmatprep.subr.bf16.mxu0 0
    %2215 = vmatpush1.bf16.msra.mxu0 0
    %2216 = vmatprep.subr.bf16.mxu0 0
    %2217 = vmatpush1.bf16.msra.mxu0 0
    %2218 = vmatprep.subr.bf16.mxu0 0
    %2219 = vmatpush1.bf16.msra.mxu0 0
    %2220 = vmatprep.subr.bf16.mxu0 0
    %2221 = vmatpush1.bf16.msra.mxu0 0
    %2222 = vmatprep.subr.bf16.mxu0 0
    %2223 = vmatpush1.bf16.msra.mxu0 0
    %2224 = vmatprep.subr.bf16.mxu0 0
    %2225 = vmatpush1.bf16.msra.mxu0 0
    %2226 = vmatprep.subr.bf16.mxu0 0
    %2227 = vmatpush1.bf16.msra.mxu0 0
    %2228 = vmatprep.subr.bf16.mxu0 0
    %2229 = vmatpush1.bf16.msra.mxu0 0
    %2230 = vmatprep.subr.bf16.mxu0 0
    %2231 = vmatpush1.bf16.msra.mxu0 0
    %2232 = vmatprep.subr.bf16.mxu0 0
    %2233 = vmatpush1.bf16.msra.mxu0 0
    %2234 = vmatprep.subr.bf16.mxu0 0
    %2235 = vmatpush1.bf16.msra.mxu0 0
    %2236 = vmatprep.subr.bf16.mxu0 0
    %2237 = vmatpush1.bf16.msra.mxu0 0
    %2238 = vmatprep.mubr.bf16.mxu0 0
    %2239 = vmatmul.mubr.bf16.gmra.mrb[0].mxu0 %v1001
    %v2240 = vpop.f32.mrb[0].mxu0
    %v2241 = vadd.f32 0.0, %v2240
    %v2242 = vpop.f32.mrb[0].mxu0
    %v2243 = vadd.f32 0.0, %v2242
    %v2244 = vpop.f32.mrb[0].mxu0
    %v2245 = vadd.f32 0.0, %v2244
    %v2246 = vpop.f32.mrb[0].mxu0
    %v2247 = vadd.f32 0.0, %v2246
    %2248 = vmatprep.mubr.bf16.mxu0 0
    %2249 = vmatmul.mubr.bf16.gmra.mrb[0].mxu0 %v1004
    %v2250 = vpop.f32.mrb[0].mxu0
    %v2251 = vadd.f32 0.0, %v2250
    %v2252 = vpop.f32.mrb[0].mxu0
    %v2253 = vadd.f32 0.0, %v2252
    %v2254 = vpop.f32.mrb[0].mxu0
    %v2255 = vadd.f32 0.0, %v2254
    %v2256 = vpop.f32.mrb[0].mxu0
    %v2257 = vadd.f32 0.0, %v2256
    %2258 = vmatprep.mubr.bf16.mxu0 0
    %2259 = vmatmul.mubr.bf16.gmra.mrb[0].mxu0 %v1007
    %v2260 = vpop.f32.mrb[0].mxu0
    %v2261 = vadd.f32 0.0, %v2260
    %v2262 = vpop.f32.mrb[0].mxu0
    %v2263 = vadd.f32 0.0, %v2262
    %v2264 = vpop.f32.mrb[0].mxu0
    %v2265 = vadd.f32 0.0, %v2264
    %v2266 = vpop.f32.mrb[0].mxu0
    %v2267 = vadd.f32 0.0, %v2266
    %2268 = vmatprep.mubr.bf16.mxu0 0
    %2269 = vmatmul.mubr.bf16.gmra.mrb[0].mxu0 %v1010
    %v2270 = vpop.f32.mrb[0].mxu0
    %v2271 = vadd.f32 0.0, %v2270
    %v2272 = vpop.f32.mrb[0].mxu0
    %v2273 = vadd.f32 0.0, %v2272
    %v2274 = vpop.f32.mrb[0].mxu0
    %v2275 = vadd.f32 0.0, %v2274
    %v2276 = vpop.f32.mrb[0].mxu0
    %v2277 = vadd.f32 0.0, %v2276
    %2278 = vmatprep.mubr.bf16.mxu0 0
    %2279 = vmatmul.mubr.bf16.gmra.mrb[0].mxu0 %v1013
    %v2280 = vpop.f32.mrb[0].mxu0
    %v2281 = vadd.f32 0.0, %v2280
    %v2282 = vpop.f32.mrb[0].mxu0
    %v2283 = vadd.f32 0.0, %v2282
    %v2284 = vpop.f32.mrb[0].mxu0
    %v2285 = vadd.f32 0.0, %v2284
    %v2286 = vpop.f32.mrb[0].mxu0
    %v2287 = vadd.f32 0.0, %v2286
    %2288 = vmatprep.mubr.bf16.mxu0 0
    %2289 = vmatmul.mubr.bf16.gmra.mrb[0].mxu0 %v1016
    %v2290 = vpop.f32.mrb[0].mxu0
    %v2291 = vadd.f32 0.0, %v2290
    %v2292 = vpop.f32.mrb[0].mxu0
    %v2293 = vadd.f32 0.0, %v2292
    %v2294 = vpop.f32.mrb[0].mxu0
    %v2295 = vadd.f32 0.0, %v2294
    %v2296 = vpop.f32.mrb[0].mxu0
    %v2297 = vadd.f32 0.0, %v2296
    %2298 = vmatprep.mubr.bf16.mxu0 0
    %2299 = vmatmul.mubr.bf16.gmra.mrb[0].mxu0 %v1019
    %v2300 = vpop.f32.mrb[0].mxu0
    %v2301 = vadd.f32 0.0, %v2300
    %v2302 = vpop.f32.mrb[0].mxu0
    %v2303 = vadd.f32 0.0, %v2302
    %v2304 = vpop.f32.mrb[0].mxu0
    %v2305 = vadd.f32 0.0, %v2304
    %v2306 = vpop.f32.mrb[0].mxu0
    %v2307 = vadd.f32 0.0, %v2306
    %2308 = vmatprep.mubr.bf16.mxu0 0
    %2309 = vmatmul.mubr.bf16.gmra.mrb[0].mxu0 %v1022
    %v2310 = vpop.f32.mrb[0].mxu0
    %v2311 = vadd.f32 0.0, %v2310
    %v2312 = vpop.f32.mrb[0].mxu0
    %v2313 = vadd.f32 0.0, %v2312
    %v2314 = vpop.f32.mrb[0].mxu0
    %v2315 = vadd.f32 0.0, %v2314
    %v2316 = vpop.f32.mrb[0].mxu0
    %v2317 = vadd.f32 0.0, %v2316
    %2318 = vmatprep.mubr.bf16.mxu0 0
    %2319 = vmatmul.mubr.bf16.gmra.mrb[0].mxu0 %v1025
    %v2320 = vpop.f32.mrb[0].mxu0
    %v2321 = vadd.f32 0.0, %v2320
    %v2322 = vpop.f32.mrb[0].mxu0
    %v2323 = vadd.f32 0.0, %v2322
    %v2324 = vpop.f32.mrb[0].mxu0
    %v2325 = vadd.f32 0.0, %v2324
    %v2326 = vpop.f32.mrb[0].mxu0
    %v2327 = vadd.f32 0.0, %v2326
    %2328 = vmatprep.mubr.bf16.mxu0 0
    %2329 = vmatmul.mubr.bf16.gmra.mrb[0].mxu0 %v1028
    %v2330 = vpop.f32.mrb[0].mxu0
    %v2331 = vadd.f32 0.0, %v2330
    %v2332 = vpop.f32.mrb[0].mxu0
    %v2333 = vadd.f32 0.0, %v2332
    %v2334 = vpop.f32.mrb[0].mxu0
    %v2335 = vadd.f32 0.0, %v2334
    %v2336 = vpop.f32.mrb[0].mxu0
    %v2337 = vadd.f32 0.0, %v2336
    %2338 = vmatprep.mubr.bf16.mxu0 0
    %2339 = vmatmul.mubr.bf16.gmra.mrb[0].mxu0 %v1031
    %v2340 = vpop.f32.mrb[0].mxu0
    %v2341 = vadd.f32 0.0, %v2340
    %v2342 = vpop.f32.mrb[0].mxu0
    %v2343 = vadd.f32 0.0, %v2342
    %v2344 = vpop.f32.mrb[0].mxu0
    %v2345 = vadd.f32 0.0, %v2344
    %v2346 = vpop.f32.mrb[0].mxu0
    %v2347 = vadd.f32 0.0, %v2346
    %2348 = vmatprep.mubr.bf16.mxu0 0
    %2349 = vmatmul.mubr.bf16.gmra.mrb[0].mxu0 %v1034
    %v2350 = vpop.f32.mrb[0].mxu0
    %v2351 = vadd.f32 0.0, %v2350
    %v2352 = vpop.f32.mrb[0].mxu0
    %v2353 = vadd.f32 0.0, %v2352
    %v2354 = vpop.f32.mrb[0].mxu0
    %v2355 = vadd.f32 0.0, %v2354
    %v2356 = vpop.f32.mrb[0].mxu0
    %v2357 = vadd.f32 0.0, %v2356
    %2358 = vmatprep.mubr.bf16.mxu0 0
    %2359 = vmatmul.mubr.bf16.gmra.mrb[0].mxu0 %v1037
    %v2360 = vpop.f32.mrb[0].mxu0
    %v2361 = vadd.f32 0.0, %v2360
    %v2362 = vpop.f32.mrb[0].mxu0
    %v2363 = vadd.f32 0.0, %v2362
    %v2364 = vpop.f32.mrb[0].mxu0
    %v2365 = vadd.f32 0.0, %v2364
    %v2366 = vpop.f32.mrb[0].mxu0
    %v2367 = vadd.f32 0.0, %v2366
    %2368 = vmatprep.mubr.bf16.mxu0 0
    %2369 = vmatmul.mubr.bf16.gmra.mrb[0].mxu0 %v1040
    %v2370 = vpop.f32.mrb[0].mxu0
    %v2371 = vadd.f32 0.0, %v2370
    %v2372 = vpop.f32.mrb[0].mxu0
    %v2373 = vadd.f32 0.0, %v2372
    %v2374 = vpop.f32.mrb[0].mxu0
    %v2375 = vadd.f32 0.0, %v2374
    %v2376 = vpop.f32.mrb[0].mxu0
    %v2377 = vadd.f32 0.0, %v2376
    %2378 = vmatprep.mubr.bf16.mxu0 0
    %2379 = vmatmul.mubr.bf16.gmra.mrb[0].mxu0 %v1043
    %v2380 = vpop.f32.mrb[0].mxu0
    %v2381 = vadd.f32 0.0, %v2380
    %v2382 = vpop.f32.mrb[0].mxu0
    %v2383 = vadd.f32 0.0, %v2382
    %v2384 = vpop.f32.mrb[0].mxu0
    %v2385 = vadd.f32 0.0, %v2384
    %v2386 = vpop.f32.mrb[0].mxu0
    %v2387 = vadd.f32 0.0, %v2386
    %2388 = vmatprep.mubr.bf16.mxu0 0
    %2389 = vmatmul.mubr.bf16.gmra.mrb[0].mxu0 %v1046
    %v2390 = vpop.f32.mrb[0].mxu0
    %v2391 = vadd.f32 0.0, %v2390
    %v2392 = vpop.f32.mrb[0].mxu0
    %v2393 = vadd.f32 0.0, %v2392
    %v2394 = vpop.f32.mrb[0].mxu0
    %v2395 = vadd.f32 0.0, %v2394
    %v2396 = vpop.f32.mrb[0].mxu0
    %v2397 = vadd.f32 0.0, %v2396
    %2398 = vdwg.mxu0
    %2399 = vmatprep.subr.bf16.mxu0 %v742
    %2400 = vmatpush1.bf16.msra.mxu0 %v741
    %2401 = vmatprep.subr.bf16.mxu0 %v776
    %2402 = vmatpush1.bf16.msra.mxu0 %v775
    %2403 = vmatprep.subr.bf16.mxu0 %v810
    %2404 = vmatpush1.bf16.msra.mxu0 %v809
    %2405 = vmatprep.subr.bf16.mxu0 %v844
    %2406 = vmatpush1.bf16.msra.mxu0 %v843
    %2407 = vmatprep.subr.bf16.mxu0 0
    %2408 = vmatpush1.bf16.msra.mxu0 0
    %2409 = vmatprep.subr.bf16.mxu0 0
    %2410 = vmatpush1.bf16.msra.mxu0 0
    %2411 = vmatprep.subr.bf16.mxu0 0
    %2412 = vmatpush1.bf16.msra.mxu0 0
    %2413 = vmatprep.subr.bf16.mxu0 0
    %2414 = vmatpush1.bf16.msra.mxu0 0
    %2415 = vmatprep.subr.bf16.mxu0 0
    %2416 = vmatpush1.bf16.msra.mxu0 0
    %2417 = vmatprep.subr.bf16.mxu0 0
    %2418 = vmatpush1.bf16.msra.mxu0 0
    %2419 = vmatprep.subr.bf16.mxu0 0
    %2420 = vmatpush1.bf16.msra.mxu0 0
    %2421 = vmatprep.subr.bf16.mxu0 0
    %2422 = vmatpush1.bf16.msra.mxu0 0
    %2423 = vmatprep.subr.bf16.mxu0 0
    %2424 = vmatpush1.bf16.msra.mxu0 0
    %2425 = vmatprep.subr.bf16.mxu0 0
    %2426 = vmatpush1.bf16.msra.mxu0 0
    %2427 = vmatprep.subr.bf16.mxu0 0
    %2428 = vmatpush1.bf16.msra.mxu0 0
    %2429 = vmatprep.subr.bf16.mxu0 0
    %2430 = vmatpush1.bf16.msra.mxu0 0
    %2431 = vmatprep.mubr.bf16.mxu0 0
    %2432 = vmatmul.mubr.bf16.gmra.mrb[0].mxu0 %v1001
    %v2433 = vpop.f32.mrb[0].mxu0
    %v2434 = vadd.f32 0.0, %v2433
    %v2435 = vpop.f32.mrb[0].mxu0
    %v2436 = vadd.f32 0.0, %v2435
    %v2437 = vpop.f32.mrb[0].mxu0
    %v2438 = vadd.f32 0.0, %v2437
    %v2439 = vpop.f32.mrb[0].mxu0
    %v2440 = vadd.f32 0.0, %v2439
    %2441 = vmatprep.mubr.bf16.mxu0 0
    %2442 = vmatmul.mubr.bf16.gmra.mrb[0].mxu0 %v1004
    %v2443 = vpop.f32.mrb[0].mxu0
    %v2444 = vadd.f32 0.0, %v2443
    %v2445 = vpop.f32.mrb[0].mxu0
    %v2446 = vadd.f32 0.0, %v2445
    %v2447 = vpop.f32.mrb[0].mxu0
    %v2448 = vadd.f32 0.0, %v2447
    %v2449 = vpop.f32.mrb[0].mxu0
    %v2450 = vadd.f32 0.0, %v2449
    %2451 = vmatprep.mubr.bf16.mxu0 0
    %2452 = vmatmul.mubr.bf16.gmra.mrb[0].mxu0 %v1007
    %v2453 = vpop.f32.mrb[0].mxu0
    %v2454 = vadd.f32 0.0, %v2453
    %v2455 = vpop.f32.mrb[0].mxu0
    %v2456 = vadd.f32 0.0, %v2455
    %v2457 = vpop.f32.mrb[0].mxu0
    %v2458 = vadd.f32 0.0, %v2457
    %v2459 = vpop.f32.mrb[0].mxu0
    %v2460 = vadd.f32 0.0, %v2459
    %2461 = vmatprep.mubr.bf16.mxu0 0
    %2462 = vmatmul.mubr.bf16.gmra.mrb[0].mxu0 %v1010
    %v2463 = vpop.f32.mrb[0].mxu0
    %v2464 = vadd.f32 0.0, %v2463
    %v2465 = vpop.f32.mrb[0].mxu0
    %v2466 = vadd.f32 0.0, %v2465
    %v2467 = vpop.f32.mrb[0].mxu0
    %v2468 = vadd.f32 0.0, %v2467
    %v2469 = vpop.f32.mrb[0].mxu0
    %v2470 = vadd.f32 0.0, %v2469
    %2471 = vmatprep.mubr.bf16.mxu0 0
    %2472 = vmatmul.mubr.bf16.gmra.mrb[0].mxu0 %v1013
    %v2473 = vpop.f32.mrb[0].mxu0
    %v2474 = vadd.f32 0.0, %v2473
    %v2475 = vpop.f32.mrb[0].mxu0
    %v2476 = vadd.f32 0.0, %v2475
    %v2477 = vpop.f32.mrb[0].mxu0
    %v2478 = vadd.f32 0.0, %v2477
    %v2479 = vpop.f32.mrb[0].mxu0
    %v2480 = vadd.f32 0.0, %v2479
    %2481 = vmatprep.mubr.bf16.mxu0 0
    %2482 = vmatmul.mubr.bf16.gmra.mrb[0].mxu0 %v1016
    %v2483 = vpop.f32.mrb[0].mxu0
    %v2484 = vadd.f32 0.0, %v2483
    %v2485 = vpop.f32.mrb[0].mxu0
    %v2486 = vadd.f32 0.0, %v2485
    %v2487 = vpop.f32.mrb[0].mxu0
    %v2488 = vadd.f32 0.0, %v2487
    %v2489 = vpop.f32.mrb[0].mxu0
    %v2490 = vadd.f32 0.0, %v2489
    %2491 = vmatprep.mubr.bf16.mxu0 0
    %2492 = vmatmul.mubr.bf16.gmra.mrb[0].mxu0 %v1019
    %v2493 = vpop.f32.mrb[0].mxu0
    %v2494 = vadd.f32 0.0, %v2493
    %v2495 = vpop.f32.mrb[0].mxu0
    %v2496 = vadd.f32 0.0, %v2495
    %v2497 = vpop.f32.mrb[0].mxu0
    %v2498 = vadd.f32 0.0, %v2497
    %v2499 = vpop.f32.mrb[0].mxu0
    %v2500 = vadd.f32 0.0, %v2499
    %2501 = vmatprep.mubr.bf16.mxu0 0
    %2502 = vmatmul.mubr.bf16.gmra.mrb[0].mxu0 %v1022
    %v2503 = vpop.f32.mrb[0].mxu0
    %v2504 = vadd.f32 0.0, %v2503
    %v2505 = vpop.f32.mrb[0].mxu0
    %v2506 = vadd.f32 0.0, %v2505
    %v2507 = vpop.f32.mrb[0].mxu0
    %v2508 = vadd.f32 0.0, %v2507
    %v2509 = vpop.f32.mrb[0].mxu0
    %v2510 = vadd.f32 0.0, %v2509
    %2511 = vmatprep.mubr.bf16.mxu0 0
    %2512 = vmatmul.mubr.bf16.gmra.mrb[0].mxu0 %v1025
    %v2513 = vpop.f32.mrb[0].mxu0
    %v2514 = vadd.f32 0.0, %v2513
    %v2515 = vpop.f32.mrb[0].mxu0
    %v2516 = vadd.f32 0.0, %v2515
    %v2517 = vpop.f32.mrb[0].mxu0
    %v2518 = vadd.f32 0.0, %v2517
    %v2519 = vpop.f32.mrb[0].mxu0
    %v2520 = vadd.f32 0.0, %v2519
    %2521 = vmatprep.mubr.bf16.mxu0 0
    %2522 = vmatmul.mubr.bf16.gmra.mrb[0].mxu0 %v1028
    %v2523 = vpop.f32.mrb[0].mxu0
    %v2524 = vadd.f32 0.0, %v2523
    %v2525 = vpop.f32.mrb[0].mxu0
    %v2526 = vadd.f32 0.0, %v2525
    %v2527 = vpop.f32.mrb[0].mxu0
    %v2528 = vadd.f32 0.0, %v2527
    %v2529 = vpop.f32.mrb[0].mxu0
    %v2530 = vadd.f32 0.0, %v2529
    %2531 = vmatprep.mubr.bf16.mxu0 0
    %2532 = vmatmul.mubr.bf16.gmra.mrb[0].mxu0 %v1031
    %v2533 = vpop.f32.mrb[0].mxu0
    %v2534 = vadd.f32 0.0, %v2533
    %v2535 = vpop.f32.mrb[0].mxu0
    %v2536 = vadd.f32 0.0, %v2535
    %v2537 = vpop.f32.mrb[0].mxu0
    %v2538 = vadd.f32 0.0, %v2537
    %v2539 = vpop.f32.mrb[0].mxu0
    %v2540 = vadd.f32 0.0, %v2539
    %2541 = vmatprep.mubr.bf16.mxu0 0
    %2542 = vmatmul.mubr.bf16.gmra.mrb[0].mxu0 %v1034
    %v2543 = vpop.f32.mrb[0].mxu0
    %v2544 = vadd.f32 0.0, %v2543
    %v2545 = vpop.f32.mrb[0].mxu0
    %v2546 = vadd.f32 0.0, %v2545
    %v2547 = vpop.f32.mrb[0].mxu0
    %v2548 = vadd.f32 0.0, %v2547
    %v2549 = vpop.f32.mrb[0].mxu0
    %v2550 = vadd.f32 0.0, %v2549
    %2551 = vmatprep.mubr.bf16.mxu0 0
    %2552 = vmatmul.mubr.bf16.gmra.mrb[0].mxu0 %v1037
    %v2553 = vpop.f32.mrb[0].mxu0
    %v2554 = vadd.f32 0.0, %v2553
    %v2555 = vpop.f32.mrb[0].mxu0
    %v2556 = vadd.f32 0.0, %v2555
    %v2557 = vpop.f32.mrb[0].mxu0
    %v2558 = vadd.f32 0.0, %v2557
    %v2559 = vpop.f32.mrb[0].mxu0
    %v2560 = vadd.f32 0.0, %v2559
    %2561 = vmatprep.mubr.bf16.mxu0 0
    %2562 = vmatmul.mubr.bf16.gmra.mrb[0].mxu0 %v1040
    %v2563 = vpop.f32.mrb[0].mxu0
    %v2564 = vadd.f32 0.0, %v2563
    %v2565 = vpop.f32.mrb[0].mxu0
    %v2566 = vadd.f32 0.0, %v2565
    %v2567 = vpop.f32.mrb[0].mxu0
    %v2568 = vadd.f32 0.0, %v2567
    %v2569 = vpop.f32.mrb[0].mxu0
    %v2570 = vadd.f32 0.0, %v2569
    %2571 = vmatprep.mubr.bf16.mxu0 0
    %2572 = vmatmul.mubr.bf16.gmra.mrb[0].mxu0 %v1043
    %v2573 = vpop.f32.mrb[0].mxu0
    %v2574 = vadd.f32 0.0, %v2573
    %v2575 = vpop.f32.mrb[0].mxu0
    %v2576 = vadd.f32 0.0, %v2575
    %v2577 = vpop.f32.mrb[0].mxu0
    %v2578 = vadd.f32 0.0, %v2577
    %v2579 = vpop.f32.mrb[0].mxu0
    %v2580 = vadd.f32 0.0, %v2579
    %2581 = vmatprep.mubr.bf16.mxu0 0
    %2582 = vmatmul.mubr.bf16.gmra.mrb[0].mxu0 %v1046
    %v2583 = vpop.f32.mrb[0].mxu0
    %v2584 = vadd.f32 0.0, %v2583
    %v2585 = vpop.f32.mrb[0].mxu0
    %v2586 = vadd.f32 0.0, %v2585
    %v2587 = vpop.f32.mrb[0].mxu0
    %v2588 = vadd.f32 0.0, %v2587
    %v2589 = vpop.f32.mrb[0].mxu0
    %v2590 = vadd.f32 0.0, %v2589
    %2591 = vdwg.mxu0
    %2592 = vmatprep.subr.bf16.mxu0 %v744
    %2593 = vmatpush1.bf16.msra.mxu0 %v743
    %2594 = vmatprep.subr.bf16.mxu0 %v778
    %2595 = vmatpush1.bf16.msra.mxu0 %v777
    %2596 = vmatprep.subr.bf16.mxu0 %v812
    %2597 = vmatpush1.bf16.msra.mxu0 %v811
    %2598 = vmatprep.subr.bf16.mxu0 %v846
    %2599 = vmatpush1.bf16.msra.mxu0 %v845
    %2600 = vmatprep.subr.bf16.mxu0 0
    %2601 = vmatpush1.bf16.msra.mxu0 0
    %2602 = vmatprep.subr.bf16.mxu0 0
    %2603 = vmatpush1.bf16.msra.mxu0 0
    %2604 = vmatprep.subr.bf16.mxu0 0
    %2605 = vmatpush1.bf16.msra.mxu0 0
    %2606 = vmatprep.subr.bf16.mxu0 0
    %2607 = vmatpush1.bf16.msra.mxu0 0
    %2608 = vmatprep.subr.bf16.mxu0 0
    %2609 = vmatpush1.bf16.msra.mxu0 0
    %2610 = vmatprep.subr.bf16.mxu0 0
    %2611 = vmatpush1.bf16.msra.mxu0 0
    %2612 = vmatprep.subr.bf16.mxu0 0
    %2613 = vmatpush1.bf16.msra.mxu0 0
    %2614 = vmatprep.subr.bf16.mxu0 0
    %2615 = vmatpush1.bf16.msra.mxu0 0
    %2616 = vmatprep.subr.bf16.mxu0 0
    %2617 = vmatpush1.bf16.msra.mxu0 0
    %2618 = vmatprep.subr.bf16.mxu0 0
    %2619 = vmatpush1.bf16.msra.mxu0 0
    %2620 = vmatprep.subr.bf16.mxu0 0
    %2621 = vmatpush1.bf16.msra.mxu0 0
    %2622 = vmatprep.subr.bf16.mxu0 0
    %2623 = vmatpush1.bf16.msra.mxu0 0
    %2624 = vmatprep.mubr.bf16.mxu0 0
    %2625 = vmatmul.mubr.bf16.gmra.mrb[0].mxu0 %v1001
    %v2626 = vpop.f32.mrb[0].mxu0
    %v2627 = vadd.f32 0.0, %v2626
    %v2628 = vpop.f32.mrb[0].mxu0
    %v2629 = vadd.f32 0.0, %v2628
    %v2630 = vpop.f32.mrb[0].mxu0
    %v2631 = vadd.f32 0.0, %v2630
    %v2632 = vpop.f32.mrb[0].mxu0
    %v2633 = vadd.f32 0.0, %v2632
    %2634 = vmatprep.mubr.bf16.mxu0 0
    %2635 = vmatmul.mubr.bf16.gmra.mrb[0].mxu0 %v1004
    %v2636 = vpop.f32.mrb[0].mxu0
    %v2637 = vadd.f32 0.0, %v2636
    %v2638 = vpop.f32.mrb[0].mxu0
    %v2639 = vadd.f32 0.0, %v2638
    %v2640 = vpop.f32.mrb[0].mxu0
    %v2641 = vadd.f32 0.0, %v2640
    %v2642 = vpop.f32.mrb[0].mxu0
    %v2643 = vadd.f32 0.0, %v2642
    %2644 = vmatprep.mubr.bf16.mxu0 0
    %2645 = vmatmul.mubr.bf16.gmra.mrb[0].mxu0 %v1007
    %v2646 = vpop.f32.mrb[0].mxu0
    %v2647 = vadd.f32 0.0, %v2646
    %v2648 = vpop.f32.mrb[0].mxu0
    %v2649 = vadd.f32 0.0, %v2648
    %v2650 = vpop.f32.mrb[0].mxu0
    %v2651 = vadd.f32 0.0, %v2650
    %v2652 = vpop.f32.mrb[0].mxu0
    %v2653 = vadd.f32 0.0, %v2652
    %2654 = vmatprep.mubr.bf16.mxu0 0
    %2655 = vmatmul.mubr.bf16.gmra.mrb[0].mxu0 %v1010
    %v2656 = vpop.f32.mrb[0].mxu0
    %v2657 = vadd.f32 0.0, %v2656
    %v2658 = vpop.f32.mrb[0].mxu0
    %v2659 = vadd.f32 0.0, %v2658
    %v2660 = vpop.f32.mrb[0].mxu0
    %v2661 = vadd.f32 0.0, %v2660
    %v2662 = vpop.f32.mrb[0].mxu0
    %v2663 = vadd.f32 0.0, %v2662
    %2664 = vmatprep.mubr.bf16.mxu0 0
    %2665 = vmatmul.mubr.bf16.gmra.mrb[0].mxu0 %v1013
    %v2666 = vpop.f32.mrb[0].mxu0
    %v2667 = vadd.f32 0.0, %v2666
    %v2668 = vpop.f32.mrb[0].mxu0
    %v2669 = vadd.f32 0.0, %v2668
    %v2670 = vpop.f32.mrb[0].mxu0
    %v2671 = vadd.f32 0.0, %v2670
    %v2672 = vpop.f32.mrb[0].mxu0
    %v2673 = vadd.f32 0.0, %v2672
    %2674 = vmatprep.mubr.bf16.mxu0 0
    %2675 = vmatmul.mubr.bf16.gmra.mrb[0].mxu0 %v1016
    %v2676 = vpop.f32.mrb[0].mxu0
    %v2677 = vadd.f32 0.0, %v2676
    %v2678 = vpop.f32.mrb[0].mxu0
    %v2679 = vadd.f32 0.0, %v2678
    %v2680 = vpop.f32.mrb[0].mxu0
    %v2681 = vadd.f32 0.0, %v2680
    %v2682 = vpop.f32.mrb[0].mxu0
    %v2683 = vadd.f32 0.0, %v2682
    %2684 = vmatprep.mubr.bf16.mxu0 0
    %2685 = vmatmul.mubr.bf16.gmra.mrb[0].mxu0 %v1019
    %v2686 = vpop.f32.mrb[0].mxu0
    %v2687 = vadd.f32 0.0, %v2686
    %v2688 = vpop.f32.mrb[0].mxu0
    %v2689 = vadd.f32 0.0, %v2688
    %v2690 = vpop.f32.mrb[0].mxu0
    %v2691 = vadd.f32 0.0, %v2690
    %v2692 = vpop.f32.mrb[0].mxu0
    %v2693 = vadd.f32 0.0, %v2692
    %2694 = vmatprep.mubr.bf16.mxu0 0
    %2695 = vmatmul.mubr.bf16.gmra.mrb[0].mxu0 %v1022
    %v2696 = vpop.f32.mrb[0].mxu0
    %v2697 = vadd.f32 0.0, %v2696
    %v2698 = vpop.f32.mrb[0].mxu0
    %v2699 = vadd.f32 0.0, %v2698
    %v2700 = vpop.f32.mrb[0].mxu0
    %v2701 = vadd.f32 0.0, %v2700
    %v2702 = vpop.f32.mrb[0].mxu0
    %v2703 = vadd.f32 0.0, %v2702
    %2704 = vmatprep.mubr.bf16.mxu0 0
    %2705 = vmatmul.mubr.bf16.gmra.mrb[0].mxu0 %v1025
    %v2706 = vpop.f32.mrb[0].mxu0
    %v2707 = vadd.f32 0.0, %v2706
    %v2708 = vpop.f32.mrb[0].mxu0
    %v2709 = vadd.f32 0.0, %v2708
    %v2710 = vpop.f32.mrb[0].mxu0
    %v2711 = vadd.f32 0.0, %v2710
    %v2712 = vpop.f32.mrb[0].mxu0
    %v2713 = vadd.f32 0.0, %v2712
    %2714 = vmatprep.mubr.bf16.mxu0 0
    %2715 = vmatmul.mubr.bf16.gmra.mrb[0].mxu0 %v1028
    %v2716 = vpop.f32.mrb[0].mxu0
    %v2717 = vadd.f32 0.0, %v2716
    %v2718 = vpop.f32.mrb[0].mxu0
    %v2719 = vadd.f32 0.0, %v2718
    %v2720 = vpop.f32.mrb[0].mxu0
    %v2721 = vadd.f32 0.0, %v2720
    %v2722 = vpop.f32.mrb[0].mxu0
    %v2723 = vadd.f32 0.0, %v2722
    %2724 = vmatprep.mubr.bf16.mxu0 0
    %2725 = vmatmul.mubr.bf16.gmra.mrb[0].mxu0 %v1031
    %v2726 = vpop.f32.mrb[0].mxu0
    %v2727 = vadd.f32 0.0, %v2726
    %v2728 = vpop.f32.mrb[0].mxu0
    %v2729 = vadd.f32 0.0, %v2728
    %v2730 = vpop.f32.mrb[0].mxu0
    %v2731 = vadd.f32 0.0, %v2730
    %v2732 = vpop.f32.mrb[0].mxu0
    %v2733 = vadd.f32 0.0, %v2732
    %2734 = vmatprep.mubr.bf16.mxu0 0
    %2735 = vmatmul.mubr.bf16.gmra.mrb[0].mxu0 %v1034
    %v2736 = vpop.f32.mrb[0].mxu0
    %v2737 = vadd.f32 0.0, %v2736
    %v2738 = vpop.f32.mrb[0].mxu0
    %v2739 = vadd.f32 0.0, %v2738
    %v2740 = vpop.f32.mrb[0].mxu0
    %v2741 = vadd.f32 0.0, %v2740
    %v2742 = vpop.f32.mrb[0].mxu0
    %v2743 = vadd.f32 0.0, %v2742
    %2744 = vmatprep.mubr.bf16.mxu0 0
    %2745 = vmatmul.mubr.bf16.gmra.mrb[0].mxu0 %v1037
    %v2746 = vpop.f32.mrb[0].mxu0
    %v2747 = vadd.f32 0.0, %v2746
    %v2748 = vpop.f32.mrb[0].mxu0
    %v2749 = vadd.f32 0.0, %v2748
    %v2750 = vpop.f32.mrb[0].mxu0
    %v2751 = vadd.f32 0.0, %v2750
    %v2752 = vpop.f32.mrb[0].mxu0
    %v2753 = vadd.f32 0.0, %v2752
    %2754 = vmatprep.mubr.bf16.mxu0 0
    %2755 = vmatmul.mubr.bf16.gmra.mrb[0].mxu0 %v1040
    %v2756 = vpop.f32.mrb[0].mxu0
    %v2757 = vadd.f32 0.0, %v2756
    %v2758 = vpop.f32.mrb[0].mxu0
    %v2759 = vadd.f32 0.0, %v2758
    %v2760 = vpop.f32.mrb[0].mxu0
    %v2761 = vadd.f32 0.0, %v2760
    %v2762 = vpop.f32.mrb[0].mxu0
    %v2763 = vadd.f32 0.0, %v2762
    %2764 = vmatprep.mubr.bf16.mxu0 0
    %2765 = vmatmul.mubr.bf16.gmra.mrb[0].mxu0 %v1043
    %v2766 = vpop.f32.mrb[0].mxu0
    %v2767 = vadd.f32 0.0, %v2766
    %v2768 = vpop.f32.mrb[0].mxu0
    %v2769 = vadd.f32 0.0, %v2768
    %v2770 = vpop.f32.mrb[0].mxu0
    %v2771 = vadd.f32 0.0, %v2770
    %v2772 = vpop.f32.mrb[0].mxu0
    %v2773 = vadd.f32 0.0, %v2772
    %2774 = vmatprep.mubr.bf16.mxu0 0
    %2775 = vmatmul.mubr.bf16.gmra.mrb[0].mxu0 %v1046
    %v2776 = vpop.f32.mrb[0].mxu0
    %v2777 = vadd.f32 0.0, %v2776
    %v2778 = vpop.f32.mrb[0].mxu0
    %v2779 = vadd.f32 0.0, %v2778
    %v2780 = vpop.f32.mrb[0].mxu0
    %v2781 = vadd.f32 0.0, %v2780
    %v2782 = vpop.f32.mrb[0].mxu0
    %v2783 = vadd.f32 0.0, %v2782
    %2784 = vdwg.mxu0
    %2785 = vmatprep.subr.bf16.mxu0 %v746
    %2786 = vmatpush1.bf16.msra.mxu0 %v745
    %2787 = vmatprep.subr.bf16.mxu0 %v780
    %2788 = vmatpush1.bf16.msra.mxu0 %v779
    %2789 = vmatprep.subr.bf16.mxu0 %v814
    %2790 = vmatpush1.bf16.msra.mxu0 %v813
    %2791 = vmatprep.subr.bf16.mxu0 %v848
    %2792 = vmatpush1.bf16.msra.mxu0 %v847
    %2793 = vmatprep.subr.bf16.mxu0 0
    %2794 = vmatpush1.bf16.msra.mxu0 0
    %2795 = vmatprep.subr.bf16.mxu0 0
    %2796 = vmatpush1.bf16.msra.mxu0 0
    %2797 = vmatprep.subr.bf16.mxu0 0
    %2798 = vmatpush1.bf16.msra.mxu0 0
    %2799 = vmatprep.subr.bf16.mxu0 0
    %2800 = vmatpush1.bf16.msra.mxu0 0
    %2801 = vmatprep.subr.bf16.mxu0 0
    %2802 = vmatpush1.bf16.msra.mxu0 0
    %2803 = vmatprep.subr.bf16.mxu0 0
    %2804 = vmatpush1.bf16.msra.mxu0 0
    %2805 = vmatprep.subr.bf16.mxu0 0
    %2806 = vmatpush1.bf16.msra.mxu0 0
    %2807 = vmatprep.subr.bf16.mxu0 0
    %2808 = vmatpush1.bf16.msra.mxu0 0
    %2809 = vmatprep.subr.bf16.mxu0 0
    %2810 = vmatpush1.bf16.msra.mxu0 0
    %2811 = vmatprep.subr.bf16.mxu0 0
    %2812 = vmatpush1.bf16.msra.mxu0 0
    %2813 = vmatprep.subr.bf16.mxu0 0
    %2814 = vmatpush1.bf16.msra.mxu0 0
    %2815 = vmatprep.subr.bf16.mxu0 0
    %2816 = vmatpush1.bf16.msra.mxu0 0
    %2817 = vmatprep.mubr.bf16.mxu0 0
    %2818 = vmatmul.mubr.bf16.gmra.mrb[0].mxu0 %v1001
    %v2819 = vpop.f32.mrb[0].mxu0
    %v2820 = vadd.f32 0.0, %v2819
    %v2821 = vpop.f32.mrb[0].mxu0
    %v2822 = vadd.f32 0.0, %v2821
    %v2823 = vpop.f32.mrb[0].mxu0
    %v2824 = vadd.f32 0.0, %v2823
    %v2825 = vpop.f32.mrb[0].mxu0
    %v2826 = vadd.f32 0.0, %v2825
    %2827 = vmatprep.mubr.bf16.mxu0 0
    %2828 = vmatmul.mubr.bf16.gmra.mrb[0].mxu0 %v1004
    %v2829 = vpop.f32.mrb[0].mxu0
    %v2830 = vadd.f32 0.0, %v2829
    %v2831 = vpop.f32.mrb[0].mxu0
    %v2832 = vadd.f32 0.0, %v2831
    %v2833 = vpop.f32.mrb[0].mxu0
    %v2834 = vadd.f32 0.0, %v2833
    %v2835 = vpop.f32.mrb[0].mxu0
    %v2836 = vadd.f32 0.0, %v2835
    %2837 = vmatprep.mubr.bf16.mxu0 0
    %2838 = vmatmul.mubr.bf16.gmra.mrb[0].mxu0 %v1007
    %v2839 = vpop.f32.mrb[0].mxu0
    %v2840 = vadd.f32 0.0, %v2839
    %v2841 = vpop.f32.mrb[0].mxu0
    %v2842 = vadd.f32 0.0, %v2841
    %v2843 = vpop.f32.mrb[0].mxu0
    %v2844 = vadd.f32 0.0, %v2843
    %v2845 = vpop.f32.mrb[0].mxu0
    %v2846 = vadd.f32 0.0, %v2845
    %2847 = vmatprep.mubr.bf16.mxu0 0
    %2848 = vmatmul.mubr.bf16.gmra.mrb[0].mxu0 %v1010
    %v2849 = vpop.f32.mrb[0].mxu0
    %v2850 = vadd.f32 0.0, %v2849
    %v2851 = vpop.f32.mrb[0].mxu0
    %v2852 = vadd.f32 0.0, %v2851
    %v2853 = vpop.f32.mrb[0].mxu0
    %v2854 = vadd.f32 0.0, %v2853
    %v2855 = vpop.f32.mrb[0].mxu0
    %v2856 = vadd.f32 0.0, %v2855
    %2857 = vmatprep.mubr.bf16.mxu0 0
    %2858 = vmatmul.mubr.bf16.gmra.mrb[0].mxu0 %v1013
    %v2859 = vpop.f32.mrb[0].mxu0
    %v2860 = vadd.f32 0.0, %v2859
    %v2861 = vpop.f32.mrb[0].mxu0
    %v2862 = vadd.f32 0.0, %v2861
    %v2863 = vpop.f32.mrb[0].mxu0
    %v2864 = vadd.f32 0.0, %v2863
    %v2865 = vpop.f32.mrb[0].mxu0
    %v2866 = vadd.f32 0.0, %v2865
    %2867 = vmatprep.mubr.bf16.mxu0 0
    %2868 = vmatmul.mubr.bf16.gmra.mrb[0].mxu0 %v1016
    %v2869 = vpop.f32.mrb[0].mxu0
    %v2870 = vadd.f32 0.0, %v2869
    %v2871 = vpop.f32.mrb[0].mxu0
    %v2872 = vadd.f32 0.0, %v2871
    %v2873 = vpop.f32.mrb[0].mxu0
    %v2874 = vadd.f32 0.0, %v2873
    %v2875 = vpop.f32.mrb[0].mxu0
    %v2876 = vadd.f32 0.0, %v2875
    %2877 = vmatprep.mubr.bf16.mxu0 0
    %2878 = vmatmul.mubr.bf16.gmra.mrb[0].mxu0 %v1019
    %v2879 = vpop.f32.mrb[0].mxu0
    %v2880 = vadd.f32 0.0, %v2879
    %v2881 = vpop.f32.mrb[0].mxu0
    %v2882 = vadd.f32 0.0, %v2881
    %v2883 = vpop.f32.mrb[0].mxu0
    %v2884 = vadd.f32 0.0, %v2883
    %v2885 = vpop.f32.mrb[0].mxu0
    %v2886 = vadd.f32 0.0, %v2885
    %2887 = vmatprep.mubr.bf16.mxu0 0
    %2888 = vmatmul.mubr.bf16.gmra.mrb[0].mxu0 %v1022
    %v2889 = vpop.f32.mrb[0].mxu0
    %v2890 = vadd.f32 0.0, %v2889
    %v2891 = vpop.f32.mrb[0].mxu0
    %v2892 = vadd.f32 0.0, %v2891
    %v2893 = vpop.f32.mrb[0].mxu0
    %v2894 = vadd.f32 0.0, %v2893
    %v2895 = vpop.f32.mrb[0].mxu0
    %v2896 = vadd.f32 0.0, %v2895
    %2897 = vmatprep.mubr.bf16.mxu0 0
    %2898 = vmatmul.mubr.bf16.gmra.mrb[0].mxu0 %v1025
    %v2899 = vpop.f32.mrb[0].mxu0
    %v2900 = vadd.f32 0.0, %v2899
    %v2901 = vpop.f32.mrb[0].mxu0
    %v2902 = vadd.f32 0.0, %v2901
    %v2903 = vpop.f32.mrb[0].mxu0
    %v2904 = vadd.f32 0.0, %v2903
    %v2905 = vpop.f32.mrb[0].mxu0
    %v2906 = vadd.f32 0.0, %v2905
    %2907 = vmatprep.mubr.bf16.mxu0 0
    %2908 = vmatmul.mubr.bf16.gmra.mrb[0].mxu0 %v1028
    %v2909 = vpop.f32.mrb[0].mxu0
    %v2910 = vadd.f32 0.0, %v2909
    %v2911 = vpop.f32.mrb[0].mxu0
    %v2912 = vadd.f32 0.0, %v2911
    %v2913 = vpop.f32.mrb[0].mxu0
    %v2914 = vadd.f32 0.0, %v2913
    %v2915 = vpop.f32.mrb[0].mxu0
    %v2916 = vadd.f32 0.0, %v2915
    %2917 = vmatprep.mubr.bf16.mxu0 0
    %2918 = vmatmul.mubr.bf16.gmra.mrb[0].mxu0 %v1031
    %v2919 = vpop.f32.mrb[0].mxu0
    %v2920 = vadd.f32 0.0, %v2919
    %v2921 = vpop.f32.mrb[0].mxu0
    %v2922 = vadd.f32 0.0, %v2921
    %v2923 = vpop.f32.mrb[0].mxu0
    %v2924 = vadd.f32 0.0, %v2923
    %v2925 = vpop.f32.mrb[0].mxu0
    %v2926 = vadd.f32 0.0, %v2925
    %2927 = vmatprep.mubr.bf16.mxu0 0
    %2928 = vmatmul.mubr.bf16.gmra.mrb[0].mxu0 %v1034
    %v2929 = vpop.f32.mrb[0].mxu0
    %v2930 = vadd.f32 0.0, %v2929
    %v2931 = vpop.f32.mrb[0].mxu0
    %v2932 = vadd.f32 0.0, %v2931
    %v2933 = vpop.f32.mrb[0].mxu0
    %v2934 = vadd.f32 0.0, %v2933
    %v2935 = vpop.f32.mrb[0].mxu0
    %v2936 = vadd.f32 0.0, %v2935
    %2937 = vmatprep.mubr.bf16.mxu0 0
    %2938 = vmatmul.mubr.bf16.gmra.mrb[0].mxu0 %v1037
    %v2939 = vpop.f32.mrb[0].mxu0
    %v2940 = vadd.f32 0.0, %v2939
    %v2941 = vpop.f32.mrb[0].mxu0
    %v2942 = vadd.f32 0.0, %v2941
    %v2943 = vpop.f32.mrb[0].mxu0
    %v2944 = vadd.f32 0.0, %v2943
    %v2945 = vpop.f32.mrb[0].mxu0
    %v2946 = vadd.f32 0.0, %v2945
    %2947 = vmatprep.mubr.bf16.mxu0 0
    %2948 = vmatmul.mubr.bf16.gmra.mrb[0].mxu0 %v1040
    %v2949 = vpop.f32.mrb[0].mxu0
    %v2950 = vadd.f32 0.0, %v2949
    %v2951 = vpop.f32.mrb[0].mxu0
    %v2952 = vadd.f32 0.0, %v2951
    %v2953 = vpop.f32.mrb[0].mxu0
    %v2954 = vadd.f32 0.0, %v2953
    %v2955 = vpop.f32.mrb[0].mxu0
    %v2956 = vadd.f32 0.0, %v2955
    %2957 = vmatprep.mubr.bf16.mxu0 0
    %2958 = vmatmul.mubr.bf16.gmra.mrb[0].mxu0 %v1043
    %v2959 = vpop.f32.mrb[0].mxu0
    %v2960 = vadd.f32 0.0, %v2959
    %v2961 = vpop.f32.mrb[0].mxu0
    %v2962 = vadd.f32 0.0, %v2961
    %v2963 = vpop.f32.mrb[0].mxu0
    %v2964 = vadd.f32 0.0, %v2963
    %v2965 = vpop.f32.mrb[0].mxu0
    %v2966 = vadd.f32 0.0, %v2965
    %2967 = vmatprep.mubr.bf16.mxu0 0
    %2968 = vmatmul.mubr.bf16.gmra.mrb[0].mxu0 %v1046
    %v2969 = vpop.f32.mrb[0].mxu0
    %v2970 = vadd.f32 0.0, %v2969
    %v2971 = vpop.f32.mrb[0].mxu0
    %v2972 = vadd.f32 0.0, %v2971
    %v2973 = vpop.f32.mrb[0].mxu0
    %v2974 = vadd.f32 0.0, %v2973
    %v2975 = vpop.f32.mrb[0].mxu0
    %v2976 = vadd.f32 0.0, %v2975
    %2977 = vdwg.mxu0
    %2978 = vmatprep.subr.bf16.mxu0 %v748
    %2979 = vmatpush1.bf16.msra.mxu0 %v747
    %2980 = vmatprep.subr.bf16.mxu0 %v782
    %2981 = vmatpush1.bf16.msra.mxu0 %v781
    %2982 = vmatprep.subr.bf16.mxu0 %v816
    %2983 = vmatpush1.bf16.msra.mxu0 %v815
    %2984 = vmatprep.subr.bf16.mxu0 %v850
    %2985 = vmatpush1.bf16.msra.mxu0 %v849
    %2986 = vmatprep.subr.bf16.mxu0 0
    %2987 = vmatpush1.bf16.msra.mxu0 0
    %2988 = vmatprep.subr.bf16.mxu0 0
    %2989 = vmatpush1.bf16.msra.mxu0 0
    %2990 = vmatprep.subr.bf16.mxu0 0
    %2991 = vmatpush1.bf16.msra.mxu0 0
    %2992 = vmatprep.subr.bf16.mxu0 0
    %2993 = vmatpush1.bf16.msra.mxu0 0
    %2994 = vmatprep.subr.bf16.mxu0 0
    %2995 = vmatpush1.bf16.msra.mxu0 0
    %2996 = vmatprep.subr.bf16.mxu0 0
    %2997 = vmatpush1.bf16.msra.mxu0 0
    %2998 = vmatprep.subr.bf16.mxu0 0
    %2999 = vmatpush1.bf16.msra.mxu0 0
    %3000 = vmatprep.subr.bf16.mxu0 0
    %3001 = vmatpush1.bf16.msra.mxu0 0
    %3002 = vmatprep.subr.bf16.mxu0 0
    %3003 = vmatpush1.bf16.msra.mxu0 0
    %3004 = vmatprep.subr.bf16.mxu0 0
    %3005 = vmatpush1.bf16.msra.mxu0 0
    %3006 = vmatprep.subr.bf16.mxu0 0
    %3007 = vmatpush1.bf16.msra.mxu0 0
    %3008 = vmatprep.subr.bf16.mxu0 0
    %3009 = vmatpush1.bf16.msra.mxu0 0
    %3010 = vmatprep.mubr.bf16.mxu0 0
    %3011 = vmatmul.mubr.bf16.gmra.mrb[0].mxu0 %v1001
    %v3012 = vpop.f32.mrb[0].mxu0
    %v3013 = vadd.f32 0.0, %v3012
    %v3014 = vpop.f32.mrb[0].mxu0
    %v3015 = vadd.f32 0.0, %v3014
    %v3016 = vpop.f32.mrb[0].mxu0
    %v3017 = vadd.f32 0.0, %v3016
    %v3018 = vpop.f32.mrb[0].mxu0
    %v3019 = vadd.f32 0.0, %v3018
    %3020 = vmatprep.mubr.bf16.mxu0 0
    %3021 = vmatmul.mubr.bf16.gmra.mrb[0].mxu0 %v1004
    %v3022 = vpop.f32.mrb[0].mxu0
    %v3023 = vadd.f32 0.0, %v3022
    %v3024 = vpop.f32.mrb[0].mxu0
    %v3025 = vadd.f32 0.0, %v3024
    %v3026 = vpop.f32.mrb[0].mxu0
    %v3027 = vadd.f32 0.0, %v3026
    %v3028 = vpop.f32.mrb[0].mxu0
    %v3029 = vadd.f32 0.0, %v3028
    %3030 = vmatprep.mubr.bf16.mxu0 0
    %3031 = vmatmul.mubr.bf16.gmra.mrb[0].mxu0 %v1007
    %v3032 = vpop.f32.mrb[0].mxu0
    %v3033 = vadd.f32 0.0, %v3032
    %v3034 = vpop.f32.mrb[0].mxu0
    %v3035 = vadd.f32 0.0, %v3034
    %v3036 = vpop.f32.mrb[0].mxu0
    %v3037 = vadd.f32 0.0, %v3036
    %v3038 = vpop.f32.mrb[0].mxu0
    %v3039 = vadd.f32 0.0, %v3038
    %3040 = vmatprep.mubr.bf16.mxu0 0
    %3041 = vmatmul.mubr.bf16.gmra.mrb[0].mxu0 %v1010
    %v3042 = vpop.f32.mrb[0].mxu0
    %v3043 = vadd.f32 0.0, %v3042
    %v3044 = vpop.f32.mrb[0].mxu0
    %v3045 = vadd.f32 0.0, %v3044
    %v3046 = vpop.f32.mrb[0].mxu0
    %v3047 = vadd.f32 0.0, %v3046
    %v3048 = vpop.f32.mrb[0].mxu0
    %v3049 = vadd.f32 0.0, %v3048
    %3050 = vmatprep.mubr.bf16.mxu0 0
    %3051 = vmatmul.mubr.bf16.gmra.mrb[0].mxu0 %v1013
    %v3052 = vpop.f32.mrb[0].mxu0
    %v3053 = vadd.f32 0.0, %v3052
    %v3054 = vpop.f32.mrb[0].mxu0
    %v3055 = vadd.f32 0.0, %v3054
    %v3056 = vpop.f32.mrb[0].mxu0
    %v3057 = vadd.f32 0.0, %v3056
    %v3058 = vpop.f32.mrb[0].mxu0
    %v3059 = vadd.f32 0.0, %v3058
    %3060 = vmatprep.mubr.bf16.mxu0 0
    %3061 = vmatmul.mubr.bf16.gmra.mrb[0].mxu0 %v1016
    %v3062 = vpop.f32.mrb[0].mxu0
    %v3063 = vadd.f32 0.0, %v3062
    %v3064 = vpop.f32.mrb[0].mxu0
    %v3065 = vadd.f32 0.0, %v3064
    %v3066 = vpop.f32.mrb[0].mxu0
    %v3067 = vadd.f32 0.0, %v3066
    %v3068 = vpop.f32.mrb[0].mxu0
    %v3069 = vadd.f32 0.0, %v3068
    %3070 = vmatprep.mubr.bf16.mxu0 0
    %3071 = vmatmul.mubr.bf16.gmra.mrb[0].mxu0 %v1019
    %v3072 = vpop.f32.mrb[0].mxu0
    %v3073 = vadd.f32 0.0, %v3072
    %v3074 = vpop.f32.mrb[0].mxu0
    %v3075 = vadd.f32 0.0, %v3074
    %v3076 = vpop.f32.mrb[0].mxu0
    %v3077 = vadd.f32 0.0, %v3076
    %v3078 = vpop.f32.mrb[0].mxu0
    %v3079 = vadd.f32 0.0, %v3078
    %3080 = vmatprep.mubr.bf16.mxu0 0
    %3081 = vmatmul.mubr.bf16.gmra.mrb[0].mxu0 %v1022
    %v3082 = vpop.f32.mrb[0].mxu0
    %v3083 = vadd.f32 0.0, %v3082
    %v3084 = vpop.f32.mrb[0].mxu0
    %v3085 = vadd.f32 0.0, %v3084
    %v3086 = vpop.f32.mrb[0].mxu0
    %v3087 = vadd.f32 0.0, %v3086
    %v3088 = vpop.f32.mrb[0].mxu0
    %v3089 = vadd.f32 0.0, %v3088
    %3090 = vmatprep.mubr.bf16.mxu0 0
    %3091 = vmatmul.mubr.bf16.gmra.mrb[0].mxu0 %v1025
    %v3092 = vpop.f32.mrb[0].mxu0
    %v3093 = vadd.f32 0.0, %v3092
    %v3094 = vpop.f32.mrb[0].mxu0
    %v3095 = vadd.f32 0.0, %v3094
    %v3096 = vpop.f32.mrb[0].mxu0
    %v3097 = vadd.f32 0.0, %v3096
    %v3098 = vpop.f32.mrb[0].mxu0
    %v3099 = vadd.f32 0.0, %v3098
    %3100 = vmatprep.mubr.bf16.mxu0 0
    %3101 = vmatmul.mubr.bf16.gmra.mrb[0].mxu0 %v1028
    %v3102 = vpop.f32.mrb[0].mxu0
    %v3103 = vadd.f32 0.0, %v3102
    %v3104 = vpop.f32.mrb[0].mxu0
    %v3105 = vadd.f32 0.0, %v3104
    %v3106 = vpop.f32.mrb[0].mxu0
    %v3107 = vadd.f32 0.0, %v3106
    %v3108 = vpop.f32.mrb[0].mxu0
    %v3109 = vadd.f32 0.0, %v3108
    %3110 = vmatprep.mubr.bf16.mxu0 0
    %3111 = vmatmul.mubr.bf16.gmra.mrb[0].mxu0 %v1031
    %v3112 = vpop.f32.mrb[0].mxu0
    %v3113 = vadd.f32 0.0, %v3112
    %v3114 = vpop.f32.mrb[0].mxu0
    %v3115 = vadd.f32 0.0, %v3114
    %v3116 = vpop.f32.mrb[0].mxu0
    %v3117 = vadd.f32 0.0, %v3116
    %v3118 = vpop.f32.mrb[0].mxu0
    %v3119 = vadd.f32 0.0, %v3118
    %3120 = vmatprep.mubr.bf16.mxu0 0
    %3121 = vmatmul.mubr.bf16.gmra.mrb[0].mxu0 %v1034
    %v3122 = vpop.f32.mrb[0].mxu0
    %v3123 = vadd.f32 0.0, %v3122
    %v3124 = vpop.f32.mrb[0].mxu0
    %v3125 = vadd.f32 0.0, %v3124
    %v3126 = vpop.f32.mrb[0].mxu0
    %v3127 = vadd.f32 0.0, %v3126
    %v3128 = vpop.f32.mrb[0].mxu0
    %v3129 = vadd.f32 0.0, %v3128
    %3130 = vmatprep.mubr.bf16.mxu0 0
    %3131 = vmatmul.mubr.bf16.gmra.mrb[0].mxu0 %v1037
    %v3132 = vpop.f32.mrb[0].mxu0
    %v3133 = vadd.f32 0.0, %v3132
    %v3134 = vpop.f32.mrb[0].mxu0
    %v3135 = vadd.f32 0.0, %v3134
    %v3136 = vpop.f32.mrb[0].mxu0
    %v3137 = vadd.f32 0.0, %v3136
    %v3138 = vpop.f32.mrb[0].mxu0
    %v3139 = vadd.f32 0.0, %v3138
    %3140 = vmatprep.mubr.bf16.mxu0 0
    %3141 = vmatmul.mubr.bf16.gmra.mrb[0].mxu0 %v1040
    %v3142 = vpop.f32.mrb[0].mxu0
    %v3143 = vadd.f32 0.0, %v3142
    %v3144 = vpop.f32.mrb[0].mxu0
    %v3145 = vadd.f32 0.0, %v3144
    %v3146 = vpop.f32.mrb[0].mxu0
    %v3147 = vadd.f32 0.0, %v3146
    %v3148 = vpop.f32.mrb[0].mxu0
    %v3149 = vadd.f32 0.0, %v3148
    %3150 = vmatprep.mubr.bf16.mxu0 0
    %3151 = vmatmul.mubr.bf16.gmra.mrb[0].mxu0 %v1043
    %v3152 = vpop.f32.mrb[0].mxu0
    %v3153 = vadd.f32 0.0, %v3152
    %v3154 = vpop.f32.mrb[0].mxu0
    %v3155 = vadd.f32 0.0, %v3154
    %v3156 = vpop.f32.mrb[0].mxu0
    %v3157 = vadd.f32 0.0, %v3156
    %v3158 = vpop.f32.mrb[0].mxu0
    %v3159 = vadd.f32 0.0, %v3158
    %3160 = vmatprep.mubr.bf16.mxu0 0
    %3161 = vmatmul.mubr.bf16.gmra.mrb[0].mxu0 %v1046
    %v3162 = vpop.f32.mrb[0].mxu0
    %v3163 = vadd.f32 0.0, %v3162
    %v3164 = vpop.f32.mrb[0].mxu0
    %v3165 = vadd.f32 0.0, %v3164
    %v3166 = vpop.f32.mrb[0].mxu0
    %v3167 = vadd.f32 0.0, %v3166
    %v3168 = vpop.f32.mrb[0].mxu0
    %v3169 = vadd.f32 0.0, %v3168
    %3170 = vdwg.mxu0
    %3171 = vmatprep.subr.bf16.mxu0 %v750
    %3172 = vmatpush1.bf16.msra.mxu0 %v749
    %3173 = vmatprep.subr.bf16.mxu0 %v784
    %3174 = vmatpush1.bf16.msra.mxu0 %v783
    %3175 = vmatprep.subr.bf16.mxu0 %v818
    %3176 = vmatpush1.bf16.msra.mxu0 %v817
    %3177 = vmatprep.subr.bf16.mxu0 %v852
    %3178 = vmatpush1.bf16.msra.mxu0 %v851
    %3179 = vmatprep.subr.bf16.mxu0 0
    %3180 = vmatpush1.bf16.msra.mxu0 0
    %3181 = vmatprep.subr.bf16.mxu0 0
    %3182 = vmatpush1.bf16.msra.mxu0 0
    %3183 = vmatprep.subr.bf16.mxu0 0
    %3184 = vmatpush1.bf16.msra.mxu0 0
    %3185 = vmatprep.subr.bf16.mxu0 0
    %3186 = vmatpush1.bf16.msra.mxu0 0
    %3187 = vmatprep.subr.bf16.mxu0 0
    %3188 = vmatpush1.bf16.msra.mxu0 0
    %3189 = vmatprep.subr.bf16.mxu0 0
    %3190 = vmatpush1.bf16.msra.mxu0 0
    %3191 = vmatprep.subr.bf16.mxu0 0
    %3192 = vmatpush1.bf16.msra.mxu0 0
    %3193 = vmatprep.subr.bf16.mxu0 0
    %3194 = vmatpush1.bf16.msra.mxu0 0
    %3195 = vmatprep.subr.bf16.mxu0 0
    %3196 = vmatpush1.bf16.msra.mxu0 0
    %3197 = vmatprep.subr.bf16.mxu0 0
    %3198 = vmatpush1.bf16.msra.mxu0 0
    %3199 = vmatprep.subr.bf16.mxu0 0
    %3200 = vmatpush1.bf16.msra.mxu0 0
    %3201 = vmatprep.subr.bf16.mxu0 0
    %3202 = vmatpush1.bf16.msra.mxu0 0
    %3203 = vmatprep.mubr.bf16.mxu0 0
    %3204 = vmatmul.mubr.bf16.gmra.mrb[0].mxu0 %v1001
    %v3205 = vpop.f32.mrb[0].mxu0
    %v3206 = vadd.f32 0.0, %v3205
    %v3207 = vpop.f32.mrb[0].mxu0
    %v3208 = vadd.f32 0.0, %v3207
    %v3209 = vpop.f32.mrb[0].mxu0
    %v3210 = vadd.f32 0.0, %v3209
    %v3211 = vpop.f32.mrb[0].mxu0
    %v3212 = vadd.f32 0.0, %v3211
    %3213 = vmatprep.mubr.bf16.mxu0 0
    %3214 = vmatmul.mubr.bf16.gmra.mrb[0].mxu0 %v1004
    %v3215 = vpop.f32.mrb[0].mxu0
    %v3216 = vadd.f32 0.0, %v3215
    %v3217 = vpop.f32.mrb[0].mxu0
    %v3218 = vadd.f32 0.0, %v3217
    %v3219 = vpop.f32.mrb[0].mxu0
    %v3220 = vadd.f32 0.0, %v3219
    %v3221 = vpop.f32.mrb[0].mxu0
    %v3222 = vadd.f32 0.0, %v3221
    %3223 = vmatprep.mubr.bf16.mxu0 0
    %3224 = vmatmul.mubr.bf16.gmra.mrb[0].mxu0 %v1007
    %v3225 = vpop.f32.mrb[0].mxu0
    %v3226 = vadd.f32 0.0, %v3225
    %v3227 = vpop.f32.mrb[0].mxu0
    %v3228 = vadd.f32 0.0, %v3227
    %v3229 = vpop.f32.mrb[0].mxu0
    %v3230 = vadd.f32 0.0, %v3229
    %v3231 = vpop.f32.mrb[0].mxu0
    %v3232 = vadd.f32 0.0, %v3231
    %3233 = vmatprep.mubr.bf16.mxu0 0
    %3234 = vmatmul.mubr.bf16.gmra.mrb[0].mxu0 %v1010
    %v3235 = vpop.f32.mrb[0].mxu0
    %v3236 = vadd.f32 0.0, %v3235
    %v3237 = vpop.f32.mrb[0].mxu0
    %v3238 = vadd.f32 0.0, %v3237
    %v3239 = vpop.f32.mrb[0].mxu0
    %v3240 = vadd.f32 0.0, %v3239
    %v3241 = vpop.f32.mrb[0].mxu0
    %v3242 = vadd.f32 0.0, %v3241
    %3243 = vmatprep.mubr.bf16.mxu0 0
    %3244 = vmatmul.mubr.bf16.gmra.mrb[0].mxu0 %v1013
    %v3245 = vpop.f32.mrb[0].mxu0
    %v3246 = vadd.f32 0.0, %v3245
    %v3247 = vpop.f32.mrb[0].mxu0
    %v3248 = vadd.f32 0.0, %v3247
    %v3249 = vpop.f32.mrb[0].mxu0
    %v3250 = vadd.f32 0.0, %v3249
    %v3251 = vpop.f32.mrb[0].mxu0
    %v3252 = vadd.f32 0.0, %v3251
    %3253 = vmatprep.mubr.bf16.mxu0 0
    %3254 = vmatmul.mubr.bf16.gmra.mrb[0].mxu0 %v1016
    %v3255 = vpop.f32.mrb[0].mxu0
    %v3256 = vadd.f32 0.0, %v3255
    %v3257 = vpop.f32.mrb[0].mxu0
    %v3258 = vadd.f32 0.0, %v3257
    %v3259 = vpop.f32.mrb[0].mxu0
    %v3260 = vadd.f32 0.0, %v3259
    %v3261 = vpop.f32.mrb[0].mxu0
    %v3262 = vadd.f32 0.0, %v3261
    %3263 = vmatprep.mubr.bf16.mxu0 0
    %3264 = vmatmul.mubr.bf16.gmra.mrb[0].mxu0 %v1019
    %v3265 = vpop.f32.mrb[0].mxu0
    %v3266 = vadd.f32 0.0, %v3265
    %v3267 = vpop.f32.mrb[0].mxu0
    %v3268 = vadd.f32 0.0, %v3267
    %v3269 = vpop.f32.mrb[0].mxu0
    %v3270 = vadd.f32 0.0, %v3269
    %v3271 = vpop.f32.mrb[0].mxu0
    %v3272 = vadd.f32 0.0, %v3271
    %3273 = vmatprep.mubr.bf16.mxu0 0
    %3274 = vmatmul.mubr.bf16.gmra.mrb[0].mxu0 %v1022
    %v3275 = vpop.f32.mrb[0].mxu0
    %v3276 = vadd.f32 0.0, %v3275
    %v3277 = vpop.f32.mrb[0].mxu0
    %v3278 = vadd.f32 0.0, %v3277
    %v3279 = vpop.f32.mrb[0].mxu0
    %v3280 = vadd.f32 0.0, %v3279
    %v3281 = vpop.f32.mrb[0].mxu0
    %v3282 = vadd.f32 0.0, %v3281
    %3283 = vmatprep.mubr.bf16.mxu0 0
    %3284 = vmatmul.mubr.bf16.gmra.mrb[0].mxu0 %v1025
    %v3285 = vpop.f32.mrb[0].mxu0
    %v3286 = vadd.f32 0.0, %v3285
    %v3287 = vpop.f32.mrb[0].mxu0
    %v3288 = vadd.f32 0.0, %v3287
    %v3289 = vpop.f32.mrb[0].mxu0
    %v3290 = vadd.f32 0.0, %v3289
    %v3291 = vpop.f32.mrb[0].mxu0
    %v3292 = vadd.f32 0.0, %v3291
    %3293 = vmatprep.mubr.bf16.mxu0 0
    %3294 = vmatmul.mubr.bf16.gmra.mrb[0].mxu0 %v1028
    %v3295 = vpop.f32.mrb[0].mxu0
    %v3296 = vadd.f32 0.0, %v3295
    %v3297 = vpop.f32.mrb[0].mxu0
    %v3298 = vadd.f32 0.0, %v3297
    %v3299 = vpop.f32.mrb[0].mxu0
    %v3300 = vadd.f32 0.0, %v3299
    %v3301 = vpop.f32.mrb[0].mxu0
    %v3302 = vadd.f32 0.0, %v3301
    %3303 = vmatprep.mubr.bf16.mxu0 0
    %3304 = vmatmul.mubr.bf16.gmra.mrb[0].mxu0 %v1031
    %v3305 = vpop.f32.mrb[0].mxu0
    %v3306 = vadd.f32 0.0, %v3305
    %v3307 = vpop.f32.mrb[0].mxu0
    %v3308 = vadd.f32 0.0, %v3307
    %v3309 = vpop.f32.mrb[0].mxu0
    %v3310 = vadd.f32 0.0, %v3309
    %v3311 = vpop.f32.mrb[0].mxu0
    %v3312 = vadd.f32 0.0, %v3311
    %3313 = vmatprep.mubr.bf16.mxu0 0
    %3314 = vmatmul.mubr.bf16.gmra.mrb[0].mxu0 %v1034
    %v3315 = vpop.f32.mrb[0].mxu0
    %v3316 = vadd.f32 0.0, %v3315
    %v3317 = vpop.f32.mrb[0].mxu0
    %v3318 = vadd.f32 0.0, %v3317
    %v3319 = vpop.f32.mrb[0].mxu0
    %v3320 = vadd.f32 0.0, %v3319
    %v3321 = vpop.f32.mrb[0].mxu0
    %v3322 = vadd.f32 0.0, %v3321
    %3323 = vmatprep.mubr.bf16.mxu0 0
    %3324 = vmatmul.mubr.bf16.gmra.mrb[0].mxu0 %v1037
    %v3325 = vpop.f32.mrb[0].mxu0
    %v3326 = vadd.f32 0.0, %v3325
    %v3327 = vpop.f32.mrb[0].mxu0
    %v3328 = vadd.f32 0.0, %v3327
    %v3329 = vpop.f32.mrb[0].mxu0
    %v3330 = vadd.f32 0.0, %v3329
    %v3331 = vpop.f32.mrb[0].mxu0
    %v3332 = vadd.f32 0.0, %v3331
    %3333 = vmatprep.mubr.bf16.mxu0 0
    %3334 = vmatmul.mubr.bf16.gmra.mrb[0].mxu0 %v1040
    %v3335 = vpop.f32.mrb[0].mxu0
    %v3336 = vadd.f32 0.0, %v3335
    %v3337 = vpop.f32.mrb[0].mxu0
    %v3338 = vadd.f32 0.0, %v3337
    %v3339 = vpop.f32.mrb[0].mxu0
    %v3340 = vadd.f32 0.0, %v3339
    %v3341 = vpop.f32.mrb[0].mxu0
    %v3342 = vadd.f32 0.0, %v3341
    %3343 = vmatprep.mubr.bf16.mxu0 0
    %3344 = vmatmul.mubr.bf16.gmra.mrb[0].mxu0 %v1043
    %v3345 = vpop.f32.mrb[0].mxu0
    %v3346 = vadd.f32 0.0, %v3345
    %v3347 = vpop.f32.mrb[0].mxu0
    %v3348 = vadd.f32 0.0, %v3347
    %v3349 = vpop.f32.mrb[0].mxu0
    %v3350 = vadd.f32 0.0, %v3349
    %v3351 = vpop.f32.mrb[0].mxu0
    %v3352 = vadd.f32 0.0, %v3351
    %3353 = vmatprep.mubr.bf16.mxu0 0
    %3354 = vmatmul.mubr.bf16.gmra.mrb[0].mxu0 %v1046
    %v3355 = vpop.f32.mrb[0].mxu0
    %v3356 = vadd.f32 0.0, %v3355
    %v3357 = vpop.f32.mrb[0].mxu0
    %v3358 = vadd.f32 0.0, %v3357
    %v3359 = vpop.f32.mrb[0].mxu0
    %v3360 = vadd.f32 0.0, %v3359
    %v3361 = vpop.f32.mrb[0].mxu0
    %v3362 = vadd.f32 0.0, %v3361
    %3363 = vdwg.mxu0
    %3364 = vmatprep.subr.bf16.mxu0 %v752
    %3365 = vmatpush1.bf16.msra.mxu0 %v751
    %3366 = vmatprep.subr.bf16.mxu0 %v786
    %3367 = vmatpush1.bf16.msra.mxu0 %v785
    %3368 = vmatprep.subr.bf16.mxu0 %v820
    %3369 = vmatpush1.bf16.msra.mxu0 %v819
    %3370 = vmatprep.subr.bf16.mxu0 %v854
    %3371 = vmatpush1.bf16.msra.mxu0 %v853
    %3372 = vmatprep.subr.bf16.mxu0 0
    %3373 = vmatpush1.bf16.msra.mxu0 0
    %3374 = vmatprep.subr.bf16.mxu0 0
    %3375 = vmatpush1.bf16.msra.mxu0 0
    %3376 = vmatprep.subr.bf16.mxu0 0
    %3377 = vmatpush1.bf16.msra.mxu0 0
    %3378 = vmatprep.subr.bf16.mxu0 0
    %3379 = vmatpush1.bf16.msra.mxu0 0
    %3380 = vmatprep.subr.bf16.mxu0 0
    %3381 = vmatpush1.bf16.msra.mxu0 0
    %3382 = vmatprep.subr.bf16.mxu0 0
    %3383 = vmatpush1.bf16.msra.mxu0 0
    %3384 = vmatprep.subr.bf16.mxu0 0
    %3385 = vmatpush1.bf16.msra.mxu0 0
    %3386 = vmatprep.subr.bf16.mxu0 0
    %3387 = vmatpush1.bf16.msra.mxu0 0
    %3388 = vmatprep.subr.bf16.mxu0 0
    %3389 = vmatpush1.bf16.msra.mxu0 0
    %3390 = vmatprep.subr.bf16.mxu0 0
    %3391 = vmatpush1.bf16.msra.mxu0 0
    %3392 = vmatprep.subr.bf16.mxu0 0
    %3393 = vmatpush1.bf16.msra.mxu0 0
    %3394 = vmatprep.subr.bf16.mxu0 0
    %3395 = vmatpush1.bf16.msra.mxu0 0
    %3396 = vmatprep.mubr.bf16.mxu0 0
    %3397 = vmatmul.mubr.bf16.gmra.mrb[0].mxu0 %v1001
    %v3398 = vpop.f32.mrb[0].mxu0
    %v3399 = vadd.f32 0.0, %v3398
    %v3400 = vpop.f32.mrb[0].mxu0
    %v3401 = vadd.f32 0.0, %v3400
    %v3402 = vpop.f32.mrb[0].mxu0
    %v3403 = vadd.f32 0.0, %v3402
    %v3404 = vpop.f32.mrb[0].mxu0
    %v3405 = vadd.f32 0.0, %v3404
    %3406 = vmatprep.mubr.bf16.mxu0 0
    %3407 = vmatmul.mubr.bf16.gmra.mrb[0].mxu0 %v1004
    %v3408 = vpop.f32.mrb[0].mxu0
    %v3409 = vadd.f32 0.0, %v3408
    %v3410 = vpop.f32.mrb[0].mxu0
    %v3411 = vadd.f32 0.0, %v3410
    %v3412 = vpop.f32.mrb[0].mxu0
    %v3413 = vadd.f32 0.0, %v3412
    %v3414 = vpop.f32.mrb[0].mxu0
    %v3415 = vadd.f32 0.0, %v3414
    %3416 = vmatprep.mubr.bf16.mxu0 0
    %3417 = vmatmul.mubr.bf16.gmra.mrb[0].mxu0 %v1007
    %v3418 = vpop.f32.mrb[0].mxu0
    %v3419 = vadd.f32 0.0, %v3418
    %v3420 = vpop.f32.mrb[0].mxu0
    %v3421 = vadd.f32 0.0, %v3420
    %v3422 = vpop.f32.mrb[0].mxu0
    %v3423 = vadd.f32 0.0, %v3422
    %v3424 = vpop.f32.mrb[0].mxu0
    %v3425 = vadd.f32 0.0, %v3424
    %3426 = vmatprep.mubr.bf16.mxu0 0
    %3427 = vmatmul.mubr.bf16.gmra.mrb[0].mxu0 %v1010
    %v3428 = vpop.f32.mrb[0].mxu0
    %v3429 = vadd.f32 0.0, %v3428
    %v3430 = vpop.f32.mrb[0].mxu0
    %v3431 = vadd.f32 0.0, %v3430
    %v3432 = vpop.f32.mrb[0].mxu0
    %v3433 = vadd.f32 0.0, %v3432
    %v3434 = vpop.f32.mrb[0].mxu0
    %v3435 = vadd.f32 0.0, %v3434
    %3436 = vmatprep.mubr.bf16.mxu0 0
    %3437 = vmatmul.mubr.bf16.gmra.mrb[0].mxu0 %v1013
    %v3438 = vpop.f32.mrb[0].mxu0
    %v3439 = vadd.f32 0.0, %v3438
    %v3440 = vpop.f32.mrb[0].mxu0
    %v3441 = vadd.f32 0.0, %v3440
    %v3442 = vpop.f32.mrb[0].mxu0
    %v3443 = vadd.f32 0.0, %v3442
    %v3444 = vpop.f32.mrb[0].mxu0
    %v3445 = vadd.f32 0.0, %v3444
    %3446 = vmatprep.mubr.bf16.mxu0 0
    %3447 = vmatmul.mubr.bf16.gmra.mrb[0].mxu0 %v1016
    %v3448 = vpop.f32.mrb[0].mxu0
    %v3449 = vadd.f32 0.0, %v3448
    %v3450 = vpop.f32.mrb[0].mxu0
    %v3451 = vadd.f32 0.0, %v3450
    %v3452 = vpop.f32.mrb[0].mxu0
    %v3453 = vadd.f32 0.0, %v3452
    %v3454 = vpop.f32.mrb[0].mxu0
    %v3455 = vadd.f32 0.0, %v3454
    %3456 = vmatprep.mubr.bf16.mxu0 0
    %3457 = vmatmul.mubr.bf16.gmra.mrb[0].mxu0 %v1019
    %v3458 = vpop.f32.mrb[0].mxu0
    %v3459 = vadd.f32 0.0, %v3458
    %v3460 = vpop.f32.mrb[0].mxu0
    %v3461 = vadd.f32 0.0, %v3460
    %v3462 = vpop.f32.mrb[0].mxu0
    %v3463 = vadd.f32 0.0, %v3462
    %v3464 = vpop.f32.mrb[0].mxu0
    %v3465 = vadd.f32 0.0, %v3464
    %3466 = vmatprep.mubr.bf16.mxu0 0
    %3467 = vmatmul.mubr.bf16.gmra.mrb[0].mxu0 %v1022
    %v3468 = vpop.f32.mrb[0].mxu0
    %v3469 = vadd.f32 0.0, %v3468
    %v3470 = vpop.f32.mrb[0].mxu0
    %v3471 = vadd.f32 0.0, %v3470
    %v3472 = vpop.f32.mrb[0].mxu0
    %v3473 = vadd.f32 0.0, %v3472
    %v3474 = vpop.f32.mrb[0].mxu0
    %v3475 = vadd.f32 0.0, %v3474
    %3476 = vmatprep.mubr.bf16.mxu0 0
    %3477 = vmatmul.mubr.bf16.gmra.mrb[0].mxu0 %v1025
    %v3478 = vpop.f32.mrb[0].mxu0
    %v3479 = vadd.f32 0.0, %v3478
    %v3480 = vpop.f32.mrb[0].mxu0
    %v3481 = vadd.f32 0.0, %v3480
    %v3482 = vpop.f32.mrb[0].mxu0
    %v3483 = vadd.f32 0.0, %v3482
    %v3484 = vpop.f32.mrb[0].mxu0
    %v3485 = vadd.f32 0.0, %v3484
    %3486 = vmatprep.mubr.bf16.mxu0 0
    %3487 = vmatmul.mubr.bf16.gmra.mrb[0].mxu0 %v1028
    %v3488 = vpop.f32.mrb[0].mxu0
    %v3489 = vadd.f32 0.0, %v3488
    %v3490 = vpop.f32.mrb[0].mxu0
    %v3491 = vadd.f32 0.0, %v3490
    %v3492 = vpop.f32.mrb[0].mxu0
    %v3493 = vadd.f32 0.0, %v3492
    %v3494 = vpop.f32.mrb[0].mxu0
    %v3495 = vadd.f32 0.0, %v3494
    %3496 = vmatprep.mubr.bf16.mxu0 0
    %3497 = vmatmul.mubr.bf16.gmra.mrb[0].mxu0 %v1031
    %v3498 = vpop.f32.mrb[0].mxu0
    %v3499 = vadd.f32 0.0, %v3498
    %v3500 = vpop.f32.mrb[0].mxu0
    %v3501 = vadd.f32 0.0, %v3500
    %v3502 = vpop.f32.mrb[0].mxu0
    %v3503 = vadd.f32 0.0, %v3502
    %v3504 = vpop.f32.mrb[0].mxu0
    %v3505 = vadd.f32 0.0, %v3504
    %3506 = vmatprep.mubr.bf16.mxu0 0
    %3507 = vmatmul.mubr.bf16.gmra.mrb[0].mxu0 %v1034
    %v3508 = vpop.f32.mrb[0].mxu0
    %v3509 = vadd.f32 0.0, %v3508
    %v3510 = vpop.f32.mrb[0].mxu0
    %v3511 = vadd.f32 0.0, %v3510
    %v3512 = vpop.f32.mrb[0].mxu0
    %v3513 = vadd.f32 0.0, %v3512
    %v3514 = vpop.f32.mrb[0].mxu0
    %v3515 = vadd.f32 0.0, %v3514
    %3516 = vmatprep.mubr.bf16.mxu0 0
    %3517 = vmatmul.mubr.bf16.gmra.mrb[0].mxu0 %v1037
    %v3518 = vpop.f32.mrb[0].mxu0
    %v3519 = vadd.f32 0.0, %v3518
    %v3520 = vpop.f32.mrb[0].mxu0
    %v3521 = vadd.f32 0.0, %v3520
    %v3522 = vpop.f32.mrb[0].mxu0
    %v3523 = vadd.f32 0.0, %v3522
    %v3524 = vpop.f32.mrb[0].mxu0
    %v3525 = vadd.f32 0.0, %v3524
    %3526 = vmatprep.mubr.bf16.mxu0 0
    %3527 = vmatmul.mubr.bf16.gmra.mrb[0].mxu0 %v1040
    %v3528 = vpop.f32.mrb[0].mxu0
    %v3529 = vadd.f32 0.0, %v3528
    %v3530 = vpop.f32.mrb[0].mxu0
    %v3531 = vadd.f32 0.0, %v3530
    %v3532 = vpop.f32.mrb[0].mxu0
    %v3533 = vadd.f32 0.0, %v3532
    %v3534 = vpop.f32.mrb[0].mxu0
    %v3535 = vadd.f32 0.0, %v3534
    %3536 = vmatprep.mubr.bf16.mxu0 0
    %3537 = vmatmul.mubr.bf16.gmra.mrb[0].mxu0 %v1043
    %v3538 = vpop.f32.mrb[0].mxu0
    %v3539 = vadd.f32 0.0, %v3538
    %v3540 = vpop.f32.mrb[0].mxu0
    %v3541 = vadd.f32 0.0, %v3540
    %v3542 = vpop.f32.mrb[0].mxu0
    %v3543 = vadd.f32 0.0, %v3542
    %v3544 = vpop.f32.mrb[0].mxu0
    %v3545 = vadd.f32 0.0, %v3544
    %3546 = vmatprep.mubr.bf16.mxu0 0
    %3547 = vmatmul.mubr.bf16.gmra.mrb[0].mxu0 %v1046
    %v3548 = vpop.f32.mrb[0].mxu0
    %v3549 = vadd.f32 0.0, %v3548
    %v3550 = vpop.f32.mrb[0].mxu0
    %v3551 = vadd.f32 0.0, %v3550
    %v3552 = vpop.f32.mrb[0].mxu0
    %v3553 = vadd.f32 0.0, %v3552
    %v3554 = vpop.f32.mrb[0].mxu0
    %v3555 = vadd.f32 0.0, %v3554
    %3556 = vdwg.mxu0
    %3557 = vmatprep.subr.bf16.mxu0 %v754
    %3558 = vmatpush1.bf16.msra.mxu0 %v753
    %3559 = vmatprep.subr.bf16.mxu0 %v788
    %3560 = vmatpush1.bf16.msra.mxu0 %v787
    %3561 = vmatprep.subr.bf16.mxu0 %v822
    %3562 = vmatpush1.bf16.msra.mxu0 %v821
    %3563 = vmatprep.subr.bf16.mxu0 %v856
    %3564 = vmatpush1.bf16.msra.mxu0 %v855
    %3565 = vmatprep.subr.bf16.mxu0 0
    %3566 = vmatpush1.bf16.msra.mxu0 0
    %3567 = vmatprep.subr.bf16.mxu0 0
    %3568 = vmatpush1.bf16.msra.mxu0 0
    %3569 = vmatprep.subr.bf16.mxu0 0
    %3570 = vmatpush1.bf16.msra.mxu0 0
    %3571 = vmatprep.subr.bf16.mxu0 0
    %3572 = vmatpush1.bf16.msra.mxu0 0
    %3573 = vmatprep.subr.bf16.mxu0 0
    %3574 = vmatpush1.bf16.msra.mxu0 0
    %3575 = vmatprep.subr.bf16.mxu0 0
    %3576 = vmatpush1.bf16.msra.mxu0 0
    %3577 = vmatprep.subr.bf16.mxu0 0
    %3578 = vmatpush1.bf16.msra.mxu0 0
    %3579 = vmatprep.subr.bf16.mxu0 0
    %3580 = vmatpush1.bf16.msra.mxu0 0
    %3581 = vmatprep.subr.bf16.mxu0 0
    %3582 = vmatpush1.bf16.msra.mxu0 0
    %3583 = vmatprep.subr.bf16.mxu0 0
    %3584 = vmatpush1.bf16.msra.mxu0 0
    %3585 = vmatprep.subr.bf16.mxu0 0
    %3586 = vmatpush1.bf16.msra.mxu0 0
    %3587 = vmatprep.subr.bf16.mxu0 0
    %3588 = vmatpush1.bf16.msra.mxu0 0
    %3589 = vmatprep.mubr.bf16.mxu0 0
    %3590 = vmatmul.mubr.bf16.gmra.mrb[0].mxu0 %v1001
    %v3591 = vpop.f32.mrb[0].mxu0
    %v3592 = vadd.f32 0.0, %v3591
    %v3593 = vpop.f32.mrb[0].mxu0
    %v3594 = vadd.f32 0.0, %v3593
    %v3595 = vpop.f32.mrb[0].mxu0
    %v3596 = vadd.f32 0.0, %v3595
    %v3597 = vpop.f32.mrb[0].mxu0
    %v3598 = vadd.f32 0.0, %v3597
    %3599 = vmatprep.mubr.bf16.mxu0 0
    %3600 = vmatmul.mubr.bf16.gmra.mrb[0].mxu0 %v1004
    %v3601 = vpop.f32.mrb[0].mxu0
    %v3602 = vadd.f32 0.0, %v3601
    %v3603 = vpop.f32.mrb[0].mxu0
    %v3604 = vadd.f32 0.0, %v3603
    %v3605 = vpop.f32.mrb[0].mxu0
    %v3606 = vadd.f32 0.0, %v3605
    %v3607 = vpop.f32.mrb[0].mxu0
    %v3608 = vadd.f32 0.0, %v3607
    %3609 = vmatprep.mubr.bf16.mxu0 0
    %3610 = vmatmul.mubr.bf16.gmra.mrb[0].mxu0 %v1007
    %v3611 = vpop.f32.mrb[0].mxu0
    %v3612 = vadd.f32 0.0, %v3611
    %v3613 = vpop.f32.mrb[0].mxu0
    %v3614 = vadd.f32 0.0, %v3613
    %v3615 = vpop.f32.mrb[0].mxu0
    %v3616 = vadd.f32 0.0, %v3615
    %v3617 = vpop.f32.mrb[0].mxu0
    %v3618 = vadd.f32 0.0, %v3617
    %3619 = vmatprep.mubr.bf16.mxu0 0
    %3620 = vmatmul.mubr.bf16.gmra.mrb[0].mxu0 %v1010
    %v3621 = vpop.f32.mrb[0].mxu0
    %v3622 = vadd.f32 0.0, %v3621
    %v3623 = vpop.f32.mrb[0].mxu0
    %v3624 = vadd.f32 0.0, %v3623
    %v3625 = vpop.f32.mrb[0].mxu0
    %v3626 = vadd.f32 0.0, %v3625
    %v3627 = vpop.f32.mrb[0].mxu0
    %v3628 = vadd.f32 0.0, %v3627
    %3629 = vmatprep.mubr.bf16.mxu0 0
    %3630 = vmatmul.mubr.bf16.gmra.mrb[0].mxu0 %v1013
    %v3631 = vpop.f32.mrb[0].mxu0
    %v3632 = vadd.f32 0.0, %v3631
    %v3633 = vpop.f32.mrb[0].mxu0
    %v3634 = vadd.f32 0.0, %v3633
    %v3635 = vpop.f32.mrb[0].mxu0
    %v3636 = vadd.f32 0.0, %v3635
    %v3637 = vpop.f32.mrb[0].mxu0
    %v3638 = vadd.f32 0.0, %v3637
    %3639 = vmatprep.mubr.bf16.mxu0 0
    %3640 = vmatmul.mubr.bf16.gmra.mrb[0].mxu0 %v1016
    %v3641 = vpop.f32.mrb[0].mxu0
    %v3642 = vadd.f32 0.0, %v3641
    %v3643 = vpop.f32.mrb[0].mxu0
    %v3644 = vadd.f32 0.0, %v3643
    %v3645 = vpop.f32.mrb[0].mxu0
    %v3646 = vadd.f32 0.0, %v3645
    %v3647 = vpop.f32.mrb[0].mxu0
    %v3648 = vadd.f32 0.0, %v3647
    %3649 = vmatprep.mubr.bf16.mxu0 0
    %3650 = vmatmul.mubr.bf16.gmra.mrb[0].mxu0 %v1019
    %v3651 = vpop.f32.mrb[0].mxu0
    %v3652 = vadd.f32 0.0, %v3651
    %v3653 = vpop.f32.mrb[0].mxu0
    %v3654 = vadd.f32 0.0, %v3653
    %v3655 = vpop.f32.mrb[0].mxu0
    %v3656 = vadd.f32 0.0, %v3655
    %v3657 = vpop.f32.mrb[0].mxu0
    %v3658 = vadd.f32 0.0, %v3657
    %3659 = vmatprep.mubr.bf16.mxu0 0
    %3660 = vmatmul.mubr.bf16.gmra.mrb[0].mxu0 %v1022
    %v3661 = vpop.f32.mrb[0].mxu0
    %v3662 = vadd.f32 0.0, %v3661
    %v3663 = vpop.f32.mrb[0].mxu0
    %v3664 = vadd.f32 0.0, %v3663
    %v3665 = vpop.f32.mrb[0].mxu0
    %v3666 = vadd.f32 0.0, %v3665
    %v3667 = vpop.f32.mrb[0].mxu0
    %v3668 = vadd.f32 0.0, %v3667
    %3669 = vmatprep.mubr.bf16.mxu0 0
    %3670 = vmatmul.mubr.bf16.gmra.mrb[0].mxu0 %v1025
    %v3671 = vpop.f32.mrb[0].mxu0
    %v3672 = vadd.f32 0.0, %v3671
    %v3673 = vpop.f32.mrb[0].mxu0
    %v3674 = vadd.f32 0.0, %v3673
    %v3675 = vpop.f32.mrb[0].mxu0
    %v3676 = vadd.f32 0.0, %v3675
    %v3677 = vpop.f32.mrb[0].mxu0
    %v3678 = vadd.f32 0.0, %v3677
    %3679 = vmatprep.mubr.bf16.mxu0 0
    %3680 = vmatmul.mubr.bf16.gmra.mrb[0].mxu0 %v1028
    %v3681 = vpop.f32.mrb[0].mxu0
    %v3682 = vadd.f32 0.0, %v3681
    %v3683 = vpop.f32.mrb[0].mxu0
    %v3684 = vadd.f32 0.0, %v3683
    %v3685 = vpop.f32.mrb[0].mxu0
    %v3686 = vadd.f32 0.0, %v3685
    %v3687 = vpop.f32.mrb[0].mxu0
    %v3688 = vadd.f32 0.0, %v3687
    %3689 = vmatprep.mubr.bf16.mxu0 0
    %3690 = vmatmul.mubr.bf16.gmra.mrb[0].mxu0 %v1031
    %v3691 = vpop.f32.mrb[0].mxu0
    %v3692 = vadd.f32 0.0, %v3691
    %v3693 = vpop.f32.mrb[0].mxu0
    %v3694 = vadd.f32 0.0, %v3693
    %v3695 = vpop.f32.mrb[0].mxu0
    %v3696 = vadd.f32 0.0, %v3695
    %v3697 = vpop.f32.mrb[0].mxu0
    %v3698 = vadd.f32 0.0, %v3697
    %3699 = vmatprep.mubr.bf16.mxu0 0
    %3700 = vmatmul.mubr.bf16.gmra.mrb[0].mxu0 %v1034
    %v3701 = vpop.f32.mrb[0].mxu0
    %v3702 = vadd.f32 0.0, %v3701
    %v3703 = vpop.f32.mrb[0].mxu0
    %v3704 = vadd.f32 0.0, %v3703
    %v3705 = vpop.f32.mrb[0].mxu0
    %v3706 = vadd.f32 0.0, %v3705
    %v3707 = vpop.f32.mrb[0].mxu0
    %v3708 = vadd.f32 0.0, %v3707
    %3709 = vmatprep.mubr.bf16.mxu0 0
    %3710 = vmatmul.mubr.bf16.gmra.mrb[0].mxu0 %v1037
    %v3711 = vpop.f32.mrb[0].mxu0
    %v3712 = vadd.f32 0.0, %v3711
    %v3713 = vpop.f32.mrb[0].mxu0
    %v3714 = vadd.f32 0.0, %v3713
    %v3715 = vpop.f32.mrb[0].mxu0
    %v3716 = vadd.f32 0.0, %v3715
    %v3717 = vpop.f32.mrb[0].mxu0
    %v3718 = vadd.f32 0.0, %v3717
    %3719 = vmatprep.mubr.bf16.mxu0 0
    %3720 = vmatmul.mubr.bf16.gmra.mrb[0].mxu0 %v1040
    %v3721 = vpop.f32.mrb[0].mxu0
    %v3722 = vadd.f32 0.0, %v3721
    %v3723 = vpop.f32.mrb[0].mxu0
    %v3724 = vadd.f32 0.0, %v3723
    %v3725 = vpop.f32.mrb[0].mxu0
    %v3726 = vadd.f32 0.0, %v3725
    %v3727 = vpop.f32.mrb[0].mxu0
    %v3728 = vadd.f32 0.0, %v3727
    %3729 = vmatprep.mubr.bf16.mxu0 0
    %3730 = vmatmul.mubr.bf16.gmra.mrb[0].mxu0 %v1043
    %v3731 = vpop.f32.mrb[0].mxu0
    %v3732 = vadd.f32 0.0, %v3731
    %v3733 = vpop.f32.mrb[0].mxu0
    %v3734 = vadd.f32 0.0, %v3733
    %v3735 = vpop.f32.mrb[0].mxu0
    %v3736 = vadd.f32 0.0, %v3735
    %v3737 = vpop.f32.mrb[0].mxu0
    %v3738 = vadd.f32 0.0, %v3737
    %3739 = vmatprep.mubr.bf16.mxu0 0
    %3740 = vmatmul.mubr.bf16.gmra.mrb[0].mxu0 %v1046
    %v3741 = vpop.f32.mrb[0].mxu0
    %v3742 = vadd.f32 0.0, %v3741
    %v3743 = vpop.f32.mrb[0].mxu0
    %v3744 = vadd.f32 0.0, %v3743
    %v3745 = vpop.f32.mrb[0].mxu0
    %v3746 = vadd.f32 0.0, %v3745
    %v3747 = vpop.f32.mrb[0].mxu0
    %v3748 = vadd.f32 0.0, %v3747
    %3749 = vdwg.mxu0
    %3750 = vmatprep.subr.bf16.mxu0 %v756
    %3751 = vmatpush1.bf16.msra.mxu0 %v755
    %3752 = vmatprep.subr.bf16.mxu0 %v790
    %3753 = vmatpush1.bf16.msra.mxu0 %v789
    %3754 = vmatprep.subr.bf16.mxu0 %v824
    %3755 = vmatpush1.bf16.msra.mxu0 %v823
    %3756 = vmatprep.subr.bf16.mxu0 %v858
    %3757 = vmatpush1.bf16.msra.mxu0 %v857
    %3758 = vmatprep.subr.bf16.mxu0 0
    %3759 = vmatpush1.bf16.msra.mxu0 0
    %3760 = vmatprep.subr.bf16.mxu0 0
    %3761 = vmatpush1.bf16.msra.mxu0 0
    %3762 = vmatprep.subr.bf16.mxu0 0
    %3763 = vmatpush1.bf16.msra.mxu0 0
    %3764 = vmatprep.subr.bf16.mxu0 0
    %3765 = vmatpush1.bf16.msra.mxu0 0
    %3766 = vmatprep.subr.bf16.mxu0 0
    %3767 = vmatpush1.bf16.msra.mxu0 0
    %3768 = vmatprep.subr.bf16.mxu0 0
    %3769 = vmatpush1.bf16.msra.mxu0 0
    %3770 = vmatprep.subr.bf16.mxu0 0
    %3771 = vmatpush1.bf16.msra.mxu0 0
    %3772 = vmatprep.subr.bf16.mxu0 0
    %3773 = vmatpush1.bf16.msra.mxu0 0
    %3774 = vmatprep.subr.bf16.mxu0 0
    %3775 = vmatpush1.bf16.msra.mxu0 0
    %3776 = vmatprep.subr.bf16.mxu0 0
    %3777 = vmatpush1.bf16.msra.mxu0 0
    %3778 = vmatprep.subr.bf16.mxu0 0
    %3779 = vmatpush1.bf16.msra.mxu0 0
    %3780 = vmatprep.subr.bf16.mxu0 0
    %3781 = vmatpush1.bf16.msra.mxu0 0
    %3782 = vmatprep.mubr.bf16.mxu0 0
    %3783 = vmatmul.mubr.bf16.gmra.mrb[0].mxu0 %v1001
    %v3784 = vpop.f32.mrb[0].mxu0
    %v3785 = vadd.f32 0.0, %v3784
    %v3786 = vpop.f32.mrb[0].mxu0
    %v3787 = vadd.f32 0.0, %v3786
    %v3788 = vpop.f32.mrb[0].mxu0
    %v3789 = vadd.f32 0.0, %v3788
    %v3790 = vpop.f32.mrb[0].mxu0
    %v3791 = vadd.f32 0.0, %v3790
    %3792 = vmatprep.mubr.bf16.mxu0 0
    %3793 = vmatmul.mubr.bf16.gmra.mrb[0].mxu0 %v1004
    %v3794 = vpop.f32.mrb[0].mxu0
    %v3795 = vadd.f32 0.0, %v3794
    %v3796 = vpop.f32.mrb[0].mxu0
    %v3797 = vadd.f32 0.0, %v3796
    %v3798 = vpop.f32.mrb[0].mxu0
    %v3799 = vadd.f32 0.0, %v3798
    %v3800 = vpop.f32.mrb[0].mxu0
    %v3801 = vadd.f32 0.0, %v3800
    %3802 = vmatprep.mubr.bf16.mxu0 0
    %3803 = vmatmul.mubr.bf16.gmra.mrb[0].mxu0 %v1007
    %v3804 = vpop.f32.mrb[0].mxu0
    %v3805 = vadd.f32 0.0, %v3804
    %v3806 = vpop.f32.mrb[0].mxu0
    %v3807 = vadd.f32 0.0, %v3806
    %v3808 = vpop.f32.mrb[0].mxu0
    %v3809 = vadd.f32 0.0, %v3808
    %v3810 = vpop.f32.mrb[0].mxu0
    %v3811 = vadd.f32 0.0, %v3810
    %3812 = vmatprep.mubr.bf16.mxu0 0
    %3813 = vmatmul.mubr.bf16.gmra.mrb[0].mxu0 %v1010
    %v3814 = vpop.f32.mrb[0].mxu0
    %v3815 = vadd.f32 0.0, %v3814
    %v3816 = vpop.f32.mrb[0].mxu0
    %v3817 = vadd.f32 0.0, %v3816
    %v3818 = vpop.f32.mrb[0].mxu0
    %v3819 = vadd.f32 0.0, %v3818
    %v3820 = vpop.f32.mrb[0].mxu0
    %v3821 = vadd.f32 0.0, %v3820
    %3822 = vmatprep.mubr.bf16.mxu0 0
    %3823 = vmatmul.mubr.bf16.gmra.mrb[0].mxu0 %v1013
    %v3824 = vpop.f32.mrb[0].mxu0
    %v3825 = vadd.f32 0.0, %v3824
    %v3826 = vpop.f32.mrb[0].mxu0
    %v3827 = vadd.f32 0.0, %v3826
    %v3828 = vpop.f32.mrb[0].mxu0
    %v3829 = vadd.f32 0.0, %v3828
    %v3830 = vpop.f32.mrb[0].mxu0
    %v3831 = vadd.f32 0.0, %v3830
    %3832 = vmatprep.mubr.bf16.mxu0 0
    %3833 = vmatmul.mubr.bf16.gmra.mrb[0].mxu0 %v1016
    %v3834 = vpop.f32.mrb[0].mxu0
    %v3835 = vadd.f32 0.0, %v3834
    %v3836 = vpop.f32.mrb[0].mxu0
    %v3837 = vadd.f32 0.0, %v3836
    %v3838 = vpop.f32.mrb[0].mxu0
    %v3839 = vadd.f32 0.0, %v3838
    %v3840 = vpop.f32.mrb[0].mxu0
    %v3841 = vadd.f32 0.0, %v3840
    %3842 = vmatprep.mubr.bf16.mxu0 0
    %3843 = vmatmul.mubr.bf16.gmra.mrb[0].mxu0 %v1019
    %v3844 = vpop.f32.mrb[0].mxu0
    %v3845 = vadd.f32 0.0, %v3844
    %v3846 = vpop.f32.mrb[0].mxu0
    %v3847 = vadd.f32 0.0, %v3846
    %v3848 = vpop.f32.mrb[0].mxu0
    %v3849 = vadd.f32 0.0, %v3848
    %v3850 = vpop.f32.mrb[0].mxu0
    %v3851 = vadd.f32 0.0, %v3850
    %3852 = vmatprep.mubr.bf16.mxu0 0
    %3853 = vmatmul.mubr.bf16.gmra.mrb[0].mxu0 %v1022
    %v3854 = vpop.f32.mrb[0].mxu0
    %v3855 = vadd.f32 0.0, %v3854
    %v3856 = vpop.f32.mrb[0].mxu0
    %v3857 = vadd.f32 0.0, %v3856
    %v3858 = vpop.f32.mrb[0].mxu0
    %v3859 = vadd.f32 0.0, %v3858
    %v3860 = vpop.f32.mrb[0].mxu0
    %v3861 = vadd.f32 0.0, %v3860
    %3862 = vmatprep.mubr.bf16.mxu0 0
    %3863 = vmatmul.mubr.bf16.gmra.mrb[0].mxu0 %v1025
    %v3864 = vpop.f32.mrb[0].mxu0
    %v3865 = vadd.f32 0.0, %v3864
    %v3866 = vpop.f32.mrb[0].mxu0
    %v3867 = vadd.f32 0.0, %v3866
    %v3868 = vpop.f32.mrb[0].mxu0
    %v3869 = vadd.f32 0.0, %v3868
    %v3870 = vpop.f32.mrb[0].mxu0
    %v3871 = vadd.f32 0.0, %v3870
    %3872 = vmatprep.mubr.bf16.mxu0 0
    %3873 = vmatmul.mubr.bf16.gmra.mrb[0].mxu0 %v1028
    %v3874 = vpop.f32.mrb[0].mxu0
    %v3875 = vadd.f32 0.0, %v3874
    %v3876 = vpop.f32.mrb[0].mxu0
    %v3877 = vadd.f32 0.0, %v3876
    %v3878 = vpop.f32.mrb[0].mxu0
    %v3879 = vadd.f32 0.0, %v3878
    %v3880 = vpop.f32.mrb[0].mxu0
    %v3881 = vadd.f32 0.0, %v3880
    %3882 = vmatprep.mubr.bf16.mxu0 0
    %3883 = vmatmul.mubr.bf16.gmra.mrb[0].mxu0 %v1031
    %v3884 = vpop.f32.mrb[0].mxu0
    %v3885 = vadd.f32 0.0, %v3884
    %v3886 = vpop.f32.mrb[0].mxu0
    %v3887 = vadd.f32 0.0, %v3886
    %v3888 = vpop.f32.mrb[0].mxu0
    %v3889 = vadd.f32 0.0, %v3888
    %v3890 = vpop.f32.mrb[0].mxu0
    %v3891 = vadd.f32 0.0, %v3890
    %3892 = vmatprep.mubr.bf16.mxu0 0
    %3893 = vmatmul.mubr.bf16.gmra.mrb[0].mxu0 %v1034
    %v3894 = vpop.f32.mrb[0].mxu0
    %v3895 = vadd.f32 0.0, %v3894
    %v3896 = vpop.f32.mrb[0].mxu0
    %v3897 = vadd.f32 0.0, %v3896
    %v3898 = vpop.f32.mrb[0].mxu0
    %v3899 = vadd.f32 0.0, %v3898
    %v3900 = vpop.f32.mrb[0].mxu0
    %v3901 = vadd.f32 0.0, %v3900
    %3902 = vmatprep.mubr.bf16.mxu0 0
    %3903 = vmatmul.mubr.bf16.gmra.mrb[0].mxu0 %v1037
    %v3904 = vpop.f32.mrb[0].mxu0
    %v3905 = vadd.f32 0.0, %v3904
    %v3906 = vpop.f32.mrb[0].mxu0
    %v3907 = vadd.f32 0.0, %v3906
    %v3908 = vpop.f32.mrb[0].mxu0
    %v3909 = vadd.f32 0.0, %v3908
    %v3910 = vpop.f32.mrb[0].mxu0
    %v3911 = vadd.f32 0.0, %v3910
    %3912 = vmatprep.mubr.bf16.mxu0 0
    %3913 = vmatmul.mubr.bf16.gmra.mrb[0].mxu0 %v1040
    %v3914 = vpop.f32.mrb[0].mxu0
    %v3915 = vadd.f32 0.0, %v3914
    %v3916 = vpop.f32.mrb[0].mxu0
    %v3917 = vadd.f32 0.0, %v3916
    %v3918 = vpop.f32.mrb[0].mxu0
    %v3919 = vadd.f32 0.0, %v3918
    %v3920 = vpop.f32.mrb[0].mxu0
    %v3921 = vadd.f32 0.0, %v3920
    %3922 = vmatprep.mubr.bf16.mxu0 0
    %3923 = vmatmul.mubr.bf16.gmra.mrb[0].mxu0 %v1043
    %v3924 = vpop.f32.mrb[0].mxu0
    %v3925 = vadd.f32 0.0, %v3924
    %v3926 = vpop.f32.mrb[0].mxu0
    %v3927 = vadd.f32 0.0, %v3926
    %v3928 = vpop.f32.mrb[0].mxu0
    %v3929 = vadd.f32 0.0, %v3928
    %v3930 = vpop.f32.mrb[0].mxu0
    %v3931 = vadd.f32 0.0, %v3930
    %3932 = vmatprep.mubr.bf16.mxu0 0
    %3933 = vmatmul.mubr.bf16.gmra.mrb[0].mxu0 %v1046
    %v3934 = vpop.f32.mrb[0].mxu0
    %v3935 = vadd.f32 0.0, %v3934
    %v3936 = vpop.f32.mrb[0].mxu0
    %v3937 = vadd.f32 0.0, %v3936
    %v3938 = vpop.f32.mrb[0].mxu0
    %v3939 = vadd.f32 0.0, %v3938
    %v3940 = vpop.f32.mrb[0].mxu0
    %v3941 = vadd.f32 0.0, %v3940
    %3942 = vdwg.mxu0
    %3943 = vmatprep.subr.bf16.mxu0 %v758
    %3944 = vmatpush1.bf16.msra.mxu0 %v757
    %3945 = vmatprep.subr.bf16.mxu0 %v792
    %3946 = vmatpush1.bf16.msra.mxu0 %v791
    %3947 = vmatprep.subr.bf16.mxu0 %v826
    %3948 = vmatpush1.bf16.msra.mxu0 %v825
    %3949 = vmatprep.subr.bf16.mxu0 %v860
    %3950 = vmatpush1.bf16.msra.mxu0 %v859
    %3951 = vmatprep.subr.bf16.mxu0 0
    %3952 = vmatpush1.bf16.msra.mxu0 0
    %3953 = vmatprep.subr.bf16.mxu0 0
    %3954 = vmatpush1.bf16.msra.mxu0 0
    %3955 = vmatprep.subr.bf16.mxu0 0
    %3956 = vmatpush1.bf16.msra.mxu0 0
    %3957 = vmatprep.subr.bf16.mxu0 0
    %3958 = vmatpush1.bf16.msra.mxu0 0
    %3959 = vmatprep.subr.bf16.mxu0 0
    %3960 = vmatpush1.bf16.msra.mxu0 0
    %3961 = vmatprep.subr.bf16.mxu0 0
    %3962 = vmatpush1.bf16.msra.mxu0 0
    %3963 = vmatprep.subr.bf16.mxu0 0
    %3964 = vmatpush1.bf16.msra.mxu0 0
    %3965 = vmatprep.subr.bf16.mxu0 0
    %3966 = vmatpush1.bf16.msra.mxu0 0
    %3967 = vmatprep.subr.bf16.mxu0 0
    %3968 = vmatpush1.bf16.msra.mxu0 0
    %3969 = vmatprep.subr.bf16.mxu0 0
    %3970 = vmatpush1.bf16.msra.mxu0 0
    %3971 = vmatprep.subr.bf16.mxu0 0
    %3972 = vmatpush1.bf16.msra.mxu0 0
    %3973 = vmatprep.subr.bf16.mxu0 0
    %3974 = vmatpush1.bf16.msra.mxu0 0
    %3975 = vmatprep.mubr.bf16.mxu0 0
    %3976 = vmatmul.mubr.bf16.gmra.mrb[0].mxu0 %v1001
    %v3977 = vpop.f32.mrb[0].mxu0
    %v3978 = vadd.f32 0.0, %v3977
    %v3979 = vpop.f32.mrb[0].mxu0
    %v3980 = vadd.f32 0.0, %v3979
    %v3981 = vpop.f32.mrb[0].mxu0
    %v3982 = vadd.f32 0.0, %v3981
    %v3983 = vpop.f32.mrb[0].mxu0
    %v3984 = vadd.f32 0.0, %v3983
    %3985 = vmatprep.mubr.bf16.mxu0 0
    %3986 = vmatmul.mubr.bf16.gmra.mrb[0].mxu0 %v1004
    %v3987 = vpop.f32.mrb[0].mxu0
    %v3988 = vadd.f32 0.0, %v3987
    %v3989 = vpop.f32.mrb[0].mxu0
    %v3990 = vadd.f32 0.0, %v3989
    %v3991 = vpop.f32.mrb[0].mxu0
    %v3992 = vadd.f32 0.0, %v3991
    %v3993 = vpop.f32.mrb[0].mxu0
    %v3994 = vadd.f32 0.0, %v3993
    %3995 = vmatprep.mubr.bf16.mxu0 0
    %3996 = vmatmul.mubr.bf16.gmra.mrb[0].mxu0 %v1007
    %v3997 = vpop.f32.mrb[0].mxu0
    %v3998 = vadd.f32 0.0, %v3997
    %v3999 = vpop.f32.mrb[0].mxu0
    %v4000 = vadd.f32 0.0, %v3999
    %v4001 = vpop.f32.mrb[0].mxu0
    %v4002 = vadd.f32 0.0, %v4001
    %v4003 = vpop.f32.mrb[0].mxu0
    %v4004 = vadd.f32 0.0, %v4003
    %4005 = vmatprep.mubr.bf16.mxu0 0
    %4006 = vmatmul.mubr.bf16.gmra.mrb[0].mxu0 %v1010
    %v4007 = vpop.f32.mrb[0].mxu0
    %v4008 = vadd.f32 0.0, %v4007
    %v4009 = vpop.f32.mrb[0].mxu0
    %v4010 = vadd.f32 0.0, %v4009
    %v4011 = vpop.f32.mrb[0].mxu0
    %v4012 = vadd.f32 0.0, %v4011
    %v4013 = vpop.f32.mrb[0].mxu0
    %v4014 = vadd.f32 0.0, %v4013
    %4015 = vmatprep.mubr.bf16.mxu0 0
    %4016 = vmatmul.mubr.bf16.gmra.mrb[0].mxu0 %v1013
    %v4017 = vpop.f32.mrb[0].mxu0
    %v4018 = vadd.f32 0.0, %v4017
    %v4019 = vpop.f32.mrb[0].mxu0
    %v4020 = vadd.f32 0.0, %v4019
    %v4021 = vpop.f32.mrb[0].mxu0
    %v4022 = vadd.f32 0.0, %v4021
    %v4023 = vpop.f32.mrb[0].mxu0
    %v4024 = vadd.f32 0.0, %v4023
    %4025 = vmatprep.mubr.bf16.mxu0 0
    %4026 = vmatmul.mubr.bf16.gmra.mrb[0].mxu0 %v1016
    %v4027 = vpop.f32.mrb[0].mxu0
    %v4028 = vadd.f32 0.0, %v4027
    %v4029 = vpop.f32.mrb[0].mxu0
    %v4030 = vadd.f32 0.0, %v4029
    %v4031 = vpop.f32.mrb[0].mxu0
    %v4032 = vadd.f32 0.0, %v4031
    %v4033 = vpop.f32.mrb[0].mxu0
    %v4034 = vadd.f32 0.0, %v4033
    %4035 = vmatprep.mubr.bf16.mxu0 0
    %4036 = vmatmul.mubr.bf16.gmra.mrb[0].mxu0 %v1019
    %v4037 = vpop.f32.mrb[0].mxu0
    %v4038 = vadd.f32 0.0, %v4037
    %v4039 = vpop.f32.mrb[0].mxu0
    %v4040 = vadd.f32 0.0, %v4039
    %v4041 = vpop.f32.mrb[0].mxu0
    %v4042 = vadd.f32 0.0, %v4041
    %v4043 = vpop.f32.mrb[0].mxu0
    %v4044 = vadd.f32 0.0, %v4043
    %4045 = vmatprep.mubr.bf16.mxu0 0
    %4046 = vmatmul.mubr.bf16.gmra.mrb[0].mxu0 %v1022
    %v4047 = vpop.f32.mrb[0].mxu0
    %v4048 = vadd.f32 0.0, %v4047
    %v4049 = vpop.f32.mrb[0].mxu0
    %v4050 = vadd.f32 0.0, %v4049
    %v4051 = vpop.f32.mrb[0].mxu0
    %v4052 = vadd.f32 0.0, %v4051
    %v4053 = vpop.f32.mrb[0].mxu0
    %v4054 = vadd.f32 0.0, %v4053
    %4055 = vmatprep.mubr.bf16.mxu0 0
    %4056 = vmatmul.mubr.bf16.gmra.mrb[0].mxu0 %v1025
    %v4057 = vpop.f32.mrb[0].mxu0
    %v4058 = vadd.f32 0.0, %v4057
    %v4059 = vpop.f32.mrb[0].mxu0
    %v4060 = vadd.f32 0.0, %v4059
    %v4061 = vpop.f32.mrb[0].mxu0
    %v4062 = vadd.f32 0.0, %v4061
    %v4063 = vpop.f32.mrb[0].mxu0
    %v4064 = vadd.f32 0.0, %v4063
    %4065 = vmatprep.mubr.bf16.mxu0 0
    %4066 = vmatmul.mubr.bf16.gmra.mrb[0].mxu0 %v1028
    %v4067 = vpop.f32.mrb[0].mxu0
    %v4068 = vadd.f32 0.0, %v4067
    %v4069 = vpop.f32.mrb[0].mxu0
    %v4070 = vadd.f32 0.0, %v4069
    %v4071 = vpop.f32.mrb[0].mxu0
    %v4072 = vadd.f32 0.0, %v4071
    %v4073 = vpop.f32.mrb[0].mxu0
    %v4074 = vadd.f32 0.0, %v4073
    %4075 = vmatprep.mubr.bf16.mxu0 0
    %4076 = vmatmul.mubr.bf16.gmra.mrb[0].mxu0 %v1031
    %v4077 = vpop.f32.mrb[0].mxu0
    %v4078 = vadd.f32 0.0, %v4077
    %v4079 = vpop.f32.mrb[0].mxu0
    %v4080 = vadd.f32 0.0, %v4079
    %v4081 = vpop.f32.mrb[0].mxu0
    %v4082 = vadd.f32 0.0, %v4081
    %v4083 = vpop.f32.mrb[0].mxu0
    %v4084 = vadd.f32 0.0, %v4083
    %4085 = vmatprep.mubr.bf16.mxu0 0
    %4086 = vmatmul.mubr.bf16.gmra.mrb[0].mxu0 %v1034
    %v4087 = vpop.f32.mrb[0].mxu0
    %v4088 = vadd.f32 0.0, %v4087
    %v4089 = vpop.f32.mrb[0].mxu0
    %v4090 = vadd.f32 0.0, %v4089
    %v4091 = vpop.f32.mrb[0].mxu0
    %v4092 = vadd.f32 0.0, %v4091
    %v4093 = vpop.f32.mrb[0].mxu0
    %v4094 = vadd.f32 0.0, %v4093
    %4095 = vmatprep.mubr.bf16.mxu0 0
    %4096 = vmatmul.mubr.bf16.gmra.mrb[0].mxu0 %v1037
    %v4097 = vpop.f32.mrb[0].mxu0
    %v4098 = vadd.f32 0.0, %v4097
    %v4099 = vpop.f32.mrb[0].mxu0
    %v4100 = vadd.f32 0.0, %v4099
    %v4101 = vpop.f32.mrb[0].mxu0
    %v4102 = vadd.f32 0.0, %v4101
    %v4103 = vpop.f32.mrb[0].mxu0
    %v4104 = vadd.f32 0.0, %v4103
    %4105 = vmatprep.mubr.bf16.mxu0 0
    %4106 = vmatmul.mubr.bf16.gmra.mrb[0].mxu0 %v1040
    %v4107 = vpop.f32.mrb[0].mxu0
    %v4108 = vadd.f32 0.0, %v4107
    %v4109 = vpop.f32.mrb[0].mxu0
    %v4110 = vadd.f32 0.0, %v4109
    %v4111 = vpop.f32.mrb[0].mxu0
    %v4112 = vadd.f32 0.0, %v4111
    %v4113 = vpop.f32.mrb[0].mxu0
    %v4114 = vadd.f32 0.0, %v4113
    %4115 = vmatprep.mubr.bf16.mxu0 0
    %4116 = vmatmul.mubr.bf16.gmra.mrb[0].mxu0 %v1043
    %v4117 = vpop.f32.mrb[0].mxu0
    %v4118 = vadd.f32 0.0, %v4117
    %v4119 = vpop.f32.mrb[0].mxu0
    %v4120 = vadd.f32 0.0, %v4119
    %v4121 = vpop.f32.mrb[0].mxu0
    %v4122 = vadd.f32 0.0, %v4121
    %v4123 = vpop.f32.mrb[0].mxu0
    %v4124 = vadd.f32 0.0, %v4123
    %4125 = vmatprep.mubr.bf16.mxu0 0
    %4126 = vmatmul.mubr.bf16.gmra.mrb[0].mxu0 %v1046
    %v4127 = vpop.f32.mrb[0].mxu0
    %v4128 = vadd.f32 0.0, %v4127
    %v4129 = vpop.f32.mrb[0].mxu0
    %v4130 = vadd.f32 0.0, %v4129
    %v4131 = vpop.f32.mrb[0].mxu0
    %v4132 = vadd.f32 0.0, %v4131
    %v4133 = vpop.f32.mrb[0].mxu0
    %v4134 = vadd.f32 0.0, %v4133
    %4135 = vdwg.mxu0
    %4136 = vmatprep.subr.bf16.mxu0 %v760
    %4137 = vmatpush1.bf16.msra.mxu0 %v759
    %4138 = vmatprep.subr.bf16.mxu0 %v794
    %4139 = vmatpush1.bf16.msra.mxu0 %v793
    %4140 = vmatprep.subr.bf16.mxu0 %v828
    %4141 = vmatpush1.bf16.msra.mxu0 %v827
    %4142 = vmatprep.subr.bf16.mxu0 %v862
    %4143 = vmatpush1.bf16.msra.mxu0 %v861
    %4144 = vmatprep.subr.bf16.mxu0 0
    %4145 = vmatpush1.bf16.msra.mxu0 0
    %4146 = vmatprep.subr.bf16.mxu0 0
    %4147 = vmatpush1.bf16.msra.mxu0 0
    %4148 = vmatprep.subr.bf16.mxu0 0
    %4149 = vmatpush1.bf16.msra.mxu0 0
    %4150 = vmatprep.subr.bf16.mxu0 0
    %4151 = vmatpush1.bf16.msra.mxu0 0
    %4152 = vmatprep.subr.bf16.mxu0 0
    %4153 = vmatpush1.bf16.msra.mxu0 0
    %4154 = vmatprep.subr.bf16.mxu0 0
    %4155 = vmatpush1.bf16.msra.mxu0 0
    %4156 = vmatprep.subr.bf16.mxu0 0
    %4157 = vmatpush1.bf16.msra.mxu0 0
    %4158 = vmatprep.subr.bf16.mxu0 0
    %4159 = vmatpush1.bf16.msra.mxu0 0
    %4160 = vmatprep.subr.bf16.mxu0 0
    %4161 = vmatpush1.bf16.msra.mxu0 0
    %4162 = vmatprep.subr.bf16.mxu0 0
    %4163 = vmatpush1.bf16.msra.mxu0 0
    %4164 = vmatprep.subr.bf16.mxu0 0
    %4165 = vmatpush1.bf16.msra.mxu0 0
    %4166 = vmatprep.subr.bf16.mxu0 0
    %4167 = vmatpush1.bf16.msra.mxu0 0
    %4168 = vmatprep.mubr.bf16.mxu0 0
    %4169 = vmatmul.mubr.bf16.gmra.mrb[0].mxu0 %v1001
    %v4170 = vpop.f32.mrb[0].mxu0
    %v4171 = vadd.f32 0.0, %v4170
    %v4172 = vpop.f32.mrb[0].mxu0
    %v4173 = vadd.f32 0.0, %v4172
    %v4174 = vpop.f32.mrb[0].mxu0
    %v4175 = vadd.f32 0.0, %v4174
    %v4176 = vpop.f32.mrb[0].mxu0
    %v4177 = vadd.f32 0.0, %v4176
    %4178 = vmatprep.mubr.bf16.mxu0 0
    %4179 = vmatmul.mubr.bf16.gmra.mrb[0].mxu0 %v1004
    %v4180 = vpop.f32.mrb[0].mxu0
    %v4181 = vadd.f32 0.0, %v4180
    %v4182 = vpop.f32.mrb[0].mxu0
    %v4183 = vadd.f32 0.0, %v4182
    %v4184 = vpop.f32.mrb[0].mxu0
    %v4185 = vadd.f32 0.0, %v4184
    %v4186 = vpop.f32.mrb[0].mxu0
    %v4187 = vadd.f32 0.0, %v4186
    %4188 = vmatprep.mubr.bf16.mxu0 0
    %4189 = vmatmul.mubr.bf16.gmra.mrb[0].mxu0 %v1007
    %v4190 = vpop.f32.mrb[0].mxu0
    %v4191 = vadd.f32 0.0, %v4190
    %v4192 = vpop.f32.mrb[0].mxu0
    %v4193 = vadd.f32 0.0, %v4192
    %v4194 = vpop.f32.mrb[0].mxu0
    %v4195 = vadd.f32 0.0, %v4194
    %v4196 = vpop.f32.mrb[0].mxu0
    %v4197 = vadd.f32 0.0, %v4196
    %4198 = vmatprep.mubr.bf16.mxu0 0
    %4199 = vmatmul.mubr.bf16.gmra.mrb[0].mxu0 %v1010
    %v4200 = vpop.f32.mrb[0].mxu0
    %v4201 = vadd.f32 0.0, %v4200
    %v4202 = vpop.f32.mrb[0].mxu0
    %v4203 = vadd.f32 0.0, %v4202
    %v4204 = vpop.f32.mrb[0].mxu0
    %v4205 = vadd.f32 0.0, %v4204
    %v4206 = vpop.f32.mrb[0].mxu0
    %v4207 = vadd.f32 0.0, %v4206
    %4208 = vmatprep.mubr.bf16.mxu0 0
    %4209 = vmatmul.mubr.bf16.gmra.mrb[0].mxu0 %v1013
    %v4210 = vpop.f32.mrb[0].mxu0
    %v4211 = vadd.f32 0.0, %v4210
    %v4212 = vpop.f32.mrb[0].mxu0
    %v4213 = vadd.f32 0.0, %v4212
    %v4214 = vpop.f32.mrb[0].mxu0
    %v4215 = vadd.f32 0.0, %v4214
    %v4216 = vpop.f32.mrb[0].mxu0
    %v4217 = vadd.f32 0.0, %v4216
    %4218 = vmatprep.mubr.bf16.mxu0 0
    %4219 = vmatmul.mubr.bf16.gmra.mrb[0].mxu0 %v1016
    %v4220 = vpop.f32.mrb[0].mxu0
    %v4221 = vadd.f32 0.0, %v4220
    %v4222 = vpop.f32.mrb[0].mxu0
    %v4223 = vadd.f32 0.0, %v4222
    %v4224 = vpop.f32.mrb[0].mxu0
    %v4225 = vadd.f32 0.0, %v4224
    %v4226 = vpop.f32.mrb[0].mxu0
    %v4227 = vadd.f32 0.0, %v4226
    %4228 = vmatprep.mubr.bf16.mxu0 0
    %4229 = vmatmul.mubr.bf16.gmra.mrb[0].mxu0 %v1019
    %v4230 = vpop.f32.mrb[0].mxu0
    %v4231 = vadd.f32 0.0, %v4230
    %v4232 = vpop.f32.mrb[0].mxu0
    %v4233 = vadd.f32 0.0, %v4232
    %v4234 = vpop.f32.mrb[0].mxu0
    %v4235 = vadd.f32 0.0, %v4234
    %v4236 = vpop.f32.mrb[0].mxu0
    %v4237 = vadd.f32 0.0, %v4236
    %4238 = vmatprep.mubr.bf16.mxu0 0
    %4239 = vmatmul.mubr.bf16.gmra.mrb[0].mxu0 %v1022
    %v4240 = vpop.f32.mrb[0].mxu0
    %v4241 = vadd.f32 0.0, %v4240
    %v4242 = vpop.f32.mrb[0].mxu0
    %v4243 = vadd.f32 0.0, %v4242
    %v4244 = vpop.f32.mrb[0].mxu0
    %v4245 = vadd.f32 0.0, %v4244
    %v4246 = vpop.f32.mrb[0].mxu0
    %v4247 = vadd.f32 0.0, %v4246
    %4248 = vmatprep.mubr.bf16.mxu0 0
    %4249 = vmatmul.mubr.bf16.gmra.mrb[0].mxu0 %v1025
    %v4250 = vpop.f32.mrb[0].mxu0
    %v4251 = vadd.f32 0.0, %v4250
    %v4252 = vpop.f32.mrb[0].mxu0
    %v4253 = vadd.f32 0.0, %v4252
    %v4254 = vpop.f32.mrb[0].mxu0
    %v4255 = vadd.f32 0.0, %v4254
    %v4256 = vpop.f32.mrb[0].mxu0
    %v4257 = vadd.f32 0.0, %v4256
    %4258 = vmatprep.mubr.bf16.mxu0 0
    %4259 = vmatmul.mubr.bf16.gmra.mrb[0].mxu0 %v1028
    %v4260 = vpop.f32.mrb[0].mxu0
    %v4261 = vadd.f32 0.0, %v4260
    %v4262 = vpop.f32.mrb[0].mxu0
    %v4263 = vadd.f32 0.0, %v4262
    %v4264 = vpop.f32.mrb[0].mxu0
    %v4265 = vadd.f32 0.0, %v4264
    %v4266 = vpop.f32.mrb[0].mxu0
    %v4267 = vadd.f32 0.0, %v4266
    %4268 = vmatprep.mubr.bf16.mxu0 0
    %4269 = vmatmul.mubr.bf16.gmra.mrb[0].mxu0 %v1031
    %v4270 = vpop.f32.mrb[0].mxu0
    %v4271 = vadd.f32 0.0, %v4270
    %v4272 = vpop.f32.mrb[0].mxu0
    %v4273 = vadd.f32 0.0, %v4272
    %v4274 = vpop.f32.mrb[0].mxu0
    %v4275 = vadd.f32 0.0, %v4274
    %v4276 = vpop.f32.mrb[0].mxu0
    %v4277 = vadd.f32 0.0, %v4276
    %4278 = vmatprep.mubr.bf16.mxu0 0
    %4279 = vmatmul.mubr.bf16.gmra.mrb[0].mxu0 %v1034
    %v4280 = vpop.f32.mrb[0].mxu0
    %v4281 = vadd.f32 0.0, %v4280
    %v4282 = vpop.f32.mrb[0].mxu0
    %v4283 = vadd.f32 0.0, %v4282
    %v4284 = vpop.f32.mrb[0].mxu0
    %v4285 = vadd.f32 0.0, %v4284
    %v4286 = vpop.f32.mrb[0].mxu0
    %v4287 = vadd.f32 0.0, %v4286
    %4288 = vmatprep.mubr.bf16.mxu0 0
    %4289 = vmatmul.mubr.bf16.gmra.mrb[0].mxu0 %v1037
    %v4290 = vpop.f32.mrb[0].mxu0
    %v4291 = vadd.f32 0.0, %v4290
    %v4292 = vpop.f32.mrb[0].mxu0
    %v4293 = vadd.f32 0.0, %v4292
    %v4294 = vpop.f32.mrb[0].mxu0
    %v4295 = vadd.f32 0.0, %v4294
    %v4296 = vpop.f32.mrb[0].mxu0
    %v4297 = vadd.f32 0.0, %v4296
    %4298 = vmatprep.mubr.bf16.mxu0 0
    %4299 = vmatmul.mubr.bf16.gmra.mrb[0].mxu0 %v1040
    %v4300 = vpop.f32.mrb[0].mxu0
    %v4301 = vadd.f32 0.0, %v4300
    %v4302 = vpop.f32.mrb[0].mxu0
    %v4303 = vadd.f32 0.0, %v4302
    %v4304 = vpop.f32.mrb[0].mxu0
    %v4305 = vadd.f32 0.0, %v4304
    %v4306 = vpop.f32.mrb[0].mxu0
    %v4307 = vadd.f32 0.0, %v4306
    %4308 = vmatprep.mubr.bf16.mxu0 0
    %4309 = vmatmul.mubr.bf16.gmra.mrb[0].mxu0 %v1043
    %v4310 = vpop.f32.mrb[0].mxu0
    %v4311 = vadd.f32 0.0, %v4310
    %v4312 = vpop.f32.mrb[0].mxu0
    %v4313 = vadd.f32 0.0, %v4312
    %v4314 = vpop.f32.mrb[0].mxu0
    %v4315 = vadd.f32 0.0, %v4314
    %v4316 = vpop.f32.mrb[0].mxu0
    %v4317 = vadd.f32 0.0, %v4316
    %4318 = vmatprep.mubr.bf16.mxu0 0
    %4319 = vmatmul.mubr.bf16.gmra.mrb[0].mxu0 %v1046
    %v4320 = vpop.f32.mrb[0].mxu0
    %v4321 = vadd.f32 0.0, %v4320
    %v4322 = vpop.f32.mrb[0].mxu0
    %v4323 = vadd.f32 0.0, %v4322
    %v4324 = vpop.f32.mrb[0].mxu0
    %v4325 = vadd.f32 0.0, %v4324
    %v4326 = vpop.f32.mrb[0].mxu0
    %v4327 = vadd.f32 0.0, %v4326
    %4328 = vdwg.mxu0
    %v4329 = vmax.f32 %v1083, %v2629
    %v4330 = vmax.f32 %v1085, %v2820
    %v4331 = vmax.f32 %v1276, %v2822
    %v4332 = vmax.f32 %v1278, %v3013
    %v4333 = vmax.f32 %v1469, %v3015
    %v4334 = vmax.f32 %v1471, %v3206
    %v4335 = vmax.f32 %v1662, %v3208
    %v4336 = vmax.f32 %v1664, %v3399
    %v4337 = vmax.f32 %v1855, %v3401
    %v4338 = vmax.f32 %v1857, %v3592
    %v4339 = vmax.f32 %v2048, %v3594
    %v4340 = vmax.f32 %v2050, %v3785
    %v4341 = vmax.f32 %v2241, %v3787
    %v4342 = vmax.f32 %v2243, %v3978
    %v4343 = vmax.f32 %v2434, %v3980
    %v4344 = vmax.f32 %v2436, %v4171
    %v4345 = vmax.f32 %v2627, %v4173
    %v4346 = vmax.f32 %v1087, %v2633
    %v4347 = vmax.f32 %v1089, %v2824
    %v4348 = vmax.f32 %v1280, %v2826
    %v4349 = vmax.f32 %v1282, %v3017
    %v4350 = vmax.f32 %v1473, %v3019
    %v4351 = vmax.f32 %v1475, %v3210
    %v4352 = vmax.f32 %v1666, %v3212
    %v4353 = vmax.f32 %v1668, %v3403
    %v4354 = vmax.f32 %v1859, %v3405
    %v4355 = vmax.f32 %v1861, %v3596
    %v4356 = vmax.f32 %v2052, %v3598
    %v4357 = vmax.f32 %v2054, %v3789
    %v4358 = vmax.f32 %v2245, %v3791
    %v4359 = vmax.f32 %v2247, %v3982
    %v4360 = vmax.f32 %v2438, %v3984
    %v4361 = vmax.f32 %v2440, %v4175
    %v4362 = vmax.f32 %v2631, %v4177
    %v4363 = vmax.f32 %v1093, %v2639
    %v4364 = vmax.f32 %v1095, %v2830
    %v4365 = vmax.f32 %v1286, %v2832
    %v4366 = vmax.f32 %v1288, %v3023
    %v4367 = vmax.f32 %v1479, %v3025
    %v4368 = vmax.f32 %v1481, %v3216
    %v4369 = vmax.f32 %v1672, %v3218
    %v4370 = vmax.f32 %v1674, %v3409
    %v4371 = vmax.f32 %v1865, %v3411
    %v4372 = vmax.f32 %v1867, %v3602
    %v4373 = vmax.f32 %v2058, %v3604
    %v4374 = vmax.f32 %v2060, %v3795
    %v4375 = vmax.f32 %v2251, %v3797
    %v4376 = vmax.f32 %v2253, %v3988
    %v4377 = vmax.f32 %v2444, %v3990
    %v4378 = vmax.f32 %v2446, %v4181
    %v4379 = vmax.f32 %v2637, %v4183
    %v4380 = vmax.f32 %v1097, %v2643
    %v4381 = vmax.f32 %v1099, %v2834
    %v4382 = vmax.f32 %v1290, %v2836
    %v4383 = vmax.f32 %v1292, %v3027
    %v4384 = vmax.f32 %v1483, %v3029
    %v4385 = vmax.f32 %v1485, %v3220
    %v4386 = vmax.f32 %v1676, %v3222
    %v4387 = vmax.f32 %v1678, %v3413
    %v4388 = vmax.f32 %v1869, %v3415
    %v4389 = vmax.f32 %v1871, %v3606
    %v4390 = vmax.f32 %v2062, %v3608
    %v4391 = vmax.f32 %v2064, %v3799
    %v4392 = vmax.f32 %v2255, %v3801
    %v4393 = vmax.f32 %v2257, %v3992
    %v4394 = vmax.f32 %v2448, %v3994
    %v4395 = vmax.f32 %v2450, %v4185
    %v4396 = vmax.f32 %v2641, %v4187
    %v4397 = vmax.f32 %v1103, %v2649
    %v4398 = vmax.f32 %v1105, %v2840
    %v4399 = vmax.f32 %v1296, %v2842
    %v4400 = vmax.f32 %v1298, %v3033
    %v4401 = vmax.f32 %v1489, %v3035
    %v4402 = vmax.f32 %v1491, %v3226
    %v4403 = vmax.f32 %v1682, %v3228
    %v4404 = vmax.f32 %v1684, %v3419
    %v4405 = vmax.f32 %v1875, %v3421
    %v4406 = vmax.f32 %v1877, %v3612
    %v4407 = vmax.f32 %v2068, %v3614
    %v4408 = vmax.f32 %v2070, %v3805
    %v4409 = vmax.f32 %v2261, %v3807
    %v4410 = vmax.f32 %v2263, %v3998
    %v4411 = vmax.f32 %v2454, %v4000
    %v4412 = vmax.f32 %v2456, %v4191
    %v4413 = vmax.f32 %v2647, %v4193
    %v4414 = vmax.f32 %v1107, %v2653
    %v4415 = vmax.f32 %v1109, %v2844
    %v4416 = vmax.f32 %v1300, %v2846
    %v4417 = vmax.f32 %v1302, %v3037
    %v4418 = vmax.f32 %v1493, %v3039
    %v4419 = vmax.f32 %v1495, %v3230
    %v4420 = vmax.f32 %v1686, %v3232
    %v4421 = vmax.f32 %v1688, %v3423
    %v4422 = vmax.f32 %v1879, %v3425
    %v4423 = vmax.f32 %v1881, %v3616
    %v4424 = vmax.f32 %v2072, %v3618
    %v4425 = vmax.f32 %v2074, %v3809
    %v4426 = vmax.f32 %v2265, %v3811
    %v4427 = vmax.f32 %v2267, %v4002
    %v4428 = vmax.f32 %v2458, %v4004
    %v4429 = vmax.f32 %v2460, %v4195
    %v4430 = vmax.f32 %v2651, %v4197
    %v4431 = vmax.f32 %v1113, %v2659
    %v4432 = vmax.f32 %v1115, %v2850
    %v4433 = vmax.f32 %v1306, %v2852
    %v4434 = vmax.f32 %v1308, %v3043
    %v4435 = vmax.f32 %v1499, %v3045
    %v4436 = vmax.f32 %v1501, %v3236
    %v4437 = vmax.f32 %v1692, %v3238
    %v4438 = vmax.f32 %v1694, %v3429
    %v4439 = vmax.f32 %v1885, %v3431
    %v4440 = vmax.f32 %v1887, %v3622
    %v4441 = vmax.f32 %v2078, %v3624
    %v4442 = vmax.f32 %v2080, %v3815
    %v4443 = vmax.f32 %v2271, %v3817
    %v4444 = vmax.f32 %v2273, %v4008
    %v4445 = vmax.f32 %v2464, %v4010
    %v4446 = vmax.f32 %v2466, %v4201
    %v4447 = vmax.f32 %v2657, %v4203
    %v4448 = vmax.f32 %v1117, %v2663
    %v4449 = vmax.f32 %v1119, %v2854
    %v4450 = vmax.f32 %v1310, %v2856
    %v4451 = vmax.f32 %v1312, %v3047
    %v4452 = vmax.f32 %v1503, %v3049
    %v4453 = vmax.f32 %v1505, %v3240
    %v4454 = vmax.f32 %v1696, %v3242
    %v4455 = vmax.f32 %v1698, %v3433
    %v4456 = vmax.f32 %v1889, %v3435
    %v4457 = vmax.f32 %v1891, %v3626
    %v4458 = vmax.f32 %v2082, %v3628
    %v4459 = vmax.f32 %v2084, %v3819
    %v4460 = vmax.f32 %v2275, %v3821
    %v4461 = vmax.f32 %v2277, %v4012
    %v4462 = vmax.f32 %v2468, %v4014
    %v4463 = vmax.f32 %v2470, %v4205
    %v4464 = vmax.f32 %v2661, %v4207
    %v4465 = vmax.f32 %v1123, %v2669
    %v4466 = vmax.f32 %v1125, %v2860
    %v4467 = vmax.f32 %v1316, %v2862
    %v4468 = vmax.f32 %v1318, %v3053
    %v4469 = vmax.f32 %v1509, %v3055
    %v4470 = vmax.f32 %v1511, %v3246
    %v4471 = vmax.f32 %v1702, %v3248
    %v4472 = vmax.f32 %v1704, %v3439
    %v4473 = vmax.f32 %v1895, %v3441
    %v4474 = vmax.f32 %v1897, %v3632
    %v4475 = vmax.f32 %v2088, %v3634
    %v4476 = vmax.f32 %v2090, %v3825
    %v4477 = vmax.f32 %v2281, %v3827
    %v4478 = vmax.f32 %v2283, %v4018
    %v4479 = vmax.f32 %v2474, %v4020
    %v4480 = vmax.f32 %v2476, %v4211
    %v4481 = vmax.f32 %v2667, %v4213
    %v4482 = vmax.f32 %v1127, %v2673
    %v4483 = vmax.f32 %v1129, %v2864
    %v4484 = vmax.f32 %v1320, %v2866
    %v4485 = vmax.f32 %v1322, %v3057
    %v4486 = vmax.f32 %v1513, %v3059
    %v4487 = vmax.f32 %v1515, %v3250
    %v4488 = vmax.f32 %v1706, %v3252
    %v4489 = vmax.f32 %v1708, %v3443
    %v4490 = vmax.f32 %v1899, %v3445
    %v4491 = vmax.f32 %v1901, %v3636
    %v4492 = vmax.f32 %v2092, %v3638
    %v4493 = vmax.f32 %v2094, %v3829
    %v4494 = vmax.f32 %v2285, %v3831
    %v4495 = vmax.f32 %v2287, %v4022
    %v4496 = vmax.f32 %v2478, %v4024
    %v4497 = vmax.f32 %v2480, %v4215
    %v4498 = vmax.f32 %v2671, %v4217
    %v4499 = vmax.f32 %v1133, %v2679
    %v4500 = vmax.f32 %v1135, %v2870
    %v4501 = vmax.f32 %v1326, %v2872
    %v4502 = vmax.f32 %v1328, %v3063
    %v4503 = vmax.f32 %v1519, %v3065
    %v4504 = vmax.f32 %v1521, %v3256
    %v4505 = vmax.f32 %v1712, %v3258
    %v4506 = vmax.f32 %v1714, %v3449
    %v4507 = vmax.f32 %v1905, %v3451
    %v4508 = vmax.f32 %v1907, %v3642
    %v4509 = vmax.f32 %v2098, %v3644
    %v4510 = vmax.f32 %v2100, %v3835
    %v4511 = vmax.f32 %v2291, %v3837
    %v4512 = vmax.f32 %v2293, %v4028
    %v4513 = vmax.f32 %v2484, %v4030
    %v4514 = vmax.f32 %v2486, %v4221
    %v4515 = vmax.f32 %v2677, %v4223
    %v4516 = vmax.f32 %v1137, %v2683
    %v4517 = vmax.f32 %v1139, %v2874
    %v4518 = vmax.f32 %v1330, %v2876
    %v4519 = vmax.f32 %v1332, %v3067
    %v4520 = vmax.f32 %v1523, %v3069
    %v4521 = vmax.f32 %v1525, %v3260
    %v4522 = vmax.f32 %v1716, %v3262
    %v4523 = vmax.f32 %v1718, %v3453
    %v4524 = vmax.f32 %v1909, %v3455
    %v4525 = vmax.f32 %v1911, %v3646
    %v4526 = vmax.f32 %v2102, %v3648
    %v4527 = vmax.f32 %v2104, %v3839
    %v4528 = vmax.f32 %v2295, %v3841
    %v4529 = vmax.f32 %v2297, %v4032
    %v4530 = vmax.f32 %v2488, %v4034
    %v4531 = vmax.f32 %v2490, %v4225
    %v4532 = vmax.f32 %v2681, %v4227
    %v4533 = vmax.f32 %v1143, %v2689
    %v4534 = vmax.f32 %v1145, %v2880
    %v4535 = vmax.f32 %v1336, %v2882
    %v4536 = vmax.f32 %v1338, %v3073
    %v4537 = vmax.f32 %v1529, %v3075
    %v4538 = vmax.f32 %v1531, %v3266
    %v4539 = vmax.f32 %v1722, %v3268
    %v4540 = vmax.f32 %v1724, %v3459
    %v4541 = vmax.f32 %v1915, %v3461
    %v4542 = vmax.f32 %v1917, %v3652
    %v4543 = vmax.f32 %v2108, %v3654
    %v4544 = vmax.f32 %v2110, %v3845
    %v4545 = vmax.f32 %v2301, %v3847
    %v4546 = vmax.f32 %v2303, %v4038
    %v4547 = vmax.f32 %v2494, %v4040
    %v4548 = vmax.f32 %v2496, %v4231
    %v4549 = vmax.f32 %v2687, %v4233
    %v4550 = vmax.f32 %v1147, %v2693
    %v4551 = vmax.f32 %v1149, %v2884
    %v4552 = vmax.f32 %v1340, %v2886
    %v4553 = vmax.f32 %v1342, %v3077
    %v4554 = vmax.f32 %v1533, %v3079
    %v4555 = vmax.f32 %v1535, %v3270
    %v4556 = vmax.f32 %v1726, %v3272
    %v4557 = vmax.f32 %v1728, %v3463
    %v4558 = vmax.f32 %v1919, %v3465
    %v4559 = vmax.f32 %v1921, %v3656
    %v4560 = vmax.f32 %v2112, %v3658
    %v4561 = vmax.f32 %v2114, %v3849
    %v4562 = vmax.f32 %v2305, %v3851
    %v4563 = vmax.f32 %v2307, %v4042
    %v4564 = vmax.f32 %v2498, %v4044
    %v4565 = vmax.f32 %v2500, %v4235
    %v4566 = vmax.f32 %v2691, %v4237
    %v4567 = vmax.f32 %v1153, %v2699
    %v4568 = vmax.f32 %v1155, %v2890
    %v4569 = vmax.f32 %v1346, %v2892
    %v4570 = vmax.f32 %v1348, %v3083
    %v4571 = vmax.f32 %v1539, %v3085
    %v4572 = vmax.f32 %v1541, %v3276
    %v4573 = vmax.f32 %v1732, %v3278
    %v4574 = vmax.f32 %v1734, %v3469
    %v4575 = vmax.f32 %v1925, %v3471
    %v4576 = vmax.f32 %v1927, %v3662
    %v4577 = vmax.f32 %v2118, %v3664
    %v4578 = vmax.f32 %v2120, %v3855
    %v4579 = vmax.f32 %v2311, %v3857
    %v4580 = vmax.f32 %v2313, %v4048
    %v4581 = vmax.f32 %v2504, %v4050
    %v4582 = vmax.f32 %v2506, %v4241
    %v4583 = vmax.f32 %v2697, %v4243
    %v4584 = vmax.f32 %v1157, %v2703
    %v4585 = vmax.f32 %v1159, %v2894
    %v4586 = vmax.f32 %v1350, %v2896
    %v4587 = vmax.f32 %v1352, %v3087
    %v4588 = vmax.f32 %v1543, %v3089
    %v4589 = vmax.f32 %v1545, %v3280
    %v4590 = vmax.f32 %v1736, %v3282
    %v4591 = vmax.f32 %v1738, %v3473
    %v4592 = vmax.f32 %v1929, %v3475
    %v4593 = vmax.f32 %v1931, %v3666
    %v4594 = vmax.f32 %v2122, %v3668
    %v4595 = vmax.f32 %v2124, %v3859
    %v4596 = vmax.f32 %v2315, %v3861
    %v4597 = vmax.f32 %v2317, %v4052
    %v4598 = vmax.f32 %v2508, %v4054
    %v4599 = vmax.f32 %v2510, %v4245
    %v4600 = vmax.f32 %v2701, %v4247
    %v4601 = vmax.f32 %v1163, %v2709
    %v4602 = vmax.f32 %v1165, %v2900
    %v4603 = vmax.f32 %v1356, %v2902
    %v4604 = vmax.f32 %v1358, %v3093
    %v4605 = vmax.f32 %v1549, %v3095
    %v4606 = vmax.f32 %v1551, %v3286
    %v4607 = vmax.f32 %v1742, %v3288
    %v4608 = vmax.f32 %v1744, %v3479
    %v4609 = vmax.f32 %v1935, %v3481
    %v4610 = vmax.f32 %v1937, %v3672
    %v4611 = vmax.f32 %v2128, %v3674
    %v4612 = vmax.f32 %v2130, %v3865
    %v4613 = vmax.f32 %v2321, %v3867
    %v4614 = vmax.f32 %v2323, %v4058
    %v4615 = vmax.f32 %v2514, %v4060
    %v4616 = vmax.f32 %v2516, %v4251
    %v4617 = vmax.f32 %v2707, %v4253
    %v4618 = vmax.f32 %v1167, %v2713
    %v4619 = vmax.f32 %v1169, %v2904
    %v4620 = vmax.f32 %v1360, %v2906
    %v4621 = vmax.f32 %v1362, %v3097
    %v4622 = vmax.f32 %v1553, %v3099
    %v4623 = vmax.f32 %v1555, %v3290
    %v4624 = vmax.f32 %v1746, %v3292
    %v4625 = vmax.f32 %v1748, %v3483
    %v4626 = vmax.f32 %v1939, %v3485
    %v4627 = vmax.f32 %v1941, %v3676
    %v4628 = vmax.f32 %v2132, %v3678
    %v4629 = vmax.f32 %v2134, %v3869
    %v4630 = vmax.f32 %v2325, %v3871
    %v4631 = vmax.f32 %v2327, %v4062
    %v4632 = vmax.f32 %v2518, %v4064
    %v4633 = vmax.f32 %v2520, %v4255
    %v4634 = vmax.f32 %v2711, %v4257
    %v4635 = vmax.f32 %v1173, %v2719
    %v4636 = vmax.f32 %v1175, %v2910
    %v4637 = vmax.f32 %v1366, %v2912
    %v4638 = vmax.f32 %v1368, %v3103
    %v4639 = vmax.f32 %v1559, %v3105
    %v4640 = vmax.f32 %v1561, %v3296
    %v4641 = vmax.f32 %v1752, %v3298
    %v4642 = vmax.f32 %v1754, %v3489
    %v4643 = vmax.f32 %v1945, %v3491
    %v4644 = vmax.f32 %v1947, %v3682
    %v4645 = vmax.f32 %v2138, %v3684
    %v4646 = vmax.f32 %v2140, %v3875
    %v4647 = vmax.f32 %v2331, %v3877
    %v4648 = vmax.f32 %v2333, %v4068
    %v4649 = vmax.f32 %v2524, %v4070
    %v4650 = vmax.f32 %v2526, %v4261
    %v4651 = vmax.f32 %v2717, %v4263
    %v4652 = vmax.f32 %v1177, %v2723
    %v4653 = vmax.f32 %v1179, %v2914
    %v4654 = vmax.f32 %v1370, %v2916
    %v4655 = vmax.f32 %v1372, %v3107
    %v4656 = vmax.f32 %v1563, %v3109
    %v4657 = vmax.f32 %v1565, %v3300
    %v4658 = vmax.f32 %v1756, %v3302
    %v4659 = vmax.f32 %v1758, %v3493
    %v4660 = vmax.f32 %v1949, %v3495
    %v4661 = vmax.f32 %v1951, %v3686
    %v4662 = vmax.f32 %v2142, %v3688
    %v4663 = vmax.f32 %v2144, %v3879
    %v4664 = vmax.f32 %v2335, %v3881
    %v4665 = vmax.f32 %v2337, %v4072
    %v4666 = vmax.f32 %v2528, %v4074
    %v4667 = vmax.f32 %v2530, %v4265
    %v4668 = vmax.f32 %v2721, %v4267
    %v4669 = vmax.f32 %v1183, %v2729
    %v4670 = vmax.f32 %v1185, %v2920
    %v4671 = vmax.f32 %v1376, %v2922
    %v4672 = vmax.f32 %v1378, %v3113
    %v4673 = vmax.f32 %v1569, %v3115
    %v4674 = vmax.f32 %v1571, %v3306
    %v4675 = vmax.f32 %v1762, %v3308
    %v4676 = vmax.f32 %v1764, %v3499
    %v4677 = vmax.f32 %v1955, %v3501
    %v4678 = vmax.f32 %v1957, %v3692
    %v4679 = vmax.f32 %v2148, %v3694
    %v4680 = vmax.f32 %v2150, %v3885
    %v4681 = vmax.f32 %v2341, %v3887
    %v4682 = vmax.f32 %v2343, %v4078
    %v4683 = vmax.f32 %v2534, %v4080
    %v4684 = vmax.f32 %v2536, %v4271
    %v4685 = vmax.f32 %v2727, %v4273
    %v4686 = vmax.f32 %v1187, %v2733
    %v4687 = vmax.f32 %v1189, %v2924
    %v4688 = vmax.f32 %v1380, %v2926
    %v4689 = vmax.f32 %v1382, %v3117
    %v4690 = vmax.f32 %v1573, %v3119
    %v4691 = vmax.f32 %v1575, %v3310
    %v4692 = vmax.f32 %v1766, %v3312
    %v4693 = vmax.f32 %v1768, %v3503
    %v4694 = vmax.f32 %v1959, %v3505
    %v4695 = vmax.f32 %v1961, %v3696
    %v4696 = vmax.f32 %v2152, %v3698
    %v4697 = vmax.f32 %v2154, %v3889
    %v4698 = vmax.f32 %v2345, %v3891
    %v4699 = vmax.f32 %v2347, %v4082
    %v4700 = vmax.f32 %v2538, %v4084
    %v4701 = vmax.f32 %v2540, %v4275
    %v4702 = vmax.f32 %v2731, %v4277
    %v4703 = vmax.f32 %v1193, %v2739
    %v4704 = vmax.f32 %v1195, %v2930
    %v4705 = vmax.f32 %v1386, %v2932
    %v4706 = vmax.f32 %v1388, %v3123
    %v4707 = vmax.f32 %v1579, %v3125
    %v4708 = vmax.f32 %v1581, %v3316
    %v4709 = vmax.f32 %v1772, %v3318
    %v4710 = vmax.f32 %v1774, %v3509
    %v4711 = vmax.f32 %v1965, %v3511
    %v4712 = vmax.f32 %v1967, %v3702
    %v4713 = vmax.f32 %v2158, %v3704
    %v4714 = vmax.f32 %v2160, %v3895
    %v4715 = vmax.f32 %v2351, %v3897
    %v4716 = vmax.f32 %v2353, %v4088
    %v4717 = vmax.f32 %v2544, %v4090
    %v4718 = vmax.f32 %v2546, %v4281
    %v4719 = vmax.f32 %v2737, %v4283
    %v4720 = vmax.f32 %v1197, %v2743
    %v4721 = vmax.f32 %v1199, %v2934
    %v4722 = vmax.f32 %v1390, %v2936
    %v4723 = vmax.f32 %v1392, %v3127
    %v4724 = vmax.f32 %v1583, %v3129
    %v4725 = vmax.f32 %v1585, %v3320
    %v4726 = vmax.f32 %v1776, %v3322
    %v4727 = vmax.f32 %v1778, %v3513
    %v4728 = vmax.f32 %v1969, %v3515
    %v4729 = vmax.f32 %v1971, %v3706
    %v4730 = vmax.f32 %v2162, %v3708
    %v4731 = vmax.f32 %v2164, %v3899
    %v4732 = vmax.f32 %v2355, %v3901
    %v4733 = vmax.f32 %v2357, %v4092
    %v4734 = vmax.f32 %v2548, %v4094
    %v4735 = vmax.f32 %v2550, %v4285
    %v4736 = vmax.f32 %v2741, %v4287
    %v4737 = vmax.f32 %v1203, %v2749
    %v4738 = vmax.f32 %v1205, %v2940
    %v4739 = vmax.f32 %v1396, %v2942
    %v4740 = vmax.f32 %v1398, %v3133
    %v4741 = vmax.f32 %v1589, %v3135
    %v4742 = vmax.f32 %v1591, %v3326
    %v4743 = vmax.f32 %v1782, %v3328
    %v4744 = vmax.f32 %v1784, %v3519
    %v4745 = vmax.f32 %v1975, %v3521
    %v4746 = vmax.f32 %v1977, %v3712
    %v4747 = vmax.f32 %v2168, %v3714
    %v4748 = vmax.f32 %v2170, %v3905
    %v4749 = vmax.f32 %v2361, %v3907
    %v4750 = vmax.f32 %v2363, %v4098
    %v4751 = vmax.f32 %v2554, %v4100
    %v4752 = vmax.f32 %v2556, %v4291
    %v4753 = vmax.f32 %v2747, %v4293
    %v4754 = vmax.f32 %v1207, %v2753
    %v4755 = vmax.f32 %v1209, %v2944
    %v4756 = vmax.f32 %v1400, %v2946
    %v4757 = vmax.f32 %v1402, %v3137
    %v4758 = vmax.f32 %v1593, %v3139
    %v4759 = vmax.f32 %v1595, %v3330
    %v4760 = vmax.f32 %v1786, %v3332
    %v4761 = vmax.f32 %v1788, %v3523
    %v4762 = vmax.f32 %v1979, %v3525
    %v4763 = vmax.f32 %v1981, %v3716
    %v4764 = vmax.f32 %v2172, %v3718
    %v4765 = vmax.f32 %v2174, %v3909
    %v4766 = vmax.f32 %v2365, %v3911
    %v4767 = vmax.f32 %v2367, %v4102
    %v4768 = vmax.f32 %v2558, %v4104
    %v4769 = vmax.f32 %v2560, %v4295
    %v4770 = vmax.f32 %v2751, %v4297
    %v4771 = vmax.f32 %v1213, %v2759
    %v4772 = vmax.f32 %v1215, %v2950
    %v4773 = vmax.f32 %v1406, %v2952
    %v4774 = vmax.f32 %v1408, %v3143
    %v4775 = vmax.f32 %v1599, %v3145
    %v4776 = vmax.f32 %v1601, %v3336
    %v4777 = vmax.f32 %v1792, %v3338
    %v4778 = vmax.f32 %v1794, %v3529
    %v4779 = vmax.f32 %v1985, %v3531
    %v4780 = vmax.f32 %v1987, %v3722
    %v4781 = vmax.f32 %v2178, %v3724
    %v4782 = vmax.f32 %v2180, %v3915
    %v4783 = vmax.f32 %v2371, %v3917
    %v4784 = vmax.f32 %v2373, %v4108
    %v4785 = vmax.f32 %v2564, %v4110
    %v4786 = vmax.f32 %v2566, %v4301
    %v4787 = vmax.f32 %v2757, %v4303
    %v4788 = vmax.f32 %v1217, %v2763
    %v4789 = vmax.f32 %v1219, %v2954
    %v4790 = vmax.f32 %v1410, %v2956
    %v4791 = vmax.f32 %v1412, %v3147
    %v4792 = vmax.f32 %v1603, %v3149
    %v4793 = vmax.f32 %v1605, %v3340
    %v4794 = vmax.f32 %v1796, %v3342
    %v4795 = vmax.f32 %v1798, %v3533
    %v4796 = vmax.f32 %v1989, %v3535
    %v4797 = vmax.f32 %v1991, %v3726
    %v4798 = vmax.f32 %v2182, %v3728
    %v4799 = vmax.f32 %v2184, %v3919
    %v4800 = vmax.f32 %v2375, %v3921
    %v4801 = vmax.f32 %v2377, %v4112
    %v4802 = vmax.f32 %v2568, %v4114
    %v4803 = vmax.f32 %v2570, %v4305
    %v4804 = vmax.f32 %v2761, %v4307
    %v4805 = vmax.f32 %v1223, %v2769
    %v4806 = vmax.f32 %v1225, %v2960
    %v4807 = vmax.f32 %v1416, %v2962
    %v4808 = vmax.f32 %v1418, %v3153
    %v4809 = vmax.f32 %v1609, %v3155
    %v4810 = vmax.f32 %v1611, %v3346
    %v4811 = vmax.f32 %v1802, %v3348
    %v4812 = vmax.f32 %v1804, %v3539
    %v4813 = vmax.f32 %v1995, %v3541
    %v4814 = vmax.f32 %v1997, %v3732
    %v4815 = vmax.f32 %v2188, %v3734
    %v4816 = vmax.f32 %v2190, %v3925
    %v4817 = vmax.f32 %v2381, %v3927
    %v4818 = vmax.f32 %v2383, %v4118
    %v4819 = vmax.f32 %v2574, %v4120
    %v4820 = vmax.f32 %v2576, %v4311
    %v4821 = vmax.f32 %v2767, %v4313
    %v4822 = vmax.f32 %v1227, %v2773
    %v4823 = vmax.f32 %v1229, %v2964
    %v4824 = vmax.f32 %v1420, %v2966
    %v4825 = vmax.f32 %v1422, %v3157
    %v4826 = vmax.f32 %v1613, %v3159
    %v4827 = vmax.f32 %v1615, %v3350
    %v4828 = vmax.f32 %v1806, %v3352
    %v4829 = vmax.f32 %v1808, %v3543
    %v4830 = vmax.f32 %v1999, %v3545
    %v4831 = vmax.f32 %v2001, %v3736
    %v4832 = vmax.f32 %v2192, %v3738
    %v4833 = vmax.f32 %v2194, %v3929
    %v4834 = vmax.f32 %v2385, %v3931
    %v4835 = vmax.f32 %v2387, %v4122
    %v4836 = vmax.f32 %v2578, %v4124
    %v4837 = vmax.f32 %v2580, %v4315
    %v4838 = vmax.f32 %v2771, %v4317
    %v4839 = vmax.f32 %v1233, %v2779
    %v4840 = vmax.f32 %v1235, %v2970
    %v4841 = vmax.f32 %v1426, %v2972
    %v4842 = vmax.f32 %v1428, %v3163
    %v4843 = vmax.f32 %v1619, %v3165
    %v4844 = vmax.f32 %v1621, %v3356
    %v4845 = vmax.f32 %v1812, %v3358
    %v4846 = vmax.f32 %v1814, %v3549
    %v4847 = vmax.f32 %v2005, %v3551
    %v4848 = vmax.f32 %v2007, %v3742
    %v4849 = vmax.f32 %v2198, %v3744
    %v4850 = vmax.f32 %v2200, %v3935
    %v4851 = vmax.f32 %v2391, %v3937
    %v4852 = vmax.f32 %v2393, %v4128
    %v4853 = vmax.f32 %v2584, %v4130
    %v4854 = vmax.f32 %v2586, %v4321
    %v4855 = vmax.f32 %v2777, %v4323
    %v4856 = vmax.f32 %v1237, %v2783
    %v4857 = vmax.f32 %v1239, %v2974
    %v4858 = vmax.f32 %v1430, %v2976
    %v4859 = vmax.f32 %v1432, %v3167
    %v4860 = vmax.f32 %v1623, %v3169
    %v4861 = vmax.f32 %v1625, %v3360
    %v4862 = vmax.f32 %v1816, %v3362
    %v4863 = vmax.f32 %v1818, %v3553
    %v4864 = vmax.f32 %v2009, %v3555
    %v4865 = vmax.f32 %v2011, %v3746
    %v4866 = vmax.f32 %v2202, %v3748
    %v4867 = vmax.f32 %v2204, %v3939
    %v4868 = vmax.f32 %v2395, %v3941
    %v4869 = vmax.f32 %v2397, %v4132
    %v4870 = vmax.f32 %v2588, %v4134
    %v4871 = vmax.f32 %v2590, %v4325
    %v4872 = vmax.f32 %v2781, %v4327
    %v4873 = vld [vmem:[#allocation5] sm:$0xff]
    %v4874 = vld [vmem:[#allocation5 + $0x8] sm:$0xff]
    %v4875 = vld [vmem:[#allocation5 + $0x10] sm:$0x1]
    %v4879 = vlaneseq
    %v4880 = vshrl.u32 %v4879, 7
    %v4881 = vsub.s32 0, %v4880
    %v4882 = vrot.slane %v4873, %v4881
    %v4883 = vlaneseq
    %v4884 = vshrl.u32 %v4883, 7
    %v4885 = vsub.s32 1, %v4884
    %v4886 = vrot.slane %v4873, %v4885
    %v4887 = vlaneseq
    %v4888 = vshrl.u32 %v4887, 7
    %v4889 = vsub.s32 2, %v4888
    %v4890 = vrot.slane %v4873, %v4889
    %v4891 = vlaneseq
    %v4892 = vshrl.u32 %v4891, 7
    %v4893 = vsub.s32 3, %v4892
    %v4894 = vrot.slane %v4873, %v4893
    %v4895 = vlaneseq
    %v4896 = vshrl.u32 %v4895, 7
    %v4897 = vsub.s32 4, %v4896
    %v4898 = vrot.slane %v4873, %v4897
    %v4899 = vlaneseq
    %v4900 = vshrl.u32 %v4899, 7
    %v4901 = vsub.s32 5, %v4900
    %v4902 = vrot.slane %v4873, %v4901
    %v4903 = vlaneseq
    %v4904 = vshrl.u32 %v4903, 7
    %v4905 = vsub.s32 6, %v4904
    %v4906 = vrot.slane %v4873, %v4905
    %v4907 = vlaneseq
    %v4908 = vshrl.u32 %v4907, 7
    %v4909 = vsub.s32 7, %v4908
    %v4910 = vrot.slane %v4873, %v4909
    %v4911 = vlaneseq
    %v4912 = vshrl.u32 %v4911, 7
    %v4913 = vsub.s32 0, %v4912
    %v4914 = vrot.slane %v4874, %v4913
    %v4915 = vlaneseq
    %v4916 = vshrl.u32 %v4915, 7
    %v4917 = vsub.s32 1, %v4916
    %v4918 = vrot.slane %v4874, %v4917
    %v4919 = vlaneseq
    %v4920 = vshrl.u32 %v4919, 7
    %v4921 = vsub.s32 2, %v4920
    %v4922 = vrot.slane %v4874, %v4921
    %v4923 = vlaneseq
    %v4924 = vshrl.u32 %v4923, 7
    %v4925 = vsub.s32 3, %v4924
    %v4926 = vrot.slane %v4874, %v4925
    %v4927 = vlaneseq
    %v4928 = vshrl.u32 %v4927, 7
    %v4929 = vsub.s32 4, %v4928
    %v4930 = vrot.slane %v4874, %v4929
    %v4931 = vlaneseq
    %v4932 = vshrl.u32 %v4931, 7
    %v4933 = vsub.s32 5, %v4932
    %v4934 = vrot.slane %v4874, %v4933
    %v4935 = vlaneseq
    %v4936 = vshrl.u32 %v4935, 7
    %v4937 = vsub.s32 6, %v4936
    %v4938 = vrot.slane %v4874, %v4937
    %v4939 = vlaneseq
    %v4940 = vshrl.u32 %v4939, 7
    %v4941 = vsub.s32 7, %v4940
    %v4942 = vrot.slane %v4874, %v4941
    %v4943 = vlaneseq
    %v4944 = vshrl.u32 %v4943, 7
    %v4945 = vsub.s32 0, %v4944
    %v4946 = vrot.slane %v4875, %v4945
    %v4964 = vadd.f32 %v4329, %v4882
    %v4965 = vadd.f32 %v4330, %v4886
    %v4966 = vadd.f32 %v4331, %v4890
    %v4967 = vadd.f32 %v4332, %v4894
    %v4968 = vadd.f32 %v4333, %v4898
    %v4969 = vadd.f32 %v4334, %v4902
    %v4970 = vadd.f32 %v4335, %v4906
    %v4971 = vadd.f32 %v4336, %v4910
    %v4972 = vadd.f32 %v4337, %v4914
    %v4973 = vadd.f32 %v4338, %v4918
    %v4974 = vadd.f32 %v4339, %v4922
    %v4975 = vadd.f32 %v4340, %v4926
    %v4976 = vadd.f32 %v4341, %v4930
    %v4977 = vadd.f32 %v4342, %v4934
    %v4978 = vadd.f32 %v4343, %v4938
    %v4979 = vadd.f32 %v4344, %v4942
    %v4980 = vadd.f32 %v4345, %v4946
    %v4981 = vadd.f32 %v4346, %v4882
    %v4982 = vadd.f32 %v4347, %v4886
    %v4983 = vadd.f32 %v4348, %v4890
    %v4984 = vadd.f32 %v4349, %v4894
    %v4985 = vadd.f32 %v4350, %v4898
    %v4986 = vadd.f32 %v4351, %v4902
    %v4987 = vadd.f32 %v4352, %v4906
    %v4988 = vadd.f32 %v4353, %v4910
    %v4989 = vadd.f32 %v4354, %v4914
    %v4990 = vadd.f32 %v4355, %v4918
    %v4991 = vadd.f32 %v4356, %v4922
    %v4992 = vadd.f32 %v4357, %v4926
    %v4993 = vadd.f32 %v4358, %v4930
    %v4994 = vadd.f32 %v4359, %v4934
    %v4995 = vadd.f32 %v4360, %v4938
    %v4996 = vadd.f32 %v4361, %v4942
    %v4997 = vadd.f32 %v4362, %v4946
    %v4998 = vadd.f32 %v4363, %v4882
    %v4999 = vadd.f32 %v4364, %v4886
    %v5000 = vadd.f32 %v4365, %v4890
    %v5001 = vadd.f32 %v4366, %v4894
    %v5002 = vadd.f32 %v4367, %v4898
    %v5003 = vadd.f32 %v4368, %v4902
    %v5004 = vadd.f32 %v4369, %v4906
    %v5005 = vadd.f32 %v4370, %v4910
    %v5006 = vadd.f32 %v4371, %v4914
    %v5007 = vadd.f32 %v4372, %v4918
    %v5008 = vadd.f32 %v4373, %v4922
    %v5009 = vadd.f32 %v4374, %v4926
    %v5010 = vadd.f32 %v4375, %v4930
    %v5011 = vadd.f32 %v4376, %v4934
    %v5012 = vadd.f32 %v4377, %v4938
    %v5013 = vadd.f32 %v4378, %v4942
    %v5014 = vadd.f32 %v4379, %v4946
    %v5015 = vadd.f32 %v4380, %v4882
    %v5016 = vadd.f32 %v4381, %v4886
    %v5017 = vadd.f32 %v4382, %v4890
    %v5018 = vadd.f32 %v4383, %v4894
    %v5019 = vadd.f32 %v4384, %v4898
    %v5020 = vadd.f32 %v4385, %v4902
    %v5021 = vadd.f32 %v4386, %v4906
    %v5022 = vadd.f32 %v4387, %v4910
    %v5023 = vadd.f32 %v4388, %v4914
    %v5024 = vadd.f32 %v4389, %v4918
    %v5025 = vadd.f32 %v4390, %v4922
    %v5026 = vadd.f32 %v4391, %v4926
    %v5027 = vadd.f32 %v4392, %v4930
    %v5028 = vadd.f32 %v4393, %v4934
    %v5029 = vadd.f32 %v4394, %v4938
    %v5030 = vadd.f32 %v4395, %v4942
    %v5031 = vadd.f32 %v4396, %v4946
    %v5032 = vadd.f32 %v4397, %v4882
    %v5033 = vadd.f32 %v4398, %v4886
    %v5034 = vadd.f32 %v4399, %v4890
    %v5035 = vadd.f32 %v4400, %v4894
    %v5036 = vadd.f32 %v4401, %v4898
    %v5037 = vadd.f32 %v4402, %v4902
    %v5038 = vadd.f32 %v4403, %v4906
    %v5039 = vadd.f32 %v4404, %v4910
    %v5040 = vadd.f32 %v4405, %v4914
    %v5041 = vadd.f32 %v4406, %v4918
    %v5042 = vadd.f32 %v4407, %v4922
    %v5043 = vadd.f32 %v4408, %v4926
    %v5044 = vadd.f32 %v4409, %v4930
    %v5045 = vadd.f32 %v4410, %v4934
    %v5046 = vadd.f32 %v4411, %v4938
    %v5047 = vadd.f32 %v4412, %v4942
    %v5048 = vadd.f32 %v4413, %v4946
    %v5049 = vadd.f32 %v4414, %v4882
    %v5050 = vadd.f32 %v4415, %v4886
    %v5051 = vadd.f32 %v4416, %v4890
    %v5052 = vadd.f32 %v4417, %v4894
    %v5053 = vadd.f32 %v4418, %v4898
    %v5054 = vadd.f32 %v4419, %v4902
    %v5055 = vadd.f32 %v4420, %v4906
    %v5056 = vadd.f32 %v4421, %v4910
    %v5057 = vadd.f32 %v4422, %v4914
    %v5058 = vadd.f32 %v4423, %v4918
    %v5059 = vadd.f32 %v4424, %v4922
    %v5060 = vadd.f32 %v4425, %v4926
    %v5061 = vadd.f32 %v4426, %v4930
    %v5062 = vadd.f32 %v4427, %v4934
    %v5063 = vadd.f32 %v4428, %v4938
    %v5064 = vadd.f32 %v4429, %v4942
    %v5065 = vadd.f32 %v4430, %v4946
    %v5066 = vadd.f32 %v4431, %v4882
    %v5067 = vadd.f32 %v4432, %v4886
    %v5068 = vadd.f32 %v4433, %v4890
    %v5069 = vadd.f32 %v4434, %v4894
    %v5070 = vadd.f32 %v4435, %v4898
    %v5071 = vadd.f32 %v4436, %v4902
    %v5072 = vadd.f32 %v4437, %v4906
    %v5073 = vadd.f32 %v4438, %v4910
    %v5074 = vadd.f32 %v4439, %v4914
    %v5075 = vadd.f32 %v4440, %v4918
    %v5076 = vadd.f32 %v4441, %v4922
    %v5077 = vadd.f32 %v4442, %v4926
    %v5078 = vadd.f32 %v4443, %v4930
    %v5079 = vadd.f32 %v4444, %v4934
    %v5080 = vadd.f32 %v4445, %v4938
    %v5081 = vadd.f32 %v4446, %v4942
    %v5082 = vadd.f32 %v4447, %v4946
    %v5083 = vadd.f32 %v4448, %v4882
    %v5084 = vadd.f32 %v4449, %v4886
    %v5085 = vadd.f32 %v4450, %v4890
    %v5086 = vadd.f32 %v4451, %v4894
    %v5087 = vadd.f32 %v4452, %v4898
    %v5088 = vadd.f32 %v4453, %v4902
    %v5089 = vadd.f32 %v4454, %v4906
    %v5090 = vadd.f32 %v4455, %v4910
    %v5091 = vadd.f32 %v4456, %v4914
    %v5092 = vadd.f32 %v4457, %v4918
    %v5093 = vadd.f32 %v4458, %v4922
    %v5094 = vadd.f32 %v4459, %v4926
    %v5095 = vadd.f32 %v4460, %v4930
    %v5096 = vadd.f32 %v4461, %v4934
    %v5097 = vadd.f32 %v4462, %v4938
    %v5098 = vadd.f32 %v4463, %v4942
    %v5099 = vadd.f32 %v4464, %v4946
    %v5100 = vadd.f32 %v4465, %v4882
    %v5101 = vadd.f32 %v4466, %v4886
    %v5102 = vadd.f32 %v4467, %v4890
    %v5103 = vadd.f32 %v4468, %v4894
    %v5104 = vadd.f32 %v4469, %v4898
    %v5105 = vadd.f32 %v4470, %v4902
    %v5106 = vadd.f32 %v4471, %v4906
    %v5107 = vadd.f32 %v4472, %v4910
    %v5108 = vadd.f32 %v4473, %v4914
    %v5109 = vadd.f32 %v4474, %v4918
    %v5110 = vadd.f32 %v4475, %v4922
    %v5111 = vadd.f32 %v4476, %v4926
    %v5112 = vadd.f32 %v4477, %v4930
    %v5113 = vadd.f32 %v4478, %v4934
    %v5114 = vadd.f32 %v4479, %v4938
    %v5115 = vadd.f32 %v4480, %v4942
    %v5116 = vadd.f32 %v4481, %v4946
    %v5117 = vadd.f32 %v4482, %v4882
    %v5118 = vadd.f32 %v4483, %v4886
    %v5119 = vadd.f32 %v4484, %v4890
    %v5120 = vadd.f32 %v4485, %v4894
    %v5121 = vadd.f32 %v4486, %v4898
    %v5122 = vadd.f32 %v4487, %v4902
    %v5123 = vadd.f32 %v4488, %v4906
    %v5124 = vadd.f32 %v4489, %v4910
    %v5125 = vadd.f32 %v4490, %v4914
    %v5126 = vadd.f32 %v4491, %v4918
    %v5127 = vadd.f32 %v4492, %v4922
    %v5128 = vadd.f32 %v4493, %v4926
    %v5129 = vadd.f32 %v4494, %v4930
    %v5130 = vadd.f32 %v4495, %v4934
    %v5131 = vadd.f32 %v4496, %v4938
    %v5132 = vadd.f32 %v4497, %v4942
    %v5133 = vadd.f32 %v4498, %v4946
    %v5134 = vadd.f32 %v4499, %v4882
    %v5135 = vadd.f32 %v4500, %v4886
    %v5136 = vadd.f32 %v4501, %v4890
    %v5137 = vadd.f32 %v4502, %v4894
    %v5138 = vadd.f32 %v4503, %v4898
    %v5139 = vadd.f32 %v4504, %v4902
    %v5140 = vadd.f32 %v4505, %v4906
    %v5141 = vadd.f32 %v4506, %v4910
    %v5142 = vadd.f32 %v4507, %v4914
    %v5143 = vadd.f32 %v4508, %v4918
    %v5144 = vadd.f32 %v4509, %v4922
    %v5145 = vadd.f32 %v4510, %v4926
    %v5146 = vadd.f32 %v4511, %v4930
    %v5147 = vadd.f32 %v4512, %v4934
    %v5148 = vadd.f32 %v4513, %v4938
    %v5149 = vadd.f32 %v4514, %v4942
    %v5150 = vadd.f32 %v4515, %v4946
    %v5151 = vadd.f32 %v4516, %v4882
    %v5152 = vadd.f32 %v4517, %v4886
    %v5153 = vadd.f32 %v4518, %v4890
    %v5154 = vadd.f32 %v4519, %v4894
    %v5155 = vadd.f32 %v4520, %v4898
    %v5156 = vadd.f32 %v4521, %v4902
    %v5157 = vadd.f32 %v4522, %v4906
    %v5158 = vadd.f32 %v4523, %v4910
    %v5159 = vadd.f32 %v4524, %v4914
    %v5160 = vadd.f32 %v4525, %v4918
    %v5161 = vadd.f32 %v4526, %v4922
    %v5162 = vadd.f32 %v4527, %v4926
    %v5163 = vadd.f32 %v4528, %v4930
    %v5164 = vadd.f32 %v4529, %v4934
    %v5165 = vadd.f32 %v4530, %v4938
    %v5166 = vadd.f32 %v4531, %v4942
    %v5167 = vadd.f32 %v4532, %v4946
    %v5168 = vadd.f32 %v4533, %v4882
    %v5169 = vadd.f32 %v4534, %v4886
    %v5170 = vadd.f32 %v4535, %v4890
    %v5171 = vadd.f32 %v4536, %v4894
    %v5172 = vadd.f32 %v4537, %v4898
    %v5173 = vadd.f32 %v4538, %v4902
    %v5174 = vadd.f32 %v4539, %v4906
    %v5175 = vadd.f32 %v4540, %v4910
    %v5176 = vadd.f32 %v4541, %v4914
    %v5177 = vadd.f32 %v4542, %v4918
    %v5178 = vadd.f32 %v4543, %v4922
    %v5179 = vadd.f32 %v4544, %v4926
    %v5180 = vadd.f32 %v4545, %v4930
    %v5181 = vadd.f32 %v4546, %v4934
    %v5182 = vadd.f32 %v4547, %v4938
    %v5183 = vadd.f32 %v4548, %v4942
    %v5184 = vadd.f32 %v4549, %v4946
    %v5185 = vadd.f32 %v4550, %v4882
    %v5186 = vadd.f32 %v4551, %v4886
    %v5187 = vadd.f32 %v4552, %v4890
    %v5188 = vadd.f32 %v4553, %v4894
    %v5189 = vadd.f32 %v4554, %v4898
    %v5190 = vadd.f32 %v4555, %v4902
    %v5191 = vadd.f32 %v4556, %v4906
    %v5192 = vadd.f32 %v4557, %v4910
    %v5193 = vadd.f32 %v4558, %v4914
    %v5194 = vadd.f32 %v4559, %v4918
    %v5195 = vadd.f32 %v4560, %v4922
    %v5196 = vadd.f32 %v4561, %v4926
    %v5197 = vadd.f32 %v4562, %v4930
    %v5198 = vadd.f32 %v4563, %v4934
    %v5199 = vadd.f32 %v4564, %v4938
    %v5200 = vadd.f32 %v4565, %v4942
    %v5201 = vadd.f32 %v4566, %v4946
    %v5202 = vadd.f32 %v4567, %v4882
    %v5203 = vadd.f32 %v4568, %v4886
    %v5204 = vadd.f32 %v4569, %v4890
    %v5205 = vadd.f32 %v4570, %v4894
    %v5206 = vadd.f32 %v4571, %v4898
    %v5207 = vadd.f32 %v4572, %v4902
    %v5208 = vadd.f32 %v4573, %v4906
    %v5209 = vadd.f32 %v4574, %v4910
    %v5210 = vadd.f32 %v4575, %v4914
    %v5211 = vadd.f32 %v4576, %v4918
    %v5212 = vadd.f32 %v4577, %v4922
    %v5213 = vadd.f32 %v4578, %v4926
    %v5214 = vadd.f32 %v4579, %v4930
    %v5215 = vadd.f32 %v4580, %v4934
    %v5216 = vadd.f32 %v4581, %v4938
    %v5217 = vadd.f32 %v4582, %v4942
    %v5218 = vadd.f32 %v4583, %v4946
    %v5219 = vadd.f32 %v4584, %v4882
    %v5220 = vadd.f32 %v4585, %v4886
    %v5221 = vadd.f32 %v4586, %v4890
    %v5222 = vadd.f32 %v4587, %v4894
    %v5223 = vadd.f32 %v4588, %v4898
    %v5224 = vadd.f32 %v4589, %v4902
    %v5225 = vadd.f32 %v4590, %v4906
    %v5226 = vadd.f32 %v4591, %v4910
    %v5227 = vadd.f32 %v4592, %v4914
    %v5228 = vadd.f32 %v4593, %v4918
    %v5229 = vadd.f32 %v4594, %v4922
    %v5230 = vadd.f32 %v4595, %v4926
    %v5231 = vadd.f32 %v4596, %v4930
    %v5232 = vadd.f32 %v4597, %v4934
    %v5233 = vadd.f32 %v4598, %v4938
    %v5234 = vadd.f32 %v4599, %v4942
    %v5235 = vadd.f32 %v4600, %v4946
    %v5236 = vadd.f32 %v4601, %v4882
    %v5237 = vadd.f32 %v4602, %v4886
    %v5238 = vadd.f32 %v4603, %v4890
    %v5239 = vadd.f32 %v4604, %v4894
    %v5240 = vadd.f32 %v4605, %v4898
    %v5241 = vadd.f32 %v4606, %v4902
    %v5242 = vadd.f32 %v4607, %v4906
    %v5243 = vadd.f32 %v4608, %v4910
    %v5244 = vadd.f32 %v4609, %v4914
    %v5245 = vadd.f32 %v4610, %v4918
    %v5246 = vadd.f32 %v4611, %v4922
    %v5247 = vadd.f32 %v4612, %v4926
    %v5248 = vadd.f32 %v4613, %v4930
    %v5249 = vadd.f32 %v4614, %v4934
    %v5250 = vadd.f32 %v4615, %v4938
    %v5251 = vadd.f32 %v4616, %v4942
    %v5252 = vadd.f32 %v4617, %v4946
    %v5253 = vadd.f32 %v4618, %v4882
    %v5254 = vadd.f32 %v4619, %v4886
    %v5255 = vadd.f32 %v4620, %v4890
    %v5256 = vadd.f32 %v4621, %v4894
    %v5257 = vadd.f32 %v4622, %v4898
    %v5258 = vadd.f32 %v4623, %v4902
    %v5259 = vadd.f32 %v4624, %v4906
    %v5260 = vadd.f32 %v4625, %v4910
    %v5261 = vadd.f32 %v4626, %v4914
    %v5262 = vadd.f32 %v4627, %v4918
    %v5263 = vadd.f32 %v4628, %v4922
    %v5264 = vadd.f32 %v4629, %v4926
    %v5265 = vadd.f32 %v4630, %v4930
    %v5266 = vadd.f32 %v4631, %v4934
    %v5267 = vadd.f32 %v4632, %v4938
    %v5268 = vadd.f32 %v4633, %v4942
    %v5269 = vadd.f32 %v4634, %v4946
    %v5270 = vadd.f32 %v4635, %v4882
    %v5271 = vadd.f32 %v4636, %v4886
    %v5272 = vadd.f32 %v4637, %v4890
    %v5273 = vadd.f32 %v4638, %v4894
    %v5274 = vadd.f32 %v4639, %v4898
    %v5275 = vadd.f32 %v4640, %v4902
    %v5276 = vadd.f32 %v4641, %v4906
    %v5277 = vadd.f32 %v4642, %v4910
    %v5278 = vadd.f32 %v4643, %v4914
    %v5279 = vadd.f32 %v4644, %v4918
    %v5280 = vadd.f32 %v4645, %v4922
    %v5281 = vadd.f32 %v4646, %v4926
    %v5282 = vadd.f32 %v4647, %v4930
    %v5283 = vadd.f32 %v4648, %v4934
    %v5284 = vadd.f32 %v4649, %v4938
    %v5285 = vadd.f32 %v4650, %v4942
    %v5286 = vadd.f32 %v4651, %v4946
    %v5287 = vadd.f32 %v4652, %v4882
    %v5288 = vadd.f32 %v4653, %v4886
    %v5289 = vadd.f32 %v4654, %v4890
    %v5290 = vadd.f32 %v4655, %v4894
    %v5291 = vadd.f32 %v4656, %v4898
    %v5292 = vadd.f32 %v4657, %v4902
    %v5293 = vadd.f32 %v4658, %v4906
    %v5294 = vadd.f32 %v4659, %v4910
    %v5295 = vadd.f32 %v4660, %v4914
    %v5296 = vadd.f32 %v4661, %v4918
    %v5297 = vadd.f32 %v4662, %v4922
    %v5298 = vadd.f32 %v4663, %v4926
    %v5299 = vadd.f32 %v4664, %v4930
    %v5300 = vadd.f32 %v4665, %v4934
    %v5301 = vadd.f32 %v4666, %v4938
    %v5302 = vadd.f32 %v4667, %v4942
    %v5303 = vadd.f32 %v4668, %v4946
    %v5304 = vadd.f32 %v4669, %v4882
    %v5305 = vadd.f32 %v4670, %v4886
    %v5306 = vadd.f32 %v4671, %v4890
    %v5307 = vadd.f32 %v4672, %v4894
    %v5308 = vadd.f32 %v4673, %v4898
    %v5309 = vadd.f32 %v4674, %v4902
    %v5310 = vadd.f32 %v4675, %v4906
    %v5311 = vadd.f32 %v4676, %v4910
    %v5312 = vadd.f32 %v4677, %v4914
    %v5313 = vadd.f32 %v4678, %v4918
    %v5314 = vadd.f32 %v4679, %v4922
    %v5315 = vadd.f32 %v4680, %v4926
    %v5316 = vadd.f32 %v4681, %v4930
    %v5317 = vadd.f32 %v4682, %v4934
    %v5318 = vadd.f32 %v4683, %v4938
    %v5319 = vadd.f32 %v4684, %v4942
    %v5320 = vadd.f32 %v4685, %v4946
    %v5321 = vadd.f32 %v4686, %v4882
    %v5322 = vadd.f32 %v4687, %v4886
    %v5323 = vadd.f32 %v4688, %v4890
    %v5324 = vadd.f32 %v4689, %v4894
    %v5325 = vadd.f32 %v4690, %v4898
    %v5326 = vadd.f32 %v4691, %v4902
    %v5327 = vadd.f32 %v4692, %v4906
    %v5328 = vadd.f32 %v4693, %v4910
    %v5329 = vadd.f32 %v4694, %v4914
    %v5330 = vadd.f32 %v4695, %v4918
    %v5331 = vadd.f32 %v4696, %v4922
    %v5332 = vadd.f32 %v4697, %v4926
    %v5333 = vadd.f32 %v4698, %v4930
    %v5334 = vadd.f32 %v4699, %v4934
    %v5335 = vadd.f32 %v4700, %v4938
    %v5336 = vadd.f32 %v4701, %v4942
    %v5337 = vadd.f32 %v4702, %v4946
    %v5338 = vadd.f32 %v4703, %v4882
    %v5339 = vadd.f32 %v4704, %v4886
    %v5340 = vadd.f32 %v4705, %v4890
    %v5341 = vadd.f32 %v4706, %v4894
    %v5342 = vadd.f32 %v4707, %v4898
    %v5343 = vadd.f32 %v4708, %v4902
    %v5344 = vadd.f32 %v4709, %v4906
    %v5345 = vadd.f32 %v4710, %v4910
    %v5346 = vadd.f32 %v4711, %v4914
    %v5347 = vadd.f32 %v4712, %v4918
    %v5348 = vadd.f32 %v4713, %v4922
    %v5349 = vadd.f32 %v4714, %v4926
    %v5350 = vadd.f32 %v4715, %v4930
    %v5351 = vadd.f32 %v4716, %v4934
    %v5352 = vadd.f32 %v4717, %v4938
    %v5353 = vadd.f32 %v4718, %v4942
    %v5354 = vadd.f32 %v4719, %v4946
    %v5355 = vadd.f32 %v4720, %v4882
    %v5356 = vadd.f32 %v4721, %v4886
    %v5357 = vadd.f32 %v4722, %v4890
    %v5358 = vadd.f32 %v4723, %v4894
    %v5359 = vadd.f32 %v4724, %v4898
    %v5360 = vadd.f32 %v4725, %v4902
    %v5361 = vadd.f32 %v4726, %v4906
    %v5362 = vadd.f32 %v4727, %v4910
    %v5363 = vadd.f32 %v4728, %v4914
    %v5364 = vadd.f32 %v4729, %v4918
    %v5365 = vadd.f32 %v4730, %v4922
    %v5366 = vadd.f32 %v4731, %v4926
    %v5367 = vadd.f32 %v4732, %v4930
    %v5368 = vadd.f32 %v4733, %v4934
    %v5369 = vadd.f32 %v4734, %v4938
    %v5370 = vadd.f32 %v4735, %v4942
    %v5371 = vadd.f32 %v4736, %v4946
    %v5372 = vadd.f32 %v4737, %v4882
    %v5373 = vadd.f32 %v4738, %v4886
    %v5374 = vadd.f32 %v4739, %v4890
    %v5375 = vadd.f32 %v4740, %v4894
    %v5376 = vadd.f32 %v4741, %v4898
    %v5377 = vadd.f32 %v4742, %v4902
    %v5378 = vadd.f32 %v4743, %v4906
    %v5379 = vadd.f32 %v4744, %v4910
    %v5380 = vadd.f32 %v4745, %v4914
    %v5381 = vadd.f32 %v4746, %v4918
    %v5382 = vadd.f32 %v4747, %v4922
    %v5383 = vadd.f32 %v4748, %v4926
    %v5384 = vadd.f32 %v4749, %v4930
    %v5385 = vadd.f32 %v4750, %v4934
    %v5386 = vadd.f32 %v4751, %v4938
    %v5387 = vadd.f32 %v4752, %v4942
    %v5388 = vadd.f32 %v4753, %v4946
    %v5389 = vadd.f32 %v4754, %v4882
    %v5390 = vadd.f32 %v4755, %v4886
    %v5391 = vadd.f32 %v4756, %v4890
    %v5392 = vadd.f32 %v4757, %v4894
    %v5393 = vadd.f32 %v4758, %v4898
    %v5394 = vadd.f32 %v4759, %v4902
    %v5395 = vadd.f32 %v4760, %v4906
    %v5396 = vadd.f32 %v4761, %v4910
    %v5397 = vadd.f32 %v4762, %v4914
    %v5398 = vadd.f32 %v4763, %v4918
    %v5399 = vadd.f32 %v4764, %v4922
    %v5400 = vadd.f32 %v4765, %v4926
    %v5401 = vadd.f32 %v4766, %v4930
    %v5402 = vadd.f32 %v4767, %v4934
    %v5403 = vadd.f32 %v4768, %v4938
    %v5404 = vadd.f32 %v4769, %v4942
    %v5405 = vadd.f32 %v4770, %v4946
    %v5406 = vadd.f32 %v4771, %v4882
    %v5407 = vadd.f32 %v4772, %v4886
    %v5408 = vadd.f32 %v4773, %v4890
    %v5409 = vadd.f32 %v4774, %v4894
    %v5410 = vadd.f32 %v4775, %v4898
    %v5411 = vadd.f32 %v4776, %v4902
    %v5412 = vadd.f32 %v4777, %v4906
    %v5413 = vadd.f32 %v4778, %v4910
    %v5414 = vadd.f32 %v4779, %v4914
    %v5415 = vadd.f32 %v4780, %v4918
    %v5416 = vadd.f32 %v4781, %v4922
    %v5417 = vadd.f32 %v4782, %v4926
    %v5418 = vadd.f32 %v4783, %v4930
    %v5419 = vadd.f32 %v4784, %v4934
    %v5420 = vadd.f32 %v4785, %v4938
    %v5421 = vadd.f32 %v4786, %v4942
    %v5422 = vadd.f32 %v4787, %v4946
    %v5423 = vadd.f32 %v4788, %v4882
    %v5424 = vadd.f32 %v4789, %v4886
    %v5425 = vadd.f32 %v4790, %v4890
    %v5426 = vadd.f32 %v4791, %v4894
    %v5427 = vadd.f32 %v4792, %v4898
    %v5428 = vadd.f32 %v4793, %v4902
    %v5429 = vadd.f32 %v4794, %v4906
    %v5430 = vadd.f32 %v4795, %v4910
    %v5431 = vadd.f32 %v4796, %v4914
    %v5432 = vadd.f32 %v4797, %v4918
    %v5433 = vadd.f32 %v4798, %v4922
    %v5434 = vadd.f32 %v4799, %v4926
    %v5435 = vadd.f32 %v4800, %v4930
    %v5436 = vadd.f32 %v4801, %v4934
    %v5437 = vadd.f32 %v4802, %v4938
    %v5438 = vadd.f32 %v4803, %v4942
    %v5439 = vadd.f32 %v4804, %v4946
    %v5440 = vadd.f32 %v4805, %v4882
    %v5441 = vadd.f32 %v4806, %v4886
    %v5442 = vadd.f32 %v4807, %v4890
    %v5443 = vadd.f32 %v4808, %v4894
    %v5444 = vadd.f32 %v4809, %v4898
    %v5445 = vadd.f32 %v4810, %v4902
    %v5446 = vadd.f32 %v4811, %v4906
    %v5447 = vadd.f32 %v4812, %v4910
    %v5448 = vadd.f32 %v4813, %v4914
    %v5449 = vadd.f32 %v4814, %v4918
    %v5450 = vadd.f32 %v4815, %v4922
    %v5451 = vadd.f32 %v4816, %v4926
    %v5452 = vadd.f32 %v4817, %v4930
    %v5453 = vadd.f32 %v4818, %v4934
    %v5454 = vadd.f32 %v4819, %v4938
    %v5455 = vadd.f32 %v4820, %v4942
    %v5456 = vadd.f32 %v4821, %v4946
    %v5457 = vadd.f32 %v4822, %v4882
    %v5458 = vadd.f32 %v4823, %v4886
    %v5459 = vadd.f32 %v4824, %v4890
    %v5460 = vadd.f32 %v4825, %v4894
    %v5461 = vadd.f32 %v4826, %v4898
    %v5462 = vadd.f32 %v4827, %v4902
    %v5463 = vadd.f32 %v4828, %v4906
    %v5464 = vadd.f32 %v4829, %v4910
    %v5465 = vadd.f32 %v4830, %v4914
    %v5466 = vadd.f32 %v4831, %v4918
    %v5467 = vadd.f32 %v4832, %v4922
    %v5468 = vadd.f32 %v4833, %v4926
    %v5469 = vadd.f32 %v4834, %v4930
    %v5470 = vadd.f32 %v4835, %v4934
    %v5471 = vadd.f32 %v4836, %v4938
    %v5472 = vadd.f32 %v4837, %v4942
    %v5473 = vadd.f32 %v4838, %v4946
    %v5474 = vadd.f32 %v4839, %v4882
    %v5475 = vadd.f32 %v4840, %v4886
    %v5476 = vadd.f32 %v4841, %v4890
    %v5477 = vadd.f32 %v4842, %v4894
    %v5478 = vadd.f32 %v4843, %v4898
    %v5479 = vadd.f32 %v4844, %v4902
    %v5480 = vadd.f32 %v4845, %v4906
    %v5481 = vadd.f32 %v4846, %v4910
    %v5482 = vadd.f32 %v4847, %v4914
    %v5483 = vadd.f32 %v4848, %v4918
    %v5484 = vadd.f32 %v4849, %v4922
    %v5485 = vadd.f32 %v4850, %v4926
    %v5486 = vadd.f32 %v4851, %v4930
    %v5487 = vadd.f32 %v4852, %v4934
    %v5488 = vadd.f32 %v4853, %v4938
    %v5489 = vadd.f32 %v4854, %v4942
    %v5490 = vadd.f32 %v4855, %v4946
    %v5491 = vadd.f32 %v4856, %v4882
    %v5492 = vadd.f32 %v4857, %v4886
    %v5493 = vadd.f32 %v4858, %v4890
    %v5494 = vadd.f32 %v4859, %v4894
    %v5495 = vadd.f32 %v4860, %v4898
    %v5496 = vadd.f32 %v4861, %v4902
    %v5497 = vadd.f32 %v4862, %v4906
    %v5498 = vadd.f32 %v4863, %v4910
    %v5499 = vadd.f32 %v4864, %v4914
    %v5500 = vadd.f32 %v4865, %v4918
    %v5501 = vadd.f32 %v4866, %v4922
    %v5502 = vadd.f32 %v4867, %v4926
    %v5503 = vadd.f32 %v4868, %v4930
    %v5504 = vadd.f32 %v4869, %v4934
    %v5505 = vadd.f32 %v4870, %v4938
    %v5506 = vadd.f32 %v4871, %v4942
    %v5507 = vadd.f32 %v4872, %v4946
    %v5508 = vmax.f32 %v4964, 0.0
    %v5509 = vmax.f32 %v4965, 0.0
    %v5510 = vmax.f32 %v4966, 0.0
    %v5511 = vmax.f32 %v4967, 0.0
    %v5512 = vmax.f32 %v4968, 0.0
    %v5513 = vmax.f32 %v4969, 0.0
    %v5514 = vmax.f32 %v4970, 0.0
    %v5515 = vmax.f32 %v4971, 0.0
    %v5516 = vmax.f32 %v4972, 0.0
    %v5517 = vmax.f32 %v4973, 0.0
    %v5518 = vmax.f32 %v4974, 0.0
    %v5519 = vmax.f32 %v4975, 0.0
    %v5520 = vmax.f32 %v4976, 0.0
    %v5521 = vmax.f32 %v4977, 0.0
    %v5522 = vmax.f32 %v4978, 0.0
    %v5523 = vmax.f32 %v4979, 0.0
    %v5524 = vmax.f32 %v4980, 0.0
    %v5525 = vmax.f32 %v4981, 0.0
    %v5526 = vmax.f32 %v4982, 0.0
    %v5527 = vmax.f32 %v4983, 0.0
    %v5528 = vmax.f32 %v4984, 0.0
    %v5529 = vmax.f32 %v4985, 0.0
    %v5530 = vmax.f32 %v4986, 0.0
    %v5531 = vmax.f32 %v4987, 0.0
    %v5532 = vmax.f32 %v4988, 0.0
    %v5533 = vmax.f32 %v4989, 0.0
    %v5534 = vmax.f32 %v4990, 0.0
    %v5535 = vmax.f32 %v4991, 0.0
    %v5536 = vmax.f32 %v4992, 0.0
    %v5537 = vmax.f32 %v4993, 0.0
    %v5538 = vmax.f32 %v4994, 0.0
    %v5539 = vmax.f32 %v4995, 0.0
    %v5540 = vmax.f32 %v4996, 0.0
    %v5541 = vmax.f32 %v4997, 0.0
    %v5542 = vmax.f32 %v4998, 0.0
    %v5543 = vmax.f32 %v4999, 0.0
    %v5544 = vmax.f32 %v5000, 0.0
    %v5545 = vmax.f32 %v5001, 0.0
    %v5546 = vmax.f32 %v5002, 0.0
    %v5547 = vmax.f32 %v5003, 0.0
    %v5548 = vmax.f32 %v5004, 0.0
    %v5549 = vmax.f32 %v5005, 0.0
    %v5550 = vmax.f32 %v5006, 0.0
    %v5551 = vmax.f32 %v5007, 0.0
    %v5552 = vmax.f32 %v5008, 0.0
    %v5553 = vmax.f32 %v5009, 0.0
    %v5554 = vmax.f32 %v5010, 0.0
    %v5555 = vmax.f32 %v5011, 0.0
    %v5556 = vmax.f32 %v5012, 0.0
    %v5557 = vmax.f32 %v5013, 0.0
    %v5558 = vmax.f32 %v5014, 0.0
    %v5559 = vmax.f32 %v5015, 0.0
    %v5560 = vmax.f32 %v5016, 0.0
    %v5561 = vmax.f32 %v5017, 0.0
    %v5562 = vmax.f32 %v5018, 0.0
    %v5563 = vmax.f32 %v5019, 0.0
    %v5564 = vmax.f32 %v5020, 0.0
    %v5565 = vmax.f32 %v5021, 0.0
    %v5566 = vmax.f32 %v5022, 0.0
    %v5567 = vmax.f32 %v5023, 0.0
    %v5568 = vmax.f32 %v5024, 0.0
    %v5569 = vmax.f32 %v5025, 0.0
    %v5570 = vmax.f32 %v5026, 0.0
    %v5571 = vmax.f32 %v5027, 0.0
    %v5572 = vmax.f32 %v5028, 0.0
    %v5573 = vmax.f32 %v5029, 0.0
    %v5574 = vmax.f32 %v5030, 0.0
    %v5575 = vmax.f32 %v5031, 0.0
    %v5576 = vmax.f32 %v5032, 0.0
    %v5577 = vmax.f32 %v5033, 0.0
    %v5578 = vmax.f32 %v5034, 0.0
    %v5579 = vmax.f32 %v5035, 0.0
    %v5580 = vmax.f32 %v5036, 0.0
    %v5581 = vmax.f32 %v5037, 0.0
    %v5582 = vmax.f32 %v5038, 0.0
    %v5583 = vmax.f32 %v5039, 0.0
    %v5584 = vmax.f32 %v5040, 0.0
    %v5585 = vmax.f32 %v5041, 0.0
    %v5586 = vmax.f32 %v5042, 0.0
    %v5587 = vmax.f32 %v5043, 0.0
    %v5588 = vmax.f32 %v5044, 0.0
    %v5589 = vmax.f32 %v5045, 0.0
    %v5590 = vmax.f32 %v5046, 0.0
    %v5591 = vmax.f32 %v5047, 0.0
    %v5592 = vmax.f32 %v5048, 0.0
    %v5593 = vmax.f32 %v5049, 0.0
    %v5594 = vmax.f32 %v5050, 0.0
    %v5595 = vmax.f32 %v5051, 0.0
    %v5596 = vmax.f32 %v5052, 0.0
    %v5597 = vmax.f32 %v5053, 0.0
    %v5598 = vmax.f32 %v5054, 0.0
    %v5599 = vmax.f32 %v5055, 0.0
    %v5600 = vmax.f32 %v5056, 0.0
    %v5601 = vmax.f32 %v5057, 0.0
    %v5602 = vmax.f32 %v5058, 0.0
    %v5603 = vmax.f32 %v5059, 0.0
    %v5604 = vmax.f32 %v5060, 0.0
    %v5605 = vmax.f32 %v5061, 0.0
    %v5606 = vmax.f32 %v5062, 0.0
    %v5607 = vmax.f32 %v5063, 0.0
    %v5608 = vmax.f32 %v5064, 0.0
    %v5609 = vmax.f32 %v5065, 0.0
    %v5610 = vmax.f32 %v5066, 0.0
    %v5611 = vmax.f32 %v5067, 0.0
    %v5612 = vmax.f32 %v5068, 0.0
    %v5613 = vmax.f32 %v5069, 0.0
    %v5614 = vmax.f32 %v5070, 0.0
    %v5615 = vmax.f32 %v5071, 0.0
    %v5616 = vmax.f32 %v5072, 0.0
    %v5617 = vmax.f32 %v5073, 0.0
    %v5618 = vmax.f32 %v5074, 0.0
    %v5619 = vmax.f32 %v5075, 0.0
    %v5620 = vmax.f32 %v5076, 0.0
    %v5621 = vmax.f32 %v5077, 0.0
    %v5622 = vmax.f32 %v5078, 0.0
    %v5623 = vmax.f32 %v5079, 0.0
    %v5624 = vmax.f32 %v5080, 0.0
    %v5625 = vmax.f32 %v5081, 0.0
    %v5626 = vmax.f32 %v5082, 0.0
    %v5627 = vmax.f32 %v5083, 0.0
    %v5628 = vmax.f32 %v5084, 0.0
    %v5629 = vmax.f32 %v5085, 0.0
    %v5630 = vmax.f32 %v5086, 0.0
    %v5631 = vmax.f32 %v5087, 0.0
    %v5632 = vmax.f32 %v5088, 0.0
    %v5633 = vmax.f32 %v5089, 0.0
    %v5634 = vmax.f32 %v5090, 0.0
    %v5635 = vmax.f32 %v5091, 0.0
    %v5636 = vmax.f32 %v5092, 0.0
    %v5637 = vmax.f32 %v5093, 0.0
    %v5638 = vmax.f32 %v5094, 0.0
    %v5639 = vmax.f32 %v5095, 0.0
    %v5640 = vmax.f32 %v5096, 0.0
    %v5641 = vmax.f32 %v5097, 0.0
    %v5642 = vmax.f32 %v5098, 0.0
    %v5643 = vmax.f32 %v5099, 0.0
    %v5644 = vmax.f32 %v5100, 0.0
    %v5645 = vmax.f32 %v5101, 0.0
    %v5646 = vmax.f32 %v5102, 0.0
    %v5647 = vmax.f32 %v5103, 0.0
    %v5648 = vmax.f32 %v5104, 0.0
    %v5649 = vmax.f32 %v5105, 0.0
    %v5650 = vmax.f32 %v5106, 0.0
    %v5651 = vmax.f32 %v5107, 0.0
    %v5652 = vmax.f32 %v5108, 0.0
    %v5653 = vmax.f32 %v5109, 0.0
    %v5654 = vmax.f32 %v5110, 0.0
    %v5655 = vmax.f32 %v5111, 0.0
    %v5656 = vmax.f32 %v5112, 0.0
    %v5657 = vmax.f32 %v5113, 0.0
    %v5658 = vmax.f32 %v5114, 0.0
    %v5659 = vmax.f32 %v5115, 0.0
    %v5660 = vmax.f32 %v5116, 0.0
    %v5661 = vmax.f32 %v5117, 0.0
    %v5662 = vmax.f32 %v5118, 0.0
    %v5663 = vmax.f32 %v5119, 0.0
    %v5664 = vmax.f32 %v5120, 0.0
    %v5665 = vmax.f32 %v5121, 0.0
    %v5666 = vmax.f32 %v5122, 0.0
    %v5667 = vmax.f32 %v5123, 0.0
    %v5668 = vmax.f32 %v5124, 0.0
    %v5669 = vmax.f32 %v5125, 0.0
    %v5670 = vmax.f32 %v5126, 0.0
    %v5671 = vmax.f32 %v5127, 0.0
    %v5672 = vmax.f32 %v5128, 0.0
    %v5673 = vmax.f32 %v5129, 0.0
    %v5674 = vmax.f32 %v5130, 0.0
    %v5675 = vmax.f32 %v5131, 0.0
    %v5676 = vmax.f32 %v5132, 0.0
    %v5677 = vmax.f32 %v5133, 0.0
    %v5678 = vmax.f32 %v5134, 0.0
    %v5679 = vmax.f32 %v5135, 0.0
    %v5680 = vmax.f32 %v5136, 0.0
    %v5681 = vmax.f32 %v5137, 0.0
    %v5682 = vmax.f32 %v5138, 0.0
    %v5683 = vmax.f32 %v5139, 0.0
    %v5684 = vmax.f32 %v5140, 0.0
    %v5685 = vmax.f32 %v5141, 0.0
    %v5686 = vmax.f32 %v5142, 0.0
    %v5687 = vmax.f32 %v5143, 0.0
    %v5688 = vmax.f32 %v5144, 0.0
    %v5689 = vmax.f32 %v5145, 0.0
    %v5690 = vmax.f32 %v5146, 0.0
    %v5691 = vmax.f32 %v5147, 0.0
    %v5692 = vmax.f32 %v5148, 0.0
    %v5693 = vmax.f32 %v5149, 0.0
    %v5694 = vmax.f32 %v5150, 0.0
    %v5695 = vmax.f32 %v5151, 0.0
    %v5696 = vmax.f32 %v5152, 0.0
    %v5697 = vmax.f32 %v5153, 0.0
    %v5698 = vmax.f32 %v5154, 0.0
    %v5699 = vmax.f32 %v5155, 0.0
    %v5700 = vmax.f32 %v5156, 0.0
    %v5701 = vmax.f32 %v5157, 0.0
    %v5702 = vmax.f32 %v5158, 0.0
    %v5703 = vmax.f32 %v5159, 0.0
    %v5704 = vmax.f32 %v5160, 0.0
    %v5705 = vmax.f32 %v5161, 0.0
    %v5706 = vmax.f32 %v5162, 0.0
    %v5707 = vmax.f32 %v5163, 0.0
    %v5708 = vmax.f32 %v5164, 0.0
    %v5709 = vmax.f32 %v5165, 0.0
    %v5710 = vmax.f32 %v5166, 0.0
    %v5711 = vmax.f32 %v5167, 0.0
    %v5712 = vmax.f32 %v5168, 0.0
    %v5713 = vmax.f32 %v5169, 0.0
    %v5714 = vmax.f32 %v5170, 0.0
    %v5715 = vmax.f32 %v5171, 0.0
    %v5716 = vmax.f32 %v5172, 0.0
    %v5717 = vmax.f32 %v5173, 0.0
    %v5718 = vmax.f32 %v5174, 0.0
    %v5719 = vmax.f32 %v5175, 0.0
    %v5720 = vmax.f32 %v5176, 0.0
    %v5721 = vmax.f32 %v5177, 0.0
    %v5722 = vmax.f32 %v5178, 0.0
    %v5723 = vmax.f32 %v5179, 0.0
    %v5724 = vmax.f32 %v5180, 0.0
    %v5725 = vmax.f32 %v5181, 0.0
    %v5726 = vmax.f32 %v5182, 0.0
    %v5727 = vmax.f32 %v5183, 0.0
    %v5728 = vmax.f32 %v5184, 0.0
    %v5729 = vmax.f32 %v5185, 0.0
    %v5730 = vmax.f32 %v5186, 0.0
    %v5731 = vmax.f32 %v5187, 0.0
    %v5732 = vmax.f32 %v5188, 0.0
    %v5733 = vmax.f32 %v5189, 0.0
    %v5734 = vmax.f32 %v5190, 0.0
    %v5735 = vmax.f32 %v5191, 0.0
    %v5736 = vmax.f32 %v5192, 0.0
    %v5737 = vmax.f32 %v5193, 0.0
    %v5738 = vmax.f32 %v5194, 0.0
    %v5739 = vmax.f32 %v5195, 0.0
    %v5740 = vmax.f32 %v5196, 0.0
    %v5741 = vmax.f32 %v5197, 0.0
    %v5742 = vmax.f32 %v5198, 0.0
    %v5743 = vmax.f32 %v5199, 0.0
    %v5744 = vmax.f32 %v5200, 0.0
    %v5745 = vmax.f32 %v5201, 0.0
    %v5746 = vmax.f32 %v5202, 0.0
    %v5747 = vmax.f32 %v5203, 0.0
    %v5748 = vmax.f32 %v5204, 0.0
    %v5749 = vmax.f32 %v5205, 0.0
    %v5750 = vmax.f32 %v5206, 0.0
    %v5751 = vmax.f32 %v5207, 0.0
    %v5752 = vmax.f32 %v5208, 0.0
    %v5753 = vmax.f32 %v5209, 0.0
    %v5754 = vmax.f32 %v5210, 0.0
    %v5755 = vmax.f32 %v5211, 0.0
    %v5756 = vmax.f32 %v5212, 0.0
    %v5757 = vmax.f32 %v5213, 0.0
    %v5758 = vmax.f32 %v5214, 0.0
    %v5759 = vmax.f32 %v5215, 0.0
    %v5760 = vmax.f32 %v5216, 0.0
    %v5761 = vmax.f32 %v5217, 0.0
    %v5762 = vmax.f32 %v5218, 0.0
    %v5763 = vmax.f32 %v5219, 0.0
    %v5764 = vmax.f32 %v5220, 0.0
    %v5765 = vmax.f32 %v5221, 0.0
    %v5766 = vmax.f32 %v5222, 0.0
    %v5767 = vmax.f32 %v5223, 0.0
    %v5768 = vmax.f32 %v5224, 0.0
    %v5769 = vmax.f32 %v5225, 0.0
    %v5770 = vmax.f32 %v5226, 0.0
    %v5771 = vmax.f32 %v5227, 0.0
    %v5772 = vmax.f32 %v5228, 0.0
    %v5773 = vmax.f32 %v5229, 0.0
    %v5774 = vmax.f32 %v5230, 0.0
    %v5775 = vmax.f32 %v5231, 0.0
    %v5776 = vmax.f32 %v5232, 0.0
    %v5777 = vmax.f32 %v5233, 0.0
    %v5778 = vmax.f32 %v5234, 0.0
    %v5779 = vmax.f32 %v5235, 0.0
    %v5780 = vmax.f32 %v5236, 0.0
    %v5781 = vmax.f32 %v5237, 0.0
    %v5782 = vmax.f32 %v5238, 0.0
    %v5783 = vmax.f32 %v5239, 0.0
    %v5784 = vmax.f32 %v5240, 0.0
    %v5785 = vmax.f32 %v5241, 0.0
    %v5786 = vmax.f32 %v5242, 0.0
    %v5787 = vmax.f32 %v5243, 0.0
    %v5788 = vmax.f32 %v5244, 0.0
    %v5789 = vmax.f32 %v5245, 0.0
    %v5790 = vmax.f32 %v5246, 0.0
    %v5791 = vmax.f32 %v5247, 0.0
    %v5792 = vmax.f32 %v5248, 0.0
    %v5793 = vmax.f32 %v5249, 0.0
    %v5794 = vmax.f32 %v5250, 0.0
    %v5795 = vmax.f32 %v5251, 0.0
    %v5796 = vmax.f32 %v5252, 0.0
    %v5797 = vmax.f32 %v5253, 0.0
    %v5798 = vmax.f32 %v5254, 0.0
    %v5799 = vmax.f32 %v5255, 0.0
    %v5800 = vmax.f32 %v5256, 0.0
    %v5801 = vmax.f32 %v5257, 0.0
    %v5802 = vmax.f32 %v5258, 0.0
    %v5803 = vmax.f32 %v5259, 0.0
    %v5804 = vmax.f32 %v5260, 0.0
    %v5805 = vmax.f32 %v5261, 0.0
    %v5806 = vmax.f32 %v5262, 0.0
    %v5807 = vmax.f32 %v5263, 0.0
    %v5808 = vmax.f32 %v5264, 0.0
    %v5809 = vmax.f32 %v5265, 0.0
    %v5810 = vmax.f32 %v5266, 0.0
    %v5811 = vmax.f32 %v5267, 0.0
    %v5812 = vmax.f32 %v5268, 0.0
    %v5813 = vmax.f32 %v5269, 0.0
    %v5814 = vmax.f32 %v5270, 0.0
    %v5815 = vmax.f32 %v5271, 0.0
    %v5816 = vmax.f32 %v5272, 0.0
    %v5817 = vmax.f32 %v5273, 0.0
    %v5818 = vmax.f32 %v5274, 0.0
    %v5819 = vmax.f32 %v5275, 0.0
    %v5820 = vmax.f32 %v5276, 0.0
    %v5821 = vmax.f32 %v5277, 0.0
    %v5822 = vmax.f32 %v5278, 0.0
    %v5823 = vmax.f32 %v5279, 0.0
    %v5824 = vmax.f32 %v5280, 0.0
    %v5825 = vmax.f32 %v5281, 0.0
    %v5826 = vmax.f32 %v5282, 0.0
    %v5827 = vmax.f32 %v5283, 0.0
    %v5828 = vmax.f32 %v5284, 0.0
    %v5829 = vmax.f32 %v5285, 0.0
    %v5830 = vmax.f32 %v5286, 0.0
    %v5831 = vmax.f32 %v5287, 0.0
    %v5832 = vmax.f32 %v5288, 0.0
    %v5833 = vmax.f32 %v5289, 0.0
    %v5834 = vmax.f32 %v5290, 0.0
    %v5835 = vmax.f32 %v5291, 0.0
    %v5836 = vmax.f32 %v5292, 0.0
    %v5837 = vmax.f32 %v5293, 0.0
    %v5838 = vmax.f32 %v5294, 0.0
    %v5839 = vmax.f32 %v5295, 0.0
    %v5840 = vmax.f32 %v5296, 0.0
    %v5841 = vmax.f32 %v5297, 0.0
    %v5842 = vmax.f32 %v5298, 0.0
    %v5843 = vmax.f32 %v5299, 0.0
    %v5844 = vmax.f32 %v5300, 0.0
    %v5845 = vmax.f32 %v5301, 0.0
    %v5846 = vmax.f32 %v5302, 0.0
    %v5847 = vmax.f32 %v5303, 0.0
    %v5848 = vmax.f32 %v5304, 0.0
    %v5849 = vmax.f32 %v5305, 0.0
    %v5850 = vmax.f32 %v5306, 0.0
    %v5851 = vmax.f32 %v5307, 0.0
    %v5852 = vmax.f32 %v5308, 0.0
    %v5853 = vmax.f32 %v5309, 0.0
    %v5854 = vmax.f32 %v5310, 0.0
    %v5855 = vmax.f32 %v5311, 0.0
    %v5856 = vmax.f32 %v5312, 0.0
    %v5857 = vmax.f32 %v5313, 0.0
    %v5858 = vmax.f32 %v5314, 0.0
    %v5859 = vmax.f32 %v5315, 0.0
    %v5860 = vmax.f32 %v5316, 0.0
    %v5861 = vmax.f32 %v5317, 0.0
    %v5862 = vmax.f32 %v5318, 0.0
    %v5863 = vmax.f32 %v5319, 0.0
    %v5864 = vmax.f32 %v5320, 0.0
    %v5865 = vmax.f32 %v5321, 0.0
    %v5866 = vmax.f32 %v5322, 0.0
    %v5867 = vmax.f32 %v5323, 0.0
    %v5868 = vmax.f32 %v5324, 0.0
    %v5869 = vmax.f32 %v5325, 0.0
    %v5870 = vmax.f32 %v5326, 0.0
    %v5871 = vmax.f32 %v5327, 0.0
    %v5872 = vmax.f32 %v5328, 0.0
    %v5873 = vmax.f32 %v5329, 0.0
    %v5874 = vmax.f32 %v5330, 0.0
    %v5875 = vmax.f32 %v5331, 0.0
    %v5876 = vmax.f32 %v5332, 0.0
    %v5877 = vmax.f32 %v5333, 0.0
    %v5878 = vmax.f32 %v5334, 0.0
    %v5879 = vmax.f32 %v5335, 0.0
    %v5880 = vmax.f32 %v5336, 0.0
    %v5881 = vmax.f32 %v5337, 0.0
    %v5882 = vmax.f32 %v5338, 0.0
    %v5883 = vmax.f32 %v5339, 0.0
    %v5884 = vmax.f32 %v5340, 0.0
    %v5885 = vmax.f32 %v5341, 0.0
    %v5886 = vmax.f32 %v5342, 0.0
    %v5887 = vmax.f32 %v5343, 0.0
    %v5888 = vmax.f32 %v5344, 0.0
    %v5889 = vmax.f32 %v5345, 0.0
    %v5890 = vmax.f32 %v5346, 0.0
    %v5891 = vmax.f32 %v5347, 0.0
    %v5892 = vmax.f32 %v5348, 0.0
    %v5893 = vmax.f32 %v5349, 0.0
    %v5894 = vmax.f32 %v5350, 0.0
    %v5895 = vmax.f32 %v5351, 0.0
    %v5896 = vmax.f32 %v5352, 0.0
    %v5897 = vmax.f32 %v5353, 0.0
    %v5898 = vmax.f32 %v5354, 0.0
    %v5899 = vmax.f32 %v5355, 0.0
    %v5900 = vmax.f32 %v5356, 0.0
    %v5901 = vmax.f32 %v5357, 0.0
    %v5902 = vmax.f32 %v5358, 0.0
    %v5903 = vmax.f32 %v5359, 0.0
    %v5904 = vmax.f32 %v5360, 0.0
    %v5905 = vmax.f32 %v5361, 0.0
    %v5906 = vmax.f32 %v5362, 0.0
    %v5907 = vmax.f32 %v5363, 0.0
    %v5908 = vmax.f32 %v5364, 0.0
    %v5909 = vmax.f32 %v5365, 0.0
    %v5910 = vmax.f32 %v5366, 0.0
    %v5911 = vmax.f32 %v5367, 0.0
    %v5912 = vmax.f32 %v5368, 0.0
    %v5913 = vmax.f32 %v5369, 0.0
    %v5914 = vmax.f32 %v5370, 0.0
    %v5915 = vmax.f32 %v5371, 0.0
    %v5916 = vmax.f32 %v5372, 0.0
    %v5917 = vmax.f32 %v5373, 0.0
    %v5918 = vmax.f32 %v5374, 0.0
    %v5919 = vmax.f32 %v5375, 0.0
    %v5920 = vmax.f32 %v5376, 0.0
    %v5921 = vmax.f32 %v5377, 0.0
    %v5922 = vmax.f32 %v5378, 0.0
    %v5923 = vmax.f32 %v5379, 0.0
    %v5924 = vmax.f32 %v5380, 0.0
    %v5925 = vmax.f32 %v5381, 0.0
    %v5926 = vmax.f32 %v5382, 0.0
    %v5927 = vmax.f32 %v5383, 0.0
    %v5928 = vmax.f32 %v5384, 0.0
    %v5929 = vmax.f32 %v5385, 0.0
    %v5930 = vmax.f32 %v5386, 0.0
    %v5931 = vmax.f32 %v5387, 0.0
    %v5932 = vmax.f32 %v5388, 0.0
    %v5933 = vmax.f32 %v5389, 0.0
    %v5934 = vmax.f32 %v5390, 0.0
    %v5935 = vmax.f32 %v5391, 0.0
    %v5936 = vmax.f32 %v5392, 0.0
    %v5937 = vmax.f32 %v5393, 0.0
    %v5938 = vmax.f32 %v5394, 0.0
    %v5939 = vmax.f32 %v5395, 0.0
    %v5940 = vmax.f32 %v5396, 0.0
    %v5941 = vmax.f32 %v5397, 0.0
    %v5942 = vmax.f32 %v5398, 0.0
    %v5943 = vmax.f32 %v5399, 0.0
    %v5944 = vmax.f32 %v5400, 0.0
    %v5945 = vmax.f32 %v5401, 0.0
    %v5946 = vmax.f32 %v5402, 0.0
    %v5947 = vmax.f32 %v5403, 0.0
    %v5948 = vmax.f32 %v5404, 0.0
    %v5949 = vmax.f32 %v5405, 0.0
    %v5950 = vmax.f32 %v5406, 0.0
    %v5951 = vmax.f32 %v5407, 0.0
    %v5952 = vmax.f32 %v5408, 0.0
    %v5953 = vmax.f32 %v5409, 0.0
    %v5954 = vmax.f32 %v5410, 0.0
    %v5955 = vmax.f32 %v5411, 0.0
    %v5956 = vmax.f32 %v5412, 0.0
    %v5957 = vmax.f32 %v5413, 0.0
    %v5958 = vmax.f32 %v5414, 0.0
    %v5959 = vmax.f32 %v5415, 0.0
    %v5960 = vmax.f32 %v5416, 0.0
    %v5961 = vmax.f32 %v5417, 0.0
    %v5962 = vmax.f32 %v5418, 0.0
    %v5963 = vmax.f32 %v5419, 0.0
    %v5964 = vmax.f32 %v5420, 0.0
    %v5965 = vmax.f32 %v5421, 0.0
    %v5966 = vmax.f32 %v5422, 0.0
    %v5967 = vmax.f32 %v5423, 0.0
    %v5968 = vmax.f32 %v5424, 0.0
    %v5969 = vmax.f32 %v5425, 0.0
    %v5970 = vmax.f32 %v5426, 0.0
    %v5971 = vmax.f32 %v5427, 0.0
    %v5972 = vmax.f32 %v5428, 0.0
    %v5973 = vmax.f32 %v5429, 0.0
    %v5974 = vmax.f32 %v5430, 0.0
    %v5975 = vmax.f32 %v5431, 0.0
    %v5976 = vmax.f32 %v5432, 0.0
    %v5977 = vmax.f32 %v5433, 0.0
    %v5978 = vmax.f32 %v5434, 0.0
    %v5979 = vmax.f32 %v5435, 0.0
    %v5980 = vmax.f32 %v5436, 0.0
    %v5981 = vmax.f32 %v5437, 0.0
    %v5982 = vmax.f32 %v5438, 0.0
    %v5983 = vmax.f32 %v5439, 0.0
    %v5984 = vmax.f32 %v5440, 0.0
    %v5985 = vmax.f32 %v5441, 0.0
    %v5986 = vmax.f32 %v5442, 0.0
    %v5987 = vmax.f32 %v5443, 0.0
    %v5988 = vmax.f32 %v5444, 0.0
    %v5989 = vmax.f32 %v5445, 0.0
    %v5990 = vmax.f32 %v5446, 0.0
    %v5991 = vmax.f32 %v5447, 0.0
    %v5992 = vmax.f32 %v5448, 0.0
    %v5993 = vmax.f32 %v5449, 0.0
    %v5994 = vmax.f32 %v5450, 0.0
    %v5995 = vmax.f32 %v5451, 0.0
    %v5996 = vmax.f32 %v5452, 0.0
    %v5997 = vmax.f32 %v5453, 0.0
    %v5998 = vmax.f32 %v5454, 0.0
    %v5999 = vmax.f32 %v5455, 0.0
    %v6000 = vmax.f32 %v5456, 0.0
    %v6001 = vmax.f32 %v5457, 0.0
    %v6002 = vmax.f32 %v5458, 0.0
    %v6003 = vmax.f32 %v5459, 0.0
    %v6004 = vmax.f32 %v5460, 0.0
    %v6005 = vmax.f32 %v5461, 0.0
    %v6006 = vmax.f32 %v5462, 0.0
    %v6007 = vmax.f32 %v5463, 0.0
    %v6008 = vmax.f32 %v5464, 0.0
    %v6009 = vmax.f32 %v5465, 0.0
    %v6010 = vmax.f32 %v5466, 0.0
    %v6011 = vmax.f32 %v5467, 0.0
    %v6012 = vmax.f32 %v5468, 0.0
    %v6013 = vmax.f32 %v5469, 0.0
    %v6014 = vmax.f32 %v5470, 0.0
    %v6015 = vmax.f32 %v5471, 0.0
    %v6016 = vmax.f32 %v5472, 0.0
    %v6017 = vmax.f32 %v5473, 0.0
    %v6018 = vmax.f32 %v5474, 0.0
    %v6019 = vmax.f32 %v5475, 0.0
    %v6020 = vmax.f32 %v5476, 0.0
    %v6021 = vmax.f32 %v5477, 0.0
    %v6022 = vmax.f32 %v5478, 0.0
    %v6023 = vmax.f32 %v5479, 0.0
    %v6024 = vmax.f32 %v5480, 0.0
    %v6025 = vmax.f32 %v5481, 0.0
    %v6026 = vmax.f32 %v5482, 0.0
    %v6027 = vmax.f32 %v5483, 0.0
    %v6028 = vmax.f32 %v5484, 0.0
    %v6029 = vmax.f32 %v5485, 0.0
    %v6030 = vmax.f32 %v5486, 0.0
    %v6031 = vmax.f32 %v5487, 0.0
    %v6032 = vmax.f32 %v5488, 0.0
    %v6033 = vmax.f32 %v5489, 0.0
    %v6034 = vmax.f32 %v5490, 0.0
    %v6035 = vmax.f32 %v5491, 0.0
    %v6036 = vmax.f32 %v5492, 0.0
    %v6037 = vmax.f32 %v5493, 0.0
    %v6038 = vmax.f32 %v5494, 0.0
    %v6039 = vmax.f32 %v5495, 0.0
    %v6040 = vmax.f32 %v5496, 0.0
    %v6041 = vmax.f32 %v5497, 0.0
    %v6042 = vmax.f32 %v5498, 0.0
    %v6043 = vmax.f32 %v5499, 0.0
    %v6044 = vmax.f32 %v5500, 0.0
    %v6045 = vmax.f32 %v5501, 0.0
    %v6046 = vmax.f32 %v5502, 0.0
    %v6047 = vmax.f32 %v5503, 0.0
    %v6048 = vmax.f32 %v5504, 0.0
    %v6049 = vmax.f32 %v5505, 0.0
    %v6050 = vmax.f32 %v5506, 0.0
    %v6051 = vmax.f32 %v5507, 0.0
    %v6052 = vpack.c.bf16 %v5525, %v5508
    %v6053 = vpack.c.bf16 %v5526, %v5509
    %v6054 = vpack.c.bf16 %v5527, %v5510
    %v6055 = vpack.c.bf16 %v5528, %v5511
    %v6056 = vpack.c.bf16 %v5529, %v5512
    %v6057 = vpack.c.bf16 %v5530, %v5513
    %v6058 = vpack.c.bf16 %v5531, %v5514
    %v6059 = vpack.c.bf16 %v5532, %v5515
    %v6060 = vpack.c.bf16 %v5533, %v5516
    %v6061 = vpack.c.bf16 %v5534, %v5517
    %v6062 = vpack.c.bf16 %v5535, %v5518
    %v6063 = vpack.c.bf16 %v5536, %v5519
    %v6064 = vpack.c.bf16 %v5537, %v5520
    %v6065 = vpack.c.bf16 %v5538, %v5521
    %v6066 = vpack.c.bf16 %v5539, %v5522
    %v6067 = vpack.c.bf16 %v5540, %v5523
    %v6068 = vpack.c.bf16 %v5541, %v5524
    %v6069 = vpack.c.bf16 %v5559, %v5542
    %v6070 = vpack.c.bf16 %v5560, %v5543
    %v6071 = vpack.c.bf16 %v5561, %v5544
    %v6072 = vpack.c.bf16 %v5562, %v5545
    %v6073 = vpack.c.bf16 %v5563, %v5546
    %v6074 = vpack.c.bf16 %v5564, %v5547
    %v6075 = vpack.c.bf16 %v5565, %v5548
    %v6076 = vpack.c.bf16 %v5566, %v5549
    %v6077 = vpack.c.bf16 %v5567, %v5550
    %v6078 = vpack.c.bf16 %v5568, %v5551
    %v6079 = vpack.c.bf16 %v5569, %v5552
    %v6080 = vpack.c.bf16 %v5570, %v5553
    %v6081 = vpack.c.bf16 %v5571, %v5554
    %v6082 = vpack.c.bf16 %v5572, %v5555
    %v6083 = vpack.c.bf16 %v5573, %v5556
    %v6084 = vpack.c.bf16 %v5574, %v5557
    %v6085 = vpack.c.bf16 %v5575, %v5558
    %v6086 = vpack.c.bf16 %v5593, %v5576
    %v6087 = vpack.c.bf16 %v5594, %v5577
    %v6088 = vpack.c.bf16 %v5595, %v5578
    %v6089 = vpack.c.bf16 %v5596, %v5579
    %v6090 = vpack.c.bf16 %v5597, %v5580
    %v6091 = vpack.c.bf16 %v5598, %v5581
    %v6092 = vpack.c.bf16 %v5599, %v5582
    %v6093 = vpack.c.bf16 %v5600, %v5583
    %v6094 = vpack.c.bf16 %v5601, %v5584
    %v6095 = vpack.c.bf16 %v5602, %v5585
    %v6096 = vpack.c.bf16 %v5603, %v5586
    %v6097 = vpack.c.bf16 %v5604, %v5587
    %v6098 = vpack.c.bf16 %v5605, %v5588
    %v6099 = vpack.c.bf16 %v5606, %v5589
    %v6100 = vpack.c.bf16 %v5607, %v5590
    %v6101 = vpack.c.bf16 %v5608, %v5591
    %v6102 = vpack.c.bf16 %v5609, %v5592
    %v6103 = vpack.c.bf16 %v5627, %v5610
    %v6104 = vpack.c.bf16 %v5628, %v5611
    %v6105 = vpack.c.bf16 %v5629, %v5612
    %v6106 = vpack.c.bf16 %v5630, %v5613
    %v6107 = vpack.c.bf16 %v5631, %v5614
    %v6108 = vpack.c.bf16 %v5632, %v5615
    %v6109 = vpack.c.bf16 %v5633, %v5616
    %v6110 = vpack.c.bf16 %v5634, %v5617
    %v6111 = vpack.c.bf16 %v5635, %v5618
    %v6112 = vpack.c.bf16 %v5636, %v5619
    %v6113 = vpack.c.bf16 %v5637, %v5620
    %v6114 = vpack.c.bf16 %v5638, %v5621
    %v6115 = vpack.c.bf16 %v5639, %v5622
    %v6116 = vpack.c.bf16 %v5640, %v5623
    %v6117 = vpack.c.bf16 %v5641, %v5624
    %v6118 = vpack.c.bf16 %v5642, %v5625
    %v6119 = vpack.c.bf16 %v5643, %v5626
    %v6120 = vpack.c.bf16 %v5661, %v5644
    %v6121 = vpack.c.bf16 %v5662, %v5645
    %v6122 = vpack.c.bf16 %v5663, %v5646
    %v6123 = vpack.c.bf16 %v5664, %v5647
    %v6124 = vpack.c.bf16 %v5665, %v5648
    %v6125 = vpack.c.bf16 %v5666, %v5649
    %v6126 = vpack.c.bf16 %v5667, %v5650
    %v6127 = vpack.c.bf16 %v5668, %v5651
    %v6128 = vpack.c.bf16 %v5669, %v5652
    %v6129 = vpack.c.bf16 %v5670, %v5653
    %v6130 = vpack.c.bf16 %v5671, %v5654
    %v6131 = vpack.c.bf16 %v5672, %v5655
    %v6132 = vpack.c.bf16 %v5673, %v5656
    %v6133 = vpack.c.bf16 %v5674, %v5657
    %v6134 = vpack.c.bf16 %v5675, %v5658
    %v6135 = vpack.c.bf16 %v5676, %v5659
    %v6136 = vpack.c.bf16 %v5677, %v5660
    %v6137 = vpack.c.bf16 %v5695, %v5678
    %v6138 = vpack.c.bf16 %v5696, %v5679
    %v6139 = vpack.c.bf16 %v5697, %v5680
    %v6140 = vpack.c.bf16 %v5698, %v5681
    %v6141 = vpack.c.bf16 %v5699, %v5682
    %v6142 = vpack.c.bf16 %v5700, %v5683
    %v6143 = vpack.c.bf16 %v5701, %v5684
    %v6144 = vpack.c.bf16 %v5702, %v5685
    %v6145 = vpack.c.bf16 %v5703, %v5686
    %v6146 = vpack.c.bf16 %v5704, %v5687
    %v6147 = vpack.c.bf16 %v5705, %v5688
    %v6148 = vpack.c.bf16 %v5706, %v5689
    %v6149 = vpack.c.bf16 %v5707, %v5690
    %v6150 = vpack.c.bf16 %v5708, %v5691
    %v6151 = vpack.c.bf16 %v5709, %v5692
    %v6152 = vpack.c.bf16 %v5710, %v5693
    %v6153 = vpack.c.bf16 %v5711, %v5694
    %v6154 = vpack.c.bf16 %v5729, %v5712
    %v6155 = vpack.c.bf16 %v5730, %v5713
    %v6156 = vpack.c.bf16 %v5731, %v5714
    %v6157 = vpack.c.bf16 %v5732, %v5715
    %v6158 = vpack.c.bf16 %v5733, %v5716
    %v6159 = vpack.c.bf16 %v5734, %v5717
    %v6160 = vpack.c.bf16 %v5735, %v5718
    %v6161 = vpack.c.bf16 %v5736, %v5719
    %v6162 = vpack.c.bf16 %v5737, %v5720
    %v6163 = vpack.c.bf16 %v5738, %v5721
    %v6164 = vpack.c.bf16 %v5739, %v5722
    %v6165 = vpack.c.bf16 %v5740, %v5723
    %v6166 = vpack.c.bf16 %v5741, %v5724
    %v6167 = vpack.c.bf16 %v5742, %v5725
    %v6168 = vpack.c.bf16 %v5743, %v5726
    %v6169 = vpack.c.bf16 %v5744, %v5727
    %v6170 = vpack.c.bf16 %v5745, %v5728
    %v6171 = vpack.c.bf16 %v5763, %v5746
    %v6172 = vpack.c.bf16 %v5764, %v5747
    %v6173 = vpack.c.bf16 %v5765, %v5748
    %v6174 = vpack.c.bf16 %v5766, %v5749
    %v6175 = vpack.c.bf16 %v5767, %v5750
    %v6176 = vpack.c.bf16 %v5768, %v5751
    %v6177 = vpack.c.bf16 %v5769, %v5752
    %v6178 = vpack.c.bf16 %v5770, %v5753
    %v6179 = vpack.c.bf16 %v5771, %v5754
    %v6180 = vpack.c.bf16 %v5772, %v5755
    %v6181 = vpack.c.bf16 %v5773, %v5756
    %v6182 = vpack.c.bf16 %v5774, %v5757
    %v6183 = vpack.c.bf16 %v5775, %v5758
    %v6184 = vpack.c.bf16 %v5776, %v5759
    %v6185 = vpack.c.bf16 %v5777, %v5760
    %v6186 = vpack.c.bf16 %v5778, %v5761
    %v6187 = vpack.c.bf16 %v5779, %v5762
    %v6188 = vpack.c.bf16 %v5797, %v5780
    %v6189 = vpack.c.bf16 %v5798, %v5781
    %v6190 = vpack.c.bf16 %v5799, %v5782
    %v6191 = vpack.c.bf16 %v5800, %v5783
    %v6192 = vpack.c.bf16 %v5801, %v5784
    %v6193 = vpack.c.bf16 %v5802, %v5785
    %v6194 = vpack.c.bf16 %v5803, %v5786
    %v6195 = vpack.c.bf16 %v5804, %v5787
    %v6196 = vpack.c.bf16 %v5805, %v5788
    %v6197 = vpack.c.bf16 %v5806, %v5789
    %v6198 = vpack.c.bf16 %v5807, %v5790
    %v6199 = vpack.c.bf16 %v5808, %v5791
    %v6200 = vpack.c.bf16 %v5809, %v5792
    %v6201 = vpack.c.bf16 %v5810, %v5793
    %v6202 = vpack.c.bf16 %v5811, %v5794
    %v6203 = vpack.c.bf16 %v5812, %v5795
    %v6204 = vpack.c.bf16 %v5813, %v5796
    %v6205 = vpack.c.bf16 %v5831, %v5814
    %v6206 = vpack.c.bf16 %v5832, %v5815
    %v6207 = vpack.c.bf16 %v5833, %v5816
    %v6208 = vpack.c.bf16 %v5834, %v5817
    %v6209 = vpack.c.bf16 %v5835, %v5818
    %v6210 = vpack.c.bf16 %v5836, %v5819
    %v6211 = vpack.c.bf16 %v5837, %v5820
    %v6212 = vpack.c.bf16 %v5838, %v5821
    %v6213 = vpack.c.bf16 %v5839, %v5822
    %v6214 = vpack.c.bf16 %v5840, %v5823
    %v6215 = vpack.c.bf16 %v5841, %v5824
    %v6216 = vpack.c.bf16 %v5842, %v5825
    %v6217 = vpack.c.bf16 %v5843, %v5826
    %v6218 = vpack.c.bf16 %v5844, %v5827
    %v6219 = vpack.c.bf16 %v5845, %v5828
    %v6220 = vpack.c.bf16 %v5846, %v5829
    %v6221 = vpack.c.bf16 %v5847, %v5830
    %v6222 = vpack.c.bf16 %v5865, %v5848
    %v6223 = vpack.c.bf16 %v5866, %v5849
    %v6224 = vpack.c.bf16 %v5867, %v5850
    %v6225 = vpack.c.bf16 %v5868, %v5851
    %v6226 = vpack.c.bf16 %v5869, %v5852
    %v6227 = vpack.c.bf16 %v5870, %v5853
    %v6228 = vpack.c.bf16 %v5871, %v5854
    %v6229 = vpack.c.bf16 %v5872, %v5855
    %v6230 = vpack.c.bf16 %v5873, %v5856
    %v6231 = vpack.c.bf16 %v5874, %v5857
    %v6232 = vpack.c.bf16 %v5875, %v5858
    %v6233 = vpack.c.bf16 %v5876, %v5859
    %v6234 = vpack.c.bf16 %v5877, %v5860
    %v6235 = vpack.c.bf16 %v5878, %v5861
    %v6236 = vpack.c.bf16 %v5879, %v5862
    %v6237 = vpack.c.bf16 %v5880, %v5863
    %v6238 = vpack.c.bf16 %v5881, %v5864
    %v6239 = vpack.c.bf16 %v5899, %v5882
    %v6240 = vpack.c.bf16 %v5900, %v5883
    %v6241 = vpack.c.bf16 %v5901, %v5884
    %v6242 = vpack.c.bf16 %v5902, %v5885
    %v6243 = vpack.c.bf16 %v5903, %v5886
    %v6244 = vpack.c.bf16 %v5904, %v5887
    %v6245 = vpack.c.bf16 %v5905, %v5888
    %v6246 = vpack.c.bf16 %v5906, %v5889
    %v6247 = vpack.c.bf16 %v5907, %v5890
    %v6248 = vpack.c.bf16 %v5908, %v5891
    %v6249 = vpack.c.bf16 %v5909, %v5892
    %v6250 = vpack.c.bf16 %v5910, %v5893
    %v6251 = vpack.c.bf16 %v5911, %v5894
    %v6252 = vpack.c.bf16 %v5912, %v5895
    %v6253 = vpack.c.bf16 %v5913, %v5896
    %v6254 = vpack.c.bf16 %v5914, %v5897
    %v6255 = vpack.c.bf16 %v5915, %v5898
    %v6256 = vpack.c.bf16 %v5933, %v5916
    %v6257 = vpack.c.bf16 %v5934, %v5917
    %v6258 = vpack.c.bf16 %v5935, %v5918
    %v6259 = vpack.c.bf16 %v5936, %v5919
    %v6260 = vpack.c.bf16 %v5937, %v5920
    %v6261 = vpack.c.bf16 %v5938, %v5921
    %v6262 = vpack.c.bf16 %v5939, %v5922
    %v6263 = vpack.c.bf16 %v5940, %v5923
    %v6264 = vpack.c.bf16 %v5941, %v5924
    %v6265 = vpack.c.bf16 %v5942, %v5925
    %v6266 = vpack.c.bf16 %v5943, %v5926
    %v6267 = vpack.c.bf16 %v5944, %v5927
    %v6268 = vpack.c.bf16 %v5945, %v5928
    %v6269 = vpack.c.bf16 %v5946, %v5929
    %v6270 = vpack.c.bf16 %v5947, %v5930
    %v6271 = vpack.c.bf16 %v5948, %v5931
    %v6272 = vpack.c.bf16 %v5949, %v5932
    %v6273 = vpack.c.bf16 %v5967, %v5950
    %v6274 = vpack.c.bf16 %v5968, %v5951
    %v6275 = vpack.c.bf16 %v5969, %v5952
    %v6276 = vpack.c.bf16 %v5970, %v5953
    %v6277 = vpack.c.bf16 %v5971, %v5954
    %v6278 = vpack.c.bf16 %v5972, %v5955
    %v6279 = vpack.c.bf16 %v5973, %v5956
    %v6280 = vpack.c.bf16 %v5974, %v5957
    %v6281 = vpack.c.bf16 %v5975, %v5958
    %v6282 = vpack.c.bf16 %v5976, %v5959
    %v6283 = vpack.c.bf16 %v5977, %v5960
    %v6284 = vpack.c.bf16 %v5978, %v5961
    %v6285 = vpack.c.bf16 %v5979, %v5962
    %v6286 = vpack.c.bf16 %v5980, %v5963
    %v6287 = vpack.c.bf16 %v5981, %v5964
    %v6288 = vpack.c.bf16 %v5982, %v5965
    %v6289 = vpack.c.bf16 %v5983, %v5966
    %v6290 = vpack.c.bf16 %v6001, %v5984
    %v6291 = vpack.c.bf16 %v6002, %v5985
    %v6292 = vpack.c.bf16 %v6003, %v5986
    %v6293 = vpack.c.bf16 %v6004, %v5987
    %v6294 = vpack.c.bf16 %v6005, %v5988
    %v6295 = vpack.c.bf16 %v6006, %v5989
    %v6296 = vpack.c.bf16 %v6007, %v5990
    %v6297 = vpack.c.bf16 %v6008, %v5991
    %v6298 = vpack.c.bf16 %v6009, %v5992
    %v6299 = vpack.c.bf16 %v6010, %v5993
    %v6300 = vpack.c.bf16 %v6011, %v5994
    %v6301 = vpack.c.bf16 %v6012, %v5995
    %v6302 = vpack.c.bf16 %v6013, %v5996
    %v6303 = vpack.c.bf16 %v6014, %v5997
    %v6304 = vpack.c.bf16 %v6015, %v5998
    %v6305 = vpack.c.bf16 %v6016, %v5999
    %v6306 = vpack.c.bf16 %v6017, %v6000
    %v6307 = vpack.c.bf16 %v6035, %v6018
    %v6308 = vpack.c.bf16 %v6036, %v6019
    %v6309 = vpack.c.bf16 %v6037, %v6020
    %v6310 = vpack.c.bf16 %v6038, %v6021
    %v6311 = vpack.c.bf16 %v6039, %v6022
    %v6312 = vpack.c.bf16 %v6040, %v6023
    %v6313 = vpack.c.bf16 %v6041, %v6024
    %v6314 = vpack.c.bf16 %v6042, %v6025
    %v6315 = vpack.c.bf16 %v6043, %v6026
    %v6316 = vpack.c.bf16 %v6044, %v6027
    %v6317 = vpack.c.bf16 %v6045, %v6028
    %v6318 = vpack.c.bf16 %v6046, %v6029
    %v6319 = vpack.c.bf16 %v6047, %v6030
    %v6320 = vpack.c.bf16 %v6048, %v6031
    %v6321 = vpack.c.bf16 %v6049, %v6032
    %v6322 = vpack.c.bf16 %v6050, %v6033
    %v6323 = vpack.c.bf16 %v6051, %v6034
    %v6324 = vld [vmem:[#allocation7] sm:$0xff]
    %v6325 = vld [vmem:[#allocation7 + $0x8] sm:$0xff]
    %v6326 = vld [vmem:[#allocation7 + $0x10] sm:$0xff]
    %v6327 = vld [vmem:[#allocation7 + $0x18] sm:$0xff]
    %v6328 = vld [vmem:[#allocation7 + $0x20] sm:$0xff]
    %v6329 = vld [vmem:[#allocation7 + $0x28] sm:$0xff]
    %v6330 = vld [vmem:[#allocation7 + $0x30] sm:$0xff]
    %v6331 = vld [vmem:[#allocation7 + $0x38] sm:$0xff]
    %v6332 = vld [vmem:[#allocation7 + $0x40] sm:$0xff]
    %v6333 = vld [vmem:[#allocation7 + $0x48] sm:$0xff]
    %v6334 = vld [vmem:[#allocation7 + $0x50] sm:$0xff]
    %v6335 = vld [vmem:[#allocation7 + $0x58] sm:$0xff]
    %v6336 = vld [vmem:[#allocation7 + $0x60] sm:$0xff]
    %v6337 = vld [vmem:[#allocation7 + $0x68] sm:$0xff]
    %v6338 = vld [vmem:[#allocation7 + $0x70] sm:$0xff]
    %v6339 = vld [vmem:[#allocation7 + $0x78] sm:$0xff]
    %v6340 = vld [vmem:[#allocation7 + $0x80] sm:$0xff]
    %v6341 = vld [vmem:[#allocation7 + $0x88] sm:$0xff]
    %v6342 = vld [vmem:[#allocation7 + $0x90] sm:$0xff]
    %v6343 = vld [vmem:[#allocation7 + $0x98] sm:$0xff]
    %v6344 = vld [vmem:[#allocation7 + $0xa0] sm:$0xff]
    %v6345 = vld [vmem:[#allocation7 + $0xa8] sm:$0xff]
    %v6346 = vld [vmem:[#allocation7 + $0xb0] sm:$0xff]
    %v6347 = vld [vmem:[#allocation7 + $0xb8] sm:$0xff]
    %v6348 = vld [vmem:[#allocation7 + $0xc0] sm:$0xff]
    %v6349 = vld [vmem:[#allocation7 + $0xc8] sm:$0xff]
    %v6350 = vld [vmem:[#allocation7 + $0xd0] sm:$0xff]
    %v6351 = vld [vmem:[#allocation7 + $0xd8] sm:$0xff]
    %v6352 = vld [vmem:[#allocation7 + $0xe0] sm:$0xff]
    %v6353 = vld [vmem:[#allocation7 + $0xe8] sm:$0xff]
    %v6354 = vld [vmem:[#allocation7 + $0xf0] sm:$0xff]
    %v6355 = vld [vmem:[#allocation7 + $0xf8] sm:$0xff]
    %v6356 = vld [vmem:[#allocation7 + $0x100] sm:$0xff]
    %v6357 = vld [vmem:[#allocation7 + $0x108] sm:$0xff]
    %v6358 = vld [vmem:[#allocation7 + $0x110] sm:$0xff]
    %v6359 = vld [vmem:[#allocation7 + $0x118] sm:$0xff]
    %v6360 = vld [vmem:[#allocation7 + $0x120] sm:$0xff]
    %v6361 = vld [vmem:[#allocation7 + $0x128] sm:$0xff]
    %v6362 = vld [vmem:[#allocation7 + $0x130] sm:$0xff]
    %v6363 = vld [vmem:[#allocation7 + $0x138] sm:$0xff]
    %v6364 = vld [vmem:[#allocation7 + $0x140] sm:$0xff]
    %v6365 = vld [vmem:[#allocation7 + $0x148] sm:$0xff]
    %v6366 = vld [vmem:[#allocation7 + $0x150] sm:$0xff]
    %v6367 = vld [vmem:[#allocation7 + $0x158] sm:$0xff]
    %v6368 = vld [vmem:[#allocation7 + $0x160] sm:$0xff]
    %v6369 = vld [vmem:[#allocation7 + $0x168] sm:$0xff]
    %v6370 = vld [vmem:[#allocation7 + $0x170] sm:$0xff]
    %v6371 = vld [vmem:[#allocation7 + $0x178] sm:$0xff]
    %v6372 = vld [vmem:[#allocation7 + $0x180] sm:$0xff]
    %v6373 = vld [vmem:[#allocation7 + $0x188] sm:$0xff]
    %v6374 = vld [vmem:[#allocation7 + $0x190] sm:$0xff]
    %v6375 = vld [vmem:[#allocation7 + $0x198] sm:$0xff]
    %v6376 = vld [vmem:[#allocation7 + $0x1a0] sm:$0xff]
    %v6377 = vld [vmem:[#allocation7 + $0x1a8] sm:$0xff]
    %v6378 = vld [vmem:[#allocation7 + $0x1b0] sm:$0xff]
    %v6379 = vld [vmem:[#allocation7 + $0x1b8] sm:$0xff]
    %v6380 = vld [vmem:[#allocation7 + $0x1c0] sm:$0xff]
    %v6381 = vld [vmem:[#allocation7 + $0x1c8] sm:$0xff]
    %v6382 = vld [vmem:[#allocation7 + $0x1d0] sm:$0xff]
    %v6383 = vld [vmem:[#allocation7 + $0x1d8] sm:$0xff]
    %v6384 = vld [vmem:[#allocation7 + $0x1e0] sm:$0xff]
    %v6385 = vld [vmem:[#allocation7 + $0x1e8] sm:$0xff]
    %v6386 = vld [vmem:[#allocation7 + $0x1f0] sm:$0xff]
    %v6387 = vld [vmem:[#allocation7 + $0x1f8] sm:$0xff]
    %v6388 = vld [vmem:[#allocation7 + $0x200] sm:$0xff]
    %v6389 = vld [vmem:[#allocation7 + $0x208] sm:$0xff]
    %v6390 = vld [vmem:[#allocation7 + $0x210] sm:$0xff]
    %v6391 = vld [vmem:[#allocation7 + $0x218] sm:$0xff]
    %v6392 = vld [vmem:[#allocation7 + $0x220] sm:$0xff]
    %v6393 = vld [vmem:[#allocation7 + $0x228] sm:$0xff]
    %v6394 = vld [vmem:[#allocation7 + $0x230] sm:$0xff]
    %v6395 = vld [vmem:[#allocation7 + $0x238] sm:$0xff]
    %v6396 = vld [vmem:[#allocation7 + $0x240] sm:$0xff]
    %v6397 = vld [vmem:[#allocation7 + $0x248] sm:$0xff]
    %v6398 = vld [vmem:[#allocation7 + $0x250] sm:$0xff]
    %v6399 = vld [vmem:[#allocation7 + $0x258] sm:$0xff]
    %v6400 = vld [vmem:[#allocation7 + $0x260] sm:$0xff]
    %v6401 = vld [vmem:[#allocation7 + $0x268] sm:$0xff]
    %v6402 = vld [vmem:[#allocation7 + $0x270] sm:$0xff]
    %v6403 = vld [vmem:[#allocation7 + $0x278] sm:$0xff]
    %v6484 = vunpack.c.l.b16 %v6324
    %v6485 = vunpack.c.h.b16 %v6324
    %v6486 = vunpack.c.l.b16 %v6325
    %v6487 = vunpack.c.h.b16 %v6325
    %v6488 = vunpack.c.l.b16 %v6326
    %v6489 = vunpack.c.h.b16 %v6326
    %v6490 = vunpack.c.l.b16 %v6327
    %v6491 = vunpack.c.h.b16 %v6327
    %v6492 = vunpack.c.l.b16 %v6328
    %v6493 = vunpack.c.h.b16 %v6328
    %v6494 = vunpack.c.l.b16 %v6329
    %v6495 = vunpack.c.h.b16 %v6329
    %v6496 = vunpack.c.l.b16 %v6330
    %v6497 = vunpack.c.h.b16 %v6330
    %v6498 = vunpack.c.l.b16 %v6331
    %v6499 = vunpack.c.h.b16 %v6331
    %v6500 = vunpack.c.l.b16 %v6332
    %v6501 = vunpack.c.h.b16 %v6332
    %v6502 = vunpack.c.l.b16 %v6333
    %v6503 = vunpack.c.h.b16 %v6333
    %v6504 = vunpack.c.l.b16 %v6334
    %v6505 = vunpack.c.h.b16 %v6334
    %v6506 = vunpack.c.l.b16 %v6335
    %v6507 = vunpack.c.h.b16 %v6335
    %v6508 = vunpack.c.l.b16 %v6336
    %v6509 = vunpack.c.h.b16 %v6336
    %v6510 = vunpack.c.l.b16 %v6337
    %v6511 = vunpack.c.h.b16 %v6337
    %v6512 = vunpack.c.l.b16 %v6338
    %v6513 = vunpack.c.h.b16 %v6338
    %v6514 = vunpack.c.l.b16 %v6339
    %v6515 = vunpack.c.h.b16 %v6339
    %v6516 = vunpack.c.l.b16 %v6340
    %v6517 = vunpack.c.h.b16 %v6340
    %v6518 = vunpack.c.l.b16 %v6341
    %v6519 = vunpack.c.h.b16 %v6341
    %v6520 = vunpack.c.l.b16 %v6342
    %v6521 = vunpack.c.h.b16 %v6342
    %v6522 = vunpack.c.l.b16 %v6343
    %v6523 = vunpack.c.h.b16 %v6343
    %v6524 = vunpack.c.l.b16 %v6344
    %v6525 = vunpack.c.h.b16 %v6344
    %v6526 = vunpack.c.l.b16 %v6345
    %v6527 = vunpack.c.h.b16 %v6345
    %v6528 = vunpack.c.l.b16 %v6346
    %v6529 = vunpack.c.h.b16 %v6346
    %v6530 = vunpack.c.l.b16 %v6347
    %v6531 = vunpack.c.h.b16 %v6347
    %v6532 = vunpack.c.l.b16 %v6348
    %v6533 = vunpack.c.h.b16 %v6348
    %v6534 = vunpack.c.l.b16 %v6349
    %v6535 = vunpack.c.h.b16 %v6349
    %v6536 = vunpack.c.l.b16 %v6350
    %v6537 = vunpack.c.h.b16 %v6350
    %v6538 = vunpack.c.l.b16 %v6351
    %v6539 = vunpack.c.h.b16 %v6351
    %v6540 = vunpack.c.l.b16 %v6352
    %v6541 = vunpack.c.h.b16 %v6352
    %v6542 = vunpack.c.l.b16 %v6353
    %v6543 = vunpack.c.h.b16 %v6353
    %v6544 = vunpack.c.l.b16 %v6354
    %v6545 = vunpack.c.h.b16 %v6354
    %v6546 = vunpack.c.l.b16 %v6355
    %v6547 = vunpack.c.h.b16 %v6355
    %v6548 = vunpack.c.l.b16 %v6356
    %v6549 = vunpack.c.h.b16 %v6356
    %v6550 = vunpack.c.l.b16 %v6357
    %v6551 = vunpack.c.h.b16 %v6357
    %v6552 = vunpack.c.l.b16 %v6358
    %v6553 = vunpack.c.h.b16 %v6358
    %v6554 = vunpack.c.l.b16 %v6359
    %v6555 = vunpack.c.h.b16 %v6359
    %v6556 = vunpack.c.l.b16 %v6360
    %v6557 = vunpack.c.h.b16 %v6360
    %v6558 = vunpack.c.l.b16 %v6361
    %v6559 = vunpack.c.h.b16 %v6361
    %v6560 = vunpack.c.l.b16 %v6362
    %v6561 = vunpack.c.h.b16 %v6362
    %v6562 = vunpack.c.l.b16 %v6363
    %v6563 = vunpack.c.h.b16 %v6363
    %v6564 = vunpack.c.l.b16 %v6364
    %v6565 = vunpack.c.h.b16 %v6364
    %v6566 = vunpack.c.l.b16 %v6365
    %v6567 = vunpack.c.h.b16 %v6365
    %v6568 = vunpack.c.l.b16 %v6366
    %v6569 = vunpack.c.h.b16 %v6366
    %v6570 = vunpack.c.l.b16 %v6367
    %v6571 = vunpack.c.h.b16 %v6367
    %v6572 = vunpack.c.l.b16 %v6368
    %v6573 = vunpack.c.h.b16 %v6368
    %v6574 = vunpack.c.l.b16 %v6369
    %v6575 = vunpack.c.h.b16 %v6369
    %v6576 = vunpack.c.l.b16 %v6370
    %v6577 = vunpack.c.h.b16 %v6370
    %v6578 = vunpack.c.l.b16 %v6371
    %v6579 = vunpack.c.h.b16 %v6371
    %v6580 = vunpack.c.l.b16 %v6372
    %v6581 = vunpack.c.h.b16 %v6372
    %v6582 = vunpack.c.l.b16 %v6373
    %v6583 = vunpack.c.h.b16 %v6373
    %v6584 = vunpack.c.l.b16 %v6374
    %v6585 = vunpack.c.h.b16 %v6374
    %v6586 = vunpack.c.l.b16 %v6375
    %v6587 = vunpack.c.h.b16 %v6375
    %v6588 = vunpack.c.l.b16 %v6376
    %v6589 = vunpack.c.h.b16 %v6376
    %v6590 = vunpack.c.l.b16 %v6377
    %v6591 = vunpack.c.h.b16 %v6377
    %v6592 = vunpack.c.l.b16 %v6378
    %v6593 = vunpack.c.h.b16 %v6378
    %v6594 = vunpack.c.l.b16 %v6379
    %v6595 = vunpack.c.h.b16 %v6379
    %v6596 = vunpack.c.l.b16 %v6380
    %v6597 = vunpack.c.h.b16 %v6380
    %v6598 = vunpack.c.l.b16 %v6381
    %v6599 = vunpack.c.h.b16 %v6381
    %v6600 = vunpack.c.l.b16 %v6382
    %v6601 = vunpack.c.h.b16 %v6382
    %v6602 = vunpack.c.l.b16 %v6383
    %v6603 = vunpack.c.h.b16 %v6383
    %v6604 = vunpack.c.l.b16 %v6384
    %v6605 = vunpack.c.h.b16 %v6384
    %v6606 = vunpack.c.l.b16 %v6385
    %v6607 = vunpack.c.h.b16 %v6385
    %v6608 = vunpack.c.l.b16 %v6386
    %v6609 = vunpack.c.h.b16 %v6386
    %v6610 = vunpack.c.l.b16 %v6387
    %v6611 = vunpack.c.h.b16 %v6387
    %v6612 = vunpack.c.l.b16 %v6388
    %v6613 = vunpack.c.h.b16 %v6388
    %v6614 = vunpack.c.l.b16 %v6389
    %v6615 = vunpack.c.h.b16 %v6389
    %v6616 = vunpack.c.l.b16 %v6390
    %v6617 = vunpack.c.h.b16 %v6390
    %v6618 = vunpack.c.l.b16 %v6391
    %v6619 = vunpack.c.h.b16 %v6391
    %v6620 = vunpack.c.l.b16 %v6392
    %v6621 = vunpack.c.h.b16 %v6392
    %v6622 = vunpack.c.l.b16 %v6393
    %v6623 = vunpack.c.h.b16 %v6393
    %v6624 = vunpack.c.l.b16 %v6394
    %v6625 = vunpack.c.h.b16 %v6394
    %v6626 = vunpack.c.l.b16 %v6395
    %v6627 = vunpack.c.h.b16 %v6395
    %v6628 = vunpack.c.l.b16 %v6396
    %v6629 = vunpack.c.h.b16 %v6396
    %v6630 = vunpack.c.l.b16 %v6397
    %v6631 = vunpack.c.h.b16 %v6397
    %v6632 = vunpack.c.l.b16 %v6398
    %v6633 = vunpack.c.h.b16 %v6398
    %v6634 = vunpack.c.l.b16 %v6399
    %v6635 = vunpack.c.h.b16 %v6399
    %v6636 = vunpack.c.l.b16 %v6400
    %v6637 = vunpack.c.h.b16 %v6400
    %v6638 = vunpack.c.l.b16 %v6401
    %v6639 = vunpack.c.h.b16 %v6401
    %v6640 = vunpack.c.l.b16 %v6402
    %v6641 = vunpack.c.h.b16 %v6402
    %v6642 = vunpack.c.l.b16 %v6403
    %v6643 = vunpack.c.h.b16 %v6403
    %v6644 = vpack.c.b16 %v6486, %v6484
    %v6645 = vpack.c.b16 %v6487, %v6485
    %v6646 = vpack.c.b16 %v6490, %v6488
    %v6647 = vpack.c.b16 %v6491, %v6489
    %v6648 = vpack.c.b16 %v6494, %v6492
    %v6649 = vpack.c.b16 %v6495, %v6493
    %v6650 = vpack.c.b16 %v6498, %v6496
    %v6651 = vpack.c.b16 %v6499, %v6497
    %v6652 = vpack.c.b16 %v6502, %v6500
    %v6653 = vpack.c.b16 %v6503, %v6501
    %v6654 = vpack.c.b16 %v6506, %v6504
    %v6655 = vpack.c.b16 %v6507, %v6505
    %v6656 = vpack.c.b16 %v6510, %v6508
    %v6657 = vpack.c.b16 %v6511, %v6509
    %v6658 = vpack.c.b16 %v6514, %v6512
    %v6659 = vpack.c.b16 %v6515, %v6513
    %v6660 = vpack.c.b16 %v6518, %v6516
    %v6661 = vpack.c.b16 %v6519, %v6517
    %v6662 = vpack.c.b16 %v6522, %v6520
    %v6663 = vpack.c.b16 %v6523, %v6521
    %v6664 = vpack.c.b16 %v6526, %v6524
    %v6665 = vpack.c.b16 %v6527, %v6525
    %v6666 = vpack.c.b16 %v6530, %v6528
    %v6667 = vpack.c.b16 %v6531, %v6529
    %v6668 = vpack.c.b16 %v6534, %v6532
    %v6669 = vpack.c.b16 %v6535, %v6533
    %v6670 = vpack.c.b16 %v6538, %v6536
    %v6671 = vpack.c.b16 %v6539, %v6537
    %v6672 = vpack.c.b16 %v6542, %v6540
    %v6673 = vpack.c.b16 %v6543, %v6541
    %v6674 = vpack.c.b16 %v6546, %v6544
    %v6675 = vpack.c.b16 %v6547, %v6545
    %v6676 = vpack.c.b16 %v6550, %v6548
    %v6677 = vpack.c.b16 %v6551, %v6549
    %v6678 = vpack.c.b16 %v6554, %v6552
    %v6679 = vpack.c.b16 %v6555, %v6553
    %v6680 = vpack.c.b16 %v6558, %v6556
    %v6681 = vpack.c.b16 %v6559, %v6557
    %v6682 = vpack.c.b16 %v6562, %v6560
    %v6683 = vpack.c.b16 %v6563, %v6561
    %v6684 = vpack.c.b16 %v6566, %v6564
    %v6685 = vpack.c.b16 %v6567, %v6565
    %v6686 = vpack.c.b16 %v6570, %v6568
    %v6687 = vpack.c.b16 %v6571, %v6569
    %v6688 = vpack.c.b16 %v6574, %v6572
    %v6689 = vpack.c.b16 %v6575, %v6573
    %v6690 = vpack.c.b16 %v6578, %v6576
    %v6691 = vpack.c.b16 %v6579, %v6577
    %v6692 = vpack.c.b16 %v6582, %v6580
    %v6693 = vpack.c.b16 %v6583, %v6581
    %v6694 = vpack.c.b16 %v6586, %v6584
    %v6695 = vpack.c.b16 %v6587, %v6585
    %v6696 = vpack.c.b16 %v6590, %v6588
    %v6697 = vpack.c.b16 %v6591, %v6589
    %v6698 = vpack.c.b16 %v6594, %v6592
    %v6699 = vpack.c.b16 %v6595, %v6593
    %v6700 = vpack.c.b16 %v6598, %v6596
    %v6701 = vpack.c.b16 %v6599, %v6597
    %v6702 = vpack.c.b16 %v6602, %v6600
    %v6703 = vpack.c.b16 %v6603, %v6601
    %v6704 = vpack.c.b16 %v6606, %v6604
    %v6705 = vpack.c.b16 %v6607, %v6605
    %v6706 = vpack.c.b16 %v6610, %v6608
    %v6707 = vpack.c.b16 %v6611, %v6609
    %v6708 = vpack.c.b16 %v6614, %v6612
    %v6709 = vpack.c.b16 %v6615, %v6613
    %v6710 = vpack.c.b16 %v6618, %v6616
    %v6711 = vpack.c.b16 %v6619, %v6617
    %v6712 = vpack.c.b16 %v6622, %v6620
    %v6713 = vpack.c.b16 %v6623, %v6621
    %v6714 = vpack.c.b16 %v6626, %v6624
    %v6715 = vpack.c.b16 %v6627, %v6625
    %v6716 = vpack.c.b16 %v6630, %v6628
    %v6717 = vpack.c.b16 %v6631, %v6629
    %v6718 = vpack.c.b16 %v6634, %v6632
    %v6719 = vpack.c.b16 %v6635, %v6633
    %v6720 = vpack.c.b16 %v6638, %v6636
    %v6721 = vpack.c.b16 %v6639, %v6637
    %v6722 = vpack.c.b16 %v6642, %v6640
    %v6723 = vpack.c.b16 %v6643, %v6641
    %6804 = vmatprep.subr.bf16.mxu0 %v6645
    %6805 = vmatpush1.bf16.msra.mxu0 %v6644
    %6806 = vmatprep.subr.bf16.mxu0 %v6647
    %6807 = vmatpush1.bf16.msra.mxu0 %v6646
    %6808 = vmatprep.subr.bf16.mxu0 %v6649
    %6809 = vmatpush1.bf16.msra.mxu0 %v6648
    %6810 = vmatprep.subr.bf16.mxu0 %v6651
    %6811 = vmatpush1.bf16.msra.mxu0 %v6650
    %6812 = vmatprep.subr.bf16.mxu0 %v6653
    %6813 = vmatpush1.bf16.msra.mxu0 %v6652
    %6814 = vmatprep.subr.bf16.mxu0 %v6655
    %6815 = vmatpush1.bf16.msra.mxu0 %v6654
    %6816 = vmatprep.subr.bf16.mxu0 %v6657
    %6817 = vmatpush1.bf16.msra.mxu0 %v6656
    %6818 = vmatprep.subr.bf16.mxu0 %v6659
    %6819 = vmatpush1.bf16.msra.mxu0 %v6658
    %6820 = vmatprep.subr.bf16.mxu0 %v6661
    %6821 = vmatpush1.bf16.msra.mxu0 %v6660
    %6822 = vmatprep.subr.bf16.mxu0 %v6663
    %6823 = vmatpush1.bf16.msra.mxu0 %v6662
    %6824 = vmatprep.subr.bf16.mxu0 %v6665
    %6825 = vmatpush1.bf16.msra.mxu0 %v6664
    %6826 = vmatprep.subr.bf16.mxu0 %v6667
    %6827 = vmatpush1.bf16.msra.mxu0 %v6666
    %6828 = vmatprep.subr.bf16.mxu0 %v6669
    %6829 = vmatpush1.bf16.msra.mxu0 %v6668
    %6830 = vmatprep.subr.bf16.mxu0 %v6671
    %6831 = vmatpush1.bf16.msra.mxu0 %v6670
    %6832 = vmatprep.subr.bf16.mxu0 %v6673
    %6833 = vmatpush1.bf16.msra.mxu0 %v6672
    %6834 = vmatprep.subr.bf16.mxu0 %v6675
    %6835 = vmatpush1.bf16.msra.mxu0 %v6674
    %6836 = vmatprep.mubr.bf16.mxu0 %v6053
    %6837 = vmatmul.mubr.bf16.gmra.mrb[0].mxu0 %v6052
    %v6838 = vpop.f32.mrb[0].mxu0
    %v6839 = vadd.f32 0.0, %v6838
    %v6840 = vpop.f32.mrb[0].mxu0
    %v6841 = vadd.f32 0.0, %v6840
    %v6842 = vpop.f32.mrb[0].mxu0
    %v6843 = vadd.f32 0.0, %v6842
    %v6844 = vpop.f32.mrb[0].mxu0
    %v6845 = vadd.f32 0.0, %v6844
    %6846 = vmatprep.mubr.bf16.mxu0 %v6070
    %6847 = vmatmul.mubr.bf16.gmra.mrb[0].mxu0 %v6069
    %v6848 = vpop.f32.mrb[0].mxu0
    %v6849 = vadd.f32 0.0, %v6848
    %v6850 = vpop.f32.mrb[0].mxu0
    %v6851 = vadd.f32 0.0, %v6850
    %v6852 = vpop.f32.mrb[0].mxu0
    %v6853 = vadd.f32 0.0, %v6852
    %v6854 = vpop.f32.mrb[0].mxu0
    %v6855 = vadd.f32 0.0, %v6854
    %6856 = vmatprep.mubr.bf16.mxu0 %v6087
    %6857 = vmatmul.mubr.bf16.gmra.mrb[0].mxu0 %v6086
    %v6858 = vpop.f32.mrb[0].mxu0
    %v6859 = vadd.f32 0.0, %v6858
    %v6860 = vpop.f32.mrb[0].mxu0
    %v6861 = vadd.f32 0.0, %v6860
    %v6862 = vpop.f32.mrb[0].mxu0
    %v6863 = vadd.f32 0.0, %v6862
    %v6864 = vpop.f32.mrb[0].mxu0
    %v6865 = vadd.f32 0.0, %v6864
    %6866 = vmatprep.mubr.bf16.mxu0 %v6104
    %6867 = vmatmul.mubr.bf16.gmra.mrb[0].mxu0 %v6103
    %v6868 = vpop.f32.mrb[0].mxu0
    %v6869 = vadd.f32 0.0, %v6868
    %v6870 = vpop.f32.mrb[0].mxu0
    %v6871 = vadd.f32 0.0, %v6870
    %v6872 = vpop.f32.mrb[0].mxu0
    %v6873 = vadd.f32 0.0, %v6872
    %v6874 = vpop.f32.mrb[0].mxu0
    %v6875 = vadd.f32 0.0, %v6874
    %6876 = vmatprep.mubr.bf16.mxu0 %v6121
    %6877 = vmatmul.mubr.bf16.gmra.mrb[0].mxu0 %v6120
    %v6878 = vpop.f32.mrb[0].mxu0
    %v6879 = vadd.f32 0.0, %v6878
    %v6880 = vpop.f32.mrb[0].mxu0
    %v6881 = vadd.f32 0.0, %v6880
    %v6882 = vpop.f32.mrb[0].mxu0
    %v6883 = vadd.f32 0.0, %v6882
    %v6884 = vpop.f32.mrb[0].mxu0
    %v6885 = vadd.f32 0.0, %v6884
    %6886 = vmatprep.mubr.bf16.mxu0 %v6138
    %6887 = vmatmul.mubr.bf16.gmra.mrb[0].mxu0 %v6137
    %v6888 = vpop.f32.mrb[0].mxu0
    %v6889 = vadd.f32 0.0, %v6888
    %v6890 = vpop.f32.mrb[0].mxu0
    %v6891 = vadd.f32 0.0, %v6890
    %v6892 = vpop.f32.mrb[0].mxu0
    %v6893 = vadd.f32 0.0, %v6892
    %v6894 = vpop.f32.mrb[0].mxu0
    %v6895 = vadd.f32 0.0, %v6894
    %6896 = vmatprep.mubr.bf16.mxu0 %v6155
    %6897 = vmatmul.mubr.bf16.gmra.mrb[0].mxu0 %v6154
    %v6898 = vpop.f32.mrb[0].mxu0
    %v6899 = vadd.f32 0.0, %v6898
    %v6900 = vpop.f32.mrb[0].mxu0
    %v6901 = vadd.f32 0.0, %v6900
    %v6902 = vpop.f32.mrb[0].mxu0
    %v6903 = vadd.f32 0.0, %v6902
    %v6904 = vpop.f32.mrb[0].mxu0
    %v6905 = vadd.f32 0.0, %v6904
    %6906 = vmatprep.mubr.bf16.mxu0 %v6172
    %6907 = vmatmul.mubr.bf16.gmra.mrb[0].mxu0 %v6171
    %v6908 = vpop.f32.mrb[0].mxu0
    %v6909 = vadd.f32 0.0, %v6908
    %v6910 = vpop.f32.mrb[0].mxu0
    %v6911 = vadd.f32 0.0, %v6910
    %v6912 = vpop.f32.mrb[0].mxu0
    %v6913 = vadd.f32 0.0, %v6912
    %v6914 = vpop.f32.mrb[0].mxu0
    %v6915 = vadd.f32 0.0, %v6914
    %6916 = vmatprep.mubr.bf16.mxu0 %v6189
    %6917 = vmatmul.mubr.bf16.gmra.mrb[0].mxu0 %v6188
    %v6918 = vpop.f32.mrb[0].mxu0
    %v6919 = vadd.f32 0.0, %v6918
    %v6920 = vpop.f32.mrb[0].mxu0
    %v6921 = vadd.f32 0.0, %v6920
    %v6922 = vpop.f32.mrb[0].mxu0
    %v6923 = vadd.f32 0.0, %v6922
    %v6924 = vpop.f32.mrb[0].mxu0
    %v6925 = vadd.f32 0.0, %v6924
    %6926 = vmatprep.mubr.bf16.mxu0 %v6206
    %6927 = vmatmul.mubr.bf16.gmra.mrb[0].mxu0 %v6205
    %v6928 = vpop.f32.mrb[0].mxu0
    %v6929 = vadd.f32 0.0, %v6928
    %v6930 = vpop.f32.mrb[0].mxu0
    %v6931 = vadd.f32 0.0, %v6930
    %v6932 = vpop.f32.mrb[0].mxu0
    %v6933 = vadd.f32 0.0, %v6932
    %v6934 = vpop.f32.mrb[0].mxu0
    %v6935 = vadd.f32 0.0, %v6934
    %6936 = vmatprep.mubr.bf16.mxu0 %v6223
    %6937 = vmatmul.mubr.bf16.gmra.mrb[0].mxu0 %v6222
    %v6938 = vpop.f32.mrb[0].mxu0
    %v6939 = vadd.f32 0.0, %v6938
    %v6940 = vpop.f32.mrb[0].mxu0
    %v6941 = vadd.f32 0.0, %v6940
    %v6942 = vpop.f32.mrb[0].mxu0
    %v6943 = vadd.f32 0.0, %v6942
    %v6944 = vpop.f32.mrb[0].mxu0
    %v6945 = vadd.f32 0.0, %v6944
    %6946 = vmatprep.mubr.bf16.mxu0 %v6240
    %6947 = vmatmul.mubr.bf16.gmra.mrb[0].mxu0 %v6239
    %v6948 = vpop.f32.mrb[0].mxu0
    %v6949 = vadd.f32 0.0, %v6948
    %v6950 = vpop.f32.mrb[0].mxu0
    %v6951 = vadd.f32 0.0, %v6950
    %v6952 = vpop.f32.mrb[0].mxu0
    %v6953 = vadd.f32 0.0, %v6952
    %v6954 = vpop.f32.mrb[0].mxu0
    %v6955 = vadd.f32 0.0, %v6954
    %6956 = vmatprep.mubr.bf16.mxu0 %v6257
    %6957 = vmatmul.mubr.bf16.gmra.mrb[0].mxu0 %v6256
    %v6958 = vpop.f32.mrb[0].mxu0
    %v6959 = vadd.f32 0.0, %v6958
    %v6960 = vpop.f32.mrb[0].mxu0
    %v6961 = vadd.f32 0.0, %v6960
    %v6962 = vpop.f32.mrb[0].mxu0
    %v6963 = vadd.f32 0.0, %v6962
    %v6964 = vpop.f32.mrb[0].mxu0
    %v6965 = vadd.f32 0.0, %v6964
    %6966 = vmatprep.mubr.bf16.mxu0 %v6274
    %6967 = vmatmul.mubr.bf16.gmra.mrb[0].mxu0 %v6273
    %v6968 = vpop.f32.mrb[0].mxu0
    %v6969 = vadd.f32 0.0, %v6968
    %v6970 = vpop.f32.mrb[0].mxu0
    %v6971 = vadd.f32 0.0, %v6970
    %v6972 = vpop.f32.mrb[0].mxu0
    %v6973 = vadd.f32 0.0, %v6972
    %v6974 = vpop.f32.mrb[0].mxu0
    %v6975 = vadd.f32 0.0, %v6974
    %6976 = vmatprep.mubr.bf16.mxu0 %v6291
    %6977 = vmatmul.mubr.bf16.gmra.mrb[0].mxu0 %v6290
    %v6978 = vpop.f32.mrb[0].mxu0
    %v6979 = vadd.f32 0.0, %v6978
    %v6980 = vpop.f32.mrb[0].mxu0
    %v6981 = vadd.f32 0.0, %v6980
    %v6982 = vpop.f32.mrb[0].mxu0
    %v6983 = vadd.f32 0.0, %v6982
    %v6984 = vpop.f32.mrb[0].mxu0
    %v6985 = vadd.f32 0.0, %v6984
    %6986 = vmatprep.mubr.bf16.mxu0 %v6308
    %6987 = vmatmul.mubr.bf16.gmra.mrb[0].mxu0 %v6307
    %v6988 = vpop.f32.mrb[0].mxu0
    %v6989 = vadd.f32 0.0, %v6988
    %v6990 = vpop.f32.mrb[0].mxu0
    %v6991 = vadd.f32 0.0, %v6990
    %v6992 = vpop.f32.mrb[0].mxu0
    %v6993 = vadd.f32 0.0, %v6992
    %v6994 = vpop.f32.mrb[0].mxu0
    %v6995 = vadd.f32 0.0, %v6994
    %6996 = vdwg.mxu0
    %6997 = vmatprep.subr.bf16.mxu0 %v6677
    %6998 = vmatpush1.bf16.msra.mxu0 %v6676
    %6999 = vmatprep.subr.bf16.mxu0 %v6679
    %7000 = vmatpush1.bf16.msra.mxu0 %v6678
    %7001 = vmatprep.subr.bf16.mxu0 %v6681
    %7002 = vmatpush1.bf16.msra.mxu0 %v6680
    %7003 = vmatprep.subr.bf16.mxu0 %v6683
    %7004 = vmatpush1.bf16.msra.mxu0 %v6682
    %7005 = vmatprep.subr.bf16.mxu0 %v6685
    %7006 = vmatpush1.bf16.msra.mxu0 %v6684
    %7007 = vmatprep.subr.bf16.mxu0 %v6687
    %7008 = vmatpush1.bf16.msra.mxu0 %v6686
    %7009 = vmatprep.subr.bf16.mxu0 %v6689
    %7010 = vmatpush1.bf16.msra.mxu0 %v6688
    %7011 = vmatprep.subr.bf16.mxu0 %v6691
    %7012 = vmatpush1.bf16.msra.mxu0 %v6690
    %7013 = vmatprep.subr.bf16.mxu0 %v6693
    %7014 = vmatpush1.bf16.msra.mxu0 %v6692
    %7015 = vmatprep.subr.bf16.mxu0 %v6695
    %7016 = vmatpush1.bf16.msra.mxu0 %v6694
    %7017 = vmatprep.subr.bf16.mxu0 %v6697
    %7018 = vmatpush1.bf16.msra.mxu0 %v6696
    %7019 = vmatprep.subr.bf16.mxu0 %v6699
    %7020 = vmatpush1.bf16.msra.mxu0 %v6698
    %7021 = vmatprep.subr.bf16.mxu0 %v6701
    %7022 = vmatpush1.bf16.msra.mxu0 %v6700
    %7023 = vmatprep.subr.bf16.mxu0 %v6703
    %7024 = vmatpush1.bf16.msra.mxu0 %v6702
    %7025 = vmatprep.subr.bf16.mxu0 %v6705
    %7026 = vmatpush1.bf16.msra.mxu0 %v6704
    %7027 = vmatprep.subr.bf16.mxu0 %v6707
    %7028 = vmatpush1.bf16.msra.mxu0 %v6706
    %7029 = vmatprep.mubr.bf16.mxu0 %v6055
    %7030 = vmatmul.mubr.bf16.gmra.mrb[0].mxu0 %v6054
    %v7031 = vpop.f32.mrb[0].mxu0
    %v7032 = vadd.f32 %v6839, %v7031
    %v7033 = vpop.f32.mrb[0].mxu0
    %v7034 = vadd.f32 %v6841, %v7033
    %v7035 = vpop.f32.mrb[0].mxu0
    %v7036 = vadd.f32 %v6843, %v7035
    %v7037 = vpop.f32.mrb[0].mxu0
    %v7038 = vadd.f32 %v6845, %v7037
    %7039 = vmatprep.mubr.bf16.mxu0 %v6072
    %7040 = vmatmul.mubr.bf16.gmra.mrb[0].mxu0 %v6071
    %v7041 = vpop.f32.mrb[0].mxu0
    %v7042 = vadd.f32 %v6849, %v7041
    %v7043 = vpop.f32.mrb[0].mxu0
    %v7044 = vadd.f32 %v6851, %v7043
    %v7045 = vpop.f32.mrb[0].mxu0
    %v7046 = vadd.f32 %v6853, %v7045
    %v7047 = vpop.f32.mrb[0].mxu0
    %v7048 = vadd.f32 %v6855, %v7047
    %7049 = vmatprep.mubr.bf16.mxu0 %v6089
    %7050 = vmatmul.mubr.bf16.gmra.mrb[0].mxu0 %v6088
    %v7051 = vpop.f32.mrb[0].mxu0
    %v7052 = vadd.f32 %v6859, %v7051
    %v7053 = vpop.f32.mrb[0].mxu0
    %v7054 = vadd.f32 %v6861, %v7053
    %v7055 = vpop.f32.mrb[0].mxu0
    %v7056 = vadd.f32 %v6863, %v7055
    %v7057 = vpop.f32.mrb[0].mxu0
    %v7058 = vadd.f32 %v6865, %v7057
    %7059 = vmatprep.mubr.bf16.mxu0 %v6106
    %7060 = vmatmul.mubr.bf16.gmra.mrb[0].mxu0 %v6105
    %v7061 = vpop.f32.mrb[0].mxu0
    %v7062 = vadd.f32 %v6869, %v7061
    %v7063 = vpop.f32.mrb[0].mxu0
    %v7064 = vadd.f32 %v6871, %v7063
    %v7065 = vpop.f32.mrb[0].mxu0
    %v7066 = vadd.f32 %v6873, %v7065
    %v7067 = vpop.f32.mrb[0].mxu0
    %v7068 = vadd.f32 %v6875, %v7067
    %7069 = vmatprep.mubr.bf16.mxu0 %v6123
    %7070 = vmatmul.mubr.bf16.gmra.mrb[0].mxu0 %v6122
    %v7071 = vpop.f32.mrb[0].mxu0
    %v7072 = vadd.f32 %v6879, %v7071
    %v7073 = vpop.f32.mrb[0].mxu0
    %v7074 = vadd.f32 %v6881, %v7073
    %v7075 = vpop.f32.mrb[0].mxu0
    %v7076 = vadd.f32 %v6883, %v7075
    %v7077 = vpop.f32.mrb[0].mxu0
    %v7078 = vadd.f32 %v6885, %v7077
    %7079 = vmatprep.mubr.bf16.mxu0 %v6140
    %7080 = vmatmul.mubr.bf16.gmra.mrb[0].mxu0 %v6139
    %v7081 = vpop.f32.mrb[0].mxu0
    %v7082 = vadd.f32 %v6889, %v7081
    %v7083 = vpop.f32.mrb[0].mxu0
    %v7084 = vadd.f32 %v6891, %v7083
    %v7085 = vpop.f32.mrb[0].mxu0
    %v7086 = vadd.f32 %v6893, %v7085
    %v7087 = vpop.f32.mrb[0].mxu0
    %v7088 = vadd.f32 %v6895, %v7087
    %7089 = vmatprep.mubr.bf16.mxu0 %v6157
    %7090 = vmatmul.mubr.bf16.gmra.mrb[0].mxu0 %v6156
    %v7091 = vpop.f32.mrb[0].mxu0
    %v7092 = vadd.f32 %v6899, %v7091
    %v7093 = vpop.f32.mrb[0].mxu0
    %v7094 = vadd.f32 %v6901, %v7093
    %v7095 = vpop.f32.mrb[0].mxu0
    %v7096 = vadd.f32 %v6903, %v7095
    %v7097 = vpop.f32.mrb[0].mxu0
    %v7098 = vadd.f32 %v6905, %v7097
    %7099 = vmatprep.mubr.bf16.mxu0 %v6174
    %7100 = vmatmul.mubr.bf16.gmra.mrb[0].mxu0 %v6173
    %v7101 = vpop.f32.mrb[0].mxu0
    %v7102 = vadd.f32 %v6909, %v7101
    %v7103 = vpop.f32.mrb[0].mxu0
    %v7104 = vadd.f32 %v6911, %v7103
    %v7105 = vpop.f32.mrb[0].mxu0
    %v7106 = vadd.f32 %v6913, %v7105
    %v7107 = vpop.f32.mrb[0].mxu0
    %v7108 = vadd.f32 %v6915, %v7107
    %7109 = vmatprep.mubr.bf16.mxu0 %v6191
    %7110 = vmatmul.mubr.bf16.gmra.mrb[0].mxu0 %v6190
    %v7111 = vpop.f32.mrb[0].mxu0
    %v7112 = vadd.f32 %v6919, %v7111
    %v7113 = vpop.f32.mrb[0].mxu0
    %v7114 = vadd.f32 %v6921, %v7113
    %v7115 = vpop.f32.mrb[0].mxu0
    %v7116 = vadd.f32 %v6923, %v7115
    %v7117 = vpop.f32.mrb[0].mxu0
    %v7118 = vadd.f32 %v6925, %v7117
    %7119 = vmatprep.mubr.bf16.mxu0 %v6208
    %7120 = vmatmul.mubr.bf16.gmra.mrb[0].mxu0 %v6207
    %v7121 = vpop.f32.mrb[0].mxu0
    %v7122 = vadd.f32 %v6929, %v7121
    %v7123 = vpop.f32.mrb[0].mxu0
    %v7124 = vadd.f32 %v6931, %v7123
    %v7125 = vpop.f32.mrb[0].mxu0
    %v7126 = vadd.f32 %v6933, %v7125
    %v7127 = vpop.f32.mrb[0].mxu0
    %v7128 = vadd.f32 %v6935, %v7127
    %7129 = vmatprep.mubr.bf16.mxu0 %v6225
    %7130 = vmatmul.mubr.bf16.gmra.mrb[0].mxu0 %v6224
    %v7131 = vpop.f32.mrb[0].mxu0
    %v7132 = vadd.f32 %v6939, %v7131
    %v7133 = vpop.f32.mrb[0].mxu0
    %v7134 = vadd.f32 %v6941, %v7133
    %v7135 = vpop.f32.mrb[0].mxu0
    %v7136 = vadd.f32 %v6943, %v7135
    %v7137 = vpop.f32.mrb[0].mxu0
    %v7138 = vadd.f32 %v6945, %v7137
    %7139 = vmatprep.mubr.bf16.mxu0 %v6242
    %7140 = vmatmul.mubr.bf16.gmra.mrb[0].mxu0 %v6241
    %v7141 = vpop.f32.mrb[0].mxu0
    %v7142 = vadd.f32 %v6949, %v7141
    %v7143 = vpop.f32.mrb[0].mxu0
    %v7144 = vadd.f32 %v6951, %v7143
    %v7145 = vpop.f32.mrb[0].mxu0
    %v7146 = vadd.f32 %v6953, %v7145
    %v7147 = vpop.f32.mrb[0].mxu0
    %v7148 = vadd.f32 %v6955, %v7147
    %7149 = vmatprep.mubr.bf16.mxu0 %v6259
    %7150 = vmatmul.mubr.bf16.gmra.mrb[0].mxu0 %v6258
    %v7151 = vpop.f32.mrb[0].mxu0
    %v7152 = vadd.f32 %v6959, %v7151
    %v7153 = vpop.f32.mrb[0].mxu0
    %v7154 = vadd.f32 %v6961, %v7153
    %v7155 = vpop.f32.mrb[0].mxu0
    %v7156 = vadd.f32 %v6963, %v7155
    %v7157 = vpop.f32.mrb[0].mxu0
    %v7158 = vadd.f32 %v6965, %v7157
    %7159 = vmatprep.mubr.bf16.mxu0 %v6276
    %7160 = vmatmul.mubr.bf16.gmra.mrb[0].mxu0 %v6275
    %v7161 = vpop.f32.mrb[0].mxu0
    %v7162 = vadd.f32 %v6969, %v7161
    %v7163 = vpop.f32.mrb[0].mxu0
    %v7164 = vadd.f32 %v6971, %v7163
    %v7165 = vpop.f32.mrb[0].mxu0
    %v7166 = vadd.f32 %v6973, %v7165
    %v7167 = vpop.f32.mrb[0].mxu0
    %v7168 = vadd.f32 %v6975, %v7167
    %7169 = vmatprep.mubr.bf16.mxu0 %v6293
    %7170 = vmatmul.mubr.bf16.gmra.mrb[0].mxu0 %v6292
    %v7171 = vpop.f32.mrb[0].mxu0
    %v7172 = vadd.f32 %v6979, %v7171
    %v7173 = vpop.f32.mrb[0].mxu0
    %v7174 = vadd.f32 %v6981, %v7173
    %v7175 = vpop.f32.mrb[0].mxu0
    %v7176 = vadd.f32 %v6983, %v7175
    %v7177 = vpop.f32.mrb[0].mxu0
    %v7178 = vadd.f32 %v6985, %v7177
    %7179 = vmatprep.mubr.bf16.mxu0 %v6310
    %7180 = vmatmul.mubr.bf16.gmra.mrb[0].mxu0 %v6309
    %v7181 = vpop.f32.mrb[0].mxu0
    %v7182 = vadd.f32 %v6989, %v7181
    %v7183 = vpop.f32.mrb[0].mxu0
    %v7184 = vadd.f32 %v6991, %v7183
    %v7185 = vpop.f32.mrb[0].mxu0
    %v7186 = vadd.f32 %v6993, %v7185
    %v7187 = vpop.f32.mrb[0].mxu0
    %v7188 = vadd.f32 %v6995, %v7187
    %7189 = vdwg.mxu0
    %7190 = vmatprep.subr.bf16.mxu0 %v6709
    %7191 = vmatpush1.bf16.msra.mxu0 %v6708
    %7192 = vmatprep.subr.bf16.mxu0 %v6711
    %7193 = vmatpush1.bf16.msra.mxu0 %v6710
    %7194 = vmatprep.subr.bf16.mxu0 %v6713
    %7195 = vmatpush1.bf16.msra.mxu0 %v6712
    %7196 = vmatprep.subr.bf16.mxu0 %v6715
    %7197 = vmatpush1.bf16.msra.mxu0 %v6714
    %7198 = vmatprep.subr.bf16.mxu0 %v6717
    %7199 = vmatpush1.bf16.msra.mxu0 %v6716
    %7200 = vmatprep.subr.bf16.mxu0 %v6719
    %7201 = vmatpush1.bf16.msra.mxu0 %v6718
    %7202 = vmatprep.subr.bf16.mxu0 %v6721
    %7203 = vmatpush1.bf16.msra.mxu0 %v6720
    %7204 = vmatprep.subr.bf16.mxu0 %v6723
    %7205 = vmatpush1.bf16.msra.mxu0 %v6722
    %7206 = vmatprep.subr.bf16.mxu0 0
    %7207 = vmatpush1.bf16.msra.mxu0 0
    %7208 = vmatprep.subr.bf16.mxu0 0
    %7209 = vmatpush1.bf16.msra.mxu0 0
    %7210 = vmatprep.subr.bf16.mxu0 0
    %7211 = vmatpush1.bf16.msra.mxu0 0
    %7212 = vmatprep.subr.bf16.mxu0 0
    %7213 = vmatpush1.bf16.msra.mxu0 0
    %7214 = vmatprep.subr.bf16.mxu0 0
    %7215 = vmatpush1.bf16.msra.mxu0 0
    %7216 = vmatprep.subr.bf16.mxu0 0
    %7217 = vmatpush1.bf16.msra.mxu0 0
    %7218 = vmatprep.subr.bf16.mxu0 0
    %7219 = vmatpush1.bf16.msra.mxu0 0
    %7220 = vmatprep.subr.bf16.mxu0 0
    %7221 = vmatpush1.bf16.msra.mxu0 0
    %7222 = vmatprep.mubr.bf16.mxu0 0
    %7223 = vmatmul.mubr.bf16.gmra.mrb[0].mxu0 %v6056
    %v7224 = vpop.f32.mrb[0].mxu0
    %v7225 = vadd.f32 %v7032, %v7224
    %v7226 = vpop.f32.mrb[0].mxu0
    %v7227 = vadd.f32 %v7034, %v7226
    %v7228 = vpop.f32.mrb[0].mxu0
    %v7229 = vadd.f32 %v7036, %v7228
    %v7230 = vpop.f32.mrb[0].mxu0
    %v7231 = vadd.f32 %v7038, %v7230
    %7232 = vmatprep.mubr.bf16.mxu0 0
    %7233 = vmatmul.mubr.bf16.gmra.mrb[0].mxu0 %v6073
    %v7234 = vpop.f32.mrb[0].mxu0
    %v7235 = vadd.f32 %v7042, %v7234
    %v7236 = vpop.f32.mrb[0].mxu0
    %v7237 = vadd.f32 %v7044, %v7236
    %v7238 = vpop.f32.mrb[0].mxu0
    %v7239 = vadd.f32 %v7046, %v7238
    %v7240 = vpop.f32.mrb[0].mxu0
    %v7241 = vadd.f32 %v7048, %v7240
    %7242 = vmatprep.mubr.bf16.mxu0 0
    %7243 = vmatmul.mubr.bf16.gmra.mrb[0].mxu0 %v6090
    %v7244 = vpop.f32.mrb[0].mxu0
    %v7245 = vadd.f32 %v7052, %v7244
    %v7246 = vpop.f32.mrb[0].mxu0
    %v7247 = vadd.f32 %v7054, %v7246
    %v7248 = vpop.f32.mrb[0].mxu0
    %v7249 = vadd.f32 %v7056, %v7248
    %v7250 = vpop.f32.mrb[0].mxu0
    %v7251 = vadd.f32 %v7058, %v7250
    %7252 = vmatprep.mubr.bf16.mxu0 0
    %7253 = vmatmul.mubr.bf16.gmra.mrb[0].mxu0 %v6107
    %v7254 = vpop.f32.mrb[0].mxu0
    %v7255 = vadd.f32 %v7062, %v7254
    %v7256 = vpop.f32.mrb[0].mxu0
    %v7257 = vadd.f32 %v7064, %v7256
    %v7258 = vpop.f32.mrb[0].mxu0
    %v7259 = vadd.f32 %v7066, %v7258
    %v7260 = vpop.f32.mrb[0].mxu0
    %v7261 = vadd.f32 %v7068, %v7260
    %7262 = vmatprep.mubr.bf16.mxu0 0
    %7263 = vmatmul.mubr.bf16.gmra.mrb[0].mxu0 %v6124
    %v7264 = vpop.f32.mrb[0].mxu0
    %v7265 = vadd.f32 %v7072, %v7264
    %v7266 = vpop.f32.mrb[0].mxu0
    %v7267 = vadd.f32 %v7074, %v7266
    %v7268 = vpop.f32.mrb[0].mxu0
    %v7269 = vadd.f32 %v7076, %v7268
    %v7270 = vpop.f32.mrb[0].mxu0
    %v7271 = vadd.f32 %v7078, %v7270
    %7272 = vmatprep.mubr.bf16.mxu0 0
    %7273 = vmatmul.mubr.bf16.gmra.mrb[0].mxu0 %v6141
    %v7274 = vpop.f32.mrb[0].mxu0
    %v7275 = vadd.f32 %v7082, %v7274
    %v7276 = vpop.f32.mrb[0].mxu0
    %v7277 = vadd.f32 %v7084, %v7276
    %v7278 = vpop.f32.mrb[0].mxu0
    %v7279 = vadd.f32 %v7086, %v7278
    %v7280 = vpop.f32.mrb[0].mxu0
    %v7281 = vadd.f32 %v7088, %v7280
    %7282 = vmatprep.mubr.bf16.mxu0 0
    %7283 = vmatmul.mubr.bf16.gmra.mrb[0].mxu0 %v6158
    %v7284 = vpop.f32.mrb[0].mxu0
    %v7285 = vadd.f32 %v7092, %v7284
    %v7286 = vpop.f32.mrb[0].mxu0
    %v7287 = vadd.f32 %v7094, %v7286
    %v7288 = vpop.f32.mrb[0].mxu0
    %v7289 = vadd.f32 %v7096, %v7288
    %v7290 = vpop.f32.mrb[0].mxu0
    %v7291 = vadd.f32 %v7098, %v7290
    %7292 = vmatprep.mubr.bf16.mxu0 0
    %7293 = vmatmul.mubr.bf16.gmra.mrb[0].mxu0 %v6175
    %v7294 = vpop.f32.mrb[0].mxu0
    %v7295 = vadd.f32 %v7102, %v7294
    %v7296 = vpop.f32.mrb[0].mxu0
    %v7297 = vadd.f32 %v7104, %v7296
    %v7298 = vpop.f32.mrb[0].mxu0
    %v7299 = vadd.f32 %v7106, %v7298
    %v7300 = vpop.f32.mrb[0].mxu0
    %v7301 = vadd.f32 %v7108, %v7300
    %7302 = vmatprep.mubr.bf16.mxu0 0
    %7303 = vmatmul.mubr.bf16.gmra.mrb[0].mxu0 %v6192
    %v7304 = vpop.f32.mrb[0].mxu0
    %v7305 = vadd.f32 %v7112, %v7304
    %v7306 = vpop.f32.mrb[0].mxu0
    %v7307 = vadd.f32 %v7114, %v7306
    %v7308 = vpop.f32.mrb[0].mxu0
    %v7309 = vadd.f32 %v7116, %v7308
    %v7310 = vpop.f32.mrb[0].mxu0
    %v7311 = vadd.f32 %v7118, %v7310
    %7312 = vmatprep.mubr.bf16.mxu0 0
    %7313 = vmatmul.mubr.bf16.gmra.mrb[0].mxu0 %v6209
    %v7314 = vpop.f32.mrb[0].mxu0
    %v7315 = vadd.f32 %v7122, %v7314
    %v7316 = vpop.f32.mrb[0].mxu0
    %v7317 = vadd.f32 %v7124, %v7316
    %v7318 = vpop.f32.mrb[0].mxu0
    %v7319 = vadd.f32 %v7126, %v7318
    %v7320 = vpop.f32.mrb[0].mxu0
    %v7321 = vadd.f32 %v7128, %v7320
    %7322 = vmatprep.mubr.bf16.mxu0 0
    %7323 = vmatmul.mubr.bf16.gmra.mrb[0].mxu0 %v6226
    %v7324 = vpop.f32.mrb[0].mxu0
    %v7325 = vadd.f32 %v7132, %v7324
    %v7326 = vpop.f32.mrb[0].mxu0
    %v7327 = vadd.f32 %v7134, %v7326
    %v7328 = vpop.f32.mrb[0].mxu0
    %v7329 = vadd.f32 %v7136, %v7328
    %v7330 = vpop.f32.mrb[0].mxu0
    %v7331 = vadd.f32 %v7138, %v7330
    %7332 = vmatprep.mubr.bf16.mxu0 0
    %7333 = vmatmul.mubr.bf16.gmra.mrb[0].mxu0 %v6243
    %v7334 = vpop.f32.mrb[0].mxu0
    %v7335 = vadd.f32 %v7142, %v7334
    %v7336 = vpop.f32.mrb[0].mxu0
    %v7337 = vadd.f32 %v7144, %v7336
    %v7338 = vpop.f32.mrb[0].mxu0
    %v7339 = vadd.f32 %v7146, %v7338
    %v7340 = vpop.f32.mrb[0].mxu0
    %v7341 = vadd.f32 %v7148, %v7340
    %7342 = vmatprep.mubr.bf16.mxu0 0
    %7343 = vmatmul.mubr.bf16.gmra.mrb[0].mxu0 %v6260
    %v7344 = vpop.f32.mrb[0].mxu0
    %v7345 = vadd.f32 %v7152, %v7344
    %v7346 = vpop.f32.mrb[0].mxu0
    %v7347 = vadd.f32 %v7154, %v7346
    %v7348 = vpop.f32.mrb[0].mxu0
    %v7349 = vadd.f32 %v7156, %v7348
    %v7350 = vpop.f32.mrb[0].mxu0
    %v7351 = vadd.f32 %v7158, %v7350
    %7352 = vmatprep.mubr.bf16.mxu0 0
    %7353 = vmatmul.mubr.bf16.gmra.mrb[0].mxu0 %v6277
    %v7354 = vpop.f32.mrb[0].mxu0
    %v7355 = vadd.f32 %v7162, %v7354
    %v7356 = vpop.f32.mrb[0].mxu0
    %v7357 = vadd.f32 %v7164, %v7356
    %v7358 = vpop.f32.mrb[0].mxu0
    %v7359 = vadd.f32 %v7166, %v7358
    %v7360 = vpop.f32.mrb[0].mxu0
    %v7361 = vadd.f32 %v7168, %v7360
    %7362 = vmatprep.mubr.bf16.mxu0 0
    %7363 = vmatmul.mubr.bf16.gmra.mrb[0].mxu0 %v6294
    %v7364 = vpop.f32.mrb[0].mxu0
    %v7365 = vadd.f32 %v7172, %v7364
    %v7366 = vpop.f32.mrb[0].mxu0
    %v7367 = vadd.f32 %v7174, %v7366
    %v7368 = vpop.f32.mrb[0].mxu0
    %v7369 = vadd.f32 %v7176, %v7368
    %v7370 = vpop.f32.mrb[0].mxu0
    %v7371 = vadd.f32 %v7178, %v7370
    %7372 = vmatprep.mubr.bf16.mxu0 0
    %7373 = vmatmul.mubr.bf16.gmra.mrb[0].mxu0 %v6311
    %v7374 = vpop.f32.mrb[0].mxu0
    %v7375 = vadd.f32 %v7182, %v7374
    %v7376 = vpop.f32.mrb[0].mxu0
    %v7377 = vadd.f32 %v7184, %v7376
    %v7378 = vpop.f32.mrb[0].mxu0
    %v7379 = vadd.f32 %v7186, %v7378
    %v7380 = vpop.f32.mrb[0].mxu0
    %v7381 = vadd.f32 %v7188, %v7380
    %7382 = vdwg.mxu0
    %v7383 = vmax.f32 %v7225, %v7227
    %v7384 = vmax.f32 %v7229, %v7231
    %v7385 = vmax.f32 %v7235, %v7237
    %v7386 = vmax.f32 %v7239, %v7241
    %v7387 = vmax.f32 %v7245, %v7247
    %v7388 = vmax.f32 %v7249, %v7251
    %v7389 = vmax.f32 %v7255, %v7257
    %v7390 = vmax.f32 %v7259, %v7261
    %v7391 = vmax.f32 %v7265, %v7267
    %v7392 = vmax.f32 %v7269, %v7271
    %v7393 = vmax.f32 %v7275, %v7277
    %v7394 = vmax.f32 %v7279, %v7281
    %v7395 = vmax.f32 %v7285, %v7287
    %v7396 = vmax.f32 %v7289, %v7291
    %v7397 = vmax.f32 %v7295, %v7297
    %v7398 = vmax.f32 %v7299, %v7301
    %v7399 = vmax.f32 %v7305, %v7307
    %v7400 = vmax.f32 %v7309, %v7311
    %v7401 = vmax.f32 %v7315, %v7317
    %v7402 = vmax.f32 %v7319, %v7321
    %v7403 = vmax.f32 %v7325, %v7327
    %v7404 = vmax.f32 %v7329, %v7331
    %v7405 = vmax.f32 %v7335, %v7337
    %v7406 = vmax.f32 %v7339, %v7341
    %v7407 = vmax.f32 %v7345, %v7347
    %v7408 = vmax.f32 %v7349, %v7351
    %v7409 = vmax.f32 %v7355, %v7357
    %v7410 = vmax.f32 %v7359, %v7361
    %v7411 = vmax.f32 %v7365, %v7367
    %v7412 = vmax.f32 %v7369, %v7371
    %v7413 = vmax.f32 %v7375, %v7377
    %v7414 = vmax.f32 %v7379, %v7381
    %s7415 = scalar_lea.vmem [#allocation7], 640
    %v7416 = vld [vmem:[%s7415] sm:$0xff]
    %v7417 = vld [vmem:[%s7415 + $0x8] sm:$0xff]
    %v7418 = vld [vmem:[%s7415 + $0x10] sm:$0xff]
    %v7419 = vld [vmem:[%s7415 + $0x18] sm:$0xff]
    %v7420 = vld [vmem:[%s7415 + $0x20] sm:$0xff]
    %v7421 = vld [vmem:[%s7415 + $0x28] sm:$0xff]
    %v7422 = vld [vmem:[%s7415 + $0x30] sm:$0xff]
    %v7423 = vld [vmem:[%s7415 + $0x38] sm:$0xff]
    %v7424 = vld [vmem:[%s7415 + $0x40] sm:$0xff]
    %v7425 = vld [vmem:[%s7415 + $0x48] sm:$0xff]
    %v7426 = vld [vmem:[%s7415 + $0x50] sm:$0xff]
    %v7427 = vld [vmem:[%s7415 + $0x58] sm:$0xff]
    %v7428 = vld [vmem:[%s7415 + $0x60] sm:$0xff]
    %v7429 = vld [vmem:[%s7415 + $0x68] sm:$0xff]
    %v7430 = vld [vmem:[%s7415 + $0x70] sm:$0xff]
    %v7431 = vld [vmem:[%s7415 + $0x78] sm:$0xff]
    %v7432 = vld [vmem:[%s7415 + $0x80] sm:$0xff]
    %v7433 = vld [vmem:[%s7415 + $0x88] sm:$0xff]
    %v7434 = vld [vmem:[%s7415 + $0x90] sm:$0xff]
    %v7435 = vld [vmem:[%s7415 + $0x98] sm:$0xff]
    %v7436 = vld [vmem:[%s7415 + $0xa0] sm:$0xff]
    %v7437 = vld [vmem:[%s7415 + $0xa8] sm:$0xff]
    %v7438 = vld [vmem:[%s7415 + $0xb0] sm:$0xff]
    %v7439 = vld [vmem:[%s7415 + $0xb8] sm:$0xff]
    %v7440 = vld [vmem:[%s7415 + $0xc0] sm:$0xff]
    %v7441 = vld [vmem:[%s7415 + $0xc8] sm:$0xff]
    %v7442 = vld [vmem:[%s7415 + $0xd0] sm:$0xff]
    %v7443 = vld [vmem:[%s7415 + $0xd8] sm:$0xff]
    %v7444 = vld [vmem:[%s7415 + $0xe0] sm:$0xff]
    %v7445 = vld [vmem:[%s7415 + $0xe8] sm:$0xff]
    %v7446 = vld [vmem:[%s7415 + $0xf0] sm:$0xff]
    %v7447 = vld [vmem:[%s7415 + $0xf8] sm:$0xff]
    %v7448 = vld [vmem:[%s7415 + $0x100] sm:$0xff]
    %v7449 = vld [vmem:[%s7415 + $0x108] sm:$0xff]
    %v7450 = vld [vmem:[%s7415 + $0x110] sm:$0xff]
    %v7451 = vld [vmem:[%s7415 + $0x118] sm:$0xff]
    %v7452 = vld [vmem:[%s7415 + $0x120] sm:$0xff]
    %v7453 = vld [vmem:[%s7415 + $0x128] sm:$0xff]
    %v7454 = vld [vmem:[%s7415 + $0x130] sm:$0xff]
    %v7455 = vld [vmem:[%s7415 + $0x138] sm:$0xff]
    %v7456 = vld [vmem:[%s7415 + $0x140] sm:$0xff]
    %v7457 = vld [vmem:[%s7415 + $0x148] sm:$0xff]
    %v7458 = vld [vmem:[%s7415 + $0x150] sm:$0xff]
    %v7459 = vld [vmem:[%s7415 + $0x158] sm:$0xff]
    %v7460 = vld [vmem:[%s7415 + $0x160] sm:$0xff]
    %v7461 = vld [vmem:[%s7415 + $0x168] sm:$0xff]
    %v7462 = vld [vmem:[%s7415 + $0x170] sm:$0xff]
    %v7463 = vld [vmem:[%s7415 + $0x178] sm:$0xff]
    %v7464 = vld [vmem:[%s7415 + $0x180] sm:$0xff]
    %v7465 = vld [vmem:[%s7415 + $0x188] sm:$0xff]
    %v7466 = vld [vmem:[%s7415 + $0x190] sm:$0xff]
    %v7467 = vld [vmem:[%s7415 + $0x198] sm:$0xff]
    %v7468 = vld [vmem:[%s7415 + $0x1a0] sm:$0xff]
    %v7469 = vld [vmem:[%s7415 + $0x1a8] sm:$0xff]
    %v7470 = vld [vmem:[%s7415 + $0x1b0] sm:$0xff]
    %v7471 = vld [vmem:[%s7415 + $0x1b8] sm:$0xff]
    %v7472 = vld [vmem:[%s7415 + $0x1c0] sm:$0xff]
    %v7473 = vld [vmem:[%s7415 + $0x1c8] sm:$0xff]
    %v7474 = vld [vmem:[%s7415 + $0x1d0] sm:$0xff]
    %v7475 = vld [vmem:[%s7415 + $0x1d8] sm:$0xff]
    %v7476 = vld [vmem:[%s7415 + $0x1e0] sm:$0xff]
    %v7477 = vld [vmem:[%s7415 + $0x1e8] sm:$0xff]
    %v7478 = vld [vmem:[%s7415 + $0x1f0] sm:$0xff]
    %v7479 = vld [vmem:[%s7415 + $0x1f8] sm:$0xff]
    %v7480 = vld [vmem:[%s7415 + $0x200] sm:$0xff]
    %v7481 = vld [vmem:[%s7415 + $0x208] sm:$0xff]
    %v7482 = vld [vmem:[%s7415 + $0x210] sm:$0xff]
    %v7483 = vld [vmem:[%s7415 + $0x218] sm:$0xff]
    %v7484 = vld [vmem:[%s7415 + $0x220] sm:$0xff]
    %v7485 = vld [vmem:[%s7415 + $0x228] sm:$0xff]
    %v7486 = vld [vmem:[%s7415 + $0x230] sm:$0xff]
    %v7487 = vld [vmem:[%s7415 + $0x238] sm:$0xff]
    %v7488 = vld [vmem:[%s7415 + $0x240] sm:$0xff]
    %v7489 = vld [vmem:[%s7415 + $0x248] sm:$0xff]
    %v7490 = vld [vmem:[%s7415 + $0x250] sm:$0xff]
    %v7491 = vld [vmem:[%s7415 + $0x258] sm:$0xff]
    %v7492 = vld [vmem:[%s7415 + $0x260] sm:$0xff]
    %v7493 = vld [vmem:[%s7415 + $0x268] sm:$0xff]
    %v7494 = vld [vmem:[%s7415 + $0x270] sm:$0xff]
    %v7495 = vld [vmem:[%s7415 + $0x278] sm:$0xff]
    %v7576 = vunpack.c.l.b16 %v7416
    %v7577 = vunpack.c.h.b16 %v7416
    %v7578 = vunpack.c.l.b16 %v7417
    %v7579 = vunpack.c.h.b16 %v7417
    %v7580 = vunpack.c.l.b16 %v7418
    %v7581 = vunpack.c.h.b16 %v7418
    %v7582 = vunpack.c.l.b16 %v7419
    %v7583 = vunpack.c.h.b16 %v7419
    %v7584 = vunpack.c.l.b16 %v7420
    %v7585 = vunpack.c.h.b16 %v7420
    %v7586 = vunpack.c.l.b16 %v7421
    %v7587 = vunpack.c.h.b16 %v7421
    %v7588 = vunpack.c.l.b16 %v7422
    %v7589 = vunpack.c.h.b16 %v7422
    %v7590 = vunpack.c.l.b16 %v7423
    %v7591 = vunpack.c.h.b16 %v7423
    %v7592 = vunpack.c.l.b16 %v7424
    %v7593 = vunpack.c.h.b16 %v7424
    %v7594 = vunpack.c.l.b16 %v7425
    %v7595 = vunpack.c.h.b16 %v7425
    %v7596 = vunpack.c.l.b16 %v7426
    %v7597 = vunpack.c.h.b16 %v7426
    %v7598 = vunpack.c.l.b16 %v7427
    %v7599 = vunpack.c.h.b16 %v7427
    %v7600 = vunpack.c.l.b16 %v7428
    %v7601 = vunpack.c.h.b16 %v7428
    %v7602 = vunpack.c.l.b16 %v7429
    %v7603 = vunpack.c.h.b16 %v7429
    %v7604 = vunpack.c.l.b16 %v7430
    %v7605 = vunpack.c.h.b16 %v7430
    %v7606 = vunpack.c.l.b16 %v7431
    %v7607 = vunpack.c.h.b16 %v7431
    %v7608 = vunpack.c.l.b16 %v7432
    %v7609 = vunpack.c.h.b16 %v7432
    %v7610 = vunpack.c.l.b16 %v7433
    %v7611 = vunpack.c.h.b16 %v7433
    %v7612 = vunpack.c.l.b16 %v7434
    %v7613 = vunpack.c.h.b16 %v7434
    %v7614 = vunpack.c.l.b16 %v7435
    %v7615 = vunpack.c.h.b16 %v7435
    %v7616 = vunpack.c.l.b16 %v7436
    %v7617 = vunpack.c.h.b16 %v7436
    %v7618 = vunpack.c.l.b16 %v7437
    %v7619 = vunpack.c.h.b16 %v7437
    %v7620 = vunpack.c.l.b16 %v7438
    %v7621 = vunpack.c.h.b16 %v7438
    %v7622 = vunpack.c.l.b16 %v7439
    %v7623 = vunpack.c.h.b16 %v7439
    %v7624 = vunpack.c.l.b16 %v7440
    %v7625 = vunpack.c.h.b16 %v7440
    %v7626 = vunpack.c.l.b16 %v7441
    %v7627 = vunpack.c.h.b16 %v7441
    %v7628 = vunpack.c.l.b16 %v7442
    %v7629 = vunpack.c.h.b16 %v7442
    %v7630 = vunpack.c.l.b16 %v7443
    %v7631 = vunpack.c.h.b16 %v7443
    %v7632 = vunpack.c.l.b16 %v7444
    %v7633 = vunpack.c.h.b16 %v7444
    %v7634 = vunpack.c.l.b16 %v7445
    %v7635 = vunpack.c.h.b16 %v7445
    %v7636 = vunpack.c.l.b16 %v7446
    %v7637 = vunpack.c.h.b16 %v7446
    %v7638 = vunpack.c.l.b16 %v7447
    %v7639 = vunpack.c.h.b16 %v7447
    %v7640 = vunpack.c.l.b16 %v7448
    %v7641 = vunpack.c.h.b16 %v7448
    %v7642 = vunpack.c.l.b16 %v7449
    %v7643 = vunpack.c.h.b16 %v7449
    %v7644 = vunpack.c.l.b16 %v7450
    %v7645 = vunpack.c.h.b16 %v7450
    %v7646 = vunpack.c.l.b16 %v7451
    %v7647 = vunpack.c.h.b16 %v7451
    %v7648 = vunpack.c.l.b16 %v7452
    %v7649 = vunpack.c.h.b16 %v7452
    %v7650 = vunpack.c.l.b16 %v7453
    %v7651 = vunpack.c.h.b16 %v7453
    %v7652 = vunpack.c.l.b16 %v7454
    %v7653 = vunpack.c.h.b16 %v7454
    %v7654 = vunpack.c.l.b16 %v7455
    %v7655 = vunpack.c.h.b16 %v7455
    %v7656 = vunpack.c.l.b16 %v7456
    %v7657 = vunpack.c.h.b16 %v7456
    %v7658 = vunpack.c.l.b16 %v7457
    %v7659 = vunpack.c.h.b16 %v7457
    %v7660 = vunpack.c.l.b16 %v7458
    %v7661 = vunpack.c.h.b16 %v7458
    %v7662 = vunpack.c.l.b16 %v7459
    %v7663 = vunpack.c.h.b16 %v7459
    %v7664 = vunpack.c.l.b16 %v7460
    %v7665 = vunpack.c.h.b16 %v7460
    %v7666 = vunpack.c.l.b16 %v7461
    %v7667 = vunpack.c.h.b16 %v7461
    %v7668 = vunpack.c.l.b16 %v7462
    %v7669 = vunpack.c.h.b16 %v7462
    %v7670 = vunpack.c.l.b16 %v7463
    %v7671 = vunpack.c.h.b16 %v7463
    %v7672 = vunpack.c.l.b16 %v7464
    %v7673 = vunpack.c.h.b16 %v7464
    %v7674 = vunpack.c.l.b16 %v7465
    %v7675 = vunpack.c.h.b16 %v7465
    %v7676 = vunpack.c.l.b16 %v7466
    %v7677 = vunpack.c.h.b16 %v7466
    %v7678 = vunpack.c.l.b16 %v7467
    %v7679 = vunpack.c.h.b16 %v7467
    %v7680 = vunpack.c.l.b16 %v7468
    %v7681 = vunpack.c.h.b16 %v7468
    %v7682 = vunpack.c.l.b16 %v7469
    %v7683 = vunpack.c.h.b16 %v7469
    %v7684 = vunpack.c.l.b16 %v7470
    %v7685 = vunpack.c.h.b16 %v7470
    %v7686 = vunpack.c.l.b16 %v7471
    %v7687 = vunpack.c.h.b16 %v7471
    %v7688 = vunpack.c.l.b16 %v7472
    %v7689 = vunpack.c.h.b16 %v7472
    %v7690 = vunpack.c.l.b16 %v7473
    %v7691 = vunpack.c.h.b16 %v7473
    %v7692 = vunpack.c.l.b16 %v7474
    %v7693 = vunpack.c.h.b16 %v7474
    %v7694 = vunpack.c.l.b16 %v7475
    %v7695 = vunpack.c.h.b16 %v7475
    %v7696 = vunpack.c.l.b16 %v7476
    %v7697 = vunpack.c.h.b16 %v7476
    %v7698 = vunpack.c.l.b16 %v7477
    %v7699 = vunpack.c.h.b16 %v7477
    %v7700 = vunpack.c.l.b16 %v7478
    %v7701 = vunpack.c.h.b16 %v7478
    %v7702 = vunpack.c.l.b16 %v7479
    %v7703 = vunpack.c.h.b16 %v7479
    %v7704 = vunpack.c.l.b16 %v7480
    %v7705 = vunpack.c.h.b16 %v7480
    %v7706 = vunpack.c.l.b16 %v7481
    %v7707 = vunpack.c.h.b16 %v7481
    %v7708 = vunpack.c.l.b16 %v7482
    %v7709 = vunpack.c.h.b16 %v7482
    %v7710 = vunpack.c.l.b16 %v7483
    %v7711 = vunpack.c.h.b16 %v7483
    %v7712 = vunpack.c.l.b16 %v7484
    %v7713 = vunpack.c.h.b16 %v7484
    %v7714 = vunpack.c.l.b16 %v7485
    %v7715 = vunpack.c.h.b16 %v7485
    %v7716 = vunpack.c.l.b16 %v7486
    %v7717 = vunpack.c.h.b16 %v7486
    %v7718 = vunpack.c.l.b16 %v7487
    %v7719 = vunpack.c.h.b16 %v7487
    %v7720 = vunpack.c.l.b16 %v7488
    %v7721 = vunpack.c.h.b16 %v7488
    %v7722 = vunpack.c.l.b16 %v7489
    %v7723 = vunpack.c.h.b16 %v7489
    %v7724 = vunpack.c.l.b16 %v7490
    %v7725 = vunpack.c.h.b16 %v7490
    %v7726 = vunpack.c.l.b16 %v7491
    %v7727 = vunpack.c.h.b16 %v7491
    %v7728 = vunpack.c.l.b16 %v7492
    %v7729 = vunpack.c.h.b16 %v7492
    %v7730 = vunpack.c.l.b16 %v7493
    %v7731 = vunpack.c.h.b16 %v7493
    %v7732 = vunpack.c.l.b16 %v7494
    %v7733 = vunpack.c.h.b16 %v7494
    %v7734 = vunpack.c.l.b16 %v7495
    %v7735 = vunpack.c.h.b16 %v7495
    %v7736 = vpack.c.b16 %v7578, %v7576
    %v7737 = vpack.c.b16 %v7579, %v7577
    %v7738 = vpack.c.b16 %v7582, %v7580
    %v7739 = vpack.c.b16 %v7583, %v7581
    %v7740 = vpack.c.b16 %v7586, %v7584
    %v7741 = vpack.c.b16 %v7587, %v7585
    %v7742 = vpack.c.b16 %v7590, %v7588
    %v7743 = vpack.c.b16 %v7591, %v7589
    %v7744 = vpack.c.b16 %v7594, %v7592
    %v7745 = vpack.c.b16 %v7595, %v7593
    %v7746 = vpack.c.b16 %v7598, %v7596
    %v7747 = vpack.c.b16 %v7599, %v7597
    %v7748 = vpack.c.b16 %v7602, %v7600
    %v7749 = vpack.c.b16 %v7603, %v7601
    %v7750 = vpack.c.b16 %v7606, %v7604
    %v7751 = vpack.c.b16 %v7607, %v7605
    %v7752 = vpack.c.b16 %v7610, %v7608
    %v7753 = vpack.c.b16 %v7611, %v7609
    %v7754 = vpack.c.b16 %v7614, %v7612
    %v7755 = vpack.c.b16 %v7615, %v7613
    %v7756 = vpack.c.b16 %v7618, %v7616
    %v7757 = vpack.c.b16 %v7619, %v7617
    %v7758 = vpack.c.b16 %v7622, %v7620
    %v7759 = vpack.c.b16 %v7623, %v7621
    %v7760 = vpack.c.b16 %v7626, %v7624
    %v7761 = vpack.c.b16 %v7627, %v7625
    %v7762 = vpack.c.b16 %v7630, %v7628
    %v7763 = vpack.c.b16 %v7631, %v7629
    %v7764 = vpack.c.b16 %v7634, %v7632
    %v7765 = vpack.c.b16 %v7635, %v7633
    %v7766 = vpack.c.b16 %v7638, %v7636
    %v7767 = vpack.c.b16 %v7639, %v7637
    %v7768 = vpack.c.b16 %v7642, %v7640
    %v7769 = vpack.c.b16 %v7643, %v7641
    %v7770 = vpack.c.b16 %v7646, %v7644
    %v7771 = vpack.c.b16 %v7647, %v7645
    %v7772 = vpack.c.b16 %v7650, %v7648
    %v7773 = vpack.c.b16 %v7651, %v7649
    %v7774 = vpack.c.b16 %v7654, %v7652
    %v7775 = vpack.c.b16 %v7655, %v7653
    %v7776 = vpack.c.b16 %v7658, %v7656
    %v7777 = vpack.c.b16 %v7659, %v7657
    %v7778 = vpack.c.b16 %v7662, %v7660
    %v7779 = vpack.c.b16 %v7663, %v7661
    %v7780 = vpack.c.b16 %v7666, %v7664
    %v7781 = vpack.c.b16 %v7667, %v7665
    %v7782 = vpack.c.b16 %v7670, %v7668
    %v7783 = vpack.c.b16 %v7671, %v7669
    %v7784 = vpack.c.b16 %v7674, %v7672
    %v7785 = vpack.c.b16 %v7675, %v7673
    %v7786 = vpack.c.b16 %v7678, %v7676
    %v7787 = vpack.c.b16 %v7679, %v7677
    %v7788 = vpack.c.b16 %v7682, %v7680
    %v7789 = vpack.c.b16 %v7683, %v7681
    %v7790 = vpack.c.b16 %v7686, %v7684
    %v7791 = vpack.c.b16 %v7687, %v7685
    %v7792 = vpack.c.b16 %v7690, %v7688
    %v7793 = vpack.c.b16 %v7691, %v7689
    %v7794 = vpack.c.b16 %v7694, %v7692
    %v7795 = vpack.c.b16 %v7695, %v7693
    %v7796 = vpack.c.b16 %v7698, %v7696
    %v7797 = vpack.c.b16 %v7699, %v7697
    %v7798 = vpack.c.b16 %v7702, %v7700
    %v7799 = vpack.c.b16 %v7703, %v7701
    %v7800 = vpack.c.b16 %v7706, %v7704
    %v7801 = vpack.c.b16 %v7707, %v7705
    %v7802 = vpack.c.b16 %v7710, %v7708
    %v7803 = vpack.c.b16 %v7711, %v7709
    %v7804 = vpack.c.b16 %v7714, %v7712
    %v7805 = vpack.c.b16 %v7715, %v7713
    %v7806 = vpack.c.b16 %v7718, %v7716
    %v7807 = vpack.c.b16 %v7719, %v7717
    %v7808 = vpack.c.b16 %v7722, %v7720
    %v7809 = vpack.c.b16 %v7723, %v7721
    %v7810 = vpack.c.b16 %v7726, %v7724
    %v7811 = vpack.c.b16 %v7727, %v7725
    %v7812 = vpack.c.b16 %v7730, %v7728
    %v7813 = vpack.c.b16 %v7731, %v7729
    %v7814 = vpack.c.b16 %v7734, %v7732
    %v7815 = vpack.c.b16 %v7735, %v7733
    %7896 = vmatprep.subr.bf16.mxu0 %v7737
    %7897 = vmatpush1.bf16.msra.mxu0 %v7736
    %7898 = vmatprep.subr.bf16.mxu0 %v7739
    %7899 = vmatpush1.bf16.msra.mxu0 %v7738
    %7900 = vmatprep.subr.bf16.mxu0 %v7741
    %7901 = vmatpush1.bf16.msra.mxu0 %v7740
    %7902 = vmatprep.subr.bf16.mxu0 %v7743
    %7903 = vmatpush1.bf16.msra.mxu0 %v7742
    %7904 = vmatprep.subr.bf16.mxu0 %v7745
    %7905 = vmatpush1.bf16.msra.mxu0 %v7744
    %7906 = vmatprep.subr.bf16.mxu0 %v7747
    %7907 = vmatpush1.bf16.msra.mxu0 %v7746
    %7908 = vmatprep.subr.bf16.mxu0 %v7749
    %7909 = vmatpush1.bf16.msra.mxu0 %v7748
    %7910 = vmatprep.subr.bf16.mxu0 %v7751
    %7911 = vmatpush1.bf16.msra.mxu0 %v7750
    %7912 = vmatprep.subr.bf16.mxu0 %v7753
    %7913 = vmatpush1.bf16.msra.mxu0 %v7752
    %7914 = vmatprep.subr.bf16.mxu0 %v7755
    %7915 = vmatpush1.bf16.msra.mxu0 %v7754
    %7916 = vmatprep.subr.bf16.mxu0 %v7757
    %7917 = vmatpush1.bf16.msra.mxu0 %v7756
    %7918 = vmatprep.subr.bf16.mxu0 %v7759
    %7919 = vmatpush1.bf16.msra.mxu0 %v7758
    %7920 = vmatprep.subr.bf16.mxu0 %v7761
    %7921 = vmatpush1.bf16.msra.mxu0 %v7760
    %7922 = vmatprep.subr.bf16.mxu0 %v7763
    %7923 = vmatpush1.bf16.msra.mxu0 %v7762
    %7924 = vmatprep.subr.bf16.mxu0 %v7765
    %7925 = vmatpush1.bf16.msra.mxu0 %v7764
    %7926 = vmatprep.subr.bf16.mxu0 %v7767
    %7927 = vmatpush1.bf16.msra.mxu0 %v7766
    %7928 = vmatprep.mubr.bf16.mxu0 %v6057
    %7929 = vmatmul.mubr.bf16.gmra.mrb[0].mxu0 %v6056
    %v7930 = vpop.f32.mrb[0].mxu0
    %v7931 = vadd.f32 0.0, %v7930
    %v7932 = vpop.f32.mrb[0].mxu0
    %v7933 = vadd.f32 0.0, %v7932
    %v7934 = vpop.f32.mrb[0].mxu0
    %v7935 = vadd.f32 0.0, %v7934
    %v7936 = vpop.f32.mrb[0].mxu0
    %v7937 = vadd.f32 0.0, %v7936
    %7938 = vmatprep.mubr.bf16.mxu0 %v6074
    %7939 = vmatmul.mubr.bf16.gmra.mrb[0].mxu0 %v6073
    %v7940 = vpop.f32.mrb[0].mxu0
    %v7941 = vadd.f32 0.0, %v7940
    %v7942 = vpop.f32.mrb[0].mxu0
    %v7943 = vadd.f32 0.0, %v7942
    %v7944 = vpop.f32.mrb[0].mxu0
    %v7945 = vadd.f32 0.0, %v7944
    %v7946 = vpop.f32.mrb[0].mxu0
    %v7947 = vadd.f32 0.0, %v7946
    %7948 = vmatprep.mubr.bf16.mxu0 %v6091
    %7949 = vmatmul.mubr.bf16.gmra.mrb[0].mxu0 %v6090
    %v7950 = vpop.f32.mrb[0].mxu0
    %v7951 = vadd.f32 0.0, %v7950
    %v7952 = vpop.f32.mrb[0].mxu0
    %v7953 = vadd.f32 0.0, %v7952
    %v7954 = vpop.f32.mrb[0].mxu0
    %v7955 = vadd.f32 0.0, %v7954
    %v7956 = vpop.f32.mrb[0].mxu0
    %v7957 = vadd.f32 0.0, %v7956
    %7958 = vmatprep.mubr.bf16.mxu0 %v6108
    %7959 = vmatmul.mubr.bf16.gmra.mrb[0].mxu0 %v6107
    %v7960 = vpop.f32.mrb[0].mxu0
    %v7961 = vadd.f32 0.0, %v7960
    %v7962 = vpop.f32.mrb[0].mxu0
    %v7963 = vadd.f32 0.0, %v7962
    %v7964 = vpop.f32.mrb[0].mxu0
    %v7965 = vadd.f32 0.0, %v7964
    %v7966 = vpop.f32.mrb[0].mxu0
    %v7967 = vadd.f32 0.0, %v7966
    %7968 = vmatprep.mubr.bf16.mxu0 %v6125
    %7969 = vmatmul.mubr.bf16.gmra.mrb[0].mxu0 %v6124
    %v7970 = vpop.f32.mrb[0].mxu0
    %v7971 = vadd.f32 0.0, %v7970
    %v7972 = vpop.f32.mrb[0].mxu0
    %v7973 = vadd.f32 0.0, %v7972
    %v7974 = vpop.f32.mrb[0].mxu0
    %v7975 = vadd.f32 0.0, %v7974
    %v7976 = vpop.f32.mrb[0].mxu0
    %v7977 = vadd.f32 0.0, %v7976
    %7978 = vmatprep.mubr.bf16.mxu0 %v6142
    %7979 = vmatmul.mubr.bf16.gmra.mrb[0].mxu0 %v6141
    %v7980 = vpop.f32.mrb[0].mxu0
    %v7981 = vadd.f32 0.0, %v7980
    %v7982 = vpop.f32.mrb[0].mxu0
    %v7983 = vadd.f32 0.0, %v7982
    %v7984 = vpop.f32.mrb[0].mxu0
    %v7985 = vadd.f32 0.0, %v7984
    %v7986 = vpop.f32.mrb[0].mxu0
    %v7987 = vadd.f32 0.0, %v7986
    %7988 = vmatprep.mubr.bf16.mxu0 %v6159
    %7989 = vmatmul.mubr.bf16.gmra.mrb[0].mxu0 %v6158
    %v7990 = vpop.f32.mrb[0].mxu0
    %v7991 = vadd.f32 0.0, %v7990
    %v7992 = vpop.f32.mrb[0].mxu0
    %v7993 = vadd.f32 0.0, %v7992
    %v7994 = vpop.f32.mrb[0].mxu0
    %v7995 = vadd.f32 0.0, %v7994
    %v7996 = vpop.f32.mrb[0].mxu0
    %v7997 = vadd.f32 0.0, %v7996
    %7998 = vmatprep.mubr.bf16.mxu0 %v6176
    %7999 = vmatmul.mubr.bf16.gmra.mrb[0].mxu0 %v6175
    %v8000 = vpop.f32.mrb[0].mxu0
    %v8001 = vadd.f32 0.0, %v8000
    %v8002 = vpop.f32.mrb[0].mxu0
    %v8003 = vadd.f32 0.0, %v8002
    %v8004 = vpop.f32.mrb[0].mxu0
    %v8005 = vadd.f32 0.0, %v8004
    %v8006 = vpop.f32.mrb[0].mxu0
    %v8007 = vadd.f32 0.0, %v8006
    %8008 = vmatprep.mubr.bf16.mxu0 %v6193
    %8009 = vmatmul.mubr.bf16.gmra.mrb[0].mxu0 %v6192
    %v8010 = vpop.f32.mrb[0].mxu0
    %v8011 = vadd.f32 0.0, %v8010
    %v8012 = vpop.f32.mrb[0].mxu0
    %v8013 = vadd.f32 0.0, %v8012
    %v8014 = vpop.f32.mrb[0].mxu0
    %v8015 = vadd.f32 0.0, %v8014
    %v8016 = vpop.f32.mrb[0].mxu0
    %v8017 = vadd.f32 0.0, %v8016
    %8018 = vmatprep.mubr.bf16.mxu0 %v6210
    %8019 = vmatmul.mubr.bf16.gmra.mrb[0].mxu0 %v6209
    %v8020 = vpop.f32.mrb[0].mxu0
    %v8021 = vadd.f32 0.0, %v8020
    %v8022 = vpop.f32.mrb[0].mxu0
    %v8023 = vadd.f32 0.0, %v8022
    %v8024 = vpop.f32.mrb[0].mxu0
    %v8025 = vadd.f32 0.0, %v8024
    %v8026 = vpop.f32.mrb[0].mxu0
    %v8027 = vadd.f32 0.0, %v8026
    %8028 = vmatprep.mubr.bf16.mxu0 %v6227
    %8029 = vmatmul.mubr.bf16.gmra.mrb[0].mxu0 %v6226
    %v8030 = vpop.f32.mrb[0].mxu0
    %v8031 = vadd.f32 0.0, %v8030
    %v8032 = vpop.f32.mrb[0].mxu0
    %v8033 = vadd.f32 0.0, %v8032
    %v8034 = vpop.f32.mrb[0].mxu0
    %v8035 = vadd.f32 0.0, %v8034
    %v8036 = vpop.f32.mrb[0].mxu0
    %v8037 = vadd.f32 0.0, %v8036
    %8038 = vmatprep.mubr.bf16.mxu0 %v6244
    %8039 = vmatmul.mubr.bf16.gmra.mrb[0].mxu0 %v6243
    %v8040 = vpop.f32.mrb[0].mxu0
    %v8041 = vadd.f32 0.0, %v8040
    %v8042 = vpop.f32.mrb[0].mxu0
    %v8043 = vadd.f32 0.0, %v8042
    %v8044 = vpop.f32.mrb[0].mxu0
    %v8045 = vadd.f32 0.0, %v8044
    %v8046 = vpop.f32.mrb[0].mxu0
    %v8047 = vadd.f32 0.0, %v8046
    %8048 = vmatprep.mubr.bf16.mxu0 %v6261
    %8049 = vmatmul.mubr.bf16.gmra.mrb[0].mxu0 %v6260
    %v8050 = vpop.f32.mrb[0].mxu0
    %v8051 = vadd.f32 0.0, %v8050
    %v8052 = vpop.f32.mrb[0].mxu0
    %v8053 = vadd.f32 0.0, %v8052
    %v8054 = vpop.f32.mrb[0].mxu0
    %v8055 = vadd.f32 0.0, %v8054
    %v8056 = vpop.f32.mrb[0].mxu0
    %v8057 = vadd.f32 0.0, %v8056
    %8058 = vmatprep.mubr.bf16.mxu0 %v6278
    %8059 = vmatmul.mubr.bf16.gmra.mrb[0].mxu0 %v6277
    %v8060 = vpop.f32.mrb[0].mxu0
    %v8061 = vadd.f32 0.0, %v8060
    %v8062 = vpop.f32.mrb[0].mxu0
    %v8063 = vadd.f32 0.0, %v8062
    %v8064 = vpop.f32.mrb[0].mxu0
    %v8065 = vadd.f32 0.0, %v8064
    %v8066 = vpop.f32.mrb[0].mxu0
    %v8067 = vadd.f32 0.0, %v8066
    %8068 = vmatprep.mubr.bf16.mxu0 %v6295
    %8069 = vmatmul.mubr.bf16.gmra.mrb[0].mxu0 %v6294
    %v8070 = vpop.f32.mrb[0].mxu0
    %v8071 = vadd.f32 0.0, %v8070
    %v8072 = vpop.f32.mrb[0].mxu0
    %v8073 = vadd.f32 0.0, %v8072
    %v8074 = vpop.f32.mrb[0].mxu0
    %v8075 = vadd.f32 0.0, %v8074
    %v8076 = vpop.f32.mrb[0].mxu0
    %v8077 = vadd.f32 0.0, %v8076
    %8078 = vmatprep.mubr.bf16.mxu0 %v6312
    %8079 = vmatmul.mubr.bf16.gmra.mrb[0].mxu0 %v6311
    %v8080 = vpop.f32.mrb[0].mxu0
    %v8081 = vadd.f32 0.0, %v8080
    %v8082 = vpop.f32.mrb[0].mxu0
    %v8083 = vadd.f32 0.0, %v8082
    %v8084 = vpop.f32.mrb[0].mxu0
    %v8085 = vadd.f32 0.0, %v8084
    %v8086 = vpop.f32.mrb[0].mxu0
    %v8087 = vadd.f32 0.0, %v8086
    %8088 = vdwg.mxu0
    %8089 = vmatprep.subr.bf16.mxu0 %v7769
    %8090 = vmatpush1.bf16.msra.mxu0 %v7768
    %8091 = vmatprep.subr.bf16.mxu0 %v7771
    %8092 = vmatpush1.bf16.msra.mxu0 %v7770
    %8093 = vmatprep.subr.bf16.mxu0 %v7773
    %8094 = vmatpush1.bf16.msra.mxu0 %v7772
    %8095 = vmatprep.subr.bf16.mxu0 %v7775
    %8096 = vmatpush1.bf16.msra.mxu0 %v7774
    %8097 = vmatprep.subr.bf16.mxu0 %v7777
    %8098 = vmatpush1.bf16.msra.mxu0 %v7776
    %8099 = vmatprep.subr.bf16.mxu0 %v7779
    %8100 = vmatpush1.bf16.msra.mxu0 %v7778
    %8101 = vmatprep.subr.bf16.mxu0 %v7781
    %8102 = vmatpush1.bf16.msra.mxu0 %v7780
    %8103 = vmatprep.subr.bf16.mxu0 %v7783
    %8104 = vmatpush1.bf16.msra.mxu0 %v7782
    %8105 = vmatprep.subr.bf16.mxu0 %v7785
    %8106 = vmatpush1.bf16.msra.mxu0 %v7784
    %8107 = vmatprep.subr.bf16.mxu0 %v7787
    %8108 = vmatpush1.bf16.msra.mxu0 %v7786
    %8109 = vmatprep.subr.bf16.mxu0 %v7789
    %8110 = vmatpush1.bf16.msra.mxu0 %v7788
    %8111 = vmatprep.subr.bf16.mxu0 %v7791
    %8112 = vmatpush1.bf16.msra.mxu0 %v7790
    %8113 = vmatprep.subr.bf16.mxu0 %v7793
    %8114 = vmatpush1.bf16.msra.mxu0 %v7792
    %8115 = vmatprep.subr.bf16.mxu0 %v7795
    %8116 = vmatpush1.bf16.msra.mxu0 %v7794
    %8117 = vmatprep.subr.bf16.mxu0 %v7797
    %8118 = vmatpush1.bf16.msra.mxu0 %v7796
    %8119 = vmatprep.subr.bf16.mxu0 %v7799
    %8120 = vmatpush1.bf16.msra.mxu0 %v7798
    %8121 = vmatprep.mubr.bf16.mxu0 %v6059
    %8122 = vmatmul.mubr.bf16.gmra.mrb[0].mxu0 %v6058
    %v8123 = vpop.f32.mrb[0].mxu0
    %v8124 = vadd.f32 %v7931, %v8123
    %v8125 = vpop.f32.mrb[0].mxu0
    %v8126 = vadd.f32 %v7933, %v8125
    %v8127 = vpop.f32.mrb[0].mxu0
    %v8128 = vadd.f32 %v7935, %v8127
    %v8129 = vpop.f32.mrb[0].mxu0
    %v8130 = vadd.f32 %v7937, %v8129
    %8131 = vmatprep.mubr.bf16.mxu0 %v6076
    %8132 = vmatmul.mubr.bf16.gmra.mrb[0].mxu0 %v6075
    %v8133 = vpop.f32.mrb[0].mxu0
    %v8134 = vadd.f32 %v7941, %v8133
    %v8135 = vpop.f32.mrb[0].mxu0
    %v8136 = vadd.f32 %v7943, %v8135
    %v8137 = vpop.f32.mrb[0].mxu0
    %v8138 = vadd.f32 %v7945, %v8137
    %v8139 = vpop.f32.mrb[0].mxu0
    %v8140 = vadd.f32 %v7947, %v8139
    %8141 = vmatprep.mubr.bf16.mxu0 %v6093
    %8142 = vmatmul.mubr.bf16.gmra.mrb[0].mxu0 %v6092
    %v8143 = vpop.f32.mrb[0].mxu0
    %v8144 = vadd.f32 %v7951, %v8143
    %v8145 = vpop.f32.mrb[0].mxu0
    %v8146 = vadd.f32 %v7953, %v8145
    %v8147 = vpop.f32.mrb[0].mxu0
    %v8148 = vadd.f32 %v7955, %v8147
    %v8149 = vpop.f32.mrb[0].mxu0
    %v8150 = vadd.f32 %v7957, %v8149
    %8151 = vmatprep.mubr.bf16.mxu0 %v6110
    %8152 = vmatmul.mubr.bf16.gmra.mrb[0].mxu0 %v6109
    %v8153 = vpop.f32.mrb[0].mxu0
    %v8154 = vadd.f32 %v7961, %v8153
    %v8155 = vpop.f32.mrb[0].mxu0
    %v8156 = vadd.f32 %v7963, %v8155
    %v8157 = vpop.f32.mrb[0].mxu0
    %v8158 = vadd.f32 %v7965, %v8157
    %v8159 = vpop.f32.mrb[0].mxu0
    %v8160 = vadd.f32 %v7967, %v8159
    %8161 = vmatprep.mubr.bf16.mxu0 %v6127
    %8162 = vmatmul.mubr.bf16.gmra.mrb[0].mxu0 %v6126
    %v8163 = vpop.f32.mrb[0].mxu0
    %v8164 = vadd.f32 %v7971, %v8163
    %v8165 = vpop.f32.mrb[0].mxu0
    %v8166 = vadd.f32 %v7973, %v8165
    %v8167 = vpop.f32.mrb[0].mxu0
    %v8168 = vadd.f32 %v7975, %v8167
    %v8169 = vpop.f32.mrb[0].mxu0
    %v8170 = vadd.f32 %v7977, %v8169
    %8171 = vmatprep.mubr.bf16.mxu0 %v6144
    %8172 = vmatmul.mubr.bf16.gmra.mrb[0].mxu0 %v6143
    %v8173 = vpop.f32.mrb[0].mxu0
    %v8174 = vadd.f32 %v7981, %v8173
    %v8175 = vpop.f32.mrb[0].mxu0
    %v8176 = vadd.f32 %v7983, %v8175
    %v8177 = vpop.f32.mrb[0].mxu0
    %v8178 = vadd.f32 %v7985, %v8177
    %v8179 = vpop.f32.mrb[0].mxu0
    %v8180 = vadd.f32 %v7987, %v8179
    %8181 = vmatprep.mubr.bf16.mxu0 %v6161
    %8182 = vmatmul.mubr.bf16.gmra.mrb[0].mxu0 %v6160
    %v8183 = vpop.f32.mrb[0].mxu0
    %v8184 = vadd.f32 %v7991, %v8183
    %v8185 = vpop.f32.mrb[0].mxu0
    %v8186 = vadd.f32 %v7993, %v8185
    %v8187 = vpop.f32.mrb[0].mxu0
    %v8188 = vadd.f32 %v7995, %v8187
    %v8189 = vpop.f32.mrb[0].mxu0
    %v8190 = vadd.f32 %v7997, %v8189
    %8191 = vmatprep.mubr.bf16.mxu0 %v6178
    %8192 = vmatmul.mubr.bf16.gmra.mrb[0].mxu0 %v6177
    %v8193 = vpop.f32.mrb[0].mxu0
    %v8194 = vadd.f32 %v8001, %v8193
    %v8195 = vpop.f32.mrb[0].mxu0
    %v8196 = vadd.f32 %v8003, %v8195
    %v8197 = vpop.f32.mrb[0].mxu0
    %v8198 = vadd.f32 %v8005, %v8197
    %v8199 = vpop.f32.mrb[0].mxu0
    %v8200 = vadd.f32 %v8007, %v8199
    %8201 = vmatprep.mubr.bf16.mxu0 %v6195
    %8202 = vmatmul.mubr.bf16.gmra.mrb[0].mxu0 %v6194
    %v8203 = vpop.f32.mrb[0].mxu0
    %v8204 = vadd.f32 %v8011, %v8203
    %v8205 = vpop.f32.mrb[0].mxu0
    %v8206 = vadd.f32 %v8013, %v8205
    %v8207 = vpop.f32.mrb[0].mxu0
    %v8208 = vadd.f32 %v8015, %v8207
    %v8209 = vpop.f32.mrb[0].mxu0
    %v8210 = vadd.f32 %v8017, %v8209
    %8211 = vmatprep.mubr.bf16.mxu0 %v6212
    %8212 = vmatmul.mubr.bf16.gmra.mrb[0].mxu0 %v6211
    %v8213 = vpop.f32.mrb[0].mxu0
    %v8214 = vadd.f32 %v8021, %v8213
    %v8215 = vpop.f32.mrb[0].mxu0
    %v8216 = vadd.f32 %v8023, %v8215
    %v8217 = vpop.f32.mrb[0].mxu0
    %v8218 = vadd.f32 %v8025, %v8217
    %v8219 = vpop.f32.mrb[0].mxu0
    %v8220 = vadd.f32 %v8027, %v8219
    %8221 = vmatprep.mubr.bf16.mxu0 %v6229
    %8222 = vmatmul.mubr.bf16.gmra.mrb[0].mxu0 %v6228
    %v8223 = vpop.f32.mrb[0].mxu0
    %v8224 = vadd.f32 %v8031, %v8223
    %v8225 = vpop.f32.mrb[0].mxu0
    %v8226 = vadd.f32 %v8033, %v8225
    %v8227 = vpop.f32.mrb[0].mxu0
    %v8228 = vadd.f32 %v8035, %v8227
    %v8229 = vpop.f32.mrb[0].mxu0
    %v8230 = vadd.f32 %v8037, %v8229
    %8231 = vmatprep.mubr.bf16.mxu0 %v6246
    %8232 = vmatmul.mubr.bf16.gmra.mrb[0].mxu0 %v6245
    %v8233 = vpop.f32.mrb[0].mxu0
    %v8234 = vadd.f32 %v8041, %v8233
    %v8235 = vpop.f32.mrb[0].mxu0
    %v8236 = vadd.f32 %v8043, %v8235
    %v8237 = vpop.f32.mrb[0].mxu0
    %v8238 = vadd.f32 %v8045, %v8237
    %v8239 = vpop.f32.mrb[0].mxu0
    %v8240 = vadd.f32 %v8047, %v8239
    %8241 = vmatprep.mubr.bf16.mxu0 %v6263
    %8242 = vmatmul.mubr.bf16.gmra.mrb[0].mxu0 %v6262
    %v8243 = vpop.f32.mrb[0].mxu0
    %v8244 = vadd.f32 %v8051, %v8243
    %v8245 = vpop.f32.mrb[0].mxu0
    %v8246 = vadd.f32 %v8053, %v8245
    %v8247 = vpop.f32.mrb[0].mxu0
    %v8248 = vadd.f32 %v8055, %v8247
    %v8249 = vpop.f32.mrb[0].mxu0
    %v8250 = vadd.f32 %v8057, %v8249
    %8251 = vmatprep.mubr.bf16.mxu0 %v6280
    %8252 = vmatmul.mubr.bf16.gmra.mrb[0].mxu0 %v6279
    %v8253 = vpop.f32.mrb[0].mxu0
    %v8254 = vadd.f32 %v8061, %v8253
    %v8255 = vpop.f32.mrb[0].mxu0
    %v8256 = vadd.f32 %v8063, %v8255
    %v8257 = vpop.f32.mrb[0].mxu0
    %v8258 = vadd.f32 %v8065, %v8257
    %v8259 = vpop.f32.mrb[0].mxu0
    %v8260 = vadd.f32 %v8067, %v8259
    %8261 = vmatprep.mubr.bf16.mxu0 %v6297
    %8262 = vmatmul.mubr.bf16.gmra.mrb[0].mxu0 %v6296
    %v8263 = vpop.f32.mrb[0].mxu0
    %v8264 = vadd.f32 %v8071, %v8263
    %v8265 = vpop.f32.mrb[0].mxu0
    %v8266 = vadd.f32 %v8073, %v8265
    %v8267 = vpop.f32.mrb[0].mxu0
    %v8268 = vadd.f32 %v8075, %v8267
    %v8269 = vpop.f32.mrb[0].mxu0
    %v8270 = vadd.f32 %v8077, %v8269
    %8271 = vmatprep.mubr.bf16.mxu0 %v6314
    %8272 = vmatmul.mubr.bf16.gmra.mrb[0].mxu0 %v6313
    %v8273 = vpop.f32.mrb[0].mxu0
    %v8274 = vadd.f32 %v8081, %v8273
    %v8275 = vpop.f32.mrb[0].mxu0
    %v8276 = vadd.f32 %v8083, %v8275
    %v8277 = vpop.f32.mrb[0].mxu0
    %v8278 = vadd.f32 %v8085, %v8277
    %v8279 = vpop.f32.mrb[0].mxu0
    %v8280 = vadd.f32 %v8087, %v8279
    %8281 = vdwg.mxu0
    %8282 = vmatprep.subr.bf16.mxu0 %v7801
    %8283 = vmatpush1.bf16.msra.mxu0 %v7800
    %8284 = vmatprep.subr.bf16.mxu0 %v7803
    %8285 = vmatpush1.bf16.msra.mxu0 %v7802
    %8286 = vmatprep.subr.bf16.mxu0 %v7805
    %8287 = vmatpush1.bf16.msra.mxu0 %v7804
    %8288 = vmatprep.subr.bf16.mxu0 %v7807
    %8289 = vmatpush1.bf16.msra.mxu0 %v7806
    %8290 = vmatprep.subr.bf16.mxu0 %v7809
    %8291 = vmatpush1.bf16.msra.mxu0 %v7808
    %8292 = vmatprep.subr.bf16.mxu0 %v7811
    %8293 = vmatpush1.bf16.msra.mxu0 %v7810
    %8294 = vmatprep.subr.bf16.mxu0 %v7813
    %8295 = vmatpush1.bf16.msra.mxu0 %v7812
    %8296 = vmatprep.subr.bf16.mxu0 %v7815
    %8297 = vmatpush1.bf16.msra.mxu0 %v7814
    %8298 = vmatprep.subr.bf16.mxu0 0
    %8299 = vmatpush1.bf16.msra.mxu0 0
    %8300 = vmatprep.subr.bf16.mxu0 0
    %8301 = vmatpush1.bf16.msra.mxu0 0
    %8302 = vmatprep.subr.bf16.mxu0 0
    %8303 = vmatpush1.bf16.msra.mxu0 0
    %8304 = vmatprep.subr.bf16.mxu0 0
    %8305 = vmatpush1.bf16.msra.mxu0 0
    %8306 = vmatprep.subr.bf16.mxu0 0
    %8307 = vmatpush1.bf16.msra.mxu0 0
    %8308 = vmatprep.subr.bf16.mxu0 0
    %8309 = vmatpush1.bf16.msra.mxu0 0
    %8310 = vmatprep.subr.bf16.mxu0 0
    %8311 = vmatpush1.bf16.msra.mxu0 0
    %8312 = vmatprep.subr.bf16.mxu0 0
    %8313 = vmatpush1.bf16.msra.mxu0 0
    %8314 = vmatprep.mubr.bf16.mxu0 0
    %8315 = vmatmul.mubr.bf16.gmra.mrb[0].mxu0 %v6060
    %v8316 = vpop.f32.mrb[0].mxu0
    %v8317 = vadd.f32 %v8124, %v8316
    %v8318 = vpop.f32.mrb[0].mxu0
    %v8319 = vadd.f32 %v8126, %v8318
    %v8320 = vpop.f32.mrb[0].mxu0
    %v8321 = vadd.f32 %v8128, %v8320
    %v8322 = vpop.f32.mrb[0].mxu0
    %v8323 = vadd.f32 %v8130, %v8322
    %8324 = vmatprep.mubr.bf16.mxu0 0
    %8325 = vmatmul.mubr.bf16.gmra.mrb[0].mxu0 %v6077
    %v8326 = vpop.f32.mrb[0].mxu0
    %v8327 = vadd.f32 %v8134, %v8326
    %v8328 = vpop.f32.mrb[0].mxu0
    %v8329 = vadd.f32 %v8136, %v8328
    %v8330 = vpop.f32.mrb[0].mxu0
    %v8331 = vadd.f32 %v8138, %v8330
    %v8332 = vpop.f32.mrb[0].mxu0
    %v8333 = vadd.f32 %v8140, %v8332
    %8334 = vmatprep.mubr.bf16.mxu0 0
    %8335 = vmatmul.mubr.bf16.gmra.mrb[0].mxu0 %v6094
    %v8336 = vpop.f32.mrb[0].mxu0
    %v8337 = vadd.f32 %v8144, %v8336
    %v8338 = vpop.f32.mrb[0].mxu0
    %v8339 = vadd.f32 %v8146, %v8338
    %v8340 = vpop.f32.mrb[0].mxu0
    %v8341 = vadd.f32 %v8148, %v8340
    %v8342 = vpop.f32.mrb[0].mxu0
    %v8343 = vadd.f32 %v8150, %v8342
    %8344 = vmatprep.mubr.bf16.mxu0 0
    %8345 = vmatmul.mubr.bf16.gmra.mrb[0].mxu0 %v6111
    %v8346 = vpop.f32.mrb[0].mxu0
    %v8347 = vadd.f32 %v8154, %v8346
    %v8348 = vpop.f32.mrb[0].mxu0
    %v8349 = vadd.f32 %v8156, %v8348
    %v8350 = vpop.f32.mrb[0].mxu0
    %v8351 = vadd.f32 %v8158, %v8350
    %v8352 = vpop.f32.mrb[0].mxu0
    %v8353 = vadd.f32 %v8160, %v8352
    %8354 = vmatprep.mubr.bf16.mxu0 0
    %8355 = vmatmul.mubr.bf16.gmra.mrb[0].mxu0 %v6128
    %v8356 = vpop.f32.mrb[0].mxu0
    %v8357 = vadd.f32 %v8164, %v8356
    %v8358 = vpop.f32.mrb[0].mxu0
    %v8359 = vadd.f32 %v8166, %v8358
    %v8360 = vpop.f32.mrb[0].mxu0
    %v8361 = vadd.f32 %v8168, %v8360
    %v8362 = vpop.f32.mrb[0].mxu0
    %v8363 = vadd.f32 %v8170, %v8362
    %8364 = vmatprep.mubr.bf16.mxu0 0
    %8365 = vmatmul.mubr.bf16.gmra.mrb[0].mxu0 %v6145
    %v8366 = vpop.f32.mrb[0].mxu0
    %v8367 = vadd.f32 %v8174, %v8366
    %v8368 = vpop.f32.mrb[0].mxu0
    %v8369 = vadd.f32 %v8176, %v8368
    %v8370 = vpop.f32.mrb[0].mxu0
    %v8371 = vadd.f32 %v8178, %v8370
    %v8372 = vpop.f32.mrb[0].mxu0
    %v8373 = vadd.f32 %v8180, %v8372
    %8374 = vmatprep.mubr.bf16.mxu0 0
    %8375 = vmatmul.mubr.bf16.gmra.mrb[0].mxu0 %v6162
    %v8376 = vpop.f32.mrb[0].mxu0
    %v8377 = vadd.f32 %v8184, %v8376
    %v8378 = vpop.f32.mrb[0].mxu0
    %v8379 = vadd.f32 %v8186, %v8378
    %v8380 = vpop.f32.mrb[0].mxu0
    %v8381 = vadd.f32 %v8188, %v8380
    %v8382 = vpop.f32.mrb[0].mxu0
    %v8383 = vadd.f32 %v8190, %v8382
    %8384 = vmatprep.mubr.bf16.mxu0 0
    %8385 = vmatmul.mubr.bf16.gmra.mrb[0].mxu0 %v6179
    %v8386 = vpop.f32.mrb[0].mxu0
    %v8387 = vadd.f32 %v8194, %v8386
    %v8388 = vpop.f32.mrb[0].mxu0
    %v8389 = vadd.f32 %v8196, %v8388
    %v8390 = vpop.f32.mrb[0].mxu0
    %v8391 = vadd.f32 %v8198, %v8390
    %v8392 = vpop.f32.mrb[0].mxu0
    %v8393 = vadd.f32 %v8200, %v8392
    %8394 = vmatprep.mubr.bf16.mxu0 0
    %8395 = vmatmul.mubr.bf16.gmra.mrb[0].mxu0 %v6196
    %v8396 = vpop.f32.mrb[0].mxu0
    %v8397 = vadd.f32 %v8204, %v8396
    %v8398 = vpop.f32.mrb[0].mxu0
    %v8399 = vadd.f32 %v8206, %v8398
    %v8400 = vpop.f32.mrb[0].mxu0
    %v8401 = vadd.f32 %v8208, %v8400
    %v8402 = vpop.f32.mrb[0].mxu0
    %v8403 = vadd.f32 %v8210, %v8402
    %8404 = vmatprep.mubr.bf16.mxu0 0
    %8405 = vmatmul.mubr.bf16.gmra.mrb[0].mxu0 %v6213
    %v8406 = vpop.f32.mrb[0].mxu0
    %v8407 = vadd.f32 %v8214, %v8406
    %v8408 = vpop.f32.mrb[0].mxu0
    %v8409 = vadd.f32 %v8216, %v8408
    %v8410 = vpop.f32.mrb[0].mxu0
    %v8411 = vadd.f32 %v8218, %v8410
    %v8412 = vpop.f32.mrb[0].mxu0
    %v8413 = vadd.f32 %v8220, %v8412
    %8414 = vmatprep.mubr.bf16.mxu0 0
    %8415 = vmatmul.mubr.bf16.gmra.mrb[0].mxu0 %v6230
    %v8416 = vpop.f32.mrb[0].mxu0
    %v8417 = vadd.f32 %v8224, %v8416
    %v8418 = vpop.f32.mrb[0].mxu0
    %v8419 = vadd.f32 %v8226, %v8418
    %v8420 = vpop.f32.mrb[0].mxu0
    %v8421 = vadd.f32 %v8228, %v8420
    %v8422 = vpop.f32.mrb[0].mxu0
    %v8423 = vadd.f32 %v8230, %v8422
    %8424 = vmatprep.mubr.bf16.mxu0 0
    %8425 = vmatmul.mubr.bf16.gmra.mrb[0].mxu0 %v6247
    %v8426 = vpop.f32.mrb[0].mxu0
    %v8427 = vadd.f32 %v8234, %v8426
    %v8428 = vpop.f32.mrb[0].mxu0
    %v8429 = vadd.f32 %v8236, %v8428
    %v8430 = vpop.f32.mrb[0].mxu0
    %v8431 = vadd.f32 %v8238, %v8430
    %v8432 = vpop.f32.mrb[0].mxu0
    %v8433 = vadd.f32 %v8240, %v8432
    %8434 = vmatprep.mubr.bf16.mxu0 0
    %8435 = vmatmul.mubr.bf16.gmra.mrb[0].mxu0 %v6264
    %v8436 = vpop.f32.mrb[0].mxu0
    %v8437 = vadd.f32 %v8244, %v8436
    %v8438 = vpop.f32.mrb[0].mxu0
    %v8439 = vadd.f32 %v8246, %v8438
    %v8440 = vpop.f32.mrb[0].mxu0
    %v8441 = vadd.f32 %v8248, %v8440
    %v8442 = vpop.f32.mrb[0].mxu0
    %v8443 = vadd.f32 %v8250, %v8442
    %8444 = vmatprep.mubr.bf16.mxu0 0
    %8445 = vmatmul.mubr.bf16.gmra.mrb[0].mxu0 %v6281
    %v8446 = vpop.f32.mrb[0].mxu0
    %v8447 = vadd.f32 %v8254, %v8446
    %v8448 = vpop.f32.mrb[0].mxu0
    %v8449 = vadd.f32 %v8256, %v8448
    %v8450 = vpop.f32.mrb[0].mxu0
    %v8451 = vadd.f32 %v8258, %v8450
    %v8452 = vpop.f32.mrb[0].mxu0
    %v8453 = vadd.f32 %v8260, %v8452
    %8454 = vmatprep.mubr.bf16.mxu0 0
    %8455 = vmatmul.mubr.bf16.gmra.mrb[0].mxu0 %v6298
    %v8456 = vpop.f32.mrb[0].mxu0
    %v8457 = vadd.f32 %v8264, %v8456
    %v8458 = vpop.f32.mrb[0].mxu0
    %v8459 = vadd.f32 %v8266, %v8458
    %v8460 = vpop.f32.mrb[0].mxu0
    %v8461 = vadd.f32 %v8268, %v8460
    %v8462 = vpop.f32.mrb[0].mxu0
    %v8463 = vadd.f32 %v8270, %v8462
    %8464 = vmatprep.mubr.bf16.mxu0 0
    %8465 = vmatmul.mubr.bf16.gmra.mrb[0].mxu0 %v6315
    %v8466 = vpop.f32.mrb[0].mxu0
    %v8467 = vadd.f32 %v8274, %v8466
    %v8468 = vpop.f32.mrb[0].mxu0
    %v8469 = vadd.f32 %v8276, %v8468
    %v8470 = vpop.f32.mrb[0].mxu0
    %v8471 = vadd.f32 %v8278, %v8470
    %v8472 = vpop.f32.mrb[0].mxu0
    %v8473 = vadd.f32 %v8280, %v8472
    %8474 = vdwg.mxu0
    %v8475 = vmax.f32 %v8317, %v8319
    %v8476 = vmax.f32 %v8321, %v8323
    %v8477 = vmax.f32 %v8327, %v8329
    %v8478 = vmax.f32 %v8331, %v8333
    %v8479 = vmax.f32 %v8337, %v8339
    %v8480 = vmax.f32 %v8341, %v8343
    %v8481 = vmax.f32 %v8347, %v8349
    %v8482 = vmax.f32 %v8351, %v8353
    %v8483 = vmax.f32 %v8357, %v8359
    %v8484 = vmax.f32 %v8361, %v8363
    %v8485 = vmax.f32 %v8367, %v8369
    %v8486 = vmax.f32 %v8371, %v8373
    %v8487 = vmax.f32 %v8377, %v8379
    %v8488 = vmax.f32 %v8381, %v8383
    %v8489 = vmax.f32 %v8387, %v8389
    %v8490 = vmax.f32 %v8391, %v8393
    %v8491 = vmax.f32 %v8397, %v8399
    %v8492 = vmax.f32 %v8401, %v8403
    %v8493 = vmax.f32 %v8407, %v8409
    %v8494 = vmax.f32 %v8411, %v8413
    %v8495 = vmax.f32 %v8417, %v8419
    %v8496 = vmax.f32 %v8421, %v8423
    %v8497 = vmax.f32 %v8427, %v8429
    %v8498 = vmax.f32 %v8431, %v8433
    %v8499 = vmax.f32 %v8437, %v8439
    %v8500 = vmax.f32 %v8441, %v8443
    %v8501 = vmax.f32 %v8447, %v8449
    %v8502 = vmax.f32 %v8451, %v8453
    %v8503 = vmax.f32 %v8457, %v8459
    %v8504 = vmax.f32 %v8461, %v8463
    %v8505 = vmax.f32 %v8467, %v8469
    %v8506 = vmax.f32 %v8471, %v8473
    %s8507 = scalar_lea.vmem [#allocation7], 1280
    %v8508 = vld [vmem:[%s8507] sm:$0xff]
    %v8509 = vld [vmem:[%s8507 + $0x8] sm:$0xff]
    %v8510 = vld [vmem:[%s8507 + $0x10] sm:$0xff]
    %v8511 = vld [vmem:[%s8507 + $0x18] sm:$0xff]
    %v8512 = vld [vmem:[%s8507 + $0x20] sm:$0xff]
    %v8513 = vld [vmem:[%s8507 + $0x28] sm:$0xff]
    %v8514 = vld [vmem:[%s8507 + $0x30] sm:$0xff]
    %v8515 = vld [vmem:[%s8507 + $0x38] sm:$0xff]
    %v8516 = vld [vmem:[%s8507 + $0x40] sm:$0xff]
    %v8517 = vld [vmem:[%s8507 + $0x48] sm:$0xff]
    %v8518 = vld [vmem:[%s8507 + $0x50] sm:$0xff]
    %v8519 = vld [vmem:[%s8507 + $0x58] sm:$0xff]
    %v8520 = vld [vmem:[%s8507 + $0x60] sm:$0xff]
    %v8521 = vld [vmem:[%s8507 + $0x68] sm:$0xff]
    %v8522 = vld [vmem:[%s8507 + $0x70] sm:$0xff]
    %v8523 = vld [vmem:[%s8507 + $0x78] sm:$0xff]
    %v8524 = vld [vmem:[%s8507 + $0x80] sm:$0xff]
    %v8525 = vld [vmem:[%s8507 + $0x88] sm:$0xff]
    %v8526 = vld [vmem:[%s8507 + $0x90] sm:$0xff]
    %v8527 = vld [vmem:[%s8507 + $0x98] sm:$0xff]
    %v8528 = vld [vmem:[%s8507 + $0xa0] sm:$0xff]
    %v8529 = vld [vmem:[%s8507 + $0xa8] sm:$0xff]
    %v8530 = vld [vmem:[%s8507 + $0xb0] sm:$0xff]
    %v8531 = vld [vmem:[%s8507 + $0xb8] sm:$0xff]
    %v8532 = vld [vmem:[%s8507 + $0xc0] sm:$0xff]
    %v8533 = vld [vmem:[%s8507 + $0xc8] sm:$0xff]
    %v8534 = vld [vmem:[%s8507 + $0xd0] sm:$0xff]
    %v8535 = vld [vmem:[%s8507 + $0xd8] sm:$0xff]
    %v8536 = vld [vmem:[%s8507 + $0xe0] sm:$0xff]
    %v8537 = vld [vmem:[%s8507 + $0xe8] sm:$0xff]
    %v8538 = vld [vmem:[%s8507 + $0xf0] sm:$0xff]
    %v8539 = vld [vmem:[%s8507 + $0xf8] sm:$0xff]
    %v8540 = vld [vmem:[%s8507 + $0x100] sm:$0xff]
    %v8541 = vld [vmem:[%s8507 + $0x108] sm:$0xff]
    %v8542 = vld [vmem:[%s8507 + $0x110] sm:$0xff]
    %v8543 = vld [vmem:[%s8507 + $0x118] sm:$0xff]
    %v8544 = vld [vmem:[%s8507 + $0x120] sm:$0xff]
    %v8545 = vld [vmem:[%s8507 + $0x128] sm:$0xff]
    %v8546 = vld [vmem:[%s8507 + $0x130] sm:$0xff]
    %v8547 = vld [vmem:[%s8507 + $0x138] sm:$0xff]
    %v8548 = vld [vmem:[%s8507 + $0x140] sm:$0xff]
    %v8549 = vld [vmem:[%s8507 + $0x148] sm:$0xff]
    %v8550 = vld [vmem:[%s8507 + $0x150] sm:$0xff]
    %v8551 = vld [vmem:[%s8507 + $0x158] sm:$0xff]
    %v8552 = vld [vmem:[%s8507 + $0x160] sm:$0xff]
    %v8553 = vld [vmem:[%s8507 + $0x168] sm:$0xff]
    %v8554 = vld [vmem:[%s8507 + $0x170] sm:$0xff]
    %v8555 = vld [vmem:[%s8507 + $0x178] sm:$0xff]
    %v8556 = vld [vmem:[%s8507 + $0x180] sm:$0xff]
    %v8557 = vld [vmem:[%s8507 + $0x188] sm:$0xff]
    %v8558 = vld [vmem:[%s8507 + $0x190] sm:$0xff]
    %v8559 = vld [vmem:[%s8507 + $0x198] sm:$0xff]
    %v8560 = vld [vmem:[%s8507 + $0x1a0] sm:$0xff]
    %v8561 = vld [vmem:[%s8507 + $0x1a8] sm:$0xff]
    %v8562 = vld [vmem:[%s8507 + $0x1b0] sm:$0xff]
    %v8563 = vld [vmem:[%s8507 + $0x1b8] sm:$0xff]
    %v8564 = vld [vmem:[%s8507 + $0x1c0] sm:$0xff]
    %v8565 = vld [vmem:[%s8507 + $0x1c8] sm:$0xff]
    %v8566 = vld [vmem:[%s8507 + $0x1d0] sm:$0xff]
    %v8567 = vld [vmem:[%s8507 + $0x1d8] sm:$0xff]
    %v8568 = vld [vmem:[%s8507 + $0x1e0] sm:$0xff]
    %v8569 = vld [vmem:[%s8507 + $0x1e8] sm:$0xff]
    %v8570 = vld [vmem:[%s8507 + $0x1f0] sm:$0xff]
    %v8571 = vld [vmem:[%s8507 + $0x1f8] sm:$0xff]
    %v8572 = vld [vmem:[%s8507 + $0x200] sm:$0xff]
    %v8573 = vld [vmem:[%s8507 + $0x208] sm:$0xff]
    %v8574 = vld [vmem:[%s8507 + $0x210] sm:$0xff]
    %v8575 = vld [vmem:[%s8507 + $0x218] sm:$0xff]
    %v8576 = vld [vmem:[%s8507 + $0x220] sm:$0xff]
    %v8577 = vld [vmem:[%s8507 + $0x228] sm:$0xff]
    %v8578 = vld [vmem:[%s8507 + $0x230] sm:$0xff]
    %v8579 = vld [vmem:[%s8507 + $0x238] sm:$0xff]
    %v8580 = vld [vmem:[%s8507 + $0x240] sm:$0xff]
    %v8581 = vld [vmem:[%s8507 + $0x248] sm:$0xff]
    %v8582 = vld [vmem:[%s8507 + $0x250] sm:$0xff]
    %v8583 = vld [vmem:[%s8507 + $0x258] sm:$0xff]
    %v8584 = vld [vmem:[%s8507 + $0x260] sm:$0xff]
    %v8585 = vld [vmem:[%s8507 + $0x268] sm:$0xff]
    %v8586 = vld [vmem:[%s8507 + $0x270] sm:$0xff]
    %v8587 = vld [vmem:[%s8507 + $0x278] sm:$0xff]
    %v8668 = vunpack.c.l.b16 %v8508
    %v8669 = vunpack.c.h.b16 %v8508
    %v8670 = vunpack.c.l.b16 %v8509
    %v8671 = vunpack.c.h.b16 %v8509
    %v8672 = vunpack.c.l.b16 %v8510
    %v8673 = vunpack.c.h.b16 %v8510
    %v8674 = vunpack.c.l.b16 %v8511
    %v8675 = vunpack.c.h.b16 %v8511
    %v8676 = vunpack.c.l.b16 %v8512
    %v8677 = vunpack.c.h.b16 %v8512
    %v8678 = vunpack.c.l.b16 %v8513
    %v8679 = vunpack.c.h.b16 %v8513
    %v8680 = vunpack.c.l.b16 %v8514
    %v8681 = vunpack.c.h.b16 %v8514
    %v8682 = vunpack.c.l.b16 %v8515
    %v8683 = vunpack.c.h.b16 %v8515
    %v8684 = vunpack.c.l.b16 %v8516
    %v8685 = vunpack.c.h.b16 %v8516
    %v8686 = vunpack.c.l.b16 %v8517
    %v8687 = vunpack.c.h.b16 %v8517
    %v8688 = vunpack.c.l.b16 %v8518
    %v8689 = vunpack.c.h.b16 %v8518
    %v8690 = vunpack.c.l.b16 %v8519
    %v8691 = vunpack.c.h.b16 %v8519
    %v8692 = vunpack.c.l.b16 %v8520
    %v8693 = vunpack.c.h.b16 %v8520
    %v8694 = vunpack.c.l.b16 %v8521
    %v8695 = vunpack.c.h.b16 %v8521
    %v8696 = vunpack.c.l.b16 %v8522
    %v8697 = vunpack.c.h.b16 %v8522
    %v8698 = vunpack.c.l.b16 %v8523
    %v8699 = vunpack.c.h.b16 %v8523
    %v8700 = vunpack.c.l.b16 %v8524
    %v8701 = vunpack.c.h.b16 %v8524
    %v8702 = vunpack.c.l.b16 %v8525
    %v8703 = vunpack.c.h.b16 %v8525
    %v8704 = vunpack.c.l.b16 %v8526
    %v8705 = vunpack.c.h.b16 %v8526
    %v8706 = vunpack.c.l.b16 %v8527
    %v8707 = vunpack.c.h.b16 %v8527
    %v8708 = vunpack.c.l.b16 %v8528
    %v8709 = vunpack.c.h.b16 %v8528
    %v8710 = vunpack.c.l.b16 %v8529
    %v8711 = vunpack.c.h.b16 %v8529
    %v8712 = vunpack.c.l.b16 %v8530
    %v8713 = vunpack.c.h.b16 %v8530
    %v8714 = vunpack.c.l.b16 %v8531
    %v8715 = vunpack.c.h.b16 %v8531
    %v8716 = vunpack.c.l.b16 %v8532
    %v8717 = vunpack.c.h.b16 %v8532
    %v8718 = vunpack.c.l.b16 %v8533
    %v8719 = vunpack.c.h.b16 %v8533
    %v8720 = vunpack.c.l.b16 %v8534
    %v8721 = vunpack.c.h.b16 %v8534
    %v8722 = vunpack.c.l.b16 %v8535
    %v8723 = vunpack.c.h.b16 %v8535
    %v8724 = vunpack.c.l.b16 %v8536
    %v8725 = vunpack.c.h.b16 %v8536
    %v8726 = vunpack.c.l.b16 %v8537
    %v8727 = vunpack.c.h.b16 %v8537
    %v8728 = vunpack.c.l.b16 %v8538
    %v8729 = vunpack.c.h.b16 %v8538
    %v8730 = vunpack.c.l.b16 %v8539
    %v8731 = vunpack.c.h.b16 %v8539
    %v8732 = vunpack.c.l.b16 %v8540
    %v8733 = vunpack.c.h.b16 %v8540
    %v8734 = vunpack.c.l.b16 %v8541
    %v8735 = vunpack.c.h.b16 %v8541
    %v8736 = vunpack.c.l.b16 %v8542
    %v8737 = vunpack.c.h.b16 %v8542
    %v8738 = vunpack.c.l.b16 %v8543
    %v8739 = vunpack.c.h.b16 %v8543
    %v8740 = vunpack.c.l.b16 %v8544
    %v8741 = vunpack.c.h.b16 %v8544
    %v8742 = vunpack.c.l.b16 %v8545
    %v8743 = vunpack.c.h.b16 %v8545
    %v8744 = vunpack.c.l.b16 %v8546
    %v8745 = vunpack.c.h.b16 %v8546
    %v8746 = vunpack.c.l.b16 %v8547
    %v8747 = vunpack.c.h.b16 %v8547
    %v8748 = vunpack.c.l.b16 %v8548
    %v8749 = vunpack.c.h.b16 %v8548
    %v8750 = vunpack.c.l.b16 %v8549
    %v8751 = vunpack.c.h.b16 %v8549
    %v8752 = vunpack.c.l.b16 %v8550
    %v8753 = vunpack.c.h.b16 %v8550
    %v8754 = vunpack.c.l.b16 %v8551
    %v8755 = vunpack.c.h.b16 %v8551
    %v8756 = vunpack.c.l.b16 %v8552
    %v8757 = vunpack.c.h.b16 %v8552
    %v8758 = vunpack.c.l.b16 %v8553
    %v8759 = vunpack.c.h.b16 %v8553
    %v8760 = vunpack.c.l.b16 %v8554
    %v8761 = vunpack.c.h.b16 %v8554
    %v8762 = vunpack.c.l.b16 %v8555
    %v8763 = vunpack.c.h.b16 %v8555
    %v8764 = vunpack.c.l.b16 %v8556
    %v8765 = vunpack.c.h.b16 %v8556
    %v8766 = vunpack.c.l.b16 %v8557
    %v8767 = vunpack.c.h.b16 %v8557
    %v8768 = vunpack.c.l.b16 %v8558
    %v8769 = vunpack.c.h.b16 %v8558
    %v8770 = vunpack.c.l.b16 %v8559
    %v8771 = vunpack.c.h.b16 %v8559
    %v8772 = vunpack.c.l.b16 %v8560
    %v8773 = vunpack.c.h.b16 %v8560
    %v8774 = vunpack.c.l.b16 %v8561
    %v8775 = vunpack.c.h.b16 %v8561
    %v8776 = vunpack.c.l.b16 %v8562
    %v8777 = vunpack.c.h.b16 %v8562
    %v8778 = vunpack.c.l.b16 %v8563
    %v8779 = vunpack.c.h.b16 %v8563
    %v8780 = vunpack.c.l.b16 %v8564
    %v8781 = vunpack.c.h.b16 %v8564
    %v8782 = vunpack.c.l.b16 %v8565
    %v8783 = vunpack.c.h.b16 %v8565
    %v8784 = vunpack.c.l.b16 %v8566
    %v8785 = vunpack.c.h.b16 %v8566
    %v8786 = vunpack.c.l.b16 %v8567
    %v8787 = vunpack.c.h.b16 %v8567
    %v8788 = vunpack.c.l.b16 %v8568
    %v8789 = vunpack.c.h.b16 %v8568
    %v8790 = vunpack.c.l.b16 %v8569
    %v8791 = vunpack.c.h.b16 %v8569
    %v8792 = vunpack.c.l.b16 %v8570
    %v8793 = vunpack.c.h.b16 %v8570
    %v8794 = vunpack.c.l.b16 %v8571
    %v8795 = vunpack.c.h.b16 %v8571
    %v8796 = vunpack.c.l.b16 %v8572
    %v8797 = vunpack.c.h.b16 %v8572
    %v8798 = vunpack.c.l.b16 %v8573
    %v8799 = vunpack.c.h.b16 %v8573
    %v8800 = vunpack.c.l.b16 %v8574
    %v8801 = vunpack.c.h.b16 %v8574
    %v8802 = vunpack.c.l.b16 %v8575
    %v8803 = vunpack.c.h.b16 %v8575
    %v8804 = vunpack.c.l.b16 %v8576
    %v8805 = vunpack.c.h.b16 %v8576
    %v8806 = vunpack.c.l.b16 %v8577
    %v8807 = vunpack.c.h.b16 %v8577
    %v8808 = vunpack.c.l.b16 %v8578
    %v8809 = vunpack.c.h.b16 %v8578
    %v8810 = vunpack.c.l.b16 %v8579
    %v8811 = vunpack.c.h.b16 %v8579
    %v8812 = vunpack.c.l.b16 %v8580
    %v8813 = vunpack.c.h.b16 %v8580
    %v8814 = vunpack.c.l.b16 %v8581
    %v8815 = vunpack.c.h.b16 %v8581
    %v8816 = vunpack.c.l.b16 %v8582
    %v8817 = vunpack.c.h.b16 %v8582
    %v8818 = vunpack.c.l.b16 %v8583
    %v8819 = vunpack.c.h.b16 %v8583
    %v8820 = vunpack.c.l.b16 %v8584
    %v8821 = vunpack.c.h.b16 %v8584
    %v8822 = vunpack.c.l.b16 %v8585
    %v8823 = vunpack.c.h.b16 %v8585
    %v8824 = vunpack.c.l.b16 %v8586
    %v8825 = vunpack.c.h.b16 %v8586
    %v8826 = vunpack.c.l.b16 %v8587
    %v8827 = vunpack.c.h.b16 %v8587
    %v8828 = vpack.c.b16 %v8670, %v8668
    %v8829 = vpack.c.b16 %v8671, %v8669
    %v8830 = vpack.c.b16 %v8674, %v8672
    %v8831 = vpack.c.b16 %v8675, %v8673
    %v8832 = vpack.c.b16 %v8678, %v8676
    %v8833 = vpack.c.b16 %v8679, %v8677
    %v8834 = vpack.c.b16 %v8682, %v8680
    %v8835 = vpack.c.b16 %v8683, %v8681
    %v8836 = vpack.c.b16 %v8686, %v8684
    %v8837 = vpack.c.b16 %v8687, %v8685
    %v8838 = vpack.c.b16 %v8690, %v8688
    %v8839 = vpack.c.b16 %v8691, %v8689
    %v8840 = vpack.c.b16 %v8694, %v8692
    %v8841 = vpack.c.b16 %v8695, %v8693
    %v8842 = vpack.c.b16 %v8698, %v8696
    %v8843 = vpack.c.b16 %v8699, %v8697
    %v8844 = vpack.c.b16 %v8702, %v8700
    %v8845 = vpack.c.b16 %v8703, %v8701
    %v8846 = vpack.c.b16 %v8706, %v8704
    %v8847 = vpack.c.b16 %v8707, %v8705
    %v8848 = vpack.c.b16 %v8710, %v8708
    %v8849 = vpack.c.b16 %v8711, %v8709
    %v8850 = vpack.c.b16 %v8714, %v8712
    %v8851 = vpack.c.b16 %v8715, %v8713
    %v8852 = vpack.c.b16 %v8718, %v8716
    %v8853 = vpack.c.b16 %v8719, %v8717
    %v8854 = vpack.c.b16 %v8722, %v8720
    %v8855 = vpack.c.b16 %v8723, %v8721
    %v8856 = vpack.c.b16 %v8726, %v8724
    %v8857 = vpack.c.b16 %v8727, %v8725
    %v8858 = vpack.c.b16 %v8730, %v8728
    %v8859 = vpack.c.b16 %v8731, %v8729
    %v8860 = vpack.c.b16 %v8734, %v8732
    %v8861 = vpack.c.b16 %v8735, %v8733
    %v8862 = vpack.c.b16 %v8738, %v8736
    %v8863 = vpack.c.b16 %v8739, %v8737
    %v8864 = vpack.c.b16 %v8742, %v8740
    %v8865 = vpack.c.b16 %v8743, %v8741
    %v8866 = vpack.c.b16 %v8746, %v8744
    %v8867 = vpack.c.b16 %v8747, %v8745
    %v8868 = vpack.c.b16 %v8750, %v8748
    %v8869 = vpack.c.b16 %v8751, %v8749
    %v8870 = vpack.c.b16 %v8754, %v8752
    %v8871 = vpack.c.b16 %v8755, %v8753
    %v8872 = vpack.c.b16 %v8758, %v8756
    %v8873 = vpack.c.b16 %v8759, %v8757
    %v8874 = vpack.c.b16 %v8762, %v8760
    %v8875 = vpack.c.b16 %v8763, %v8761
    %v8876 = vpack.c.b16 %v8766, %v8764
    %v8877 = vpack.c.b16 %v8767, %v8765
    %v8878 = vpack.c.b16 %v8770, %v8768
    %v8879 = vpack.c.b16 %v8771, %v8769
    %v8880 = vpack.c.b16 %v8774, %v8772
    %v8881 = vpack.c.b16 %v8775, %v8773
    %v8882 = vpack.c.b16 %v8778, %v8776
    %v8883 = vpack.c.b16 %v8779, %v8777
    %v8884 = vpack.c.b16 %v8782, %v8780
    %v8885 = vpack.c.b16 %v8783, %v8781
    %v8886 = vpack.c.b16 %v8786, %v8784
    %v8887 = vpack.c.b16 %v8787, %v8785
    %v8888 = vpack.c.b16 %v8790, %v8788
    %v8889 = vpack.c.b16 %v8791, %v8789
    %v8890 = vpack.c.b16 %v8794, %v8792
    %v8891 = vpack.c.b16 %v8795, %v8793
    %v8892 = vpack.c.b16 %v8798, %v8796
    %v8893 = vpack.c.b16 %v8799, %v8797
    %v8894 = vpack.c.b16 %v8802, %v8800
    %v8895 = vpack.c.b16 %v8803, %v8801
    %v8896 = vpack.c.b16 %v8806, %v8804
    %v8897 = vpack.c.b16 %v8807, %v8805
    %v8898 = vpack.c.b16 %v8810, %v8808
    %v8899 = vpack.c.b16 %v8811, %v8809
    %v8900 = vpack.c.b16 %v8814, %v8812
    %v8901 = vpack.c.b16 %v8815, %v8813
    %v8902 = vpack.c.b16 %v8818, %v8816
    %v8903 = vpack.c.b16 %v8819, %v8817
    %v8904 = vpack.c.b16 %v8822, %v8820
    %v8905 = vpack.c.b16 %v8823, %v8821
    %v8906 = vpack.c.b16 %v8826, %v8824
    %v8907 = vpack.c.b16 %v8827, %v8825
    %8988 = vmatprep.subr.bf16.mxu0 %v8829
    %8989 = vmatpush1.bf16.msra.mxu0 %v8828
    %8990 = vmatprep.subr.bf16.mxu0 %v8831
    %8991 = vmatpush1.bf16.msra.mxu0 %v8830
    %8992 = vmatprep.subr.bf16.mxu0 %v8833
    %8993 = vmatpush1.bf16.msra.mxu0 %v8832
    %8994 = vmatprep.subr.bf16.mxu0 %v8835
    %8995 = vmatpush1.bf16.msra.mxu0 %v8834
    %8996 = vmatprep.subr.bf16.mxu0 %v8837
    %8997 = vmatpush1.bf16.msra.mxu0 %v8836
    %8998 = vmatprep.subr.bf16.mxu0 %v8839
    %8999 = vmatpush1.bf16.msra.mxu0 %v8838
    %9000 = vmatprep.subr.bf16.mxu0 %v8841
    %9001 = vmatpush1.bf16.msra.mxu0 %v8840
    %9002 = vmatprep.subr.bf16.mxu0 %v8843
    %9003 = vmatpush1.bf16.msra.mxu0 %v8842
    %9004 = vmatprep.subr.bf16.mxu0 %v8845
    %9005 = vmatpush1.bf16.msra.mxu0 %v8844
    %9006 = vmatprep.subr.bf16.mxu0 %v8847
    %9007 = vmatpush1.bf16.msra.mxu0 %v8846
    %9008 = vmatprep.subr.bf16.mxu0 %v8849
    %9009 = vmatpush1.bf16.msra.mxu0 %v8848
    %9010 = vmatprep.subr.bf16.mxu0 %v8851
    %9011 = vmatpush1.bf16.msra.mxu0 %v8850
    %9012 = vmatprep.subr.bf16.mxu0 %v8853
    %9013 = vmatpush1.bf16.msra.mxu0 %v8852
    %9014 = vmatprep.subr.bf16.mxu0 %v8855
    %9015 = vmatpush1.bf16.msra.mxu0 %v8854
    %9016 = vmatprep.subr.bf16.mxu0 %v8857
    %9017 = vmatpush1.bf16.msra.mxu0 %v8856
    %9018 = vmatprep.subr.bf16.mxu0 %v8859
    %9019 = vmatpush1.bf16.msra.mxu0 %v8858
    %9020 = vmatprep.mubr.bf16.mxu0 %v6061
    %9021 = vmatmul.mubr.bf16.gmra.mrb[0].mxu0 %v6060
    %v9022 = vpop.f32.mrb[0].mxu0
    %v9023 = vadd.f32 0.0, %v9022
    %v9024 = vpop.f32.mrb[0].mxu0
    %v9025 = vadd.f32 0.0, %v9024
    %v9026 = vpop.f32.mrb[0].mxu0
    %v9027 = vadd.f32 0.0, %v9026
    %v9028 = vpop.f32.mrb[0].mxu0
    %v9029 = vadd.f32 0.0, %v9028
    %9030 = vmatprep.mubr.bf16.mxu0 %v6078
    %9031 = vmatmul.mubr.bf16.gmra.mrb[0].mxu0 %v6077
    %v9032 = vpop.f32.mrb[0].mxu0
    %v9033 = vadd.f32 0.0, %v9032
    %v9034 = vpop.f32.mrb[0].mxu0
    %v9035 = vadd.f32 0.0, %v9034
    %v9036 = vpop.f32.mrb[0].mxu0
    %v9037 = vadd.f32 0.0, %v9036
    %v9038 = vpop.f32.mrb[0].mxu0
    %v9039 = vadd.f32 0.0, %v9038
    %9040 = vmatprep.mubr.bf16.mxu0 %v6095
    %9041 = vmatmul.mubr.bf16.gmra.mrb[0].mxu0 %v6094
    %v9042 = vpop.f32.mrb[0].mxu0
    %v9043 = vadd.f32 0.0, %v9042
    %v9044 = vpop.f32.mrb[0].mxu0
    %v9045 = vadd.f32 0.0, %v9044
    %v9046 = vpop.f32.mrb[0].mxu0
    %v9047 = vadd.f32 0.0, %v9046
    %v9048 = vpop.f32.mrb[0].mxu0
    %v9049 = vadd.f32 0.0, %v9048
    %9050 = vmatprep.mubr.bf16.mxu0 %v6112
    %9051 = vmatmul.mubr.bf16.gmra.mrb[0].mxu0 %v6111
    %v9052 = vpop.f32.mrb[0].mxu0
    %v9053 = vadd.f32 0.0, %v9052
    %v9054 = vpop.f32.mrb[0].mxu0
    %v9055 = vadd.f32 0.0, %v9054
    %v9056 = vpop.f32.mrb[0].mxu0
    %v9057 = vadd.f32 0.0, %v9056
    %v9058 = vpop.f32.mrb[0].mxu0
    %v9059 = vadd.f32 0.0, %v9058
    %9060 = vmatprep.mubr.bf16.mxu0 %v6129
    %9061 = vmatmul.mubr.bf16.gmra.mrb[0].mxu0 %v6128
    %v9062 = vpop.f32.mrb[0].mxu0
    %v9063 = vadd.f32 0.0, %v9062
    %v9064 = vpop.f32.mrb[0].mxu0
    %v9065 = vadd.f32 0.0, %v9064
    %v9066 = vpop.f32.mrb[0].mxu0
    %v9067 = vadd.f32 0.0, %v9066
    %v9068 = vpop.f32.mrb[0].mxu0
    %v9069 = vadd.f32 0.0, %v9068
    %9070 = vmatprep.mubr.bf16.mxu0 %v6146
    %9071 = vmatmul.mubr.bf16.gmra.mrb[0].mxu0 %v6145
    %v9072 = vpop.f32.mrb[0].mxu0
    %v9073 = vadd.f32 0.0, %v9072
    %v9074 = vpop.f32.mrb[0].mxu0
    %v9075 = vadd.f32 0.0, %v9074
    %v9076 = vpop.f32.mrb[0].mxu0
    %v9077 = vadd.f32 0.0, %v9076
    %v9078 = vpop.f32.mrb[0].mxu0
    %v9079 = vadd.f32 0.0, %v9078
    %9080 = vmatprep.mubr.bf16.mxu0 %v6163
    %9081 = vmatmul.mubr.bf16.gmra.mrb[0].mxu0 %v6162
    %v9082 = vpop.f32.mrb[0].mxu0
    %v9083 = vadd.f32 0.0, %v9082
    %v9084 = vpop.f32.mrb[0].mxu0
    %v9085 = vadd.f32 0.0, %v9084
    %v9086 = vpop.f32.mrb[0].mxu0
    %v9087 = vadd.f32 0.0, %v9086
    %v9088 = vpop.f32.mrb[0].mxu0
    %v9089 = vadd.f32 0.0, %v9088
    %9090 = vmatprep.mubr.bf16.mxu0 %v6180
    %9091 = vmatmul.mubr.bf16.gmra.mrb[0].mxu0 %v6179
    %v9092 = vpop.f32.mrb[0].mxu0
    %v9093 = vadd.f32 0.0, %v9092
    %v9094 = vpop.f32.mrb[0].mxu0
    %v9095 = vadd.f32 0.0, %v9094
    %v9096 = vpop.f32.mrb[0].mxu0
    %v9097 = vadd.f32 0.0, %v9096
    %v9098 = vpop.f32.mrb[0].mxu0
    %v9099 = vadd.f32 0.0, %v9098
    %9100 = vmatprep.mubr.bf16.mxu0 %v6197
    %9101 = vmatmul.mubr.bf16.gmra.mrb[0].mxu0 %v6196
    %v9102 = vpop.f32.mrb[0].mxu0
    %v9103 = vadd.f32 0.0, %v9102
    %v9104 = vpop.f32.mrb[0].mxu0
    %v9105 = vadd.f32 0.0, %v9104
    %v9106 = vpop.f32.mrb[0].mxu0
    %v9107 = vadd.f32 0.0, %v9106
    %v9108 = vpop.f32.mrb[0].mxu0
    %v9109 = vadd.f32 0.0, %v9108
    %9110 = vmatprep.mubr.bf16.mxu0 %v6214
    %9111 = vmatmul.mubr.bf16.gmra.mrb[0].mxu0 %v6213
    %v9112 = vpop.f32.mrb[0].mxu0
    %v9113 = vadd.f32 0.0, %v9112
    %v9114 = vpop.f32.mrb[0].mxu0
    %v9115 = vadd.f32 0.0, %v9114
    %v9116 = vpop.f32.mrb[0].mxu0
    %v9117 = vadd.f32 0.0, %v9116
    %v9118 = vpop.f32.mrb[0].mxu0
    %v9119 = vadd.f32 0.0, %v9118
    %9120 = vmatprep.mubr.bf16.mxu0 %v6231
    %9121 = vmatmul.mubr.bf16.gmra.mrb[0].mxu0 %v6230
    %v9122 = vpop.f32.mrb[0].mxu0
    %v9123 = vadd.f32 0.0, %v9122
    %v9124 = vpop.f32.mrb[0].mxu0
    %v9125 = vadd.f32 0.0, %v9124
    %v9126 = vpop.f32.mrb[0].mxu0
    %v9127 = vadd.f32 0.0, %v9126
    %v9128 = vpop.f32.mrb[0].mxu0
    %v9129 = vadd.f32 0.0, %v9128
    %9130 = vmatprep.mubr.bf16.mxu0 %v6248
    %9131 = vmatmul.mubr.bf16.gmra.mrb[0].mxu0 %v6247
    %v9132 = vpop.f32.mrb[0].mxu0
    %v9133 = vadd.f32 0.0, %v9132
    %v9134 = vpop.f32.mrb[0].mxu0
    %v9135 = vadd.f32 0.0, %v9134
    %v9136 = vpop.f32.mrb[0].mxu0
    %v9137 = vadd.f32 0.0, %v9136
    %v9138 = vpop.f32.mrb[0].mxu0
    %v9139 = vadd.f32 0.0, %v9138
    %9140 = vmatprep.mubr.bf16.mxu0 %v6265
    %9141 = vmatmul.mubr.bf16.gmra.mrb[0].mxu0 %v6264
    %v9142 = vpop.f32.mrb[0].mxu0
    %v9143 = vadd.f32 0.0, %v9142
    %v9144 = vpop.f32.mrb[0].mxu0
    %v9145 = vadd.f32 0.0, %v9144
    %v9146 = vpop.f32.mrb[0].mxu0
    %v9147 = vadd.f32 0.0, %v9146
    %v9148 = vpop.f32.mrb[0].mxu0
    %v9149 = vadd.f32 0.0, %v9148
    %9150 = vmatprep.mubr.bf16.mxu0 %v6282
    %9151 = vmatmul.mubr.bf16.gmra.mrb[0].mxu0 %v6281
    %v9152 = vpop.f32.mrb[0].mxu0
    %v9153 = vadd.f32 0.0, %v9152
    %v9154 = vpop.f32.mrb[0].mxu0
    %v9155 = vadd.f32 0.0, %v9154
    %v9156 = vpop.f32.mrb[0].mxu0
    %v9157 = vadd.f32 0.0, %v9156
    %v9158 = vpop.f32.mrb[0].mxu0
    %v9159 = vadd.f32 0.0, %v9158
    %9160 = vmatprep.mubr.bf16.mxu0 %v6299
    %9161 = vmatmul.mubr.bf16.gmra.mrb[0].mxu0 %v6298
    %v9162 = vpop.f32.mrb[0].mxu0
    %v9163 = vadd.f32 0.0, %v9162
    %v9164 = vpop.f32.mrb[0].mxu0
    %v9165 = vadd.f32 0.0, %v9164
    %v9166 = vpop.f32.mrb[0].mxu0
    %v9167 = vadd.f32 0.0, %v9166
    %v9168 = vpop.f32.mrb[0].mxu0
    %v9169 = vadd.f32 0.0, %v9168
    %9170 = vmatprep.mubr.bf16.mxu0 %v6316
    %9171 = vmatmul.mubr.bf16.gmra.mrb[0].mxu0 %v6315
    %v9172 = vpop.f32.mrb[0].mxu0
    %v9173 = vadd.f32 0.0, %v9172
    %v9174 = vpop.f32.mrb[0].mxu0
    %v9175 = vadd.f32 0.0, %v9174
    %v9176 = vpop.f32.mrb[0].mxu0
    %v9177 = vadd.f32 0.0, %v9176
    %v9178 = vpop.f32.mrb[0].mxu0
    %v9179 = vadd.f32 0.0, %v9178
    %9180 = vdwg.mxu0
    %9181 = vmatprep.subr.bf16.mxu0 %v8861
    %9182 = vmatpush1.bf16.msra.mxu0 %v8860
    %9183 = vmatprep.subr.bf16.mxu0 %v8863
    %9184 = vmatpush1.bf16.msra.mxu0 %v8862
    %9185 = vmatprep.subr.bf16.mxu0 %v8865
    %9186 = vmatpush1.bf16.msra.mxu0 %v8864
    %9187 = vmatprep.subr.bf16.mxu0 %v8867
    %9188 = vmatpush1.bf16.msra.mxu0 %v8866
    %9189 = vmatprep.subr.bf16.mxu0 %v8869
    %9190 = vmatpush1.bf16.msra.mxu0 %v8868
    %9191 = vmatprep.subr.bf16.mxu0 %v8871
    %9192 = vmatpush1.bf16.msra.mxu0 %v8870
    %9193 = vmatprep.subr.bf16.mxu0 %v8873
    %9194 = vmatpush1.bf16.msra.mxu0 %v8872
    %9195 = vmatprep.subr.bf16.mxu0 %v8875
    %9196 = vmatpush1.bf16.msra.mxu0 %v8874
    %9197 = vmatprep.subr.bf16.mxu0 %v8877
    %9198 = vmatpush1.bf16.msra.mxu0 %v8876
    %9199 = vmatprep.subr.bf16.mxu0 %v8879
    %9200 = vmatpush1.bf16.msra.mxu0 %v8878
    %9201 = vmatprep.subr.bf16.mxu0 %v8881
    %9202 = vmatpush1.bf16.msra.mxu0 %v8880
    %9203 = vmatprep.subr.bf16.mxu0 %v8883
    %9204 = vmatpush1.bf16.msra.mxu0 %v8882
    %9205 = vmatprep.subr.bf16.mxu0 %v8885
    %9206 = vmatpush1.bf16.msra.mxu0 %v8884
    %9207 = vmatprep.subr.bf16.mxu0 %v8887
    %9208 = vmatpush1.bf16.msra.mxu0 %v8886
    %9209 = vmatprep.subr.bf16.mxu0 %v8889
    %9210 = vmatpush1.bf16.msra.mxu0 %v8888
    %9211 = vmatprep.subr.bf16.mxu0 %v8891
    %9212 = vmatpush1.bf16.msra.mxu0 %v8890
    %9213 = vmatprep.mubr.bf16.mxu0 %v6063
    %9214 = vmatmul.mubr.bf16.gmra.mrb[0].mxu0 %v6062
    %v9215 = vpop.f32.mrb[0].mxu0
    %v9216 = vadd.f32 %v9023, %v9215
    %v9217 = vpop.f32.mrb[0].mxu0
    %v9218 = vadd.f32 %v9025, %v9217
    %v9219 = vpop.f32.mrb[0].mxu0
    %v9220 = vadd.f32 %v9027, %v9219
    %v9221 = vpop.f32.mrb[0].mxu0
    %v9222 = vadd.f32 %v9029, %v9221
    %9223 = vmatprep.mubr.bf16.mxu0 %v6080
    %9224 = vmatmul.mubr.bf16.gmra.mrb[0].mxu0 %v6079
    %v9225 = vpop.f32.mrb[0].mxu0
    %v9226 = vadd.f32 %v9033, %v9225
    %v9227 = vpop.f32.mrb[0].mxu0
    %v9228 = vadd.f32 %v9035, %v9227
    %v9229 = vpop.f32.mrb[0].mxu0
    %v9230 = vadd.f32 %v9037, %v9229
    %v9231 = vpop.f32.mrb[0].mxu0
    %v9232 = vadd.f32 %v9039, %v9231
    %9233 = vmatprep.mubr.bf16.mxu0 %v6097
    %9234 = vmatmul.mubr.bf16.gmra.mrb[0].mxu0 %v6096
    %v9235 = vpop.f32.mrb[0].mxu0
    %v9236 = vadd.f32 %v9043, %v9235
    %v9237 = vpop.f32.mrb[0].mxu0
    %v9238 = vadd.f32 %v9045, %v9237
    %v9239 = vpop.f32.mrb[0].mxu0
    %v9240 = vadd.f32 %v9047, %v9239
    %v9241 = vpop.f32.mrb[0].mxu0
    %v9242 = vadd.f32 %v9049, %v9241
    %9243 = vmatprep.mubr.bf16.mxu0 %v6114
    %9244 = vmatmul.mubr.bf16.gmra.mrb[0].mxu0 %v6113
    %v9245 = vpop.f32.mrb[0].mxu0
    %v9246 = vadd.f32 %v9053, %v9245
    %v9247 = vpop.f32.mrb[0].mxu0
    %v9248 = vadd.f32 %v9055, %v9247
    %v9249 = vpop.f32.mrb[0].mxu0
    %v9250 = vadd.f32 %v9057, %v9249
    %v9251 = vpop.f32.mrb[0].mxu0
    %v9252 = vadd.f32 %v9059, %v9251
    %9253 = vmatprep.mubr.bf16.mxu0 %v6131
    %9254 = vmatmul.mubr.bf16.gmra.mrb[0].mxu0 %v6130
    %v9255 = vpop.f32.mrb[0].mxu0
    %v9256 = vadd.f32 %v9063, %v9255
    %v9257 = vpop.f32.mrb[0].mxu0
    %v9258 = vadd.f32 %v9065, %v9257
    %v9259 = vpop.f32.mrb[0].mxu0
    %v9260 = vadd.f32 %v9067, %v9259
    %v9261 = vpop.f32.mrb[0].mxu0
    %v9262 = vadd.f32 %v9069, %v9261
    %9263 = vmatprep.mubr.bf16.mxu0 %v6148
    %9264 = vmatmul.mubr.bf16.gmra.mrb[0].mxu0 %v6147
    %v9265 = vpop.f32.mrb[0].mxu0
    %v9266 = vadd.f32 %v9073, %v9265
    %v9267 = vpop.f32.mrb[0].mxu0
    %v9268 = vadd.f32 %v9075, %v9267
    %v9269 = vpop.f32.mrb[0].mxu0
    %v9270 = vadd.f32 %v9077, %v9269
    %v9271 = vpop.f32.mrb[0].mxu0
    %v9272 = vadd.f32 %v9079, %v9271
    %9273 = vmatprep.mubr.bf16.mxu0 %v6165
    %9274 = vmatmul.mubr.bf16.gmra.mrb[0].mxu0 %v6164
    %v9275 = vpop.f32.mrb[0].mxu0
    %v9276 = vadd.f32 %v9083, %v9275
    %v9277 = vpop.f32.mrb[0].mxu0
    %v9278 = vadd.f32 %v9085, %v9277
    %v9279 = vpop.f32.mrb[0].mxu0
    %v9280 = vadd.f32 %v9087, %v9279
    %v9281 = vpop.f32.mrb[0].mxu0
    %v9282 = vadd.f32 %v9089, %v9281
    %9283 = vmatprep.mubr.bf16.mxu0 %v6182
    %9284 = vmatmul.mubr.bf16.gmra.mrb[0].mxu0 %v6181
    %v9285 = vpop.f32.mrb[0].mxu0
    %v9286 = vadd.f32 %v9093, %v9285
    %v9287 = vpop.f32.mrb[0].mxu0
    %v9288 = vadd.f32 %v9095, %v9287
    %v9289 = vpop.f32.mrb[0].mxu0
    %v9290 = vadd.f32 %v9097, %v9289
    %v9291 = vpop.f32.mrb[0].mxu0
    %v9292 = vadd.f32 %v9099, %v9291
    %9293 = vmatprep.mubr.bf16.mxu0 %v6199
    %9294 = vmatmul.mubr.bf16.gmra.mrb[0].mxu0 %v6198
    %v9295 = vpop.f32.mrb[0].mxu0
    %v9296 = vadd.f32 %v9103, %v9295
    %v9297 = vpop.f32.mrb[0].mxu0
    %v9298 = vadd.f32 %v9105, %v9297
    %v9299 = vpop.f32.mrb[0].mxu0
    %v9300 = vadd.f32 %v9107, %v9299
    %v9301 = vpop.f32.mrb[0].mxu0
    %v9302 = vadd.f32 %v9109, %v9301
    %9303 = vmatprep.mubr.bf16.mxu0 %v6216
    %9304 = vmatmul.mubr.bf16.gmra.mrb[0].mxu0 %v6215
    %v9305 = vpop.f32.mrb[0].mxu0
    %v9306 = vadd.f32 %v9113, %v9305
    %v9307 = vpop.f32.mrb[0].mxu0
    %v9308 = vadd.f32 %v9115, %v9307
    %v9309 = vpop.f32.mrb[0].mxu0
    %v9310 = vadd.f32 %v9117, %v9309
    %v9311 = vpop.f32.mrb[0].mxu0
    %v9312 = vadd.f32 %v9119, %v9311
    %9313 = vmatprep.mubr.bf16.mxu0 %v6233
    %9314 = vmatmul.mubr.bf16.gmra.mrb[0].mxu0 %v6232
    %v9315 = vpop.f32.mrb[0].mxu0
    %v9316 = vadd.f32 %v9123, %v9315
    %v9317 = vpop.f32.mrb[0].mxu0
    %v9318 = vadd.f32 %v9125, %v9317
    %v9319 = vpop.f32.mrb[0].mxu0
    %v9320 = vadd.f32 %v9127, %v9319
    %v9321 = vpop.f32.mrb[0].mxu0
    %v9322 = vadd.f32 %v9129, %v9321
    %9323 = vmatprep.mubr.bf16.mxu0 %v6250
    %9324 = vmatmul.mubr.bf16.gmra.mrb[0].mxu0 %v6249
    %v9325 = vpop.f32.mrb[0].mxu0
    %v9326 = vadd.f32 %v9133, %v9325
    %v9327 = vpop.f32.mrb[0].mxu0
    %v9328 = vadd.f32 %v9135, %v9327
    %v9329 = vpop.f32.mrb[0].mxu0
    %v9330 = vadd.f32 %v9137, %v9329
    %v9331 = vpop.f32.mrb[0].mxu0
    %v9332 = vadd.f32 %v9139, %v9331
    %9333 = vmatprep.mubr.bf16.mxu0 %v6267
    %9334 = vmatmul.mubr.bf16.gmra.mrb[0].mxu0 %v6266
    %v9335 = vpop.f32.mrb[0].mxu0
    %v9336 = vadd.f32 %v9143, %v9335
    %v9337 = vpop.f32.mrb[0].mxu0
    %v9338 = vadd.f32 %v9145, %v9337
    %v9339 = vpop.f32.mrb[0].mxu0
    %v9340 = vadd.f32 %v9147, %v9339
    %v9341 = vpop.f32.mrb[0].mxu0
    %v9342 = vadd.f32 %v9149, %v9341
    %9343 = vmatprep.mubr.bf16.mxu0 %v6284
    %9344 = vmatmul.mubr.bf16.gmra.mrb[0].mxu0 %v6283
    %v9345 = vpop.f32.mrb[0].mxu0
    %v9346 = vadd.f32 %v9153, %v9345
    %v9347 = vpop.f32.mrb[0].mxu0
    %v9348 = vadd.f32 %v9155, %v9347
    %v9349 = vpop.f32.mrb[0].mxu0
    %v9350 = vadd.f32 %v9157, %v9349
    %v9351 = vpop.f32.mrb[0].mxu0
    %v9352 = vadd.f32 %v9159, %v9351
    %9353 = vmatprep.mubr.bf16.mxu0 %v6301
    %9354 = vmatmul.mubr.bf16.gmra.mrb[0].mxu0 %v6300
    %v9355 = vpop.f32.mrb[0].mxu0
    %v9356 = vadd.f32 %v9163, %v9355
    %v9357 = vpop.f32.mrb[0].mxu0
    %v9358 = vadd.f32 %v9165, %v9357
    %v9359 = vpop.f32.mrb[0].mxu0
    %v9360 = vadd.f32 %v9167, %v9359
    %v9361 = vpop.f32.mrb[0].mxu0
    %v9362 = vadd.f32 %v9169, %v9361
    %9363 = vmatprep.mubr.bf16.mxu0 %v6318
    %9364 = vmatmul.mubr.bf16.gmra.mrb[0].mxu0 %v6317
    %v9365 = vpop.f32.mrb[0].mxu0
    %v9366 = vadd.f32 %v9173, %v9365
    %v9367 = vpop.f32.mrb[0].mxu0
    %v9368 = vadd.f32 %v9175, %v9367
    %v9369 = vpop.f32.mrb[0].mxu0
    %v9370 = vadd.f32 %v9177, %v9369
    %v9371 = vpop.f32.mrb[0].mxu0
    %v9372 = vadd.f32 %v9179, %v9371
    %9373 = vdwg.mxu0
    %9374 = vmatprep.subr.bf16.mxu0 %v8893
    %9375 = vmatpush1.bf16.msra.mxu0 %v8892
    %9376 = vmatprep.subr.bf16.mxu0 %v8895
    %9377 = vmatpush1.bf16.msra.mxu0 %v8894
    %9378 = vmatprep.subr.bf16.mxu0 %v8897
    %9379 = vmatpush1.bf16.msra.mxu0 %v8896
    %9380 = vmatprep.subr.bf16.mxu0 %v8899
    %9381 = vmatpush1.bf16.msra.mxu0 %v8898
    %9382 = vmatprep.subr.bf16.mxu0 %v8901
    %9383 = vmatpush1.bf16.msra.mxu0 %v8900
    %9384 = vmatprep.subr.bf16.mxu0 %v8903
    %9385 = vmatpush1.bf16.msra.mxu0 %v8902
    %9386 = vmatprep.subr.bf16.mxu0 %v8905
    %9387 = vmatpush1.bf16.msra.mxu0 %v8904
    %9388 = vmatprep.subr.bf16.mxu0 %v8907
    %9389 = vmatpush1.bf16.msra.mxu0 %v8906
    %9390 = vmatprep.subr.bf16.mxu0 0
    %9391 = vmatpush1.bf16.msra.mxu0 0
    %9392 = vmatprep.subr.bf16.mxu0 0
    %9393 = vmatpush1.bf16.msra.mxu0 0
    %9394 = vmatprep.subr.bf16.mxu0 0
    %9395 = vmatpush1.bf16.msra.mxu0 0
    %9396 = vmatprep.subr.bf16.mxu0 0
    %9397 = vmatpush1.bf16.msra.mxu0 0
    %9398 = vmatprep.subr.bf16.mxu0 0
    %9399 = vmatpush1.bf16.msra.mxu0 0
    %9400 = vmatprep.subr.bf16.mxu0 0
    %9401 = vmatpush1.bf16.msra.mxu0 0
    %9402 = vmatprep.subr.bf16.mxu0 0
    %9403 = vmatpush1.bf16.msra.mxu0 0
    %9404 = vmatprep.subr.bf16.mxu0 0
    %9405 = vmatpush1.bf16.msra.mxu0 0
    %9406 = vmatprep.mubr.bf16.mxu0 0
    %9407 = vmatmul.mubr.bf16.gmra.mrb[0].mxu0 %v6064
    %v9408 = vpop.f32.mrb[0].mxu0
    %v9409 = vadd.f32 %v9216, %v9408
    %v9410 = vpop.f32.mrb[0].mxu0
    %v9411 = vadd.f32 %v9218, %v9410
    %v9412 = vpop.f32.mrb[0].mxu0
    %v9413 = vadd.f32 %v9220, %v9412
    %v9414 = vpop.f32.mrb[0].mxu0
    %v9415 = vadd.f32 %v9222, %v9414
    %9416 = vmatprep.mubr.bf16.mxu0 0
    %9417 = vmatmul.mubr.bf16.gmra.mrb[0].mxu0 %v6081
    %v9418 = vpop.f32.mrb[0].mxu0
    %v9419 = vadd.f32 %v9226, %v9418
    %v9420 = vpop.f32.mrb[0].mxu0
    %v9421 = vadd.f32 %v9228, %v9420
    %v9422 = vpop.f32.mrb[0].mxu0
    %v9423 = vadd.f32 %v9230, %v9422
    %v9424 = vpop.f32.mrb[0].mxu0
    %v9425 = vadd.f32 %v9232, %v9424
    %9426 = vmatprep.mubr.bf16.mxu0 0
    %9427 = vmatmul.mubr.bf16.gmra.mrb[0].mxu0 %v6098
    %v9428 = vpop.f32.mrb[0].mxu0
    %v9429 = vadd.f32 %v9236, %v9428
    %v9430 = vpop.f32.mrb[0].mxu0
    %v9431 = vadd.f32 %v9238, %v9430
    %v9432 = vpop.f32.mrb[0].mxu0
    %v9433 = vadd.f32 %v9240, %v9432
    %v9434 = vpop.f32.mrb[0].mxu0
    %v9435 = vadd.f32 %v9242, %v9434
    %9436 = vmatprep.mubr.bf16.mxu0 0
    %9437 = vmatmul.mubr.bf16.gmra.mrb[0].mxu0 %v6115
    %v9438 = vpop.f32.mrb[0].mxu0
    %v9439 = vadd.f32 %v9246, %v9438
    %v9440 = vpop.f32.mrb[0].mxu0
    %v9441 = vadd.f32 %v9248, %v9440
    %v9442 = vpop.f32.mrb[0].mxu0
    %v9443 = vadd.f32 %v9250, %v9442
    %v9444 = vpop.f32.mrb[0].mxu0
    %v9445 = vadd.f32 %v9252, %v9444
    %9446 = vmatprep.mubr.bf16.mxu0 0
    %9447 = vmatmul.mubr.bf16.gmra.mrb[0].mxu0 %v6132
    %v9448 = vpop.f32.mrb[0].mxu0
    %v9449 = vadd.f32 %v9256, %v9448
    %v9450 = vpop.f32.mrb[0].mxu0
    %v9451 = vadd.f32 %v9258, %v9450
    %v9452 = vpop.f32.mrb[0].mxu0
    %v9453 = vadd.f32 %v9260, %v9452
    %v9454 = vpop.f32.mrb[0].mxu0
    %v9455 = vadd.f32 %v9262, %v9454
    %9456 = vmatprep.mubr.bf16.mxu0 0
    %9457 = vmatmul.mubr.bf16.gmra.mrb[0].mxu0 %v6149
    %v9458 = vpop.f32.mrb[0].mxu0
    %v9459 = vadd.f32 %v9266, %v9458
    %v9460 = vpop.f32.mrb[0].mxu0
    %v9461 = vadd.f32 %v9268, %v9460
    %v9462 = vpop.f32.mrb[0].mxu0
    %v9463 = vadd.f32 %v9270, %v9462
    %v9464 = vpop.f32.mrb[0].mxu0
    %v9465 = vadd.f32 %v9272, %v9464
    %9466 = vmatprep.mubr.bf16.mxu0 0
    %9467 = vmatmul.mubr.bf16.gmra.mrb[0].mxu0 %v6166
    %v9468 = vpop.f32.mrb[0].mxu0
    %v9469 = vadd.f32 %v9276, %v9468
    %v9470 = vpop.f32.mrb[0].mxu0
    %v9471 = vadd.f32 %v9278, %v9470
    %v9472 = vpop.f32.mrb[0].mxu0
    %v9473 = vadd.f32 %v9280, %v9472
    %v9474 = vpop.f32.mrb[0].mxu0
    %v9475 = vadd.f32 %v9282, %v9474
    %9476 = vmatprep.mubr.bf16.mxu0 0
    %9477 = vmatmul.mubr.bf16.gmra.mrb[0].mxu0 %v6183
    %v9478 = vpop.f32.mrb[0].mxu0
    %v9479 = vadd.f32 %v9286, %v9478
    %v9480 = vpop.f32.mrb[0].mxu0
    %v9481 = vadd.f32 %v9288, %v9480
    %v9482 = vpop.f32.mrb[0].mxu0
    %v9483 = vadd.f32 %v9290, %v9482
    %v9484 = vpop.f32.mrb[0].mxu0
    %v9485 = vadd.f32 %v9292, %v9484
    %9486 = vmatprep.mubr.bf16.mxu0 0
    %9487 = vmatmul.mubr.bf16.gmra.mrb[0].mxu0 %v6200
    %v9488 = vpop.f32.mrb[0].mxu0
    %v9489 = vadd.f32 %v9296, %v9488
    %v9490 = vpop.f32.mrb[0].mxu0
    %v9491 = vadd.f32 %v9298, %v9490
    %v9492 = vpop.f32.mrb[0].mxu0
    %v9493 = vadd.f32 %v9300, %v9492
    %v9494 = vpop.f32.mrb[0].mxu0
    %v9495 = vadd.f32 %v9302, %v9494
    %9496 = vmatprep.mubr.bf16.mxu0 0
    %9497 = vmatmul.mubr.bf16.gmra.mrb[0].mxu0 %v6217
    %v9498 = vpop.f32.mrb[0].mxu0
    %v9499 = vadd.f32 %v9306, %v9498
    %v9500 = vpop.f32.mrb[0].mxu0
    %v9501 = vadd.f32 %v9308, %v9500
    %v9502 = vpop.f32.mrb[0].mxu0
    %v9503 = vadd.f32 %v9310, %v9502
    %v9504 = vpop.f32.mrb[0].mxu0
    %v9505 = vadd.f32 %v9312, %v9504
    %9506 = vmatprep.mubr.bf16.mxu0 0
    %9507 = vmatmul.mubr.bf16.gmra.mrb[0].mxu0 %v6234
    %v9508 = vpop.f32.mrb[0].mxu0
    %v9509 = vadd.f32 %v9316, %v9508
    %v9510 = vpop.f32.mrb[0].mxu0
    %v9511 = vadd.f32 %v9318, %v9510
    %v9512 = vpop.f32.mrb[0].mxu0
    %v9513 = vadd.f32 %v9320, %v9512
    %v9514 = vpop.f32.mrb[0].mxu0
    %v9515 = vadd.f32 %v9322, %v9514
    %9516 = vmatprep.mubr.bf16.mxu0 0
    %9517 = vmatmul.mubr.bf16.gmra.mrb[0].mxu0 %v6251
    %v9518 = vpop.f32.mrb[0].mxu0
    %v9519 = vadd.f32 %v9326, %v9518
    %v9520 = vpop.f32.mrb[0].mxu0
    %v9521 = vadd.f32 %v9328, %v9520
    %v9522 = vpop.f32.mrb[0].mxu0
    %v9523 = vadd.f32 %v9330, %v9522
    %v9524 = vpop.f32.mrb[0].mxu0
    %v9525 = vadd.f32 %v9332, %v9524
    %9526 = vmatprep.mubr.bf16.mxu0 0
    %9527 = vmatmul.mubr.bf16.gmra.mrb[0].mxu0 %v6268
    %v9528 = vpop.f32.mrb[0].mxu0
    %v9529 = vadd.f32 %v9336, %v9528
    %v9530 = vpop.f32.mrb[0].mxu0
    %v9531 = vadd.f32 %v9338, %v9530
    %v9532 = vpop.f32.mrb[0].mxu0
    %v9533 = vadd.f32 %v9340, %v9532
    %v9534 = vpop.f32.mrb[0].mxu0
    %v9535 = vadd.f32 %v9342, %v9534
    %9536 = vmatprep.mubr.bf16.mxu0 0
    %9537 = vmatmul.mubr.bf16.gmra.mrb[0].mxu0 %v6285
    %v9538 = vpop.f32.mrb[0].mxu0
    %v9539 = vadd.f32 %v9346, %v9538
    %v9540 = vpop.f32.mrb[0].mxu0
    %v9541 = vadd.f32 %v9348, %v9540
    %v9542 = vpop.f32.mrb[0].mxu0
    %v9543 = vadd.f32 %v9350, %v9542
    %v9544 = vpop.f32.mrb[0].mxu0
    %v9545 = vadd.f32 %v9352, %v9544
    %9546 = vmatprep.mubr.bf16.mxu0 0
    %9547 = vmatmul.mubr.bf16.gmra.mrb[0].mxu0 %v6302
    %v9548 = vpop.f32.mrb[0].mxu0
    %v9549 = vadd.f32 %v9356, %v9548
    %v9550 = vpop.f32.mrb[0].mxu0
    %v9551 = vadd.f32 %v9358, %v9550
    %v9552 = vpop.f32.mrb[0].mxu0
    %v9553 = vadd.f32 %v9360, %v9552
    %v9554 = vpop.f32.mrb[0].mxu0
    %v9555 = vadd.f32 %v9362, %v9554
    %9556 = vmatprep.mubr.bf16.mxu0 0
    %9557 = vmatmul.mubr.bf16.gmra.mrb[0].mxu0 %v6319
    %v9558 = vpop.f32.mrb[0].mxu0
    %v9559 = vadd.f32 %v9366, %v9558
    %v9560 = vpop.f32.mrb[0].mxu0
    %v9561 = vadd.f32 %v9368, %v9560
    %v9562 = vpop.f32.mrb[0].mxu0
    %v9563 = vadd.f32 %v9370, %v9562
    %v9564 = vpop.f32.mrb[0].mxu0
    %v9565 = vadd.f32 %v9372, %v9564
    %9566 = vdwg.mxu0
    %v9567 = vmax.f32 %v9409, %v9411
    %v9568 = vmax.f32 %v9413, %v9415
    %v9569 = vmax.f32 %v9419, %v9421
    %v9570 = vmax.f32 %v9423, %v9425
    %v9571 = vmax.f32 %v9429, %v9431
    %v9572 = vmax.f32 %v9433, %v9435
    %v9573 = vmax.f32 %v9439, %v9441
    %v9574 = vmax.f32 %v9443, %v9445
    %v9575 = vmax.f32 %v9449, %v9451
    %v9576 = vmax.f32 %v9453, %v9455
    %v9577 = vmax.f32 %v9459, %v9461
    %v9578 = vmax.f32 %v9463, %v9465
    %v9579 = vmax.f32 %v9469, %v9471
    %v9580 = vmax.f32 %v9473, %v9475
    %v9581 = vmax.f32 %v9479, %v9481
    %v9582 = vmax.f32 %v9483, %v9485
    %v9583 = vmax.f32 %v9489, %v9491
    %v9584 = vmax.f32 %v9493, %v9495
    %v9585 = vmax.f32 %v9499, %v9501
    %v9586 = vmax.f32 %v9503, %v9505
    %v9587 = vmax.f32 %v9509, %v9511
    %v9588 = vmax.f32 %v9513, %v9515
    %v9589 = vmax.f32 %v9519, %v9521
    %v9590 = vmax.f32 %v9523, %v9525
    %v9591 = vmax.f32 %v9529, %v9531
    %v9592 = vmax.f32 %v9533, %v9535
    %v9593 = vmax.f32 %v9539, %v9541
    %v9594 = vmax.f32 %v9543, %v9545
    %v9595 = vmax.f32 %v9549, %v9551
    %v9596 = vmax.f32 %v9553, %v9555
    %v9597 = vmax.f32 %v9559, %v9561
    %v9598 = vmax.f32 %v9563, %v9565
    %s9599 = scalar_lea.vmem [#allocation7], 1920
    %v9600 = vld [vmem:[%s9599] sm:$0xff]
    %v9601 = vld [vmem:[%s9599 + $0x8] sm:$0xff]
    %v9602 = vld [vmem:[%s9599 + $0x10] sm:$0xff]
    %v9603 = vld [vmem:[%s9599 + $0x18] sm:$0xff]
    %v9604 = vld [vmem:[%s9599 + $0x20] sm:$0xff]
    %v9605 = vld [vmem:[%s9599 + $0x28] sm:$0xff]
    %v9606 = vld [vmem:[%s9599 + $0x30] sm:$0xff]
    %v9607 = vld [vmem:[%s9599 + $0x38] sm:$0xff]
    %v9608 = vld [vmem:[%s9599 + $0x40] sm:$0xff]
    %v9609 = vld [vmem:[%s9599 + $0x48] sm:$0xff]
    %v9610 = vld [vmem:[%s9599 + $0x50] sm:$0xff]
    %v9611 = vld [vmem:[%s9599 + $0x58] sm:$0xff]
    %v9612 = vld [vmem:[%s9599 + $0x60] sm:$0xff]
    %v9613 = vld [vmem:[%s9599 + $0x68] sm:$0xff]
    %v9614 = vld [vmem:[%s9599 + $0x70] sm:$0xff]
    %v9615 = vld [vmem:[%s9599 + $0x78] sm:$0xff]
    %v9616 = vld [vmem:[%s9599 + $0x80] sm:$0xff]
    %v9617 = vld [vmem:[%s9599 + $0x88] sm:$0xff]
    %v9618 = vld [vmem:[%s9599 + $0x90] sm:$0xff]
    %v9619 = vld [vmem:[%s9599 + $0x98] sm:$0xff]
    %v9620 = vld [vmem:[%s9599 + $0xa0] sm:$0xff]
    %v9621 = vld [vmem:[%s9599 + $0xa8] sm:$0xff]
    %v9622 = vld [vmem:[%s9599 + $0xb0] sm:$0xff]
    %v9623 = vld [vmem:[%s9599 + $0xb8] sm:$0xff]
    %v9624 = vld [vmem:[%s9599 + $0xc0] sm:$0xff]
    %v9625 = vld [vmem:[%s9599 + $0xc8] sm:$0xff]
    %v9626 = vld [vmem:[%s9599 + $0xd0] sm:$0xff]
    %v9627 = vld [vmem:[%s9599 + $0xd8] sm:$0xff]
    %v9628 = vld [vmem:[%s9599 + $0xe0] sm:$0xff]
    %v9629 = vld [vmem:[%s9599 + $0xe8] sm:$0xff]
    %v9630 = vld [vmem:[%s9599 + $0xf0] sm:$0xff]
    %v9631 = vld [vmem:[%s9599 + $0xf8] sm:$0xff]
    %v9632 = vld [vmem:[%s9599 + $0x100] sm:$0xff]
    %v9633 = vld [vmem:[%s9599 + $0x108] sm:$0xff]
    %v9634 = vld [vmem:[%s9599 + $0x110] sm:$0xff]
    %v9635 = vld [vmem:[%s9599 + $0x118] sm:$0xff]
    %v9636 = vld [vmem:[%s9599 + $0x120] sm:$0xff]
    %v9637 = vld [vmem:[%s9599 + $0x128] sm:$0xff]
    %v9638 = vld [vmem:[%s9599 + $0x130] sm:$0xff]
    %v9639 = vld [vmem:[%s9599 + $0x138] sm:$0xff]
    %v9640 = vld [vmem:[%s9599 + $0x140] sm:$0xff]
    %v9641 = vld [vmem:[%s9599 + $0x148] sm:$0xff]
    %v9642 = vld [vmem:[%s9599 + $0x150] sm:$0xff]
    %v9643 = vld [vmem:[%s9599 + $0x158] sm:$0xff]
    %v9644 = vld [vmem:[%s9599 + $0x160] sm:$0xff]
    %v9645 = vld [vmem:[%s9599 + $0x168] sm:$0xff]
    %v9646 = vld [vmem:[%s9599 + $0x170] sm:$0xff]
    %v9647 = vld [vmem:[%s9599 + $0x178] sm:$0xff]
    %v9648 = vld [vmem:[%s9599 + $0x180] sm:$0xff]
    %v9649 = vld [vmem:[%s9599 + $0x188] sm:$0xff]
    %v9650 = vld [vmem:[%s9599 + $0x190] sm:$0xff]
    %v9651 = vld [vmem:[%s9599 + $0x198] sm:$0xff]
    %v9652 = vld [vmem:[%s9599 + $0x1a0] sm:$0xff]
    %v9653 = vld [vmem:[%s9599 + $0x1a8] sm:$0xff]
    %v9654 = vld [vmem:[%s9599 + $0x1b0] sm:$0xff]
    %v9655 = vld [vmem:[%s9599 + $0x1b8] sm:$0xff]
    %v9656 = vld [vmem:[%s9599 + $0x1c0] sm:$0xff]
    %v9657 = vld [vmem:[%s9599 + $0x1c8] sm:$0xff]
    %v9658 = vld [vmem:[%s9599 + $0x1d0] sm:$0xff]
    %v9659 = vld [vmem:[%s9599 + $0x1d8] sm:$0xff]
    %v9660 = vld [vmem:[%s9599 + $0x1e0] sm:$0xff]
    %v9661 = vld [vmem:[%s9599 + $0x1e8] sm:$0xff]
    %v9662 = vld [vmem:[%s9599 + $0x1f0] sm:$0xff]
    %v9663 = vld [vmem:[%s9599 + $0x1f8] sm:$0xff]
    %v9664 = vld [vmem:[%s9599 + $0x200] sm:$0xff]
    %v9665 = vld [vmem:[%s9599 + $0x208] sm:$0xff]
    %v9666 = vld [vmem:[%s9599 + $0x210] sm:$0xff]
    %v9667 = vld [vmem:[%s9599 + $0x218] sm:$0xff]
    %v9668 = vld [vmem:[%s9599 + $0x220] sm:$0xff]
    %v9669 = vld [vmem:[%s9599 + $0x228] sm:$0xff]
    %v9670 = vld [vmem:[%s9599 + $0x230] sm:$0xff]
    %v9671 = vld [vmem:[%s9599 + $0x238] sm:$0xff]
    %v9672 = vld [vmem:[%s9599 + $0x240] sm:$0xff]
    %v9673 = vld [vmem:[%s9599 + $0x248] sm:$0xff]
    %v9674 = vld [vmem:[%s9599 + $0x250] sm:$0xff]
    %v9675 = vld [vmem:[%s9599 + $0x258] sm:$0xff]
    %v9676 = vld [vmem:[%s9599 + $0x260] sm:$0xff]
    %v9677 = vld [vmem:[%s9599 + $0x268] sm:$0xff]
    %v9678 = vld [vmem:[%s9599 + $0x270] sm:$0xff]
    %v9679 = vld [vmem:[%s9599 + $0x278] sm:$0xff]
    %v9760 = vunpack.c.l.b16 %v9600
    %v9761 = vunpack.c.h.b16 %v9600
    %v9762 = vunpack.c.l.b16 %v9601
    %v9763 = vunpack.c.h.b16 %v9601
    %v9764 = vunpack.c.l.b16 %v9602
    %v9765 = vunpack.c.h.b16 %v9602
    %v9766 = vunpack.c.l.b16 %v9603
    %v9767 = vunpack.c.h.b16 %v9603
    %v9768 = vunpack.c.l.b16 %v9604
    %v9769 = vunpack.c.h.b16 %v9604
    %v9770 = vunpack.c.l.b16 %v9605
    %v9771 = vunpack.c.h.b16 %v9605
    %v9772 = vunpack.c.l.b16 %v9606
    %v9773 = vunpack.c.h.b16 %v9606
    %v9774 = vunpack.c.l.b16 %v9607
    %v9775 = vunpack.c.h.b16 %v9607
    %v9776 = vunpack.c.l.b16 %v9608
    %v9777 = vunpack.c.h.b16 %v9608
    %v9778 = vunpack.c.l.b16 %v9609
    %v9779 = vunpack.c.h.b16 %v9609
    %v9780 = vunpack.c.l.b16 %v9610
    %v9781 = vunpack.c.h.b16 %v9610
    %v9782 = vunpack.c.l.b16 %v9611
    %v9783 = vunpack.c.h.b16 %v9611
    %v9784 = vunpack.c.l.b16 %v9612
    %v9785 = vunpack.c.h.b16 %v9612
    %v9786 = vunpack.c.l.b16 %v9613
    %v9787 = vunpack.c.h.b16 %v9613
    %v9788 = vunpack.c.l.b16 %v9614
    %v9789 = vunpack.c.h.b16 %v9614
    %v9790 = vunpack.c.l.b16 %v9615
    %v9791 = vunpack.c.h.b16 %v9615
    %v9792 = vunpack.c.l.b16 %v9616
    %v9793 = vunpack.c.h.b16 %v9616
    %v9794 = vunpack.c.l.b16 %v9617
    %v9795 = vunpack.c.h.b16 %v9617
    %v9796 = vunpack.c.l.b16 %v9618
    %v9797 = vunpack.c.h.b16 %v9618
    %v9798 = vunpack.c.l.b16 %v9619
    %v9799 = vunpack.c.h.b16 %v9619
    %v9800 = vunpack.c.l.b16 %v9620
    %v9801 = vunpack.c.h.b16 %v9620
    %v9802 = vunpack.c.l.b16 %v9621
    %v9803 = vunpack.c.h.b16 %v9621
    %v9804 = vunpack.c.l.b16 %v9622
    %v9805 = vunpack.c.h.b16 %v9622
    %v9806 = vunpack.c.l.b16 %v9623
    %v9807 = vunpack.c.h.b16 %v9623
    %v9808 = vunpack.c.l.b16 %v9624
    %v9809 = vunpack.c.h.b16 %v9624
    %v9810 = vunpack.c.l.b16 %v9625
    %v9811 = vunpack.c.h.b16 %v9625
    %v9812 = vunpack.c.l.b16 %v9626
    %v9813 = vunpack.c.h.b16 %v9626
    %v9814 = vunpack.c.l.b16 %v9627
    %v9815 = vunpack.c.h.b16 %v9627
    %v9816 = vunpack.c.l.b16 %v9628
    %v9817 = vunpack.c.h.b16 %v9628
    %v9818 = vunpack.c.l.b16 %v9629
    %v9819 = vunpack.c.h.b16 %v9629
    %v9820 = vunpack.c.l.b16 %v9630
    %v9821 = vunpack.c.h.b16 %v9630
    %v9822 = vunpack.c.l.b16 %v9631
    %v9823 = vunpack.c.h.b16 %v9631
    %v9824 = vunpack.c.l.b16 %v9632
    %v9825 = vunpack.c.h.b16 %v9632
    %v9826 = vunpack.c.l.b16 %v9633
    %v9827 = vunpack.c.h.b16 %v9633
    %v9828 = vunpack.c.l.b16 %v9634
    %v9829 = vunpack.c.h.b16 %v9634
    %v9830 = vunpack.c.l.b16 %v9635
    %v9831 = vunpack.c.h.b16 %v9635
    %v9832 = vunpack.c.l.b16 %v9636
    %v9833 = vunpack.c.h.b16 %v9636
    %v9834 = vunpack.c.l.b16 %v9637
    %v9835 = vunpack.c.h.b16 %v9637
    %v9836 = vunpack.c.l.b16 %v9638
    %v9837 = vunpack.c.h.b16 %v9638
    %v9838 = vunpack.c.l.b16 %v9639
    %v9839 = vunpack.c.h.b16 %v9639
    %v9840 = vunpack.c.l.b16 %v9640
    %v9841 = vunpack.c.h.b16 %v9640
    %v9842 = vunpack.c.l.b16 %v9641
    %v9843 = vunpack.c.h.b16 %v9641
    %v9844 = vunpack.c.l.b16 %v9642
    %v9845 = vunpack.c.h.b16 %v9642
    %v9846 = vunpack.c.l.b16 %v9643
    %v9847 = vunpack.c.h.b16 %v9643
    %v9848 = vunpack.c.l.b16 %v9644
    %v9849 = vunpack.c.h.b16 %v9644
    %v9850 = vunpack.c.l.b16 %v9645
    %v9851 = vunpack.c.h.b16 %v9645
    %v9852 = vunpack.c.l.b16 %v9646
    %v9853 = vunpack.c.h.b16 %v9646
    %v9854 = vunpack.c.l.b16 %v9647
    %v9855 = vunpack.c.h.b16 %v9647
    %v9856 = vunpack.c.l.b16 %v9648
    %v9857 = vunpack.c.h.b16 %v9648
    %v9858 = vunpack.c.l.b16 %v9649
    %v9859 = vunpack.c.h.b16 %v9649
    %v9860 = vunpack.c.l.b16 %v9650
    %v9861 = vunpack.c.h.b16 %v9650
    %v9862 = vunpack.c.l.b16 %v9651
    %v9863 = vunpack.c.h.b16 %v9651
    %v9864 = vunpack.c.l.b16 %v9652
    %v9865 = vunpack.c.h.b16 %v9652
    %v9866 = vunpack.c.l.b16 %v9653
    %v9867 = vunpack.c.h.b16 %v9653
    %v9868 = vunpack.c.l.b16 %v9654
    %v9869 = vunpack.c.h.b16 %v9654
    %v9870 = vunpack.c.l.b16 %v9655
    %v9871 = vunpack.c.h.b16 %v9655
    %v9872 = vunpack.c.l.b16 %v9656
    %v9873 = vunpack.c.h.b16 %v9656
    %v9874 = vunpack.c.l.b16 %v9657
    %v9875 = vunpack.c.h.b16 %v9657
    %v9876 = vunpack.c.l.b16 %v9658
    %v9877 = vunpack.c.h.b16 %v9658
    %v9878 = vunpack.c.l.b16 %v9659
    %v9879 = vunpack.c.h.b16 %v9659
    %v9880 = vunpack.c.l.b16 %v9660
    %v9881 = vunpack.c.h.b16 %v9660
    %v9882 = vunpack.c.l.b16 %v9661
    %v9883 = vunpack.c.h.b16 %v9661
    %v9884 = vunpack.c.l.b16 %v9662
    %v9885 = vunpack.c.h.b16 %v9662
    %v9886 = vunpack.c.l.b16 %v9663
    %v9887 = vunpack.c.h.b16 %v9663
    %v9888 = vunpack.c.l.b16 %v9664
    %v9889 = vunpack.c.h.b16 %v9664
    %v9890 = vunpack.c.l.b16 %v9665
    %v9891 = vunpack.c.h.b16 %v9665
    %v9892 = vunpack.c.l.b16 %v9666
    %v9893 = vunpack.c.h.b16 %v9666
    %v9894 = vunpack.c.l.b16 %v9667
    %v9895 = vunpack.c.h.b16 %v9667
    %v9896 = vunpack.c.l.b16 %v9668
    %v9897 = vunpack.c.h.b16 %v9668
    %v9898 = vunpack.c.l.b16 %v9669
    %v9899 = vunpack.c.h.b16 %v9669
    %v9900 = vunpack.c.l.b16 %v9670
    %v9901 = vunpack.c.h.b16 %v9670
    %v9902 = vunpack.c.l.b16 %v9671
    %v9903 = vunpack.c.h.b16 %v9671
    %v9904 = vunpack.c.l.b16 %v9672
    %v9905 = vunpack.c.h.b16 %v9672
    %v9906 = vunpack.c.l.b16 %v9673
    %v9907 = vunpack.c.h.b16 %v9673
    %v9908 = vunpack.c.l.b16 %v9674
    %v9909 = vunpack.c.h.b16 %v9674
    %v9910 = vunpack.c.l.b16 %v9675
    %v9911 = vunpack.c.h.b16 %v9675
    %v9912 = vunpack.c.l.b16 %v9676
    %v9913 = vunpack.c.h.b16 %v9676
    %v9914 = vunpack.c.l.b16 %v9677
    %v9915 = vunpack.c.h.b16 %v9677
    %v9916 = vunpack.c.l.b16 %v9678
    %v9917 = vunpack.c.h.b16 %v9678
    %v9918 = vunpack.c.l.b16 %v9679
    %v9919 = vunpack.c.h.b16 %v9679
    %v9920 = vpack.c.b16 %v9762, %v9760
    %v9921 = vpack.c.b16 %v9763, %v9761
    %v9922 = vpack.c.b16 %v9766, %v9764
    %v9923 = vpack.c.b16 %v9767, %v9765
    %v9924 = vpack.c.b16 %v9770, %v9768
    %v9925 = vpack.c.b16 %v9771, %v9769
    %v9926 = vpack.c.b16 %v9774, %v9772
    %v9927 = vpack.c.b16 %v9775, %v9773
    %v9928 = vpack.c.b16 %v9778, %v9776
    %v9929 = vpack.c.b16 %v9779, %v9777
    %v9930 = vpack.c.b16 %v9782, %v9780
    %v9931 = vpack.c.b16 %v9783, %v9781
    %v9932 = vpack.c.b16 %v9786, %v9784
    %v9933 = vpack.c.b16 %v9787, %v9785
    %v9934 = vpack.c.b16 %v9790, %v9788
    %v9935 = vpack.c.b16 %v9791, %v9789
    %v9936 = vpack.c.b16 %v9794, %v9792
    %v9937 = vpack.c.b16 %v9795, %v9793
    %v9938 = vpack.c.b16 %v9798, %v9796
    %v9939 = vpack.c.b16 %v9799, %v9797
    %v9940 = vpack.c.b16 %v9802, %v9800
    %v9941 = vpack.c.b16 %v9803, %v9801
    %v9942 = vpack.c.b16 %v9806, %v9804
    %v9943 = vpack.c.b16 %v9807, %v9805
    %v9944 = vpack.c.b16 %v9810, %v9808
    %v9945 = vpack.c.b16 %v9811, %v9809
    %v9946 = vpack.c.b16 %v9814, %v9812
    %v9947 = vpack.c.b16 %v9815, %v9813
    %v9948 = vpack.c.b16 %v9818, %v9816
    %v9949 = vpack.c.b16 %v9819, %v9817
    %v9950 = vpack.c.b16 %v9822, %v9820
    %v9951 = vpack.c.b16 %v9823, %v9821
    %v9952 = vpack.c.b16 %v9826, %v9824
    %v9953 = vpack.c.b16 %v9827, %v9825
    %v9954 = vpack.c.b16 %v9830, %v9828
    %v9955 = vpack.c.b16 %v9831, %v9829
    %v9956 = vpack.c.b16 %v9834, %v9832
    %v9957 = vpack.c.b16 %v9835, %v9833
    %v9958 = vpack.c.b16 %v9838, %v9836
    %v9959 = vpack.c.b16 %v9839, %v9837
    %v9960 = vpack.c.b16 %v9842, %v9840
    %v9961 = vpack.c.b16 %v9843, %v9841
    %v9962 = vpack.c.b16 %v9846, %v9844
    %v9963 = vpack.c.b16 %v9847, %v9845
    %v9964 = vpack.c.b16 %v9850, %v9848
    %v9965 = vpack.c.b16 %v9851, %v9849
    %v9966 = vpack.c.b16 %v9854, %v9852
    %v9967 = vpack.c.b16 %v9855, %v9853
    %v9968 = vpack.c.b16 %v9858, %v9856
    %v9969 = vpack.c.b16 %v9859, %v9857
    %v9970 = vpack.c.b16 %v9862, %v9860
    %v9971 = vpack.c.b16 %v9863, %v9861
    %v9972 = vpack.c.b16 %v9866, %v9864
    %v9973 = vpack.c.b16 %v9867, %v9865
    %v9974 = vpack.c.b16 %v9870, %v9868
    %v9975 = vpack.c.b16 %v9871, %v9869
    %v9976 = vpack.c.b16 %v9874, %v9872
    %v9977 = vpack.c.b16 %v9875, %v9873
    %v9978 = vpack.c.b16 %v9878, %v9876
    %v9979 = vpack.c.b16 %v9879, %v9877
    %v9980 = vpack.c.b16 %v9882, %v9880
    %v9981 = vpack.c.b16 %v9883, %v9881
    %v9982 = vpack.c.b16 %v9886, %v9884
    %v9983 = vpack.c.b16 %v9887, %v9885
    %v9984 = vpack.c.b16 %v9890, %v9888
    %v9985 = vpack.c.b16 %v9891, %v9889
    %v9986 = vpack.c.b16 %v9894, %v9892
    %v9987 = vpack.c.b16 %v9895, %v9893
    %v9988 = vpack.c.b16 %v9898, %v9896
    %v9989 = vpack.c.b16 %v9899, %v9897
    %v9990 = vpack.c.b16 %v9902, %v9900
    %v9991 = vpack.c.b16 %v9903, %v9901
    %v9992 = vpack.c.b16 %v9906, %v9904
    %v9993 = vpack.c.b16 %v9907, %v9905
    %v9994 = vpack.c.b16 %v9910, %v9908
    %v9995 = vpack.c.b16 %v9911, %v9909
    %v9996 = vpack.c.b16 %v9914, %v9912
    %v9997 = vpack.c.b16 %v9915, %v9913
    %v9998 = vpack.c.b16 %v9918, %v9916
    %v9999 = vpack.c.b16 %v9919, %v9917
    %10080 = vmatprep.subr.bf16.mxu0 %v9921
    %10081 = vmatpush1.bf16.msra.mxu0 %v9920
    %10082 = vmatprep.subr.bf16.mxu0 %v9923
    %10083 = vmatpush1.bf16.msra.mxu0 %v9922
    %10084 = vmatprep.subr.bf16.mxu0 %v9925
    %10085 = vmatpush1.bf16.msra.mxu0 %v9924
    %10086 = vmatprep.subr.bf16.mxu0 %v9927
    %10087 = vmatpush1.bf16.msra.mxu0 %v9926
    %10088 = vmatprep.subr.bf16.mxu0 %v9929
    %10089 = vmatpush1.bf16.msra.mxu0 %v9928
    %10090 = vmatprep.subr.bf16.mxu0 %v9931
    %10091 = vmatpush1.bf16.msra.mxu0 %v9930
    %10092 = vmatprep.subr.bf16.mxu0 %v9933
    %10093 = vmatpush1.bf16.msra.mxu0 %v9932
    %10094 = vmatprep.subr.bf16.mxu0 %v9935
    %10095 = vmatpush1.bf16.msra.mxu0 %v9934
    %10096 = vmatprep.subr.bf16.mxu0 %v9937
    %10097 = vmatpush1.bf16.msra.mxu0 %v9936
    %10098 = vmatprep.subr.bf16.mxu0 %v9939
    %10099 = vmatpush1.bf16.msra.mxu0 %v9938
    %10100 = vmatprep.subr.bf16.mxu0 %v9941
    %10101 = vmatpush1.bf16.msra.mxu0 %v9940
    %10102 = vmatprep.subr.bf16.mxu0 %v9943
    %10103 = vmatpush1.bf16.msra.mxu0 %v9942
    %10104 = vmatprep.subr.bf16.mxu0 %v9945
    %10105 = vmatpush1.bf16.msra.mxu0 %v9944
    %10106 = vmatprep.subr.bf16.mxu0 %v9947
    %10107 = vmatpush1.bf16.msra.mxu0 %v9946
    %10108 = vmatprep.subr.bf16.mxu0 %v9949
    %10109 = vmatpush1.bf16.msra.mxu0 %v9948
    %10110 = vmatprep.subr.bf16.mxu0 %v9951
    %10111 = vmatpush1.bf16.msra.mxu0 %v9950
    %10112 = vmatprep.mubr.bf16.mxu0 %v6065
    %10113 = vmatmul.mubr.bf16.gmra.mrb[0].mxu0 %v6064
    %v10114 = vpop.f32.mrb[0].mxu0
    %v10115 = vadd.f32 0.0, %v10114
    %v10116 = vpop.f32.mrb[0].mxu0
    %v10117 = vadd.f32 0.0, %v10116
    %v10118 = vpop.f32.mrb[0].mxu0
    %v10119 = vadd.f32 0.0, %v10118
    %v10120 = vpop.f32.mrb[0].mxu0
    %v10121 = vadd.f32 0.0, %v10120
    %10122 = vmatprep.mubr.bf16.mxu0 %v6082
    %10123 = vmatmul.mubr.bf16.gmra.mrb[0].mxu0 %v6081
    %v10124 = vpop.f32.mrb[0].mxu0
    %v10125 = vadd.f32 0.0, %v10124
    %v10126 = vpop.f32.mrb[0].mxu0
    %v10127 = vadd.f32 0.0, %v10126
    %v10128 = vpop.f32.mrb[0].mxu0
    %v10129 = vadd.f32 0.0, %v10128
    %v10130 = vpop.f32.mrb[0].mxu0
    %v10131 = vadd.f32 0.0, %v10130
    %10132 = vmatprep.mubr.bf16.mxu0 %v6099
    %10133 = vmatmul.mubr.bf16.gmra.mrb[0].mxu0 %v6098
    %v10134 = vpop.f32.mrb[0].mxu0
    %v10135 = vadd.f32 0.0, %v10134
    %v10136 = vpop.f32.mrb[0].mxu0
    %v10137 = vadd.f32 0.0, %v10136
    %v10138 = vpop.f32.mrb[0].mxu0
    %v10139 = vadd.f32 0.0, %v10138
    %v10140 = vpop.f32.mrb[0].mxu0
    %v10141 = vadd.f32 0.0, %v10140
    %10142 = vmatprep.mubr.bf16.mxu0 %v6116
    %10143 = vmatmul.mubr.bf16.gmra.mrb[0].mxu0 %v6115
    %v10144 = vpop.f32.mrb[0].mxu0
    %v10145 = vadd.f32 0.0, %v10144
    %v10146 = vpop.f32.mrb[0].mxu0
    %v10147 = vadd.f32 0.0, %v10146
    %v10148 = vpop.f32.mrb[0].mxu0
    %v10149 = vadd.f32 0.0, %v10148
    %v10150 = vpop.f32.mrb[0].mxu0
    %v10151 = vadd.f32 0.0, %v10150
    %10152 = vmatprep.mubr.bf16.mxu0 %v6133
    %10153 = vmatmul.mubr.bf16.gmra.mrb[0].mxu0 %v6132
    %v10154 = vpop.f32.mrb[0].mxu0
    %v10155 = vadd.f32 0.0, %v10154
    %v10156 = vpop.f32.mrb[0].mxu0
    %v10157 = vadd.f32 0.0, %v10156
    %v10158 = vpop.f32.mrb[0].mxu0
    %v10159 = vadd.f32 0.0, %v10158
    %v10160 = vpop.f32.mrb[0].mxu0
    %v10161 = vadd.f32 0.0, %v10160
    %10162 = vmatprep.mubr.bf16.mxu0 %v6150
    %10163 = vmatmul.mubr.bf16.gmra.mrb[0].mxu0 %v6149
    %v10164 = vpop.f32.mrb[0].mxu0
    %v10165 = vadd.f32 0.0, %v10164
    %v10166 = vpop.f32.mrb[0].mxu0
    %v10167 = vadd.f32 0.0, %v10166
    %v10168 = vpop.f32.mrb[0].mxu0
    %v10169 = vadd.f32 0.0, %v10168
    %v10170 = vpop.f32.mrb[0].mxu0
    %v10171 = vadd.f32 0.0, %v10170
    %10172 = vmatprep.mubr.bf16.mxu0 %v6167
    %10173 = vmatmul.mubr.bf16.gmra.mrb[0].mxu0 %v6166
    %v10174 = vpop.f32.mrb[0].mxu0
    %v10175 = vadd.f32 0.0, %v10174
    %v10176 = vpop.f32.mrb[0].mxu0
    %v10177 = vadd.f32 0.0, %v10176
    %v10178 = vpop.f32.mrb[0].mxu0
    %v10179 = vadd.f32 0.0, %v10178
    %v10180 = vpop.f32.mrb[0].mxu0
    %v10181 = vadd.f32 0.0, %v10180
    %10182 = vmatprep.mubr.bf16.mxu0 %v6184
    %10183 = vmatmul.mubr.bf16.gmra.mrb[0].mxu0 %v6183
    %v10184 = vpop.f32.mrb[0].mxu0
    %v10185 = vadd.f32 0.0, %v10184
    %v10186 = vpop.f32.mrb[0].mxu0
    %v10187 = vadd.f32 0.0, %v10186
    %v10188 = vpop.f32.mrb[0].mxu0
    %v10189 = vadd.f32 0.0, %v10188
    %v10190 = vpop.f32.mrb[0].mxu0
    %v10191 = vadd.f32 0.0, %v10190
    %10192 = vmatprep.mubr.bf16.mxu0 %v6201
    %10193 = vmatmul.mubr.bf16.gmra.mrb[0].mxu0 %v6200
    %v10194 = vpop.f32.mrb[0].mxu0
    %v10195 = vadd.f32 0.0, %v10194
    %v10196 = vpop.f32.mrb[0].mxu0
    %v10197 = vadd.f32 0.0, %v10196
    %v10198 = vpop.f32.mrb[0].mxu0
    %v10199 = vadd.f32 0.0, %v10198
    %v10200 = vpop.f32.mrb[0].mxu0
    %v10201 = vadd.f32 0.0, %v10200
    %10202 = vmatprep.mubr.bf16.mxu0 %v6218
    %10203 = vmatmul.mubr.bf16.gmra.mrb[0].mxu0 %v6217
    %v10204 = vpop.f32.mrb[0].mxu0
    %v10205 = vadd.f32 0.0, %v10204
    %v10206 = vpop.f32.mrb[0].mxu0
    %v10207 = vadd.f32 0.0, %v10206
    %v10208 = vpop.f32.mrb[0].mxu0
    %v10209 = vadd.f32 0.0, %v10208
    %v10210 = vpop.f32.mrb[0].mxu0
    %v10211 = vadd.f32 0.0, %v10210
    %10212 = vmatprep.mubr.bf16.mxu0 %v6235
    %10213 = vmatmul.mubr.bf16.gmra.mrb[0].mxu0 %v6234
    %v10214 = vpop.f32.mrb[0].mxu0
    %v10215 = vadd.f32 0.0, %v10214
    %v10216 = vpop.f32.mrb[0].mxu0
    %v10217 = vadd.f32 0.0, %v10216
    %v10218 = vpop.f32.mrb[0].mxu0
    %v10219 = vadd.f32 0.0, %v10218
    %v10220 = vpop.f32.mrb[0].mxu0
    %v10221 = vadd.f32 0.0, %v10220
    %10222 = vmatprep.mubr.bf16.mxu0 %v6252
    %10223 = vmatmul.mubr.bf16.gmra.mrb[0].mxu0 %v6251
    %v10224 = vpop.f32.mrb[0].mxu0
    %v10225 = vadd.f32 0.0, %v10224
    %v10226 = vpop.f32.mrb[0].mxu0
    %v10227 = vadd.f32 0.0, %v10226
    %v10228 = vpop.f32.mrb[0].mxu0
    %v10229 = vadd.f32 0.0, %v10228
    %v10230 = vpop.f32.mrb[0].mxu0
    %v10231 = vadd.f32 0.0, %v10230
    %10232 = vmatprep.mubr.bf16.mxu0 %v6269
    %10233 = vmatmul.mubr.bf16.gmra.mrb[0].mxu0 %v6268
    %v10234 = vpop.f32.mrb[0].mxu0
    %v10235 = vadd.f32 0.0, %v10234
    %v10236 = vpop.f32.mrb[0].mxu0
    %v10237 = vadd.f32 0.0, %v10236
    %v10238 = vpop.f32.mrb[0].mxu0
    %v10239 = vadd.f32 0.0, %v10238
    %v10240 = vpop.f32.mrb[0].mxu0
    %v10241 = vadd.f32 0.0, %v10240
    %10242 = vmatprep.mubr.bf16.mxu0 %v6286
    %10243 = vmatmul.mubr.bf16.gmra.mrb[0].mxu0 %v6285
    %v10244 = vpop.f32.mrb[0].mxu0
    %v10245 = vadd.f32 0.0, %v10244
    %v10246 = vpop.f32.mrb[0].mxu0
    %v10247 = vadd.f32 0.0, %v10246
    %v10248 = vpop.f32.mrb[0].mxu0
    %v10249 = vadd.f32 0.0, %v10248
    %v10250 = vpop.f32.mrb[0].mxu0
    %v10251 = vadd.f32 0.0, %v10250
    %10252 = vmatprep.mubr.bf16.mxu0 %v6303
    %10253 = vmatmul.mubr.bf16.gmra.mrb[0].mxu0 %v6302
    %v10254 = vpop.f32.mrb[0].mxu0
    %v10255 = vadd.f32 0.0, %v10254
    %v10256 = vpop.f32.mrb[0].mxu0
    %v10257 = vadd.f32 0.0, %v10256
    %v10258 = vpop.f32.mrb[0].mxu0
    %v10259 = vadd.f32 0.0, %v10258
    %v10260 = vpop.f32.mrb[0].mxu0
    %v10261 = vadd.f32 0.0, %v10260
    %10262 = vmatprep.mubr.bf16.mxu0 %v6320
    %10263 = vmatmul.mubr.bf16.gmra.mrb[0].mxu0 %v6319
    %v10264 = vpop.f32.mrb[0].mxu0
    %v10265 = vadd.f32 0.0, %v10264
    %v10266 = vpop.f32.mrb[0].mxu0
    %v10267 = vadd.f32 0.0, %v10266
    %v10268 = vpop.f32.mrb[0].mxu0
    %v10269 = vadd.f32 0.0, %v10268
    %v10270 = vpop.f32.mrb[0].mxu0
    %v10271 = vadd.f32 0.0, %v10270
    %10272 = vdwg.mxu0
    %10273 = vmatprep.subr.bf16.mxu0 %v9953
    %10274 = vmatpush1.bf16.msra.mxu0 %v9952
    %10275 = vmatprep.subr.bf16.mxu0 %v9955
    %10276 = vmatpush1.bf16.msra.mxu0 %v9954
    %10277 = vmatprep.subr.bf16.mxu0 %v9957
    %10278 = vmatpush1.bf16.msra.mxu0 %v9956
    %10279 = vmatprep.subr.bf16.mxu0 %v9959
    %10280 = vmatpush1.bf16.msra.mxu0 %v9958
    %10281 = vmatprep.subr.bf16.mxu0 %v9961
    %10282 = vmatpush1.bf16.msra.mxu0 %v9960
    %10283 = vmatprep.subr.bf16.mxu0 %v9963
    %10284 = vmatpush1.bf16.msra.mxu0 %v9962
    %10285 = vmatprep.subr.bf16.mxu0 %v9965
    %10286 = vmatpush1.bf16.msra.mxu0 %v9964
    %10287 = vmatprep.subr.bf16.mxu0 %v9967
    %10288 = vmatpush1.bf16.msra.mxu0 %v9966
    %10289 = vmatprep.subr.bf16.mxu0 %v9969
    %10290 = vmatpush1.bf16.msra.mxu0 %v9968
    %10291 = vmatprep.subr.bf16.mxu0 %v9971
    %10292 = vmatpush1.bf16.msra.mxu0 %v9970
    %10293 = vmatprep.subr.bf16.mxu0 %v9973
    %10294 = vmatpush1.bf16.msra.mxu0 %v9972
    %10295 = vmatprep.subr.bf16.mxu0 %v9975
    %10296 = vmatpush1.bf16.msra.mxu0 %v9974
    %10297 = vmatprep.subr.bf16.mxu0 %v9977
    %10298 = vmatpush1.bf16.msra.mxu0 %v9976
    %10299 = vmatprep.subr.bf16.mxu0 %v9979
    %10300 = vmatpush1.bf16.msra.mxu0 %v9978
    %10301 = vmatprep.subr.bf16.mxu0 %v9981
    %10302 = vmatpush1.bf16.msra.mxu0 %v9980
    %10303 = vmatprep.subr.bf16.mxu0 %v9983
    %10304 = vmatpush1.bf16.msra.mxu0 %v9982
    %10305 = vmatprep.mubr.bf16.mxu0 %v6067
    %10306 = vmatmul.mubr.bf16.gmra.mrb[0].mxu0 %v6066
    %v10307 = vpop.f32.mrb[0].mxu0
    %v10308 = vadd.f32 %v10115, %v10307
    %v10309 = vpop.f32.mrb[0].mxu0
    %v10310 = vadd.f32 %v10117, %v10309
    %v10311 = vpop.f32.mrb[0].mxu0
    %v10312 = vadd.f32 %v10119, %v10311
    %v10313 = vpop.f32.mrb[0].mxu0
    %v10314 = vadd.f32 %v10121, %v10313
    %10315 = vmatprep.mubr.bf16.mxu0 %v6084
    %10316 = vmatmul.mubr.bf16.gmra.mrb[0].mxu0 %v6083
    %v10317 = vpop.f32.mrb[0].mxu0
    %v10318 = vadd.f32 %v10125, %v10317
    %v10319 = vpop.f32.mrb[0].mxu0
    %v10320 = vadd.f32 %v10127, %v10319
    %v10321 = vpop.f32.mrb[0].mxu0
    %v10322 = vadd.f32 %v10129, %v10321
    %v10323 = vpop.f32.mrb[0].mxu0
    %v10324 = vadd.f32 %v10131, %v10323
    %10325 = vmatprep.mubr.bf16.mxu0 %v6101
    %10326 = vmatmul.mubr.bf16.gmra.mrb[0].mxu0 %v6100
    %v10327 = vpop.f32.mrb[0].mxu0
    %v10328 = vadd.f32 %v10135, %v10327
    %v10329 = vpop.f32.mrb[0].mxu0
    %v10330 = vadd.f32 %v10137, %v10329
    %v10331 = vpop.f32.mrb[0].mxu0
    %v10332 = vadd.f32 %v10139, %v10331
    %v10333 = vpop.f32.mrb[0].mxu0
    %v10334 = vadd.f32 %v10141, %v10333
    %10335 = vmatprep.mubr.bf16.mxu0 %v6118
    %10336 = vmatmul.mubr.bf16.gmra.mrb[0].mxu0 %v6117
    %v10337 = vpop.f32.mrb[0].mxu0
    %v10338 = vadd.f32 %v10145, %v10337
    %v10339 = vpop.f32.mrb[0].mxu0
    %v10340 = vadd.f32 %v10147, %v10339
    %v10341 = vpop.f32.mrb[0].mxu0
    %v10342 = vadd.f32 %v10149, %v10341
    %v10343 = vpop.f32.mrb[0].mxu0
    %v10344 = vadd.f32 %v10151, %v10343
    %10345 = vmatprep.mubr.bf16.mxu0 %v6135
    %10346 = vmatmul.mubr.bf16.gmra.mrb[0].mxu0 %v6134
    %v10347 = vpop.f32.mrb[0].mxu0
    %v10348 = vadd.f32 %v10155, %v10347
    %v10349 = vpop.f32.mrb[0].mxu0
    %v10350 = vadd.f32 %v10157, %v10349
    %v10351 = vpop.f32.mrb[0].mxu0
    %v10352 = vadd.f32 %v10159, %v10351
    %v10353 = vpop.f32.mrb[0].mxu0
    %v10354 = vadd.f32 %v10161, %v10353
    %10355 = vmatprep.mubr.bf16.mxu0 %v6152
    %10356 = vmatmul.mubr.bf16.gmra.mrb[0].mxu0 %v6151
    %v10357 = vpop.f32.mrb[0].mxu0
    %v10358 = vadd.f32 %v10165, %v10357
    %v10359 = vpop.f32.mrb[0].mxu0
    %v10360 = vadd.f32 %v10167, %v10359
    %v10361 = vpop.f32.mrb[0].mxu0
    %v10362 = vadd.f32 %v10169, %v10361
    %v10363 = vpop.f32.mrb[0].mxu0
    %v10364 = vadd.f32 %v10171, %v10363
    %10365 = vmatprep.mubr.bf16.mxu0 %v6169
    %10366 = vmatmul.mubr.bf16.gmra.mrb[0].mxu0 %v6168
    %v10367 = vpop.f32.mrb[0].mxu0
    %v10368 = vadd.f32 %v10175, %v10367
    %v10369 = vpop.f32.mrb[0].mxu0
    %v10370 = vadd.f32 %v10177, %v10369
    %v10371 = vpop.f32.mrb[0].mxu0
    %v10372 = vadd.f32 %v10179, %v10371
    %v10373 = vpop.f32.mrb[0].mxu0
    %v10374 = vadd.f32 %v10181, %v10373
    %10375 = vmatprep.mubr.bf16.mxu0 %v6186
    %10376 = vmatmul.mubr.bf16.gmra.mrb[0].mxu0 %v6185
    %v10377 = vpop.f32.mrb[0].mxu0
    %v10378 = vadd.f32 %v10185, %v10377
    %v10379 = vpop.f32.mrb[0].mxu0
    %v10380 = vadd.f32 %v10187, %v10379
    %v10381 = vpop.f32.mrb[0].mxu0
    %v10382 = vadd.f32 %v10189, %v10381
    %v10383 = vpop.f32.mrb[0].mxu0
    %v10384 = vadd.f32 %v10191, %v10383
    %10385 = vmatprep.mubr.bf16.mxu0 %v6203
    %10386 = vmatmul.mubr.bf16.gmra.mrb[0].mxu0 %v6202
    %v10387 = vpop.f32.mrb[0].mxu0
    %v10388 = vadd.f32 %v10195, %v10387
    %v10389 = vpop.f32.mrb[0].mxu0
    %v10390 = vadd.f32 %v10197, %v10389
    %v10391 = vpop.f32.mrb[0].mxu0
    %v10392 = vadd.f32 %v10199, %v10391
    %v10393 = vpop.f32.mrb[0].mxu0
    %v10394 = vadd.f32 %v10201, %v10393
    %10395 = vmatprep.mubr.bf16.mxu0 %v6220
    %10396 = vmatmul.mubr.bf16.gmra.mrb[0].mxu0 %v6219
    %v10397 = vpop.f32.mrb[0].mxu0
    %v10398 = vadd.f32 %v10205, %v10397
    %v10399 = vpop.f32.mrb[0].mxu0
    %v10400 = vadd.f32 %v10207, %v10399
    %v10401 = vpop.f32.mrb[0].mxu0
    %v10402 = vadd.f32 %v10209, %v10401
    %v10403 = vpop.f32.mrb[0].mxu0
    %v10404 = vadd.f32 %v10211, %v10403
    %10405 = vmatprep.mubr.bf16.mxu0 %v6237
    %10406 = vmatmul.mubr.bf16.gmra.mrb[0].mxu0 %v6236
    %v10407 = vpop.f32.mrb[0].mxu0
    %v10408 = vadd.f32 %v10215, %v10407
    %v10409 = vpop.f32.mrb[0].mxu0
    %v10410 = vadd.f32 %v10217, %v10409
    %v10411 = vpop.f32.mrb[0].mxu0
    %v10412 = vadd.f32 %v10219, %v10411
    %v10413 = vpop.f32.mrb[0].mxu0
    %v10414 = vadd.f32 %v10221, %v10413
    %10415 = vmatprep.mubr.bf16.mxu0 %v6254
    %10416 = vmatmul.mubr.bf16.gmra.mrb[0].mxu0 %v6253
    %v10417 = vpop.f32.mrb[0].mxu0
    %v10418 = vadd.f32 %v10225, %v10417
    %v10419 = vpop.f32.mrb[0].mxu0
    %v10420 = vadd.f32 %v10227, %v10419
    %v10421 = vpop.f32.mrb[0].mxu0
    %v10422 = vadd.f32 %v10229, %v10421
    %v10423 = vpop.f32.mrb[0].mxu0
    %v10424 = vadd.f32 %v10231, %v10423
    %10425 = vmatprep.mubr.bf16.mxu0 %v6271
    %10426 = vmatmul.mubr.bf16.gmra.mrb[0].mxu0 %v6270
    %v10427 = vpop.f32.mrb[0].mxu0
    %v10428 = vadd.f32 %v10235, %v10427
    %v10429 = vpop.f32.mrb[0].mxu0
    %v10430 = vadd.f32 %v10237, %v10429
    %v10431 = vpop.f32.mrb[0].mxu0
    %v10432 = vadd.f32 %v10239, %v10431
    %v10433 = vpop.f32.mrb[0].mxu0
    %v10434 = vadd.f32 %v10241, %v10433
    %10435 = vmatprep.mubr.bf16.mxu0 %v6288
    %10436 = vmatmul.mubr.bf16.gmra.mrb[0].mxu0 %v6287
    %v10437 = vpop.f32.mrb[0].mxu0
    %v10438 = vadd.f32 %v10245, %v10437
    %v10439 = vpop.f32.mrb[0].mxu0
    %v10440 = vadd.f32 %v10247, %v10439
    %v10441 = vpop.f32.mrb[0].mxu0
    %v10442 = vadd.f32 %v10249, %v10441
    %v10443 = vpop.f32.mrb[0].mxu0
    %v10444 = vadd.f32 %v10251, %v10443
    %10445 = vmatprep.mubr.bf16.mxu0 %v6305
    %10446 = vmatmul.mubr.bf16.gmra.mrb[0].mxu0 %v6304
    %v10447 = vpop.f32.mrb[0].mxu0
    %v10448 = vadd.f32 %v10255, %v10447
    %v10449 = vpop.f32.mrb[0].mxu0
    %v10450 = vadd.f32 %v10257, %v10449
    %v10451 = vpop.f32.mrb[0].mxu0
    %v10452 = vadd.f32 %v10259, %v10451
    %v10453 = vpop.f32.mrb[0].mxu0
    %v10454 = vadd.f32 %v10261, %v10453
    %10455 = vmatprep.mubr.bf16.mxu0 %v6322
    %10456 = vmatmul.mubr.bf16.gmra.mrb[0].mxu0 %v6321
    %v10457 = vpop.f32.mrb[0].mxu0
    %v10458 = vadd.f32 %v10265, %v10457
    %v10459 = vpop.f32.mrb[0].mxu0
    %v10460 = vadd.f32 %v10267, %v10459
    %v10461 = vpop.f32.mrb[0].mxu0
    %v10462 = vadd.f32 %v10269, %v10461
    %v10463 = vpop.f32.mrb[0].mxu0
    %v10464 = vadd.f32 %v10271, %v10463
    %10465 = vdwg.mxu0
    %10466 = vmatprep.subr.bf16.mxu0 %v9985
    %10467 = vmatpush1.bf16.msra.mxu0 %v9984
    %10468 = vmatprep.subr.bf16.mxu0 %v9987
    %10469 = vmatpush1.bf16.msra.mxu0 %v9986
    %10470 = vmatprep.subr.bf16.mxu0 %v9989
    %10471 = vmatpush1.bf16.msra.mxu0 %v9988
    %10472 = vmatprep.subr.bf16.mxu0 %v9991
    %10473 = vmatpush1.bf16.msra.mxu0 %v9990
    %10474 = vmatprep.subr.bf16.mxu0 %v9993
    %10475 = vmatpush1.bf16.msra.mxu0 %v9992
    %10476 = vmatprep.subr.bf16.mxu0 %v9995
    %10477 = vmatpush1.bf16.msra.mxu0 %v9994
    %10478 = vmatprep.subr.bf16.mxu0 %v9997
    %10479 = vmatpush1.bf16.msra.mxu0 %v9996
    %10480 = vmatprep.subr.bf16.mxu0 %v9999
    %10481 = vmatpush1.bf16.msra.mxu0 %v9998
    %10482 = vmatprep.subr.bf16.mxu0 0
    %10483 = vmatpush1.bf16.msra.mxu0 0
    %10484 = vmatprep.subr.bf16.mxu0 0
    %10485 = vmatpush1.bf16.msra.mxu0 0
    %10486 = vmatprep.subr.bf16.mxu0 0
    %10487 = vmatpush1.bf16.msra.mxu0 0
    %10488 = vmatprep.subr.bf16.mxu0 0
    %10489 = vmatpush1.bf16.msra.mxu0 0
    %10490 = vmatprep.subr.bf16.mxu0 0
    %10491 = vmatpush1.bf16.msra.mxu0 0
    %10492 = vmatprep.subr.bf16.mxu0 0
    %10493 = vmatpush1.bf16.msra.mxu0 0
    %10494 = vmatprep.subr.bf16.mxu0 0
    %10495 = vmatpush1.bf16.msra.mxu0 0
    %10496 = vmatprep.subr.bf16.mxu0 0
    %10497 = vmatpush1.bf16.msra.mxu0 0
    %10498 = vmatprep.mubr.bf16.mxu0 0
    %10499 = vmatmul.mubr.bf16.gmra.mrb[0].mxu0 %v6068
    %v10500 = vpop.f32.mrb[0].mxu0
    %v10501 = vadd.f32 %v10308, %v10500
    %v10502 = vpop.f32.mrb[0].mxu0
    %v10503 = vadd.f32 %v10310, %v10502
    %v10504 = vpop.f32.mrb[0].mxu0
    %v10505 = vadd.f32 %v10312, %v10504
    %v10506 = vpop.f32.mrb[0].mxu0
    %v10507 = vadd.f32 %v10314, %v10506
    %10508 = vmatprep.mubr.bf16.mxu0 0
    %10509 = vmatmul.mubr.bf16.gmra.mrb[0].mxu0 %v6085
    %v10510 = vpop.f32.mrb[0].mxu0
    %v10511 = vadd.f32 %v10318, %v10510
    %v10512 = vpop.f32.mrb[0].mxu0
    %v10513 = vadd.f32 %v10320, %v10512
    %v10514 = vpop.f32.mrb[0].mxu0
    %v10515 = vadd.f32 %v10322, %v10514
    %v10516 = vpop.f32.mrb[0].mxu0
    %v10517 = vadd.f32 %v10324, %v10516
    %10518 = vmatprep.mubr.bf16.mxu0 0
    %10519 = vmatmul.mubr.bf16.gmra.mrb[0].mxu0 %v6102
    %v10520 = vpop.f32.mrb[0].mxu0
    %v10521 = vadd.f32 %v10328, %v10520
    %v10522 = vpop.f32.mrb[0].mxu0
    %v10523 = vadd.f32 %v10330, %v10522
    %v10524 = vpop.f32.mrb[0].mxu0
    %v10525 = vadd.f32 %v10332, %v10524
    %v10526 = vpop.f32.mrb[0].mxu0
    %v10527 = vadd.f32 %v10334, %v10526
    %10528 = vmatprep.mubr.bf16.mxu0 0
    %10529 = vmatmul.mubr.bf16.gmra.mrb[0].mxu0 %v6119
    %v10530 = vpop.f32.mrb[0].mxu0
    %v10531 = vadd.f32 %v10338, %v10530
    %v10532 = vpop.f32.mrb[0].mxu0
    %v10533 = vadd.f32 %v10340, %v10532
    %v10534 = vpop.f32.mrb[0].mxu0
    %v10535 = vadd.f32 %v10342, %v10534
    %v10536 = vpop.f32.mrb[0].mxu0
    %v10537 = vadd.f32 %v10344, %v10536
    %10538 = vmatprep.mubr.bf16.mxu0 0
    %10539 = vmatmul.mubr.bf16.gmra.mrb[0].mxu0 %v6136
    %v10540 = vpop.f32.mrb[0].mxu0
    %v10541 = vadd.f32 %v10348, %v10540
    %v10542 = vpop.f32.mrb[0].mxu0
    %v10543 = vadd.f32 %v10350, %v10542
    %v10544 = vpop.f32.mrb[0].mxu0
    %v10545 = vadd.f32 %v10352, %v10544
    %v10546 = vpop.f32.mrb[0].mxu0
    %v10547 = vadd.f32 %v10354, %v10546
    %10548 = vmatprep.mubr.bf16.mxu0 0
    %10549 = vmatmul.mubr.bf16.gmra.mrb[0].mxu0 %v6153
    %v10550 = vpop.f32.mrb[0].mxu0
    %v10551 = vadd.f32 %v10358, %v10550
    %v10552 = vpop.f32.mrb[0].mxu0
    %v10553 = vadd.f32 %v10360, %v10552
    %v10554 = vpop.f32.mrb[0].mxu0
    %v10555 = vadd.f32 %v10362, %v10554
    %v10556 = vpop.f32.mrb[0].mxu0
    %v10557 = vadd.f32 %v10364, %v10556
    %10558 = vmatprep.mubr.bf16.mxu0 0
    %10559 = vmatmul.mubr.bf16.gmra.mrb[0].mxu0 %v6170
    %v10560 = vpop.f32.mrb[0].mxu0
    %v10561 = vadd.f32 %v10368, %v10560
    %v10562 = vpop.f32.mrb[0].mxu0
    %v10563 = vadd.f32 %v10370, %v10562
    %v10564 = vpop.f32.mrb[0].mxu0
    %v10565 = vadd.f32 %v10372, %v10564
    %v10566 = vpop.f32.mrb[0].mxu0
    %v10567 = vadd.f32 %v10374, %v10566
    %10568 = vmatprep.mubr.bf16.mxu0 0
    %10569 = vmatmul.mubr.bf16.gmra.mrb[0].mxu0 %v6187
    %v10570 = vpop.f32.mrb[0].mxu0
    %v10571 = vadd.f32 %v10378, %v10570
    %v10572 = vpop.f32.mrb[0].mxu0
    %v10573 = vadd.f32 %v10380, %v10572
    %v10574 = vpop.f32.mrb[0].mxu0
    %v10575 = vadd.f32 %v10382, %v10574
    %v10576 = vpop.f32.mrb[0].mxu0
    %v10577 = vadd.f32 %v10384, %v10576
    %10578 = vmatprep.mubr.bf16.mxu0 0
    %10579 = vmatmul.mubr.bf16.gmra.mrb[0].mxu0 %v6204
    %v10580 = vpop.f32.mrb[0].mxu0
    %v10581 = vadd.f32 %v10388, %v10580
    %v10582 = vpop.f32.mrb[0].mxu0
    %v10583 = vadd.f32 %v10390, %v10582
    %v10584 = vpop.f32.mrb[0].mxu0
    %v10585 = vadd.f32 %v10392, %v10584
    %v10586 = vpop.f32.mrb[0].mxu0
    %v10587 = vadd.f32 %v10394, %v10586
    %10588 = vmatprep.mubr.bf16.mxu0 0
    %10589 = vmatmul.mubr.bf16.gmra.mrb[0].mxu0 %v6221
    %v10590 = vpop.f32.mrb[0].mxu0
    %v10591 = vadd.f32 %v10398, %v10590
    %v10592 = vpop.f32.mrb[0].mxu0
    %v10593 = vadd.f32 %v10400, %v10592
    %v10594 = vpop.f32.mrb[0].mxu0
    %v10595 = vadd.f32 %v10402, %v10594
    %v10596 = vpop.f32.mrb[0].mxu0
    %v10597 = vadd.f32 %v10404, %v10596
    %10598 = vmatprep.mubr.bf16.mxu0 0
    %10599 = vmatmul.mubr.bf16.gmra.mrb[0].mxu0 %v6238
    %v10600 = vpop.f32.mrb[0].mxu0
    %v10601 = vadd.f32 %v10408, %v10600
    %v10602 = vpop.f32.mrb[0].mxu0
    %v10603 = vadd.f32 %v10410, %v10602
    %v10604 = vpop.f32.mrb[0].mxu0
    %v10605 = vadd.f32 %v10412, %v10604
    %v10606 = vpop.f32.mrb[0].mxu0
    %v10607 = vadd.f32 %v10414, %v10606
    %10608 = vmatprep.mubr.bf16.mxu0 0
    %10609 = vmatmul.mubr.bf16.gmra.mrb[0].mxu0 %v6255
    %v10610 = vpop.f32.mrb[0].mxu0
    %v10611 = vadd.f32 %v10418, %v10610
    %v10612 = vpop.f32.mrb[0].mxu0
    %v10613 = vadd.f32 %v10420, %v10612
    %v10614 = vpop.f32.mrb[0].mxu0
    %v10615 = vadd.f32 %v10422, %v10614
    %v10616 = vpop.f32.mrb[0].mxu0
    %v10617 = vadd.f32 %v10424, %v10616
    %10618 = vmatprep.mubr.bf16.mxu0 0
    %10619 = vmatmul.mubr.bf16.gmra.mrb[0].mxu0 %v6272
    %v10620 = vpop.f32.mrb[0].mxu0
    %v10621 = vadd.f32 %v10428, %v10620
    %v10622 = vpop.f32.mrb[0].mxu0
    %v10623 = vadd.f32 %v10430, %v10622
    %v10624 = vpop.f32.mrb[0].mxu0
    %v10625 = vadd.f32 %v10432, %v10624
    %v10626 = vpop.f32.mrb[0].mxu0
    %v10627 = vadd.f32 %v10434, %v10626
    %10628 = vmatprep.mubr.bf16.mxu0 0
    %10629 = vmatmul.mubr.bf16.gmra.mrb[0].mxu0 %v6289
    %v10630 = vpop.f32.mrb[0].mxu0
    %v10631 = vadd.f32 %v10438, %v10630
    %v10632 = vpop.f32.mrb[0].mxu0
    %v10633 = vadd.f32 %v10440, %v10632
    %v10634 = vpop.f32.mrb[0].mxu0
    %v10635 = vadd.f32 %v10442, %v10634
    %v10636 = vpop.f32.mrb[0].mxu0
    %v10637 = vadd.f32 %v10444, %v10636
    %10638 = vmatprep.mubr.bf16.mxu0 0
    %10639 = vmatmul.mubr.bf16.gmra.mrb[0].mxu0 %v6306
    %v10640 = vpop.f32.mrb[0].mxu0
    %v10641 = vadd.f32 %v10448, %v10640
    %v10642 = vpop.f32.mrb[0].mxu0
    %v10643 = vadd.f32 %v10450, %v10642
    %v10644 = vpop.f32.mrb[0].mxu0
    %v10645 = vadd.f32 %v10452, %v10644
    %v10646 = vpop.f32.mrb[0].mxu0
    %v10647 = vadd.f32 %v10454, %v10646
    %10648 = vmatprep.mubr.bf16.mxu0 0
    %10649 = vmatmul.mubr.bf16.gmra.mrb[0].mxu0 %v6323
    %v10650 = vpop.f32.mrb[0].mxu0
    %v10651 = vadd.f32 %v10458, %v10650
    %v10652 = vpop.f32.mrb[0].mxu0
    %v10653 = vadd.f32 %v10460, %v10652
    %v10654 = vpop.f32.mrb[0].mxu0
    %v10655 = vadd.f32 %v10462, %v10654
    %v10656 = vpop.f32.mrb[0].mxu0
    %v10657 = vadd.f32 %v10464, %v10656
    %10658 = vdwg.mxu0
    %v10659 = vmax.f32 %v10501, %v10503
    %v10660 = vmax.f32 %v10505, %v10507
    %v10661 = vmax.f32 %v10511, %v10513
    %v10662 = vmax.f32 %v10515, %v10517
    %v10663 = vmax.f32 %v10521, %v10523
    %v10664 = vmax.f32 %v10525, %v10527
    %v10665 = vmax.f32 %v10531, %v10533
    %v10666 = vmax.f32 %v10535, %v10537
    %v10667 = vmax.f32 %v10541, %v10543
    %v10668 = vmax.f32 %v10545, %v10547
    %v10669 = vmax.f32 %v10551, %v10553
    %v10670 = vmax.f32 %v10555, %v10557
    %v10671 = vmax.f32 %v10561, %v10563
    %v10672 = vmax.f32 %v10565, %v10567
    %v10673 = vmax.f32 %v10571, %v10573
    %v10674 = vmax.f32 %v10575, %v10577
    %v10675 = vmax.f32 %v10581, %v10583
    %v10676 = vmax.f32 %v10585, %v10587
    %v10677 = vmax.f32 %v10591, %v10593
    %v10678 = vmax.f32 %v10595, %v10597
    %v10679 = vmax.f32 %v10601, %v10603
    %v10680 = vmax.f32 %v10605, %v10607
    %v10681 = vmax.f32 %v10611, %v10613
    %v10682 = vmax.f32 %v10615, %v10617
    %v10683 = vmax.f32 %v10621, %v10623
    %v10684 = vmax.f32 %v10625, %v10627
    %v10685 = vmax.f32 %v10631, %v10633
    %v10686 = vmax.f32 %v10635, %v10637
    %v10687 = vmax.f32 %v10641, %v10643
    %v10688 = vmax.f32 %v10645, %v10647
    %v10689 = vmax.f32 %v10651, %v10653
    %v10690 = vmax.f32 %v10655, %v10657
    %v10691 = vld [vmem:[#allocation8] sm:$0xf]
    %v10693 = vlaneseq
    %v10694 = vshrl.u32 %v10693, 7
    %v10695 = vsub.s32 0, %v10694
    %v10696 = vrot.slane %v10691, %v10695
    %v10697 = vlaneseq
    %v10698 = vshrl.u32 %v10697, 7
    %v10699 = vsub.s32 1, %v10698
    %v10700 = vrot.slane %v10691, %v10699
    %v10701 = vlaneseq
    %v10702 = vshrl.u32 %v10701, 7
    %v10703 = vsub.s32 2, %v10702
    %v10704 = vrot.slane %v10691, %v10703
    %v10705 = vlaneseq
    %v10706 = vshrl.u32 %v10705, 7
    %v10707 = vsub.s32 3, %v10706
    %v10708 = vrot.slane %v10691, %v10707
    %v10713 = vadd.f32 %v7383, %v10696
    %v10714 = vadd.f32 %v8475, %v10700
    %v10715 = vadd.f32 %v9567, %v10704
    %v10716 = vadd.f32 %v10659, %v10708
    %v10717 = vadd.f32 %v7384, %v10696
    %v10718 = vadd.f32 %v8476, %v10700
    %v10719 = vadd.f32 %v9568, %v10704
    %v10720 = vadd.f32 %v10660, %v10708
    %v10721 = vadd.f32 %v7385, %v10696
    %v10722 = vadd.f32 %v8477, %v10700
    %v10723 = vadd.f32 %v9569, %v10704
    %v10724 = vadd.f32 %v10661, %v10708
    %v10725 = vadd.f32 %v7386, %v10696
    %v10726 = vadd.f32 %v8478, %v10700
    %v10727 = vadd.f32 %v9570, %v10704
    %v10728 = vadd.f32 %v10662, %v10708
    %v10729 = vadd.f32 %v7387, %v10696
    %v10730 = vadd.f32 %v8479, %v10700
    %v10731 = vadd.f32 %v9571, %v10704
    %v10732 = vadd.f32 %v10663, %v10708
    %v10733 = vadd.f32 %v7388, %v10696
    %v10734 = vadd.f32 %v8480, %v10700
    %v10735 = vadd.f32 %v9572, %v10704
    %v10736 = vadd.f32 %v10664, %v10708
    %v10737 = vadd.f32 %v7389, %v10696
    %v10738 = vadd.f32 %v8481, %v10700
    %v10739 = vadd.f32 %v9573, %v10704
    %v10740 = vadd.f32 %v10665, %v10708
    %v10741 = vadd.f32 %v7390, %v10696
    %v10742 = vadd.f32 %v8482, %v10700
    %v10743 = vadd.f32 %v9574, %v10704
    %v10744 = vadd.f32 %v10666, %v10708
    %v10745 = vadd.f32 %v7391, %v10696
    %v10746 = vadd.f32 %v8483, %v10700
    %v10747 = vadd.f32 %v9575, %v10704
    %v10748 = vadd.f32 %v10667, %v10708
    %v10749 = vadd.f32 %v7392, %v10696
    %v10750 = vadd.f32 %v8484, %v10700
    %v10751 = vadd.f32 %v9576, %v10704
    %v10752 = vadd.f32 %v10668, %v10708
    %v10753 = vadd.f32 %v7393, %v10696
    %v10754 = vadd.f32 %v8485, %v10700
    %v10755 = vadd.f32 %v9577, %v10704
    %v10756 = vadd.f32 %v10669, %v10708
    %v10757 = vadd.f32 %v7394, %v10696
    %v10758 = vadd.f32 %v8486, %v10700
    %v10759 = vadd.f32 %v9578, %v10704
    %v10760 = vadd.f32 %v10670, %v10708
    %v10761 = vadd.f32 %v7395, %v10696
    %v10762 = vadd.f32 %v8487, %v10700
    %v10763 = vadd.f32 %v9579, %v10704
    %v10764 = vadd.f32 %v10671, %v10708
    %v10765 = vadd.f32 %v7396, %v10696
    %v10766 = vadd.f32 %v8488, %v10700
    %v10767 = vadd.f32 %v9580, %v10704
    %v10768 = vadd.f32 %v10672, %v10708
    %v10769 = vadd.f32 %v7397, %v10696
    %v10770 = vadd.f32 %v8489, %v10700
    %v10771 = vadd.f32 %v9581, %v10704
    %v10772 = vadd.f32 %v10673, %v10708
    %v10773 = vadd.f32 %v7398, %v10696
    %v10774 = vadd.f32 %v8490, %v10700
    %v10775 = vadd.f32 %v9582, %v10704
    %v10776 = vadd.f32 %v10674, %v10708
    %v10777 = vadd.f32 %v7399, %v10696
    %v10778 = vadd.f32 %v8491, %v10700
    %v10779 = vadd.f32 %v9583, %v10704
    %v10780 = vadd.f32 %v10675, %v10708
    %v10781 = vadd.f32 %v7400, %v10696
    %v10782 = vadd.f32 %v8492, %v10700
    %v10783 = vadd.f32 %v9584, %v10704
    %v10784 = vadd.f32 %v10676, %v10708
    %v10785 = vadd.f32 %v7401, %v10696
    %v10786 = vadd.f32 %v8493, %v10700
    %v10787 = vadd.f32 %v9585, %v10704
    %v10788 = vadd.f32 %v10677, %v10708
    %v10789 = vadd.f32 %v7402, %v10696
    %v10790 = vadd.f32 %v8494, %v10700
    %v10791 = vadd.f32 %v9586, %v10704
    %v10792 = vadd.f32 %v10678, %v10708
    %v10793 = vadd.f32 %v7403, %v10696
    %v10794 = vadd.f32 %v8495, %v10700
    %v10795 = vadd.f32 %v9587, %v10704
    %v10796 = vadd.f32 %v10679, %v10708
    %v10797 = vadd.f32 %v7404, %v10696
    %v10798 = vadd.f32 %v8496, %v10700
    %v10799 = vadd.f32 %v9588, %v10704
    %v10800 = vadd.f32 %v10680, %v10708
    %v10801 = vadd.f32 %v7405, %v10696
    %v10802 = vadd.f32 %v8497, %v10700
    %v10803 = vadd.f32 %v9589, %v10704
    %v10804 = vadd.f32 %v10681, %v10708
    %v10805 = vadd.f32 %v7406, %v10696
    %v10806 = vadd.f32 %v8498, %v10700
    %v10807 = vadd.f32 %v9590, %v10704
    %v10808 = vadd.f32 %v10682, %v10708
    %v10809 = vadd.f32 %v7407, %v10696
    %v10810 = vadd.f32 %v8499, %v10700
    %v10811 = vadd.f32 %v9591, %v10704
    %v10812 = vadd.f32 %v10683, %v10708
    %v10813 = vadd.f32 %v7408, %v10696
    %v10814 = vadd.f32 %v8500, %v10700
    %v10815 = vadd.f32 %v9592, %v10704
    %v10816 = vadd.f32 %v10684, %v10708
    %v10817 = vadd.f32 %v7409, %v10696
    %v10818 = vadd.f32 %v8501, %v10700
    %v10819 = vadd.f32 %v9593, %v10704
    %v10820 = vadd.f32 %v10685, %v10708
    %v10821 = vadd.f32 %v7410, %v10696
    %v10822 = vadd.f32 %v8502, %v10700
    %v10823 = vadd.f32 %v9594, %v10704
    %v10824 = vadd.f32 %v10686, %v10708
    %v10825 = vadd.f32 %v7411, %v10696
    %v10826 = vadd.f32 %v8503, %v10700
    %v10827 = vadd.f32 %v9595, %v10704
    %v10828 = vadd.f32 %v10687, %v10708
    %v10829 = vadd.f32 %v7412, %v10696
    %v10830 = vadd.f32 %v8504, %v10700
    %v10831 = vadd.f32 %v9596, %v10704
    %v10832 = vadd.f32 %v10688, %v10708
    %v10833 = vadd.f32 %v7413, %v10696
    %v10834 = vadd.f32 %v8505, %v10700
    %v10835 = vadd.f32 %v9597, %v10704
    %v10836 = vadd.f32 %v10689, %v10708
    %v10837 = vadd.f32 %v7414, %v10696
    %v10838 = vadd.f32 %v8506, %v10700
    %v10839 = vadd.f32 %v9598, %v10704
    %v10840 = vadd.f32 %v10690, %v10708
    %v10841 = vmax.f32 %v10713, 0.0
    %v10842 = vmax.f32 %v10714, 0.0
    %v10843 = vmax.f32 %v10715, 0.0
    %v10844 = vmax.f32 %v10716, 0.0
    %v10845 = vmax.f32 %v10717, 0.0
    %v10846 = vmax.f32 %v10718, 0.0
    %v10847 = vmax.f32 %v10719, 0.0
    %v10848 = vmax.f32 %v10720, 0.0
    %v10849 = vmax.f32 %v10721, 0.0
    %v10850 = vmax.f32 %v10722, 0.0
    %v10851 = vmax.f32 %v10723, 0.0
    %v10852 = vmax.f32 %v10724, 0.0
    %v10853 = vmax.f32 %v10725, 0.0
    %v10854 = vmax.f32 %v10726, 0.0
    %v10855 = vmax.f32 %v10727, 0.0
    %v10856 = vmax.f32 %v10728, 0.0
    %v10857 = vmax.f32 %v10729, 0.0
    %v10858 = vmax.f32 %v10730, 0.0
    %v10859 = vmax.f32 %v10731, 0.0
    %v10860 = vmax.f32 %v10732, 0.0
    %v10861 = vmax.f32 %v10733, 0.0
    %v10862 = vmax.f32 %v10734, 0.0
    %v10863 = vmax.f32 %v10735, 0.0
    %v10864 = vmax.f32 %v10736, 0.0
    %v10865 = vmax.f32 %v10737, 0.0
    %v10866 = vmax.f32 %v10738, 0.0
    %v10867 = vmax.f32 %v10739, 0.0
    %v10868 = vmax.f32 %v10740, 0.0
    %v10869 = vmax.f32 %v10741, 0.0
    %v10870 = vmax.f32 %v10742, 0.0
    %v10871 = vmax.f32 %v10743, 0.0
    %v10872 = vmax.f32 %v10744, 0.0
    %v10873 = vmax.f32 %v10745, 0.0
    %v10874 = vmax.f32 %v10746, 0.0
    %v10875 = vmax.f32 %v10747, 0.0
    %v10876 = vmax.f32 %v10748, 0.0
    %v10877 = vmax.f32 %v10749, 0.0
    %v10878 = vmax.f32 %v10750, 0.0
    %v10879 = vmax.f32 %v10751, 0.0
    %v10880 = vmax.f32 %v10752, 0.0
    %v10881 = vmax.f32 %v10753, 0.0
    %v10882 = vmax.f32 %v10754, 0.0
    %v10883 = vmax.f32 %v10755, 0.0
    %v10884 = vmax.f32 %v10756, 0.0
    %v10885 = vmax.f32 %v10757, 0.0
    %v10886 = vmax.f32 %v10758, 0.0
    %v10887 = vmax.f32 %v10759, 0.0
    %v10888 = vmax.f32 %v10760, 0.0
    %v10889 = vmax.f32 %v10761, 0.0
    %v10890 = vmax.f32 %v10762, 0.0
    %v10891 = vmax.f32 %v10763, 0.0
    %v10892 = vmax.f32 %v10764, 0.0
    %v10893 = vmax.f32 %v10765, 0.0
    %v10894 = vmax.f32 %v10766, 0.0
    %v10895 = vmax.f32 %v10767, 0.0
    %v10896 = vmax.f32 %v10768, 0.0
    %v10897 = vmax.f32 %v10769, 0.0
    %v10898 = vmax.f32 %v10770, 0.0
    %v10899 = vmax.f32 %v10771, 0.0
    %v10900 = vmax.f32 %v10772, 0.0
    %v10901 = vmax.f32 %v10773, 0.0
    %v10902 = vmax.f32 %v10774, 0.0
    %v10903 = vmax.f32 %v10775, 0.0
    %v10904 = vmax.f32 %v10776, 0.0
    %v10905 = vmax.f32 %v10777, 0.0
    %v10906 = vmax.f32 %v10778, 0.0
    %v10907 = vmax.f32 %v10779, 0.0
    %v10908 = vmax.f32 %v10780, 0.0
    %v10909 = vmax.f32 %v10781, 0.0
    %v10910 = vmax.f32 %v10782, 0.0
    %v10911 = vmax.f32 %v10783, 0.0
    %v10912 = vmax.f32 %v10784, 0.0
    %v10913 = vmax.f32 %v10785, 0.0
    %v10914 = vmax.f32 %v10786, 0.0
    %v10915 = vmax.f32 %v10787, 0.0
    %v10916 = vmax.f32 %v10788, 0.0
    %v10917 = vmax.f32 %v10789, 0.0
    %v10918 = vmax.f32 %v10790, 0.0
    %v10919 = vmax.f32 %v10791, 0.0
    %v10920 = vmax.f32 %v10792, 0.0
    %v10921 = vmax.f32 %v10793, 0.0
    %v10922 = vmax.f32 %v10794, 0.0
    %v10923 = vmax.f32 %v10795, 0.0
    %v10924 = vmax.f32 %v10796, 0.0
    %v10925 = vmax.f32 %v10797, 0.0
    %v10926 = vmax.f32 %v10798, 0.0
    %v10927 = vmax.f32 %v10799, 0.0
    %v10928 = vmax.f32 %v10800, 0.0
    %v10929 = vmax.f32 %v10801, 0.0
    %v10930 = vmax.f32 %v10802, 0.0
    %v10931 = vmax.f32 %v10803, 0.0
    %v10932 = vmax.f32 %v10804, 0.0
    %v10933 = vmax.f32 %v10805, 0.0
    %v10934 = vmax.f32 %v10806, 0.0
    %v10935 = vmax.f32 %v10807, 0.0
    %v10936 = vmax.f32 %v10808, 0.0
    %v10937 = vmax.f32 %v10809, 0.0
    %v10938 = vmax.f32 %v10810, 0.0
    %v10939 = vmax.f32 %v10811, 0.0
    %v10940 = vmax.f32 %v10812, 0.0
    %v10941 = vmax.f32 %v10813, 0.0
    %v10942 = vmax.f32 %v10814, 0.0
    %v10943 = vmax.f32 %v10815, 0.0
    %v10944 = vmax.f32 %v10816, 0.0
    %v10945 = vmax.f32 %v10817, 0.0
    %v10946 = vmax.f32 %v10818, 0.0
    %v10947 = vmax.f32 %v10819, 0.0
    %v10948 = vmax.f32 %v10820, 0.0
    %v10949 = vmax.f32 %v10821, 0.0
    %v10950 = vmax.f32 %v10822, 0.0
    %v10951 = vmax.f32 %v10823, 0.0
    %v10952 = vmax.f32 %v10824, 0.0
    %v10953 = vmax.f32 %v10825, 0.0
    %v10954 = vmax.f32 %v10826, 0.0
    %v10955 = vmax.f32 %v10827, 0.0
    %v10956 = vmax.f32 %v10828, 0.0
    %v10957 = vmax.f32 %v10829, 0.0
    %v10958 = vmax.f32 %v10830, 0.0
    %v10959 = vmax.f32 %v10831, 0.0
    %v10960 = vmax.f32 %v10832, 0.0
    %v10961 = vmax.f32 %v10833, 0.0
    %v10962 = vmax.f32 %v10834, 0.0
    %v10963 = vmax.f32 %v10835, 0.0
    %v10964 = vmax.f32 %v10836, 0.0
    %v10965 = vmax.f32 %v10837, 0.0
    %v10966 = vmax.f32 %v10838, 0.0
    %v10967 = vmax.f32 %v10839, 0.0
    %v10968 = vmax.f32 %v10840, 0.0
    %v10969 = vpack.c.bf16 %v10845, %v10841
    %v10970 = vpack.c.bf16 %v10846, %v10842
    %v10971 = vpack.c.bf16 %v10847, %v10843
    %v10972 = vpack.c.bf16 %v10848, %v10844
    %v10973 = vpack.c.bf16 %v10853, %v10849
    %v10974 = vpack.c.bf16 %v10854, %v10850
    %v10975 = vpack.c.bf16 %v10855, %v10851
    %v10976 = vpack.c.bf16 %v10856, %v10852
    %v10977 = vpack.c.bf16 %v10861, %v10857
    %v10978 = vpack.c.bf16 %v10862, %v10858
    %v10979 = vpack.c.bf16 %v10863, %v10859
    %v10980 = vpack.c.bf16 %v10864, %v10860
    %v10981 = vpack.c.bf16 %v10869, %v10865
    %v10982 = vpack.c.bf16 %v10870, %v10866
    %v10983 = vpack.c.bf16 %v10871, %v10867
    %v10984 = vpack.c.bf16 %v10872, %v10868
    %v10985 = vpack.c.bf16 %v10877, %v10873
    %v10986 = vpack.c.bf16 %v10878, %v10874
    %v10987 = vpack.c.bf16 %v10879, %v10875
    %v10988 = vpack.c.bf16 %v10880, %v10876
    %v10989 = vpack.c.bf16 %v10885, %v10881
    %v10990 = vpack.c.bf16 %v10886, %v10882
    %v10991 = vpack.c.bf16 %v10887, %v10883
    %v10992 = vpack.c.bf16 %v10888, %v10884
    %v10993 = vpack.c.bf16 %v10893, %v10889
    %v10994 = vpack.c.bf16 %v10894, %v10890
    %v10995 = vpack.c.bf16 %v10895, %v10891
    %v10996 = vpack.c.bf16 %v10896, %v10892
    %v10997 = vpack.c.bf16 %v10901, %v10897
    %v10998 = vpack.c.bf16 %v10902, %v10898
    %v10999 = vpack.c.bf16 %v10903, %v10899
    %v11000 = vpack.c.bf16 %v10904, %v10900
    %v11001 = vpack.c.bf16 %v10909, %v10905
    %v11002 = vpack.c.bf16 %v10910, %v10906
    %v11003 = vpack.c.bf16 %v10911, %v10907
    %v11004 = vpack.c.bf16 %v10912, %v10908
    %v11005 = vpack.c.bf16 %v10917, %v10913
    %v11006 = vpack.c.bf16 %v10918, %v10914
    %v11007 = vpack.c.bf16 %v10919, %v10915
    %v11008 = vpack.c.bf16 %v10920, %v10916
    %v11009 = vpack.c.bf16 %v10925, %v10921
    %v11010 = vpack.c.bf16 %v10926, %v10922
    %v11011 = vpack.c.bf16 %v10927, %v10923
    %v11012 = vpack.c.bf16 %v10928, %v10924
    %v11013 = vpack.c.bf16 %v10933, %v10929
    %v11014 = vpack.c.bf16 %v10934, %v10930
    %v11015 = vpack.c.bf16 %v10935, %v10931
    %v11016 = vpack.c.bf16 %v10936, %v10932
    %v11017 = vpack.c.bf16 %v10941, %v10937
    %v11018 = vpack.c.bf16 %v10942, %v10938
    %v11019 = vpack.c.bf16 %v10943, %v10939
    %v11020 = vpack.c.bf16 %v10944, %v10940
    %v11021 = vpack.c.bf16 %v10949, %v10945
    %v11022 = vpack.c.bf16 %v10950, %v10946
    %v11023 = vpack.c.bf16 %v10951, %v10947
    %v11024 = vpack.c.bf16 %v10952, %v10948
    %v11025 = vpack.c.bf16 %v10957, %v10953
    %v11026 = vpack.c.bf16 %v10958, %v10954
    %v11027 = vpack.c.bf16 %v10959, %v10955
    %v11028 = vpack.c.bf16 %v10960, %v10956
    %v11029 = vpack.c.bf16 %v10965, %v10961
    %v11030 = vpack.c.bf16 %v10966, %v10962
    %v11031 = vpack.c.bf16 %v10967, %v10963
    %v11032 = vpack.c.bf16 %v10968, %v10964
    %v11033 = vld [vmem:[#allocation10] sm:$0xf]
    %v11034 = vld [vmem:[#allocation10 + $0x4] sm:$0xf]
    %v11035 = vld [vmem:[#allocation10 + $0x8] sm:$0xf]
    %v11036 = vld [vmem:[#allocation10 + $0xc] sm:$0xf]
    %v11037 = vld [vmem:[#allocation10 + $0x10] sm:$0xf]
    %v11038 = vld [vmem:[#allocation10 + $0x14] sm:$0xf]
    %v11039 = vld [vmem:[#allocation10 + $0x18] sm:$0xf]
    %v11040 = vld [vmem:[#allocation10 + $0x1c] sm:$0xf]
    %v11041 = vld [vmem:[#allocation10 + $0x20] sm:$0xf]
    %v11042 = vld [vmem:[#allocation10 + $0x24] sm:$0xf]
    %v11043 = vld [vmem:[#allocation10 + $0x28] sm:$0xf]
    %v11044 = vld [vmem:[#allocation10 + $0x2c] sm:$0xf]
    %v11045 = vld [vmem:[#allocation10 + $0x30] sm:$0xf]
    %v11046 = vld [vmem:[#allocation10 + $0x34] sm:$0xf]
    %v11047 = vld [vmem:[#allocation10 + $0x38] sm:$0xf]
    %v11048 = vld [vmem:[#allocation10 + $0x3c] sm:$0xf]
    %v11049 = vld [vmem:[#allocation10 + $0x40] sm:$0xf]
    %v11050 = vld [vmem:[#allocation10 + $0x44] sm:$0xf]
    %v11051 = vld [vmem:[#allocation10 + $0x48] sm:$0xf]
    %v11052 = vld [vmem:[#allocation10 + $0x4c] sm:$0xf]
    %v11053 = vld [vmem:[#allocation10 + $0x50] sm:$0xf]
    %v11054 = vld [vmem:[#allocation10 + $0x54] sm:$0xf]
    %v11055 = vld [vmem:[#allocation10 + $0x58] sm:$0xf]
    %v11056 = vld [vmem:[#allocation10 + $0x5c] sm:$0xf]
    %v11057 = vld [vmem:[#allocation10 + $0x60] sm:$0xf]
    %v11058 = vld [vmem:[#allocation10 + $0x64] sm:$0xf]
    %v11059 = vld [vmem:[#allocation10 + $0x68] sm:$0xf]
    %v11060 = vld [vmem:[#allocation10 + $0x6c] sm:$0xf]
    %v11061 = vld [vmem:[#allocation10 + $0x70] sm:$0xf]
    %v11062 = vld [vmem:[#allocation10 + $0x74] sm:$0xf]
    %v11063 = vld [vmem:[#allocation10 + $0x78] sm:$0xf]
    %v11064 = vld [vmem:[#allocation10 + $0x7c] sm:$0xf]
    %v11065 = vld [vmem:[#allocation10 + $0x80] sm:$0xf]
    %v11066 = vld [vmem:[#allocation10 + $0x84] sm:$0xf]
    %v11067 = vld [vmem:[#allocation10 + $0x88] sm:$0xf]
    %v11068 = vld [vmem:[#allocation10 + $0x8c] sm:$0xf]
    %v11069 = vld [vmem:[#allocation10 + $0x90] sm:$0xf]
    %v11070 = vld [vmem:[#allocation10 + $0x94] sm:$0xf]
    %v11071 = vld [vmem:[#allocation10 + $0x98] sm:$0xf]
    %v11072 = vld [vmem:[#allocation10 + $0x9c] sm:$0xf]
    %v11073 = vld [vmem:[#allocation10 + $0xa0] sm:$0xf]
    %v11074 = vld [vmem:[#allocation10 + $0xa4] sm:$0xf]
    %v11075 = vld [vmem:[#allocation10 + $0xa8] sm:$0xf]
    %v11076 = vld [vmem:[#allocation10 + $0xac] sm:$0xf]
    %v11077 = vld [vmem:[#allocation10 + $0xb0] sm:$0xf]
    %v11078 = vld [vmem:[#allocation10 + $0xb4] sm:$0xf]
    %v11079 = vld [vmem:[#allocation10 + $0xb8] sm:$0xf]
    %v11080 = vld [vmem:[#allocation10 + $0xbc] sm:$0xf]
    %v11081 = vld [vmem:[#allocation10 + $0xc0] sm:$0xf]
    %v11082 = vld [vmem:[#allocation10 + $0xc4] sm:$0xf]
    %v11083 = vld [vmem:[#allocation10 + $0xc8] sm:$0xf]
    %v11084 = vld [vmem:[#allocation10 + $0xcc] sm:$0xf]
    %v11085 = vld [vmem:[#allocation10 + $0xd0] sm:$0xf]
    %v11086 = vld [vmem:[#allocation10 + $0xd4] sm:$0xf]
    %v11087 = vld [vmem:[#allocation10 + $0xd8] sm:$0xf]
    %v11088 = vld [vmem:[#allocation10 + $0xdc] sm:$0xf]
    %v11089 = vld [vmem:[#allocation10 + $0xe0] sm:$0xf]
    %v11090 = vld [vmem:[#allocation10 + $0xe4] sm:$0xf]
    %v11091 = vld [vmem:[#allocation10 + $0xe8] sm:$0xf]
    %v11092 = vld [vmem:[#allocation10 + $0xec] sm:$0xf]
    %v11093 = vld [vmem:[#allocation10 + $0xf0] sm:$0xf]
    %v11094 = vld [vmem:[#allocation10 + $0xf4] sm:$0xf]
    %v11095 = vld [vmem:[#allocation10 + $0xf8] sm:$0xf]
    %v11096 = vld [vmem:[#allocation10 + $0xfc] sm:$0xf]
    %v11097 = vld [vmem:[#allocation11] sm:$0x1]
    %v11099 = vlaneseq
    %v11100 = vshrl.u32 %v11099, 7
    %v11101 = vsub.s32 0, %v11100
    %v11102 = vrot.slane %v11097, %v11101
    %v11168 = vunpack.c.l.b16 %v11033
    %v11169 = vunpack.c.l.b16 %v11034
    %v11170 = vunpack.c.l.b16 %v11035
    %v11171 = vunpack.c.l.b16 %v11036
    %v11172 = vunpack.c.l.b16 %v11037
    %v11173 = vunpack.c.l.b16 %v11038
    %v11174 = vunpack.c.l.b16 %v11039
    %v11175 = vunpack.c.l.b16 %v11040
    %v11176 = vunpack.c.l.b16 %v11041
    %v11177 = vunpack.c.l.b16 %v11042
    %v11178 = vunpack.c.l.b16 %v11043
    %v11179 = vunpack.c.l.b16 %v11044
    %v11180 = vunpack.c.l.b16 %v11045
    %v11181 = vunpack.c.l.b16 %v11046
    %v11182 = vunpack.c.l.b16 %v11047
    %v11183 = vunpack.c.l.b16 %v11048
    %v11184 = vunpack.c.l.b16 %v11049
    %v11185 = vunpack.c.l.b16 %v11050
    %v11186 = vunpack.c.l.b16 %v11051
    %v11187 = vunpack.c.l.b16 %v11052
    %v11188 = vunpack.c.l.b16 %v11053
    %v11189 = vunpack.c.l.b16 %v11054
    %v11190 = vunpack.c.l.b16 %v11055
    %v11191 = vunpack.c.l.b16 %v11056
    %v11192 = vunpack.c.l.b16 %v11057
    %v11193 = vunpack.c.l.b16 %v11058
    %v11194 = vunpack.c.l.b16 %v11059
    %v11195 = vunpack.c.l.b16 %v11060
    %v11196 = vunpack.c.l.b16 %v11061
    %v11197 = vunpack.c.l.b16 %v11062
    %v11198 = vunpack.c.l.b16 %v11063
    %v11199 = vunpack.c.l.b16 %v11064
    %v11200 = vunpack.c.l.b16 %v11065
    %v11201 = vunpack.c.l.b16 %v11066
    %v11202 = vunpack.c.l.b16 %v11067
    %v11203 = vunpack.c.l.b16 %v11068
    %v11204 = vunpack.c.l.b16 %v11069
    %v11205 = vunpack.c.l.b16 %v11070
    %v11206 = vunpack.c.l.b16 %v11071
    %v11207 = vunpack.c.l.b16 %v11072
    %v11208 = vunpack.c.l.b16 %v11073
    %v11209 = vunpack.c.l.b16 %v11074
    %v11210 = vunpack.c.l.b16 %v11075
    %v11211 = vunpack.c.l.b16 %v11076
    %v11212 = vunpack.c.l.b16 %v11077
    %v11213 = vunpack.c.l.b16 %v11078
    %v11214 = vunpack.c.l.b16 %v11079
    %v11215 = vunpack.c.l.b16 %v11080
    %v11216 = vunpack.c.l.b16 %v11081
    %v11217 = vunpack.c.l.b16 %v11082
    %v11218 = vunpack.c.l.b16 %v11083
    %v11219 = vunpack.c.l.b16 %v11084
    %v11220 = vunpack.c.l.b16 %v11085
    %v11221 = vunpack.c.l.b16 %v11086
    %v11222 = vunpack.c.l.b16 %v11087
    %v11223 = vunpack.c.l.b16 %v11088
    %v11224 = vunpack.c.l.b16 %v11089
    %v11225 = vunpack.c.l.b16 %v11090
    %v11226 = vunpack.c.l.b16 %v11091
    %v11227 = vunpack.c.l.b16 %v11092
    %v11228 = vunpack.c.l.b16 %v11093
    %v11229 = vunpack.c.l.b16 %v11094
    %v11230 = vunpack.c.l.b16 %v11095
    %v11231 = vunpack.c.l.b16 %v11096
    %v11232 = vpack.c.b16 %v11169, %v11168
    %v11233 = vpack.c.b16 %v11171, %v11170
    %v11234 = vpack.c.b16 %v11173, %v11172
    %v11235 = vpack.c.b16 %v11175, %v11174
    %v11236 = vpack.c.b16 %v11177, %v11176
    %v11237 = vpack.c.b16 %v11179, %v11178
    %v11238 = vpack.c.b16 %v11181, %v11180
    %v11239 = vpack.c.b16 %v11183, %v11182
    %v11240 = vpack.c.b16 %v11185, %v11184
    %v11241 = vpack.c.b16 %v11187, %v11186
    %v11242 = vpack.c.b16 %v11189, %v11188
    %v11243 = vpack.c.b16 %v11191, %v11190
    %v11244 = vpack.c.b16 %v11193, %v11192
    %v11245 = vpack.c.b16 %v11195, %v11194
    %v11246 = vpack.c.b16 %v11197, %v11196
    %v11247 = vpack.c.b16 %v11199, %v11198
    %v11248 = vpack.c.b16 %v11201, %v11200
    %v11249 = vpack.c.b16 %v11203, %v11202
    %v11250 = vpack.c.b16 %v11205, %v11204
    %v11251 = vpack.c.b16 %v11207, %v11206
    %v11252 = vpack.c.b16 %v11209, %v11208
    %v11253 = vpack.c.b16 %v11211, %v11210
    %v11254 = vpack.c.b16 %v11213, %v11212
    %v11255 = vpack.c.b16 %v11215, %v11214
    %v11256 = vpack.c.b16 %v11217, %v11216
    %v11257 = vpack.c.b16 %v11219, %v11218
    %v11258 = vpack.c.b16 %v11221, %v11220
    %v11259 = vpack.c.b16 %v11223, %v11222
    %v11260 = vpack.c.b16 %v11225, %v11224
    %v11261 = vpack.c.b16 %v11227, %v11226
    %v11262 = vpack.c.b16 %v11229, %v11228
    %v11263 = vpack.c.b16 %v11231, %v11230
    %11296 = vmatprep.subr.bf16.mxu0 0
    %11297 = vmatpush1.bf16.msra.mxu0 %v11232
    %11298 = vmatprep.subr.bf16.mxu0 0
    %11299 = vmatpush1.bf16.msra.mxu0 %v11233
    %11300 = vmatprep.subr.bf16.mxu0 0
    %11301 = vmatpush1.bf16.msra.mxu0 %v11234
    %11302 = vmatprep.subr.bf16.mxu0 0
    %11303 = vmatpush1.bf16.msra.mxu0 %v11235
    %11304 = vmatprep.subr.bf16.mxu0 0
    %11305 = vmatpush1.bf16.msra.mxu0 %v11236
    %11306 = vmatprep.subr.bf16.mxu0 0
    %11307 = vmatpush1.bf16.msra.mxu0 %v11237
    %11308 = vmatprep.subr.bf16.mxu0 0
    %11309 = vmatpush1.bf16.msra.mxu0 %v11238
    %11310 = vmatprep.subr.bf16.mxu0 0
    %11311 = vmatpush1.bf16.msra.mxu0 %v11239
    %11312 = vmatprep.subr.bf16.mxu0 0
    %11313 = vmatpush1.bf16.msra.mxu0 %v11240
    %11314 = vmatprep.subr.bf16.mxu0 0
    %11315 = vmatpush1.bf16.msra.mxu0 %v11241
    %11316 = vmatprep.subr.bf16.mxu0 0
    %11317 = vmatpush1.bf16.msra.mxu0 %v11242
    %11318 = vmatprep.subr.bf16.mxu0 0
    %11319 = vmatpush1.bf16.msra.mxu0 %v11243
    %11320 = vmatprep.subr.bf16.mxu0 0
    %11321 = vmatpush1.bf16.msra.mxu0 %v11244
    %11322 = vmatprep.subr.bf16.mxu0 0
    %11323 = vmatpush1.bf16.msra.mxu0 %v11245
    %11324 = vmatprep.subr.bf16.mxu0 0
    %11325 = vmatpush1.bf16.msra.mxu0 %v11246
    %11326 = vmatprep.subr.bf16.mxu0 0
    %11327 = vmatpush1.bf16.msra.mxu0 %v11247
    %11328 = vmatprep.mubr.bf16.mxu0 %v10970
    %11329 = vmatmul.mubr.bf16.gmra.mrb[0].mxu0 %v10969
    %v11330 = vpop.f32.mrb[0].mxu0
    %v11331 = vadd.f32 %v11102, %v11330
    %v11332 = vpop.f32.mrb[0].mxu0
    %v11333 = vpop.f32.mrb[0].mxu0
    %v11334 = vadd.f32 %v11102, %v11333
    %v11335 = vpop.f32.mrb[0].mxu0
    %11336 = vmatprep.mubr.bf16.mxu0 %v10974
    %11337 = vmatmul.mubr.bf16.gmra.mrb[0].mxu0 %v10973
    %v11338 = vpop.f32.mrb[0].mxu0
    %v11339 = vadd.f32 %v11102, %v11338
    %v11340 = vpop.f32.mrb[0].mxu0
    %v11341 = vpop.f32.mrb[0].mxu0
    %v11342 = vadd.f32 %v11102, %v11341
    %v11343 = vpop.f32.mrb[0].mxu0
    %11344 = vmatprep.mubr.bf16.mxu0 %v10978
    %11345 = vmatmul.mubr.bf16.gmra.mrb[0].mxu0 %v10977
    %v11346 = vpop.f32.mrb[0].mxu0
    %v11347 = vadd.f32 %v11102, %v11346
    %v11348 = vpop.f32.mrb[0].mxu0
    %v11349 = vpop.f32.mrb[0].mxu0
    %v11350 = vadd.f32 %v11102, %v11349
    %v11351 = vpop.f32.mrb[0].mxu0
    %11352 = vmatprep.mubr.bf16.mxu0 %v10982
    %11353 = vmatmul.mubr.bf16.gmra.mrb[0].mxu0 %v10981
    %v11354 = vpop.f32.mrb[0].mxu0
    %v11355 = vadd.f32 %v11102, %v11354
    %v11356 = vpop.f32.mrb[0].mxu0
    %v11357 = vpop.f32.mrb[0].mxu0
    %v11358 = vadd.f32 %v11102, %v11357
    %v11359 = vpop.f32.mrb[0].mxu0
    %11360 = vmatprep.mubr.bf16.mxu0 %v10986
    %11361 = vmatmul.mubr.bf16.gmra.mrb[0].mxu0 %v10985
    %v11362 = vpop.f32.mrb[0].mxu0
    %v11363 = vadd.f32 %v11102, %v11362
    %v11364 = vpop.f32.mrb[0].mxu0
    %v11365 = vpop.f32.mrb[0].mxu0
    %v11366 = vadd.f32 %v11102, %v11365
    %v11367 = vpop.f32.mrb[0].mxu0
    %11368 = vmatprep.mubr.bf16.mxu0 %v10990
    %11369 = vmatmul.mubr.bf16.gmra.mrb[0].mxu0 %v10989
    %v11370 = vpop.f32.mrb[0].mxu0
    %v11371 = vadd.f32 %v11102, %v11370
    %v11372 = vpop.f32.mrb[0].mxu0
    %v11373 = vpop.f32.mrb[0].mxu0
    %v11374 = vadd.f32 %v11102, %v11373
    %v11375 = vpop.f32.mrb[0].mxu0
    %11376 = vmatprep.mubr.bf16.mxu0 %v10994
    %11377 = vmatmul.mubr.bf16.gmra.mrb[0].mxu0 %v10993
    %v11378 = vpop.f32.mrb[0].mxu0
    %v11379 = vadd.f32 %v11102, %v11378
    %v11380 = vpop.f32.mrb[0].mxu0
    %v11381 = vpop.f32.mrb[0].mxu0
    %v11382 = vadd.f32 %v11102, %v11381
    %v11383 = vpop.f32.mrb[0].mxu0
    %11384 = vmatprep.mubr.bf16.mxu0 %v10998
    %11385 = vmatmul.mubr.bf16.gmra.mrb[0].mxu0 %v10997
    %v11386 = vpop.f32.mrb[0].mxu0
    %v11387 = vadd.f32 %v11102, %v11386
    %v11388 = vpop.f32.mrb[0].mxu0
    %v11389 = vpop.f32.mrb[0].mxu0
    %v11390 = vadd.f32 %v11102, %v11389
    %v11391 = vpop.f32.mrb[0].mxu0
    %11392 = vmatprep.mubr.bf16.mxu0 %v11002
    %11393 = vmatmul.mubr.bf16.gmra.mrb[0].mxu0 %v11001
    %v11394 = vpop.f32.mrb[0].mxu0
    %v11395 = vadd.f32 %v11102, %v11394
    %v11396 = vpop.f32.mrb[0].mxu0
    %v11397 = vpop.f32.mrb[0].mxu0
    %v11398 = vadd.f32 %v11102, %v11397
    %v11399 = vpop.f32.mrb[0].mxu0
    %11400 = vmatprep.mubr.bf16.mxu0 %v11006
    %11401 = vmatmul.mubr.bf16.gmra.mrb[0].mxu0 %v11005
    %v11402 = vpop.f32.mrb[0].mxu0
    %v11403 = vadd.f32 %v11102, %v11402
    %v11404 = vpop.f32.mrb[0].mxu0
    %v11405 = vpop.f32.mrb[0].mxu0
    %v11406 = vadd.f32 %v11102, %v11405
    %v11407 = vpop.f32.mrb[0].mxu0
    %11408 = vmatprep.mubr.bf16.mxu0 %v11010
    %11409 = vmatmul.mubr.bf16.gmra.mrb[0].mxu0 %v11009
    %v11410 = vpop.f32.mrb[0].mxu0
    %v11411 = vadd.f32 %v11102, %v11410
    %v11412 = vpop.f32.mrb[0].mxu0
    %v11413 = vpop.f32.mrb[0].mxu0
    %v11414 = vadd.f32 %v11102, %v11413
    %v11415 = vpop.f32.mrb[0].mxu0
    %11416 = vmatprep.mubr.bf16.mxu0 %v11014
    %11417 = vmatmul.mubr.bf16.gmra.mrb[0].mxu0 %v11013
    %v11418 = vpop.f32.mrb[0].mxu0
    %v11419 = vadd.f32 %v11102, %v11418
    %v11420 = vpop.f32.mrb[0].mxu0
    %v11421 = vpop.f32.mrb[0].mxu0
    %v11422 = vadd.f32 %v11102, %v11421
    %v11423 = vpop.f32.mrb[0].mxu0
    %11424 = vmatprep.mubr.bf16.mxu0 %v11018
    %11425 = vmatmul.mubr.bf16.gmra.mrb[0].mxu0 %v11017
    %v11426 = vpop.f32.mrb[0].mxu0
    %v11427 = vadd.f32 %v11102, %v11426
    %v11428 = vpop.f32.mrb[0].mxu0
    %v11429 = vpop.f32.mrb[0].mxu0
    %v11430 = vadd.f32 %v11102, %v11429
    %v11431 = vpop.f32.mrb[0].mxu0
    %11432 = vmatprep.mubr.bf16.mxu0 %v11022
    %11433 = vmatmul.mubr.bf16.gmra.mrb[0].mxu0 %v11021
    %v11434 = vpop.f32.mrb[0].mxu0
    %v11435 = vadd.f32 %v11102, %v11434
    %v11436 = vpop.f32.mrb[0].mxu0
    %v11437 = vpop.f32.mrb[0].mxu0
    %v11438 = vadd.f32 %v11102, %v11437
    %v11439 = vpop.f32.mrb[0].mxu0
    %11440 = vmatprep.mubr.bf16.mxu0 %v11026
    %11441 = vmatmul.mubr.bf16.gmra.mrb[0].mxu0 %v11025
    %v11442 = vpop.f32.mrb[0].mxu0
    %v11443 = vadd.f32 %v11102, %v11442
    %v11444 = vpop.f32.mrb[0].mxu0
    %v11445 = vpop.f32.mrb[0].mxu0
    %v11446 = vadd.f32 %v11102, %v11445
    %v11447 = vpop.f32.mrb[0].mxu0
    %11448 = vmatprep.mubr.bf16.mxu0 %v11030
    %11449 = vmatmul.mubr.bf16.gmra.mrb[0].mxu0 %v11029
    %v11450 = vpop.f32.mrb[0].mxu0
    %v11451 = vadd.f32 %v11102, %v11450
    %v11452 = vpop.f32.mrb[0].mxu0
    %v11453 = vpop.f32.mrb[0].mxu0
    %v11454 = vadd.f32 %v11102, %v11453
    %v11455 = vpop.f32.mrb[0].mxu0
    %11456 = vdwg.mxu0
    %11457 = vmatprep.subr.bf16.mxu0 0
    %11458 = vmatpush1.bf16.msra.mxu0 %v11248
    %11459 = vmatprep.subr.bf16.mxu0 0
    %11460 = vmatpush1.bf16.msra.mxu0 %v11249
    %11461 = vmatprep.subr.bf16.mxu0 0
    %11462 = vmatpush1.bf16.msra.mxu0 %v11250
    %11463 = vmatprep.subr.bf16.mxu0 0
    %11464 = vmatpush1.bf16.msra.mxu0 %v11251
    %11465 = vmatprep.subr.bf16.mxu0 0
    %11466 = vmatpush1.bf16.msra.mxu0 %v11252
    %11467 = vmatprep.subr.bf16.mxu0 0
    %11468 = vmatpush1.bf16.msra.mxu0 %v11253
    %11469 = vmatprep.subr.bf16.mxu0 0
    %11470 = vmatpush1.bf16.msra.mxu0 %v11254
    %11471 = vmatprep.subr.bf16.mxu0 0
    %11472 = vmatpush1.bf16.msra.mxu0 %v11255
    %11473 = vmatprep.subr.bf16.mxu0 0
    %11474 = vmatpush1.bf16.msra.mxu0 %v11256
    %11475 = vmatprep.subr.bf16.mxu0 0
    %11476 = vmatpush1.bf16.msra.mxu0 %v11257
    %11477 = vmatprep.subr.bf16.mxu0 0
    %11478 = vmatpush1.bf16.msra.mxu0 %v11258
    %11479 = vmatprep.subr.bf16.mxu0 0
    %11480 = vmatpush1.bf16.msra.mxu0 %v11259
    %11481 = vmatprep.subr.bf16.mxu0 0
    %11482 = vmatpush1.bf16.msra.mxu0 %v11260
    %11483 = vmatprep.subr.bf16.mxu0 0
    %11484 = vmatpush1.bf16.msra.mxu0 %v11261
    %11485 = vmatprep.subr.bf16.mxu0 0
    %11486 = vmatpush1.bf16.msra.mxu0 %v11262
    %11487 = vmatprep.subr.bf16.mxu0 0
    %11488 = vmatpush1.bf16.msra.mxu0 %v11263
    %11489 = vmatprep.mubr.bf16.mxu0 %v10972
    %11490 = vmatmul.mubr.bf16.gmra.mrb[0].mxu0 %v10971
    %v11491 = vpop.f32.mrb[0].mxu0
    %v11492 = vadd.f32 %v11331, %v11491
    %v11493 = vpop.f32.mrb[0].mxu0
    %v11494 = vpop.f32.mrb[0].mxu0
    %v11495 = vadd.f32 %v11334, %v11494
    %v11496 = vpop.f32.mrb[0].mxu0
    %11497 = vmatprep.mubr.bf16.mxu0 %v10976
    %11498 = vmatmul.mubr.bf16.gmra.mrb[0].mxu0 %v10975
    %v11499 = vpop.f32.mrb[0].mxu0
    %v11500 = vadd.f32 %v11339, %v11499
    %v11501 = vpop.f32.mrb[0].mxu0
    %v11502 = vpop.f32.mrb[0].mxu0
    %v11503 = vadd.f32 %v11342, %v11502
    %v11504 = vpop.f32.mrb[0].mxu0
    %11505 = vmatprep.mubr.bf16.mxu0 %v10980
    %11506 = vmatmul.mubr.bf16.gmra.mrb[0].mxu0 %v10979
    %v11507 = vpop.f32.mrb[0].mxu0
    %v11508 = vadd.f32 %v11347, %v11507
    %v11509 = vpop.f32.mrb[0].mxu0
    %v11510 = vpop.f32.mrb[0].mxu0
    %v11511 = vadd.f32 %v11350, %v11510
    %v11512 = vpop.f32.mrb[0].mxu0
    %11513 = vmatprep.mubr.bf16.mxu0 %v10984
    %11514 = vmatmul.mubr.bf16.gmra.mrb[0].mxu0 %v10983
    %v11515 = vpop.f32.mrb[0].mxu0
    %v11516 = vadd.f32 %v11355, %v11515
    %v11517 = vpop.f32.mrb[0].mxu0
    %v11518 = vpop.f32.mrb[0].mxu0
    %v11519 = vadd.f32 %v11358, %v11518
    %v11520 = vpop.f32.mrb[0].mxu0
    %11521 = vmatprep.mubr.bf16.mxu0 %v10988
    %11522 = vmatmul.mubr.bf16.gmra.mrb[0].mxu0 %v10987
    %v11523 = vpop.f32.mrb[0].mxu0
    %v11524 = vadd.f32 %v11363, %v11523
    %v11525 = vpop.f32.mrb[0].mxu0
    %v11526 = vpop.f32.mrb[0].mxu0
    %v11527 = vadd.f32 %v11366, %v11526
    %v11528 = vpop.f32.mrb[0].mxu0
    %11529 = vmatprep.mubr.bf16.mxu0 %v10992
    %11530 = vmatmul.mubr.bf16.gmra.mrb[0].mxu0 %v10991
    %v11531 = vpop.f32.mrb[0].mxu0
    %v11532 = vadd.f32 %v11371, %v11531
    %v11533 = vpop.f32.mrb[0].mxu0
    %v11534 = vpop.f32.mrb[0].mxu0
    %v11535 = vadd.f32 %v11374, %v11534
    %v11536 = vpop.f32.mrb[0].mxu0
    %11537 = vmatprep.mubr.bf16.mxu0 %v10996
    %11538 = vmatmul.mubr.bf16.gmra.mrb[0].mxu0 %v10995
    %v11539 = vpop.f32.mrb[0].mxu0
    %v11540 = vadd.f32 %v11379, %v11539
    %v11541 = vpop.f32.mrb[0].mxu0
    %v11542 = vpop.f32.mrb[0].mxu0
    %v11543 = vadd.f32 %v11382, %v11542
    %v11544 = vpop.f32.mrb[0].mxu0
    %11545 = vmatprep.mubr.bf16.mxu0 %v11000
    %11546 = vmatmul.mubr.bf16.gmra.mrb[0].mxu0 %v10999
    %v11547 = vpop.f32.mrb[0].mxu0
    %v11548 = vadd.f32 %v11387, %v11547
    %v11549 = vpop.f32.mrb[0].mxu0
    %v11550 = vpop.f32.mrb[0].mxu0
    %v11551 = vadd.f32 %v11390, %v11550
    %v11552 = vpop.f32.mrb[0].mxu0
    %11553 = vmatprep.mubr.bf16.mxu0 %v11004
    %11554 = vmatmul.mubr.bf16.gmra.mrb[0].mxu0 %v11003
    %v11555 = vpop.f32.mrb[0].mxu0
    %v11556 = vadd.f32 %v11395, %v11555
    %v11557 = vpop.f32.mrb[0].mxu0
    %v11558 = vpop.f32.mrb[0].mxu0
    %v11559 = vadd.f32 %v11398, %v11558
    %v11560 = vpop.f32.mrb[0].mxu0
    %11561 = vmatprep.mubr.bf16.mxu0 %v11008
    %11562 = vmatmul.mubr.bf16.gmra.mrb[0].mxu0 %v11007
    %v11563 = vpop.f32.mrb[0].mxu0
    %v11564 = vadd.f32 %v11403, %v11563
    %v11565 = vpop.f32.mrb[0].mxu0
    %v11566 = vpop.f32.mrb[0].mxu0
    %v11567 = vadd.f32 %v11406, %v11566
    %v11568 = vpop.f32.mrb[0].mxu0
    %11569 = vmatprep.mubr.bf16.mxu0 %v11012
    %11570 = vmatmul.mubr.bf16.gmra.mrb[0].mxu0 %v11011
    %v11571 = vpop.f32.mrb[0].mxu0
    %v11572 = vadd.f32 %v11411, %v11571
    %v11573 = vpop.f32.mrb[0].mxu0
    %v11574 = vpop.f32.mrb[0].mxu0
    %v11575 = vadd.f32 %v11414, %v11574
    %v11576 = vpop.f32.mrb[0].mxu0
    %11577 = vmatprep.mubr.bf16.mxu0 %v11016
    %11578 = vmatmul.mubr.bf16.gmra.mrb[0].mxu0 %v11015
    %v11579 = vpop.f32.mrb[0].mxu0
    %v11580 = vadd.f32 %v11419, %v11579
    %v11581 = vpop.f32.mrb[0].mxu0
    %v11582 = vpop.f32.mrb[0].mxu0
    %v11583 = vadd.f32 %v11422, %v11582
    %v11584 = vpop.f32.mrb[0].mxu0
    %11585 = vmatprep.mubr.bf16.mxu0 %v11020
    %11586 = vmatmul.mubr.bf16.gmra.mrb[0].mxu0 %v11019
    %v11587 = vpop.f32.mrb[0].mxu0
    %v11588 = vadd.f32 %v11427, %v11587
    %v11589 = vpop.f32.mrb[0].mxu0
    %v11590 = vpop.f32.mrb[0].mxu0
    %v11591 = vadd.f32 %v11430, %v11590
    %v11592 = vpop.f32.mrb[0].mxu0
    %11593 = vmatprep.mubr.bf16.mxu0 %v11024
    %11594 = vmatmul.mubr.bf16.gmra.mrb[0].mxu0 %v11023
    %v11595 = vpop.f32.mrb[0].mxu0
    %v11596 = vadd.f32 %v11435, %v11595
    %v11597 = vpop.f32.mrb[0].mxu0
    %v11598 = vpop.f32.mrb[0].mxu0
    %v11599 = vadd.f32 %v11438, %v11598
    %v11600 = vpop.f32.mrb[0].mxu0
    %11601 = vmatprep.mubr.bf16.mxu0 %v11028
    %11602 = vmatmul.mubr.bf16.gmra.mrb[0].mxu0 %v11027
    %v11603 = vpop.f32.mrb[0].mxu0
    %v11604 = vadd.f32 %v11443, %v11603
    %v11605 = vpop.f32.mrb[0].mxu0
    %v11606 = vpop.f32.mrb[0].mxu0
    %v11607 = vadd.f32 %v11446, %v11606
    %v11608 = vpop.f32.mrb[0].mxu0
    %11609 = vmatprep.mubr.bf16.mxu0 %v11032
    %11610 = vmatmul.mubr.bf16.gmra.mrb[0].mxu0 %v11031
    %v11611 = vpop.f32.mrb[0].mxu0
    %v11612 = vadd.f32 %v11451, %v11611
    %v11613 = vpop.f32.mrb[0].mxu0
    %v11614 = vpop.f32.mrb[0].mxu0
    %v11615 = vadd.f32 %v11454, %v11614
    %v11616 = vpop.f32.mrb[0].mxu0
    %11617 = vdwg.mxu0
    %v11618 = vmax.f32 %v11492, 0.0
    %v11619 = vmax.f32 %v11495, 0.0
    %v11620 = vmax.f32 %v11500, 0.0
    %v11621 = vmax.f32 %v11503, 0.0
    %v11622 = vmax.f32 %v11508, 0.0
    %v11623 = vmax.f32 %v11511, 0.0
    %v11624 = vmax.f32 %v11516, 0.0
    %v11625 = vmax.f32 %v11519, 0.0
    %v11626 = vmax.f32 %v11524, 0.0
    %v11627 = vmax.f32 %v11527, 0.0
    %v11628 = vmax.f32 %v11532, 0.0
    %v11629 = vmax.f32 %v11535, 0.0
    %v11630 = vmax.f32 %v11540, 0.0
    %v11631 = vmax.f32 %v11543, 0.0
    %v11632 = vmax.f32 %v11548, 0.0
    %v11633 = vmax.f32 %v11551, 0.0
    %v11634 = vmax.f32 %v11556, 0.0
    %v11635 = vmax.f32 %v11559, 0.0
    %v11636 = vmax.f32 %v11564, 0.0
    %v11637 = vmax.f32 %v11567, 0.0
    %v11638 = vmax.f32 %v11572, 0.0
    %v11639 = vmax.f32 %v11575, 0.0
    %v11640 = vmax.f32 %v11580, 0.0
    %v11641 = vmax.f32 %v11583, 0.0
    %v11642 = vmax.f32 %v11588, 0.0
    %v11643 = vmax.f32 %v11591, 0.0
    %v11644 = vmax.f32 %v11596, 0.0
    %v11645 = vmax.f32 %v11599, 0.0
    %v11646 = vmax.f32 %v11604, 0.0
    %v11647 = vmax.f32 %v11607, 0.0
    %v11648 = vmax.f32 %v11612, 0.0
    %v11649 = vmax.f32 %v11615, 0.0
    %v11650 = vpack.c.bf16 %v11619, %v11618
    %v11651 = vpack.c.bf16 %v11621, %v11620
    %v11652 = vpack.c.bf16 %v11623, %v11622
    %v11653 = vpack.c.bf16 %v11625, %v11624
    %v11654 = vpack.c.bf16 %v11627, %v11626
    %v11655 = vpack.c.bf16 %v11629, %v11628
    %v11656 = vpack.c.bf16 %v11631, %v11630
    %v11657 = vpack.c.bf16 %v11633, %v11632
    %v11658 = vpack.c.bf16 %v11635, %v11634
    %v11659 = vpack.c.bf16 %v11637, %v11636
    %v11660 = vpack.c.bf16 %v11639, %v11638
    %v11661 = vpack.c.bf16 %v11641, %v11640
    %v11662 = vpack.c.bf16 %v11643, %v11642
    %v11663 = vpack.c.bf16 %v11645, %v11644
    %v11664 = vpack.c.bf16 %v11647, %v11646
    %v11665 = vpack.c.bf16 %v11649, %v11648
    %v11666 = vld [vmem:[#allocation13] sm:$0xf]
    %v11667 = vld [vmem:[#allocation13 + $0x4] sm:$0xf]
    %v11668 = vld [vmem:[#allocation13 + $0x8] sm:$0xf]
    %v11669 = vld [vmem:[#allocation13 + $0xc] sm:$0xf]
    %v11670 = vld [vmem:[#allocation13 + $0x10] sm:$0xf]
    %v11671 = vld [vmem:[#allocation13 + $0x14] sm:$0xf]
    %v11672 = vld [vmem:[#allocation13 + $0x18] sm:$0xf]
    %v11673 = vld [vmem:[#allocation13 + $0x1c] sm:$0xf]
    %v11674 = vld [vmem:[#allocation13 + $0x20] sm:$0xf]
    %v11675 = vld [vmem:[#allocation13 + $0x24] sm:$0xf]
    %v11676 = vld [vmem:[#allocation13 + $0x28] sm:$0xf]
    %v11677 = vld [vmem:[#allocation13 + $0x2c] sm:$0xf]
    %v11678 = vld [vmem:[#allocation13 + $0x30] sm:$0xf]
    %v11679 = vld [vmem:[#allocation13 + $0x34] sm:$0xf]
    %v11680 = vld [vmem:[#allocation13 + $0x38] sm:$0xf]
    %v11681 = vld [vmem:[#allocation13 + $0x3c] sm:$0xf]
    %v11682 = vld [vmem:[#allocation14] sm:$0x1]
    %v11684 = vlaneseq
    %v11685 = vshrl.u32 %v11684, 7
    %v11686 = vsub.s32 0, %v11685
    %v11687 = vrot.slane %v11682, %v11686
    %v11705 = vunpack.c.l.b16 %v11666
    %v11706 = vunpack.c.l.b16 %v11667
    %v11707 = vunpack.c.l.b16 %v11668
    %v11708 = vunpack.c.l.b16 %v11669
    %v11709 = vunpack.c.l.b16 %v11670
    %v11710 = vunpack.c.l.b16 %v11671
    %v11711 = vunpack.c.l.b16 %v11672
    %v11712 = vunpack.c.l.b16 %v11673
    %v11713 = vunpack.c.l.b16 %v11674
    %v11714 = vunpack.c.l.b16 %v11675
    %v11715 = vunpack.c.l.b16 %v11676
    %v11716 = vunpack.c.l.b16 %v11677
    %v11717 = vunpack.c.l.b16 %v11678
    %v11718 = vunpack.c.l.b16 %v11679
    %v11719 = vunpack.c.l.b16 %v11680
    %v11720 = vunpack.c.l.b16 %v11681
    %v11721 = vpack.c.b16 %v11706, %v11705
    %v11722 = vpack.c.b16 %v11708, %v11707
    %v11723 = vpack.c.b16 %v11710, %v11709
    %v11724 = vpack.c.b16 %v11712, %v11711
    %v11725 = vpack.c.b16 %v11714, %v11713
    %v11726 = vpack.c.b16 %v11716, %v11715
    %v11727 = vpack.c.b16 %v11718, %v11717
    %v11728 = vpack.c.b16 %v11720, %v11719
    %11737 = vmatprep.subr.bf16.mxu0 0
    %11738 = vmatpush1.bf16.msra.mxu0 %v11721
    %11739 = vmatprep.subr.bf16.mxu0 0
    %11740 = vmatpush1.bf16.msra.mxu0 %v11722
    %11741 = vmatprep.subr.bf16.mxu0 0
    %11742 = vmatpush1.bf16.msra.mxu0 %v11723
    %11743 = vmatprep.subr.bf16.mxu0 0
    %11744 = vmatpush1.bf16.msra.mxu0 %v11724
    %11745 = vmatprep.subr.bf16.mxu0 0
    %11746 = vmatpush1.bf16.msra.mxu0 %v11725
    %11747 = vmatprep.subr.bf16.mxu0 0
    %11748 = vmatpush1.bf16.msra.mxu0 %v11726
    %11749 = vmatprep.subr.bf16.mxu0 0
    %11750 = vmatpush1.bf16.msra.mxu0 %v11727
    %11751 = vmatprep.subr.bf16.mxu0 0
    %11752 = vmatpush1.bf16.msra.mxu0 %v11728
    %11753 = vmatprep.subr.bf16.mxu0 0
    %11754 = vmatpush1.bf16.msra.mxu0 0
    %11755 = vmatprep.subr.bf16.mxu0 0
    %11756 = vmatpush1.bf16.msra.mxu0 0
    %11757 = vmatprep.subr.bf16.mxu0 0
    %11758 = vmatpush1.bf16.msra.mxu0 0
    %11759 = vmatprep.subr.bf16.mxu0 0
    %11760 = vmatpush1.bf16.msra.mxu0 0
    %11761 = vmatprep.subr.bf16.mxu0 0
    %11762 = vmatpush1.bf16.msra.mxu0 0
    %11763 = vmatprep.subr.bf16.mxu0 0
    %11764 = vmatpush1.bf16.msra.mxu0 0
    %11765 = vmatprep.subr.bf16.mxu0 0
    %11766 = vmatpush1.bf16.msra.mxu0 0
    %11767 = vmatprep.subr.bf16.mxu0 0
    %11768 = vmatpush1.bf16.msra.mxu0 0
    %11769 = vmatprep.mubr.bf16.mxu0 0
    %11770 = vmatmul.mubr.bf16.gmra.mrb[0].mxu0 %v11650
    %v11771 = vpop.f32.mrb[0].mxu0
    %v11772 = vadd.f32 %v11687, %v11771
    %v11773 = vpop.f32.mrb[0].mxu0
    %v11774 = vpop.f32.mrb[0].mxu0
    %v11775 = vadd.f32 %v11687, %v11774
    %v11776 = vpop.f32.mrb[0].mxu0
    %11777 = vmatprep.mubr.bf16.mxu0 0
    %11778 = vmatmul.mubr.bf16.gmra.mrb[0].mxu0 %v11651
    %v11779 = vpop.f32.mrb[0].mxu0
    %v11780 = vadd.f32 %v11687, %v11779
    %v11781 = vpop.f32.mrb[0].mxu0
    %v11782 = vpop.f32.mrb[0].mxu0
    %v11783 = vadd.f32 %v11687, %v11782
    %v11784 = vpop.f32.mrb[0].mxu0
    %11785 = vmatprep.mubr.bf16.mxu0 0
    %11786 = vmatmul.mubr.bf16.gmra.mrb[0].mxu0 %v11652
    %v11787 = vpop.f32.mrb[0].mxu0
    %v11788 = vadd.f32 %v11687, %v11787
    %v11789 = vpop.f32.mrb[0].mxu0
    %v11790 = vpop.f32.mrb[0].mxu0
    %v11791 = vadd.f32 %v11687, %v11790
    %v11792 = vpop.f32.mrb[0].mxu0
    %11793 = vmatprep.mubr.bf16.mxu0 0
    %11794 = vmatmul.mubr.bf16.gmra.mrb[0].mxu0 %v11653
    %v11795 = vpop.f32.mrb[0].mxu0
    %v11796 = vadd.f32 %v11687, %v11795
    %v11797 = vpop.f32.mrb[0].mxu0
    %v11798 = vpop.f32.mrb[0].mxu0
    %v11799 = vadd.f32 %v11687, %v11798
    %v11800 = vpop.f32.mrb[0].mxu0
    %11801 = vmatprep.mubr.bf16.mxu0 0
    %11802 = vmatmul.mubr.bf16.gmra.mrb[0].mxu0 %v11654
    %v11803 = vpop.f32.mrb[0].mxu0
    %v11804 = vadd.f32 %v11687, %v11803
    %v11805 = vpop.f32.mrb[0].mxu0
    %v11806 = vpop.f32.mrb[0].mxu0
    %v11807 = vadd.f32 %v11687, %v11806
    %v11808 = vpop.f32.mrb[0].mxu0
    %11809 = vmatprep.mubr.bf16.mxu0 0
    %11810 = vmatmul.mubr.bf16.gmra.mrb[0].mxu0 %v11655
    %v11811 = vpop.f32.mrb[0].mxu0
    %v11812 = vadd.f32 %v11687, %v11811
    %v11813 = vpop.f32.mrb[0].mxu0
    %v11814 = vpop.f32.mrb[0].mxu0
    %v11815 = vadd.f32 %v11687, %v11814
    %v11816 = vpop.f32.mrb[0].mxu0
    %11817 = vmatprep.mubr.bf16.mxu0 0
    %11818 = vmatmul.mubr.bf16.gmra.mrb[0].mxu0 %v11656
    %v11819 = vpop.f32.mrb[0].mxu0
    %v11820 = vadd.f32 %v11687, %v11819
    %v11821 = vpop.f32.mrb[0].mxu0
    %v11822 = vpop.f32.mrb[0].mxu0
    %v11823 = vadd.f32 %v11687, %v11822
    %v11824 = vpop.f32.mrb[0].mxu0
    %11825 = vmatprep.mubr.bf16.mxu0 0
    %11826 = vmatmul.mubr.bf16.gmra.mrb[0].mxu0 %v11657
    %v11827 = vpop.f32.mrb[0].mxu0
    %v11828 = vadd.f32 %v11687, %v11827
    %v11829 = vpop.f32.mrb[0].mxu0
    %v11830 = vpop.f32.mrb[0].mxu0
    %v11831 = vadd.f32 %v11687, %v11830
    %v11832 = vpop.f32.mrb[0].mxu0
    %11833 = vmatprep.mubr.bf16.mxu0 0
    %11834 = vmatmul.mubr.bf16.gmra.mrb[0].mxu0 %v11658
    %v11835 = vpop.f32.mrb[0].mxu0
    %v11836 = vadd.f32 %v11687, %v11835
    %v11837 = vpop.f32.mrb[0].mxu0
    %v11838 = vpop.f32.mrb[0].mxu0
    %v11839 = vadd.f32 %v11687, %v11838
    %v11840 = vpop.f32.mrb[0].mxu0
    %11841 = vmatprep.mubr.bf16.mxu0 0
    %11842 = vmatmul.mubr.bf16.gmra.mrb[0].mxu0 %v11659
    %v11843 = vpop.f32.mrb[0].mxu0
    %v11844 = vadd.f32 %v11687, %v11843
    %v11845 = vpop.f32.mrb[0].mxu0
    %v11846 = vpop.f32.mrb[0].mxu0
    %v11847 = vadd.f32 %v11687, %v11846
    %v11848 = vpop.f32.mrb[0].mxu0
    %11849 = vmatprep.mubr.bf16.mxu0 0
    %11850 = vmatmul.mubr.bf16.gmra.mrb[0].mxu0 %v11660
    %v11851 = vpop.f32.mrb[0].mxu0
    %v11852 = vadd.f32 %v11687, %v11851
    %v11853 = vpop.f32.mrb[0].mxu0
    %v11854 = vpop.f32.mrb[0].mxu0
    %v11855 = vadd.f32 %v11687, %v11854
    %v11856 = vpop.f32.mrb[0].mxu0
    %11857 = vmatprep.mubr.bf16.mxu0 0
    %11858 = vmatmul.mubr.bf16.gmra.mrb[0].mxu0 %v11661
    %v11859 = vpop.f32.mrb[0].mxu0
    %v11860 = vadd.f32 %v11687, %v11859
    %v11861 = vpop.f32.mrb[0].mxu0
    %v11862 = vpop.f32.mrb[0].mxu0
    %v11863 = vadd.f32 %v11687, %v11862
    %v11864 = vpop.f32.mrb[0].mxu0
    %11865 = vmatprep.mubr.bf16.mxu0 0
    %11866 = vmatmul.mubr.bf16.gmra.mrb[0].mxu0 %v11662
    %v11867 = vpop.f32.mrb[0].mxu0
    %v11868 = vadd.f32 %v11687, %v11867
    %v11869 = vpop.f32.mrb[0].mxu0
    %v11870 = vpop.f32.mrb[0].mxu0
    %v11871 = vadd.f32 %v11687, %v11870
    %v11872 = vpop.f32.mrb[0].mxu0
    %11873 = vmatprep.mubr.bf16.mxu0 0
    %11874 = vmatmul.mubr.bf16.gmra.mrb[0].mxu0 %v11663
    %v11875 = vpop.f32.mrb[0].mxu0
    %v11876 = vadd.f32 %v11687, %v11875
    %v11877 = vpop.f32.mrb[0].mxu0
    %v11878 = vpop.f32.mrb[0].mxu0
    %v11879 = vadd.f32 %v11687, %v11878
    %v11880 = vpop.f32.mrb[0].mxu0
    %11881 = vmatprep.mubr.bf16.mxu0 0
    %11882 = vmatmul.mubr.bf16.gmra.mrb[0].mxu0 %v11664
    %v11883 = vpop.f32.mrb[0].mxu0
    %v11884 = vadd.f32 %v11687, %v11883
    %v11885 = vpop.f32.mrb[0].mxu0
    %v11886 = vpop.f32.mrb[0].mxu0
    %v11887 = vadd.f32 %v11687, %v11886
    %v11888 = vpop.f32.mrb[0].mxu0
    %11889 = vmatprep.mubr.bf16.mxu0 0
    %11890 = vmatmul.mubr.bf16.gmra.mrb[0].mxu0 %v11665
    %v11891 = vpop.f32.mrb[0].mxu0
    %v11892 = vadd.f32 %v11687, %v11891
    %v11893 = vpop.f32.mrb[0].mxu0
    %v11894 = vpop.f32.mrb[0].mxu0
    %v11895 = vadd.f32 %v11687, %v11894
    %v11896 = vpop.f32.mrb[0].mxu0
    %11897 = vdwg.mxu0
    %11898 = vst [vmem:[#allocation16] sm:$0xff] %v11772
    %11899 = vst [vmem:[#allocation16 + $0x8] sm:$0xff] %v11775
    %11900 = vst [vmem:[#allocation16 + $0x10] sm:$0xff] %v11780
    %11901 = vst [vmem:[#allocation16 + $0x18] sm:$0xff] %v11783
    %11902 = vst [vmem:[#allocation16 + $0x20] sm:$0xff] %v11788
    %11903 = vst [vmem:[#allocation16 + $0x28] sm:$0xff] %v11791
    %11904 = vst [vmem:[#allocation16 + $0x30] sm:$0xff] %v11796
    %11905 = vst [vmem:[#allocation16 + $0x38] sm:$0xff] %v11799
    %11906 = vst [vmem:[#allocation16 + $0x40] sm:$0xff] %v11804
    %11907 = vst [vmem:[#allocation16 + $0x48] sm:$0xff] %v11807
    %11908 = vst [vmem:[#allocation16 + $0x50] sm:$0xff] %v11812
    %11909 = vst [vmem:[#allocation16 + $0x58] sm:$0xff] %v11815
    %11910 = vst [vmem:[#allocation16 + $0x60] sm:$0xff] %v11820
    %11911 = vst [vmem:[#allocation16 + $0x68] sm:$0xff] %v11823
    %11912 = vst [vmem:[#allocation16 + $0x70] sm:$0xff] %v11828
    %11913 = vst [vmem:[#allocation16 + $0x78] sm:$0xff] %v11831
    %11914 = vst [vmem:[#allocation16 + $0x80] sm:$0xff] %v11836
    %11915 = vst [vmem:[#allocation16 + $0x88] sm:$0xff] %v11839
    %11916 = vst [vmem:[#allocation16 + $0x90] sm:$0xff] %v11844
    %11917 = vst [vmem:[#allocation16 + $0x98] sm:$0xff] %v11847
    %11918 = vst [vmem:[#allocation16 + $0xa0] sm:$0xff] %v11852
    %11919 = vst [vmem:[#allocation16 + $0xa8] sm:$0xff] %v11855
    %11920 = vst [vmem:[#allocation16 + $0xb0] sm:$0xff] %v11860
    %11921 = vst [vmem:[#allocation16 + $0xb8] sm:$0xff] %v11863
    %11922 = vst [vmem:[#allocation16 + $0xc0] sm:$0xff] %v11868
    %11923 = vst [vmem:[#allocation16 + $0xc8] sm:$0xff] %v11871
    %11924 = vst [vmem:[#allocation16 + $0xd0] sm:$0xff] %v11876
    %11925 = vst [vmem:[#allocation16 + $0xd8] sm:$0xff] %v11879
    %11926 = vst [vmem:[#allocation16 + $0xe0] sm:$0xff] %v11884
    %11927 = vst [vmem:[#allocation16 + $0xe8] sm:$0xff] %v11887
    %11928 = vst [vmem:[#allocation16 + $0xf0] sm:$0xff] %v11892
    %11929 = vst [vmem:[#allocation16 + $0xf8] sm:$0xff] %v11895
    // Predicated region
    $region70: #{tpu_custom_call.1} parent=1 // pred_check
      _
    $region71: #{tpu_custom_call.1} parent=1 // pred_check_branch
      %11931 = sbr.rel (0) target = $region73
    $region72: #{tpu_custom_call.1} parent=1 // pred_region
      %s11933 = ssub.s32 4096, 4096
      %11934 = vsyncadd [#allocation4], %s11933
      %s11935 = sshll.u32 [#allocation16], 4
      %s11936 = int_to_ptr.vmem [resolvable:$true] %s11935
      %11941 = dma.vmem_to_hbm [thread:$0]  %s11936, 4096, %s9, [#allocation4], 128, 128, 8
    $region73: #{tpu_custom_call.1} parent=1 // pred_fallthru
      _
    // Predicated region
    $region74: #{tpu_custom_call.1} parent=1 // pred_check
      _
    $region75: #{tpu_custom_call.1} parent=1 // pred_check_branch
      %11943 = sbr.rel (0) target = $region77
    $region76: #{tpu_custom_call.1} parent=1 // pred_region
      %11944 = dma.done [#allocation4], 4096
    $region77: #{tpu_custom_call.1} parent=1 // pred_fallthru
      _
    %11945 = vsyncpa [#allocation3], 1
    %11946 = vsyncpa [#allocation6], 1
    %11947 = vsyncpa [#allocation9], 1
    %11948 = vsyncpa [#allocation12], 1
    %11949 = vsyncpa [#allocation15], 1
    %11950 = vsyncpa [#allocation4], 1

</llo_original>
